<compile_context>
chip_gen: v7x
topology: tpu7x:2x2x1
jax: 0.10.0
libtpu: 0.0.40
codegen_flags: <defaults>
</compile_context>

<pallas_src>
import functools

import jax
import jax.numpy as jnp
from jax import lax
from jax.experimental import pallas as pl
from jax.experimental.pallas import tpu as pltpu

# ---- scaled-down configuration, structurally identical to the PyTorch module ----
BATCH = 2
IN_SIZE = 16                                      # `inputsize` (64 in the original)
CFG_CNN = [(1, 16, 1, 1, 3), (16, 16, 1, 1, 3)]   # (in, out, stride, pad, kernel)
NUM_CLASSES = 9
CFG_FC = [32, NUM_CLASSES]
CFG_KERNEL = [IN_SIZE, IN_SIZE // 2, IN_SIZE // 4]
THRESH = 0.5
DECAY = 0.2
TIME_WINDOW = 4


# ------------------------------ fused kernel ----------------------------------

def _scnn_kernel(xstack_ref,    # (9*B, HW0)      im2col'd static input, rows (tap, b)
                 w1bd_ref,      # (C1*B, 9*B)     kron(conv1 taps, I_B)
                 b1_ref,        # (C1*B, 1)
                 pool1_ref,     # (HW0, HW1)      bf16 2x2 avg-pool matrix (0 / 0.25)
                 masks_ref,     # (9, 1, HW1)     border-validity masks per tap
                 w2cat_ref,     # (C2*B, 9*C1*B)  conv2: 9 taps stacked along K
                 b2_ref,        # (C2*B, 1)
                 mfc1_ref,      # (C2, HW1, F1)   fc1 weights with pool2 pre-folded
                 fb1_ref,       # (1, F1)
                 fw2_ref,       # (F1, F2)
                 fb2_ref,       # (1, F2)
                 out_ref,       # (B, F2)         h2_sumspike / time_window
                 *, num_steps, batch, h1):
    B = batch
    C1B, HW0 = xstack_ref.shape[0] // 9 * 0 + w1bd_ref.shape[0], xstack_ref.shape[1]
    C2B = w2cat_ref.shape[0]
    C2, HW1, F1 = mfc1_ref.shape
    F2 = fw2_ref.shape[1]
    f32 = jnp.float32

    # ---- loop-invariant work: the reference feeds the same static input every
    # time step, so conv1(x) is hoisted out of the time loop (one matmul). ----
    conv1 = jnp.dot(w1bd_ref[...], xstack_ref[...],
                    preferred_element_type=f32) + b1_ref[...]      # (C1B, HW0)

    pool1 = pool1_ref[...]          # bf16, exact {0, 0.25}
    w2cat = w2cat_ref[...]
    b2col = b2_ref[...]
    fb1 = fb1_ref[...]
    fw2 = fw2_ref[...]
    fb2 = fb2_ref[...]

    # Lane-roll amounts for the 9 conv2 halo taps, tap k = 3*ky + kx,
    # offset d = (ky-1)*W1 + (kx-1); jnp.roll convention -> shift = (-d) mod HW1.
    shifts = [(-((k // 3 - 1) * h1 + (k % 3 - 1))) % HW1 for k in range(9)]

    def step(_, state):
        (c1_mem, c1_spk, c2_mem, c2_spk,
         h1_mem, h1_spk, h1_sum, h2_mem, h2_spk, h2_sum) = state

        # ---- layer 1 LIF (strict `>` like the reference ActFun) ----
        c1_mem = c1_mem * (DECAY * (1.0 - c1_spk)) + conv1
        c1_spk = (c1_mem > THRESH).astype(f32)

        # ---- 2x2 avg-pool as one bf16 matmul (exact; f32 accumulate) ----
        pooled = jnp.dot(c1_spk.astype(jnp.bfloat16), pool1,
                         preferred_element_type=f32)               # (C1B, HW1)

        # ---- 3x3 halo taps: lane rolls (XLU) + border masks, stacked along K ----
        taps = []
        for k in range(9):
            rolled = pooled if shifts[k] == 0 else pltpu.roll(pooled, shifts[k], axis=1)
            taps.append(rolled * masks_ref[k])                     # (C1B, HW1)
        tapstack = jnp.concatenate(taps, axis=0)                   # (9*C1B, HW1)

        # ---- conv2: ONE block-diag-over-batch matmul with K = 9*C1*B ----
        conv2 = jnp.dot(w2cat, tapstack, preferred_element_type=f32) + b2col
        c2_mem = c2_mem * (DECAY * (1.0 - c2_spk)) + conv2
        c2_spk = (c2_mem > THRESH).astype(f32)

        # ---- fc1: second 2x2 pool pre-folded into mfc1; channel-major rows make
        # each per-channel slice a contiguous static view (no gathers) ----
        z1 = jnp.zeros((B, F1), f32) + fb1
        for c in range(C2):
            z1 = z1 + jnp.dot(c2_spk[c * B:(c + 1) * B, :], mfc1_ref[c],
                              preferred_element_type=f32)
        h1_mem = h1_mem * (DECAY * (1.0 - h1_spk)) + z1
        h1_spk = (h1_mem > THRESH).astype(f32)
        h1_sum = h1_sum + h1_spk

        # ---- fc2 ----
        z2 = jnp.dot(h1_spk, fw2, preferred_element_type=f32) + fb2
        h2_mem = h2_mem * (DECAY * (1.0 - h2_spk)) + z2
        h2_spk = (h2_mem > THRESH).astype(f32)
        h2_sum = h2_sum + h2_spk

        return (c1_mem, c1_spk, c2_mem, c2_spk,
                h1_mem, h1_spk, h1_sum, h2_mem, h2_spk, h2_sum)

    zz = jnp.zeros
    init = (zz((C1B, HW0), f32), zz((C1B, HW0), f32),
            zz((C2B, HW1), f32), zz((C2B, HW1), f32),
            zz((B, F1), f32), zz((B, F1), f32), zz((B, F1), f32),
            zz((B, F2), f32), zz((B, F2), f32), zz((B, F2), f32))

    final = lax.fori_loop(0, num_steps, step, init, unroll=True)
    out_ref[...] = final[-1] * (1.0 / num_steps)


# --------------------------- constant-matrix helpers --------------------------

def _pool_matrix_t(h_in, h_out):
    """(h_in^2, h_out^2): right-multiplying a (rows, h_in^2) map applies 2x2 avg-pool."""
    ii = jnp.arange(h_in * h_in)
    jj = jnp.arange(h_out * h_out)
    ih, iw = ii // h_in, ii % h_in
    oh, ow = jj // h_out, jj % h_out
    hit = (ih[:, None] // 2 == oh[None, :]) & (iw[:, None] // 2 == ow[None, :])
    return hit.astype(jnp.float32) * 0.25


def _tap_masks(h):
    """(9, 1, h*h) 0/1 masks: validity of the 3x3 tap offset (ky-1, kx-1) on an h x h map."""
    p = jnp.arange(h * h)
    oh, ow = p // h, p % h
    rows = []
    for ky in range(3):
        for kx in range(3):
            dy, dx = ky - 1, kx - 1
            valid = ((oh + dy >= 0) & (oh + dy < h) &
                     (ow + dx >= 0) & (ow + dx < h))
            rows.append(valid.astype(jnp.float32))
    return jnp.stack(rows, axis=0).reshape(9, 1, h * h)


def _full_spec(shape):
    nd = len(shape)
    return pl.BlockSpec(shape, lambda i, _nd=nd: (0,) * _nd)


# --------------------------------- wrapper ------------------------------------

@functools.partial(jax.jit, static_argnames=("time_window",))
def scnn_forward(x_nchw, params, time_window=TIME_WINDOW):
    """Replicates SCNN.forward: the static input is presented for `time_window` steps."""
    w1, b1, w2, b2, fw1, fb1, fw2, fb2 = params            # PyTorch layouts
    B = x_nchw.shape[0]
    H0, H1, H2 = CFG_KERNEL
    C1, C2 = CFG_CNN[0][1], CFG_CNN[1][1]
    F1, F2 = CFG_FC
    HW0, HW1, HW2 = H0 * H0, H1 * H1, H2 * H2
    f32 = jnp.float32
    eyeB = jnp.eye(B, dtype=f32)

    # im2col of the loop-invariant input (Cin == 1), rows ordered (tap, batch).
    xpad = jnp.pad(x_nchw.astype(f32)[:, 0], ((0, 0), (1, 1), (1, 1)))
    xstack = jnp.stack([xpad[:, ky:ky + H0, kx:kx + H0].reshape(B, HW0)
                        for ky in range(3) for kx in range(3)], axis=0)   # (9, B, HW0)
    xstack = xstack.reshape(9 * B, HW0)

    # conv1 as one block-diagonal matmul; state rows ordered (channel, batch).
    w1m = w1.reshape(C1, 9).astype(f32)
    w1bd = jnp.kron(w1m, eyeB)                             # (C1*B, 9*B)
    b1col = jnp.repeat(b1.astype(f32), B).reshape(C1 * B, 1)

    # conv2: per-tap (C2, C1) weights -> channel-major block-diag over batch,
    # all 9 taps concatenated along the contraction dim (K = 9*C1*B).
    w2t = jnp.transpose(w2.astype(f32), (2, 3, 0, 1)).reshape(9, C2, C1)
    w2cat = jnp.concatenate([jnp.kron(w2t[k], eyeB) for k in range(9)], axis=1)
    b2col = jnp.repeat(b2.astype(f32), B).reshape(C2 * B, 1)

    # 2x2 avg-pool matrices.  pool1 feeds the MXU against 0/1 spikes; bf16 is
    # exact for {0, 0.25}, so it gets bf16 MXU throughput with no drift.
    pool1 = _pool_matrix_t(H0, H1).astype(jnp.bfloat16)    # (HW0, HW1)
    masks = _tap_masks(H1)                                 # (9, 1, HW1)

    # fc1 with the second 2x2 pool folded in; PyTorch (c, h, w) flatten order.
    pool2t = _pool_matrix_t(H1, H2)                        # (HW1, HW2)
    fw1_3d = fw1.astype(f32).T.reshape(C2, HW2, F1)        # [c, hw2, f]
    mfc1 = jnp.einsum('pq,cqf->cpf', pool2t, fw1_3d)       # (C2, HW1, F1)
    fb1r = fb1.reshape(1, F1).astype(f32)
    fw2m = fw2.astype(f32).T                               # (F1, F2)
    fb2r = fb2.reshape(1, F2).astype(f32)

    operands = (xstack, w1bd, b1col, pool1, masks, w2cat, b2col,
                mfc1, fb1r, fw2m, fb2r)
    # All operands are loop-invariant and tiny (<0.3 MB total); with grid=(1,)
    # there is nothing to pipeline, so default buffering is irrelevant here.
    in_specs = [_full_spec(op.shape) for op in operands]
    out_specs = pl.BlockSpec((B, F2), lambda i: (0, 0))

    return pl.pallas_call(
        functools.partial(_scnn_kernel, num_steps=time_window, batch=B, h1=H1),
        grid=(1,),
        in_specs=in_specs,
        out_specs=out_specs,
        out_shape=jax.ShapeDtypeStruct((B, F2), f32),
        compiler_params=pltpu.CompilerParams(
            dimension_semantics=("arbitrary",)),
    )(*operands)


# ------------------------------ synthetic params ------------------------------

def init_params(key):
    """Parameters in PyTorch layouts: conv (Cout, Cin, k, k), linear (out, in)."""
    (cin1, c1, _, _, k1), (cin2, c2, _, _, k2) = CFG_CNN
    f1, f2 = CFG_FC
    fc_in = CFG_KERNEL[-1] * CFG_KERNEL[-1] * c2
    ks = jax.random.split(key, 8)

    def u(k, shape, fan_in):
        bound = 1.0 / (fan_in ** 0.5)
        return jax.random.uniform(k, shape, jnp.float32, -bound, bound)

    w1 = u(ks[0], (c1, cin1, k1, k1), cin1 * k1 * k1)
    b1 = u(ks[1], (c1,), cin1 * k1 * k1)
    w2 = u(ks[2], (c2, cin2, k2, k2), cin2 * k2 * k2)
    b2 = u(ks[3], (c2,), cin2 * k2 * k2)
    fw1 = u(ks[4], (f1, fc_in), fc_in)
    fb1 = u(ks[5], (f1,), fc_in)
    fw2 = u(ks[6], (f2, f1), f1)
    fb2 = u(ks[7], (f2,), f1)
    return (w1, b1, w2, b2, fw1, fb1, fw2, fb2)


if __name__ == "__main__":
    key = jax.random.PRNGKey(0)
    kp, kx = jax.random.split(key)
    params = init_params(kp)
    # PyTorch-convention NCHW input (batch, 1 channel, H, W)
    x = jax.random.uniform(kx, (BATCH, CFG_CNN[0][0], IN_SIZE, IN_SIZE),
                           dtype=jnp.float32)
    out = scnn_forward(x, params, time_window=TIME_WINDOW)
    out = jax.block_until_ready(out)
    assert out.shape == (BATCH, NUM_CLASSES)
    assert out.dtype == jnp.float32
    print("KERNEL_OK")
</pallas_src>

<mosaic_0001>
module attributes {stable_mosaic.version = 11 : i64} {
  func.func @_scnn_kernel(%arg0: i32, %arg1: memref<18x256xf32, #tpu.memory_space<vmem>>, %arg2: memref<32x18xf32, #tpu.memory_space<vmem>>, %arg3: memref<32x1xf32, #tpu.memory_space<vmem>>, %arg4: memref<256x64xbf16, #tpu.memory_space<vmem>>, %arg5: memref<9x1x64xf32, #tpu.memory_space<vmem>>, %arg6: memref<32x288xf32, #tpu.memory_space<vmem>>, %arg7: memref<32x1xf32, #tpu.memory_space<vmem>>, %arg8: memref<16x64x32xf32, #tpu.memory_space<vmem>>, %arg9: memref<1x32xf32, #tpu.memory_space<vmem>>, %arg10: memref<32x9xf32, #tpu.memory_space<vmem>>, %arg11: memref<1x9xf32, #tpu.memory_space<vmem>>, %arg12: memref<2x9xf32, #tpu.memory_space<vmem>>) attributes {dimension_semantics = [#tpu.dimension_semantics<arbitrary>], iteration_bounds = array<i64: 1>, scalar_prefetch = 0 : i64, scratch_operands = 0 : i64, tpu.core_type = #tpu.core_type<tc>, window_params = [{pipeline_mode = #tpu.pipeline_mode<synchronous>, transform_indices = @transform_0, window_bounds = array<i64: 18, 256>}, {pipeline_mode = #tpu.pipeline_mode<synchronous>, transform_indices = @transform_1, window_bounds = array<i64: 32, 18>}, {pipeline_mode = #tpu.pipeline_mode<synchronous>, transform_indices = @transform_2, window_bounds = array<i64: 32, 1>}, {pipeline_mode = #tpu.pipeline_mode<synchronous>, transform_indices = @transform_3, window_bounds = array<i64: 256, 64>}, {pipeline_mode = #tpu.pipeline_mode<synchronous>, transform_indices = @transform_4, window_bounds = array<i64: 9, 1, 64>}, {pipeline_mode = #tpu.pipeline_mode<synchronous>, transform_indices = @transform_5, window_bounds = array<i64: 32, 288>}, {pipeline_mode = #tpu.pipeline_mode<synchronous>, transform_indices = @transform_6, window_bounds = array<i64: 32, 1>}, {pipeline_mode = #tpu.pipeline_mode<synchronous>, transform_indices = @transform_7, window_bounds = array<i64: 16, 64, 32>}, {pipeline_mode = #tpu.pipeline_mode<synchronous>, transform_indices = @transform_8, window_bounds = array<i64: 1, 32>}, {pipeline_mode = #tpu.pipeline_mode<synchronous>, transform_indices = @transform_9, window_bounds = array<i64: 32, 9>}, {pipeline_mode = #tpu.pipeline_mode<synchronous>, transform_indices = @transform_10, window_bounds = array<i64: 1, 9>}, {pipeline_mode = #tpu.pipeline_mode<synchronous>, transform_indices = @transform_11, window_bounds = array<i64: 2, 9>}]} {
    %c0 = arith.constant 0 : index
    %c0_0 = arith.constant 0 : index
    %0 = vector.load %arg2[%c0, %c0_0] : memref<32x18xf32, #tpu.memory_space<vmem>>, vector<32x18xf32>
    %c0_1 = arith.constant 0 : index
    %c0_2 = arith.constant 0 : index
    %1 = vector.load %arg1[%c0_1, %c0_2] : memref<18x256xf32, #tpu.memory_space<vmem>>, vector<18x256xf32>
    %cst = arith.constant dense<0.000000e+00> : vector<32x256xf32>
    %2 = tpu.matmul %0, %1, %cst {dimension_numbers = #tpu.dot_dimension_numbers<[1], [0], [0], [1], [0, 0, 1, 1], [], []>} : vector<32x18xf32>, vector<18x256xf32>, vector<32x256xf32> -> vector<32x256xf32>
    %c0_3 = arith.constant 0 : index
    %c0_4 = arith.constant 0 : index
    %3 = vector.load %arg3[%c0_3, %c0_4] : memref<32x1xf32, #tpu.memory_space<vmem>>, vector<32x1xf32>
    %4 = vector.broadcast %3 : vector<32x1xf32> to vector<32x256xf32>
    %5 = arith.addf %2, %4 : vector<32x256xf32>
    %c0_5 = arith.constant 0 : index
    %c0_6 = arith.constant 0 : index
    %6 = vector.load %arg4[%c0_5, %c0_6] : memref<256x64xbf16, #tpu.memory_space<vmem>>, vector<256x64xbf16>
    %c0_7 = arith.constant 0 : index
    %c0_8 = arith.constant 0 : index
    %7 = vector.load %arg6[%c0_7, %c0_8] : memref<32x288xf32, #tpu.memory_space<vmem>>, vector<32x288xf32>
    %c0_9 = arith.constant 0 : index
    %c0_10 = arith.constant 0 : index
    %8 = vector.load %arg7[%c0_9, %c0_10] : memref<32x1xf32, #tpu.memory_space<vmem>>, vector<32x1xf32>
    %c0_11 = arith.constant 0 : index
    %c0_12 = arith.constant 0 : index
    %9 = vector.load %arg9[%c0_11, %c0_12] : memref<1x32xf32, #tpu.memory_space<vmem>>, vector<1x32xf32>
    %c0_13 = arith.constant 0 : index
    %c0_14 = arith.constant 0 : index
    %10 = vector.load %arg10[%c0_13, %c0_14] : memref<32x9xf32, #tpu.memory_space<vmem>>, vector<32x9xf32>
    %c0_15 = arith.constant 0 : index
    %c0_16 = arith.constant 0 : index
    %11 = vector.load %arg11[%c0_15, %c0_16] : memref<1x9xf32, #tpu.memory_space<vmem>>, vector<1x9xf32>
    %cst_17 = arith.constant 0.000000e+00 : f32
    %12 = vector.broadcast %cst_17 : f32 to vector<32x256xf32>
    %cst_18 = arith.constant 0.000000e+00 : f32
    %13 = vector.broadcast %cst_18 : f32 to vector<32x256xf32>
    %cst_19 = arith.constant 0.000000e+00 : f32
    %14 = vector.broadcast %cst_19 : f32 to vector<32x64xf32>
    %cst_20 = arith.constant 0.000000e+00 : f32
    %15 = vector.broadcast %cst_20 : f32 to vector<32x64xf32>
    %cst_21 = arith.constant 0.000000e+00 : f32
    %16 = vector.broadcast %cst_21 : f32 to vector<2x32xf32>
    %cst_22 = arith.constant 0.000000e+00 : f32
    %17 = vector.broadcast %cst_22 : f32 to vector<2x32xf32>
    %cst_23 = arith.constant 0.000000e+00 : f32
    %18 = vector.broadcast %cst_23 : f32 to vector<2x9xf32>
    %cst_24 = arith.constant 0.000000e+00 : f32
    %19 = vector.broadcast %cst_24 : f32 to vector<2x9xf32>
    %cst_25 = arith.constant 0.000000e+00 : f32
    %20 = vector.broadcast %cst_25 : f32 to vector<2x9xf32>
    %c0_i32 = arith.constant 0 : i32
    %cst_26 = arith.constant 1.000000e+00 : f32
    %21 = vector.broadcast %cst_26 : f32 to vector<32x256xf32>
    %22 = arith.subf %21, %13 : vector<32x256xf32>
    %cst_27 = arith.constant 2.000000e-01 : f32
    %23 = vector.broadcast %cst_27 : f32 to vector<32x256xf32>
    %24 = arith.mulf %23, %22 : vector<32x256xf32>
    %25 = arith.mulf %12, %24 : vector<32x256xf32>
    %26 = arith.addf %25, %5 : vector<32x256xf32>
    %cst_28 = arith.constant 5.000000e-01 : f32
    %27 = vector.broadcast %cst_28 : f32 to vector<32x256xf32>
    %28 = arith.cmpf ogt, %26, %27 : vector<32x256xf32>
    %29 = arith.extui %28 : vector<32x256xi1> to vector<32x256xi32>
    %30 = arith.sitofp %29 : vector<32x256xi32> to vector<32x256xf32>
    %31 = arith.truncf %30 : vector<32x256xf32> to vector<32x256xbf16>
    %cst_29 = arith.constant dense<0.000000e+00> : vector<32x64xf32>
    %32 = tpu.matmul %31, %6, %cst_29 {dimension_numbers = #tpu.dot_dimension_numbers<[1], [0], [0], [1], [0, 0, 1, 1], [], []>} : vector<32x256xbf16>, vector<256x64xbf16>, vector<32x64xf32> -> vector<32x64xf32>
    %c9_i32 = arith.constant 9 : i32
    %33 = tpu.dynamic_rotate %32 by %c9_i32 dim 1 : vector<32x64xf32>, i32 -> vector<32x64xf32>
    %c0_30 = arith.constant 0 : index
    %c0_31 = arith.constant 0 : index
    %c0_32 = arith.constant 0 : index
    %34 = vector.load %arg5[%c0_30, %c0_31, %c0_32] : memref<9x1x64xf32, #tpu.memory_space<vmem>>, vector<1x1x64xf32>
    %35 = vector.shape_cast %34 : vector<1x1x64xf32> to vector<1x64xf32>
    %36 = vector.broadcast %35 : vector<1x64xf32> to vector<32x64xf32>
    %37 = arith.mulf %33, %36 : vector<32x64xf32>
    %c8_i32 = arith.constant 8 : i32
    %38 = tpu.dynamic_rotate %32 by %c8_i32 dim 1 : vector<32x64xf32>, i32 -> vector<32x64xf32>
    %c1 = arith.constant 1 : index
    %c0_33 = arith.constant 0 : index
    %c0_34 = arith.constant 0 : index
    %39 = vector.load %arg5[%c1, %c0_33, %c0_34] : memref<9x1x64xf32, #tpu.memory_space<vmem>>, vector<1x1x64xf32>
    %40 = vector.shape_cast %39 : vector<1x1x64xf32> to vector<1x64xf32>
    %41 = vector.broadcast %40 : vector<1x64xf32> to vector<32x64xf32>
    %42 = arith.mulf %38, %41 : vector<32x64xf32>
    %c7_i32 = arith.constant 7 : i32
    %43 = tpu.dynamic_rotate %32 by %c7_i32 dim 1 : vector<32x64xf32>, i32 -> vector<32x64xf32>
    %c2 = arith.constant 2 : index
    %c0_35 = arith.constant 0 : index
    %c0_36 = arith.constant 0 : index
    %44 = vector.load %arg5[%c2, %c0_35, %c0_36] : memref<9x1x64xf32, #tpu.memory_space<vmem>>, vector<1x1x64xf32>
    %45 = vector.shape_cast %44 : vector<1x1x64xf32> to vector<1x64xf32>
    %46 = vector.broadcast %45 : vector<1x64xf32> to vector<32x64xf32>
    %47 = arith.mulf %43, %46 : vector<32x64xf32>
    %c1_i32 = arith.constant 1 : i32
    %48 = tpu.dynamic_rotate %32 by %c1_i32 dim 1 : vector<32x64xf32>, i32 -> vector<32x64xf32>
    %c3 = arith.constant 3 : index
    %c0_37 = arith.constant 0 : index
    %c0_38 = arith.constant 0 : index
    %49 = vector.load %arg5[%c3, %c0_37, %c0_38] : memref<9x1x64xf32, #tpu.memory_space<vmem>>, vector<1x1x64xf32>
    %50 = vector.shape_cast %49 : vector<1x1x64xf32> to vector<1x64xf32>
    %51 = vector.broadcast %50 : vector<1x64xf32> to vector<32x64xf32>
    %52 = arith.mulf %48, %51 : vector<32x64xf32>
    %c4 = arith.constant 4 : index
    %c0_39 = arith.constant 0 : index
    %c0_40 = arith.constant 0 : index
    %53 = vector.load %arg5[%c4, %c0_39, %c0_40] : memref<9x1x64xf32, #tpu.memory_space<vmem>>, vector<1x1x64xf32>
    %54 = vector.shape_cast %53 : vector<1x1x64xf32> to vector<1x64xf32>
    %55 = vector.broadcast %54 : vector<1x64xf32> to vector<32x64xf32>
    %56 = arith.mulf %32, %55 : vector<32x64xf32>
    %c63_i32 = arith.constant 63 : i32
    %57 = tpu.dynamic_rotate %32 by %c63_i32 dim 1 : vector<32x64xf32>, i32 -> vector<32x64xf32>
    %c5 = arith.constant 5 : index
    %c0_41 = arith.constant 0 : index
    %c0_42 = arith.constant 0 : index
    %58 = vector.load %arg5[%c5, %c0_41, %c0_42] : memref<9x1x64xf32, #tpu.memory_space<vmem>>, vector<1x1x64xf32>
    %59 = vector.shape_cast %58 : vector<1x1x64xf32> to vector<1x64xf32>
    %60 = vector.broadcast %59 : vector<1x64xf32> to vector<32x64xf32>
    %61 = arith.mulf %57, %60 : vector<32x64xf32>
    %c57_i32 = arith.constant 57 : i32
    %62 = tpu.dynamic_rotate %32 by %c57_i32 dim 1 : vector<32x64xf32>, i32 -> vector<32x64xf32>
    %c6 = arith.constant 6 : index
    %c0_43 = arith.constant 0 : index
    %c0_44 = arith.constant 0 : index
    %63 = vector.load %arg5[%c6, %c0_43, %c0_44] : memref<9x1x64xf32, #tpu.memory_space<vmem>>, vector<1x1x64xf32>
    %64 = vector.shape_cast %63 : vector<1x1x64xf32> to vector<1x64xf32>
    %65 = vector.broadcast %64 : vector<1x64xf32> to vector<32x64xf32>
    %66 = arith.mulf %62, %65 : vector<32x64xf32>
    %c56_i32 = arith.constant 56 : i32
    %67 = tpu.dynamic_rotate %32 by %c56_i32 dim 1 : vector<32x64xf32>, i32 -> vector<32x64xf32>
    %c7 = arith.constant 7 : index
    %c0_45 = arith.constant 0 : index
    %c0_46 = arith.constant 0 : index
    %68 = vector.load %arg5[%c7, %c0_45, %c0_46] : memref<9x1x64xf32, #tpu.memory_space<vmem>>, vector<1x1x64xf32>
    %69 = vector.shape_cast %68 : vector<1x1x64xf32> to vector<1x64xf32>
    %70 = vector.broadcast %69 : vector<1x64xf32> to vector<32x64xf32>
    %71 = arith.mulf %67, %70 : vector<32x64xf32>
    %c55_i32 = arith.constant 55 : i32
    %72 = tpu.dynamic_rotate %32 by %c55_i32 dim 1 : vector<32x64xf32>, i32 -> vector<32x64xf32>
    %c8 = arith.constant 8 : index
    %c0_47 = arith.constant 0 : index
    %c0_48 = arith.constant 0 : index
    %73 = vector.load %arg5[%c8, %c0_47, %c0_48] : memref<9x1x64xf32, #tpu.memory_space<vmem>>, vector<1x1x64xf32>
    %74 = vector.shape_cast %73 : vector<1x1x64xf32> to vector<1x64xf32>
    %75 = vector.broadcast %74 : vector<1x64xf32> to vector<32x64xf32>
    %76 = arith.mulf %72, %75 : vector<32x64xf32>
    %77 = tpu.concatenate %37, %42, %47, %52, %56, %61, %66, %71, %76 in 0 : vector<32x64xf32>, vector<32x64xf32>, vector<32x64xf32>, vector<32x64xf32>, vector<32x64xf32>, vector<32x64xf32>, vector<32x64xf32>, vector<32x64xf32>, vector<32x64xf32> -> vector<288x64xf32>
    %cst_49 = arith.constant dense<0.000000e+00> : vector<32x64xf32>
    %78 = tpu.matmul %7, %77, %cst_49 {dimension_numbers = #tpu.dot_dimension_numbers<[1], [0], [0], [1], [0, 0, 1, 1], [], []>} : vector<32x288xf32>, vector<288x64xf32>, vector<32x64xf32> -> vector<32x64xf32>
    %79 = vector.broadcast %8 : vector<32x1xf32> to vector<32x64xf32>
    %80 = arith.addf %78, %79 : vector<32x64xf32>
    %cst_50 = arith.constant 1.000000e+00 : f32
    %81 = vector.broadcast %cst_50 : f32 to vector<32x64xf32>
    %82 = arith.subf %81, %15 : vector<32x64xf32>
    %cst_51 = arith.constant 2.000000e-01 : f32
    %83 = vector.broadcast %cst_51 : f32 to vector<32x64xf32>
    %84 = arith.mulf %83, %82 : vector<32x64xf32>
    %85 = arith.mulf %14, %84 : vector<32x64xf32>
    %86 = arith.addf %85, %80 : vector<32x64xf32>
    %cst_52 = arith.constant 5.000000e-01 : f32
    %87 = vector.broadcast %cst_52 : f32 to vector<32x64xf32>
    %88 = arith.cmpf ogt, %86, %87 : vector<32x64xf32>
    %89 = arith.extui %88 : vector<32x64xi1> to vector<32x64xi32>
    %90 = arith.sitofp %89 : vector<32x64xi32> to vector<32x64xf32>
    %cst_53 = arith.constant 0.000000e+00 : f32
    %91 = vector.broadcast %cst_53 : f32 to vector<2x32xf32>
    %92 = vector.broadcast %9 : vector<1x32xf32> to vector<2x32xf32>
    %93 = arith.addf %91, %92 : vector<2x32xf32>
    %94 = vector.extract_strided_slice %90 {offsets = [0, 0], sizes = [2, 64], strides = [1, 1]} : vector<32x64xf32> to vector<2x64xf32>
    %c0_54 = arith.constant 0 : index
    %c0_55 = arith.constant 0 : index
    %c0_56 = arith.constant 0 : index
    %95 = vector.load %arg8[%c0_54, %c0_55, %c0_56] : memref<16x64x32xf32, #tpu.memory_space<vmem>>, vector<1x64x32xf32>
    %96 = vector.shape_cast %95 : vector<1x64x32xf32> to vector<64x32xf32>
    %cst_57 = arith.constant dense<0.000000e+00> : vector<2x32xf32>
    %97 = tpu.matmul %94, %96, %cst_57 {dimension_numbers = #tpu.dot_dimension_numbers<[1], [0], [0], [1], [0, 0, 1, 1], [], []>} : vector<2x64xf32>, vector<64x32xf32>, vector<2x32xf32> -> vector<2x32xf32>
    %98 = arith.addf %93, %97 : vector<2x32xf32>
    %99 = vector.extract_strided_slice %90 {offsets = [2, 0], sizes = [2, 64], strides = [1, 1]} : vector<32x64xf32> to vector<2x64xf32>
    %c1_58 = arith.constant 1 : index
    %c0_59 = arith.constant 0 : index
    %c0_60 = arith.constant 0 : index
    %100 = vector.load %arg8[%c1_58, %c0_59, %c0_60] : memref<16x64x32xf32, #tpu.memory_space<vmem>>, vector<1x64x32xf32>
    %101 = vector.shape_cast %100 : vector<1x64x32xf32> to vector<64x32xf32>
    %cst_61 = arith.constant dense<0.000000e+00> : vector<2x32xf32>
    %102 = tpu.matmul %99, %101, %cst_61 {dimension_numbers = #tpu.dot_dimension_numbers<[1], [0], [0], [1], [0, 0, 1, 1], [], []>} : vector<2x64xf32>, vector<64x32xf32>, vector<2x32xf32> -> vector<2x32xf32>
    %103 = arith.addf %98, %102 : vector<2x32xf32>
    %104 = vector.extract_strided_slice %90 {offsets = [4, 0], sizes = [2, 64], strides = [1, 1]} : vector<32x64xf32> to vector<2x64xf32>
    %c2_62 = arith.constant 2 : index
    %c0_63 = arith.constant 0 : index
    %c0_64 = arith.constant 0 : index
    %105 = vector.load %arg8[%c2_62, %c0_63, %c0_64] : memref<16x64x32xf32, #tpu.memory_space<vmem>>, vector<1x64x32xf32>
    %106 = vector.shape_cast %105 : vector<1x64x32xf32> to vector<64x32xf32>
    %cst_65 = arith.constant dense<0.000000e+00> : vector<2x32xf32>
    %107 = tpu.matmul %104, %106, %cst_65 {dimension_numbers = #tpu.dot_dimension_numbers<[1], [0], [0], [1], [0, 0, 1, 1], [], []>} : vector<2x64xf32>, vector<64x32xf32>, vector<2x32xf32> -> vector<2x32xf32>
    %108 = arith.addf %103, %107 : vector<2x32xf32>
    %109 = vector.extract_strided_slice %90 {offsets = [6, 0], sizes = [2, 64], strides = [1, 1]} : vector<32x64xf32> to vector<2x64xf32>
    %c3_66 = arith.constant 3 : index
    %c0_67 = arith.constant 0 : index
    %c0_68 = arith.constant 0 : index
    %110 = vector.load %arg8[%c3_66, %c0_67, %c0_68] : memref<16x64x32xf32, #tpu.memory_space<vmem>>, vector<1x64x32xf32>
    %111 = vector.shape_cast %110 : vector<1x64x32xf32> to vector<64x32xf32>
    %cst_69 = arith.constant dense<0.000000e+00> : vector<2x32xf32>
    %112 = tpu.matmul %109, %111, %cst_69 {dimension_numbers = #tpu.dot_dimension_numbers<[1], [0], [0], [1], [0, 0, 1, 1], [], []>} : vector<2x64xf32>, vector<64x32xf32>, vector<2x32xf32> -> vector<2x32xf32>
    %113 = arith.addf %108, %112 : vector<2x32xf32>
    %114 = vector.extract_strided_slice %90 {offsets = [8, 0], sizes = [2, 64], strides = [1, 1]} : vector<32x64xf32> to vector<2x64xf32>
    %c4_70 = arith.constant 4 : index
    %c0_71 = arith.constant 0 : index
    %c0_72 = arith.constant 0 : index
    %115 = vector.load %arg8[%c4_70, %c0_71, %c0_72] : memref<16x64x32xf32, #tpu.memory_space<vmem>>, vector<1x64x32xf32>
    %116 = vector.shape_cast %115 : vector<1x64x32xf32> to vector<64x32xf32>
    %cst_73 = arith.constant dense<0.000000e+00> : vector<2x32xf32>
    %117 = tpu.matmul %114, %116, %cst_73 {dimension_numbers = #tpu.dot_dimension_numbers<[1], [0], [0], [1], [0, 0, 1, 1], [], []>} : vector<2x64xf32>, vector<64x32xf32>, vector<2x32xf32> -> vector<2x32xf32>
    %118 = arith.addf %113, %117 : vector<2x32xf32>
    %119 = vector.extract_strided_slice %90 {offsets = [10, 0], sizes = [2, 64], strides = [1, 1]} : vector<32x64xf32> to vector<2x64xf32>
    %c5_74 = arith.constant 5 : index
    %c0_75 = arith.constant 0 : index
    %c0_76 = arith.constant 0 : index
    %120 = vector.load %arg8[%c5_74, %c0_75, %c0_76] : memref<16x64x32xf32, #tpu.memory_space<vmem>>, vector<1x64x32xf32>
    %121 = vector.shape_cast %120 : vector<1x64x32xf32> to vector<64x32xf32>
    %cst_77 = arith.constant dense<0.000000e+00> : vector<2x32xf32>
    %122 = tpu.matmul %119, %121, %cst_77 {dimension_numbers = #tpu.dot_dimension_numbers<[1], [0], [0], [1], [0, 0, 1, 1], [], []>} : vector<2x64xf32>, vector<64x32xf32>, vector<2x32xf32> -> vector<2x32xf32>
    %123 = arith.addf %118, %122 : vector<2x32xf32>
    %124 = vector.extract_strided_slice %90 {offsets = [12, 0], sizes = [2, 64], strides = [1, 1]} : vector<32x64xf32> to vector<2x64xf32>
    %c6_78 = arith.constant 6 : index
    %c0_79 = arith.constant 0 : index
    %c0_80 = arith.constant 0 : index
    %125 = vector.load %arg8[%c6_78, %c0_79, %c0_80] : memref<16x64x32xf32, #tpu.memory_space<vmem>>, vector<1x64x32xf32>
    %126 = vector.shape_cast %125 : vector<1x64x32xf32> to vector<64x32xf32>
    %cst_81 = arith.constant dense<0.000000e+00> : vector<2x32xf32>
    %127 = tpu.matmul %124, %126, %cst_81 {dimension_numbers = #tpu.dot_dimension_numbers<[1], [0], [0], [1], [0, 0, 1, 1], [], []>} : vector<2x64xf32>, vector<64x32xf32>, vector<2x32xf32> -> vector<2x32xf32>
    %128 = arith.addf %123, %127 : vector<2x32xf32>
    %129 = vector.extract_strided_slice %90 {offsets = [14, 0], sizes = [2, 64], strides = [1, 1]} : vector<32x64xf32> to vector<2x64xf32>
    %c7_82 = arith.constant 7 : index
    %c0_83 = arith.constant 0 : index
    %c0_84 = arith.constant 0 : index
    %130 = vector.load %arg8[%c7_82, %c0_83, %c0_84] : memref<16x64x32xf32, #tpu.memory_space<vmem>>, vector<1x64x32xf32>
    %131 = vector.shape_cast %130 : vector<1x64x32xf32> to vector<64x32xf32>
    %cst_85 = arith.constant dense<0.000000e+00> : vector<2x32xf32>
    %132 = tpu.matmul %129, %131, %cst_85 {dimension_numbers = #tpu.dot_dimension_numbers<[1], [0], [0], [1], [0, 0, 1, 1], [], []>} : vector<2x64xf32>, vector<64x32xf32>, vector<2x32xf32> -> vector<2x32xf32>
    %133 = arith.addf %128, %132 : vector<2x32xf32>
    %134 = vector.extract_strided_slice %90 {offsets = [16, 0], sizes = [2, 64], strides = [1, 1]} : vector<32x64xf32> to vector<2x64xf32>
    %c8_86 = arith.constant 8 : index
    %c0_87 = arith.constant 0 : index
    %c0_88 = arith.constant 0 : index
    %135 = vector.load %arg8[%c8_86, %c0_87, %c0_88] : memref<16x64x32xf32, #tpu.memory_space<vmem>>, vector<1x64x32xf32>
    %136 = vector.shape_cast %135 : vector<1x64x32xf32> to vector<64x32xf32>
    %cst_89 = arith.constant dense<0.000000e+00> : vector<2x32xf32>
    %137 = tpu.matmul %134, %136, %cst_89 {dimension_numbers = #tpu.dot_dimension_numbers<[1], [0], [0], [1], [0, 0, 1, 1], [], []>} : vector<2x64xf32>, vector<64x32xf32>, vector<2x32xf32> -> vector<2x32xf32>
    %138 = arith.addf %133, %137 : vector<2x32xf32>
    %139 = vector.extract_strided_slice %90 {offsets = [18, 0], sizes = [2, 64], strides = [1, 1]} : vector<32x64xf32> to vector<2x64xf32>
    %c9 = arith.constant 9 : index
    %c0_90 = arith.constant 0 : index
    %c0_91 = arith.constant 0 : index
    %140 = vector.load %arg8[%c9, %c0_90, %c0_91] : memref<16x64x32xf32, #tpu.memory_space<vmem>>, vector<1x64x32xf32>
    %141 = vector.shape_cast %140 : vector<1x64x32xf32> to vector<64x32xf32>
    %cst_92 = arith.constant dense<0.000000e+00> : vector<2x32xf32>
    %142 = tpu.matmul %139, %141, %cst_92 {dimension_numbers = #tpu.dot_dimension_numbers<[1], [0], [0], [1], [0, 0, 1, 1], [], []>} : vector<2x64xf32>, vector<64x32xf32>, vector<2x32xf32> -> vector<2x32xf32>
    %143 = arith.addf %138, %142 : vector<2x32xf32>
    %144 = vector.extract_strided_slice %90 {offsets = [20, 0], sizes = [2, 64], strides = [1, 1]} : vector<32x64xf32> to vector<2x64xf32>
    %c10 = arith.constant 10 : index
    %c0_93 = arith.constant 0 : index
    %c0_94 = arith.constant 0 : index
    %145 = vector.load %arg8[%c10, %c0_93, %c0_94] : memref<16x64x32xf32, #tpu.memory_space<vmem>>, vector<1x64x32xf32>
    %146 = vector.shape_cast %145 : vector<1x64x32xf32> to vector<64x32xf32>
    %cst_95 = arith.constant dense<0.000000e+00> : vector<2x32xf32>
    %147 = tpu.matmul %144, %146, %cst_95 {dimension_numbers = #tpu.dot_dimension_numbers<[1], [0], [0], [1], [0, 0, 1, 1], [], []>} : vector<2x64xf32>, vector<64x32xf32>, vector<2x32xf32> -> vector<2x32xf32>
    %148 = arith.addf %143, %147 : vector<2x32xf32>
    %149 = vector.extract_strided_slice %90 {offsets = [22, 0], sizes = [2, 64], strides = [1, 1]} : vector<32x64xf32> to vector<2x64xf32>
    %c11 = arith.constant 11 : index
    %c0_96 = arith.constant 0 : index
    %c0_97 = arith.constant 0 : index
    %150 = vector.load %arg8[%c11, %c0_96, %c0_97] : memref<16x64x32xf32, #tpu.memory_space<vmem>>, vector<1x64x32xf32>
    %151 = vector.shape_cast %150 : vector<1x64x32xf32> to vector<64x32xf32>
    %cst_98 = arith.constant dense<0.000000e+00> : vector<2x32xf32>
    %152 = tpu.matmul %149, %151, %cst_98 {dimension_numbers = #tpu.dot_dimension_numbers<[1], [0], [0], [1], [0, 0, 1, 1], [], []>} : vector<2x64xf32>, vector<64x32xf32>, vector<2x32xf32> -> vector<2x32xf32>
    %153 = arith.addf %148, %152 : vector<2x32xf32>
    %154 = vector.extract_strided_slice %90 {offsets = [24, 0], sizes = [2, 64], strides = [1, 1]} : vector<32x64xf32> to vector<2x64xf32>
    %c12 = arith.constant 12 : index
    %c0_99 = arith.constant 0 : index
    %c0_100 = arith.constant 0 : index
    %155 = vector.load %arg8[%c12, %c0_99, %c0_100] : memref<16x64x32xf32, #tpu.memory_space<vmem>>, vector<1x64x32xf32>
    %156 = vector.shape_cast %155 : vector<1x64x32xf32> to vector<64x32xf32>
    %cst_101 = arith.constant dense<0.000000e+00> : vector<2x32xf32>
    %157 = tpu.matmul %154, %156, %cst_101 {dimension_numbers = #tpu.dot_dimension_numbers<[1], [0], [0], [1], [0, 0, 1, 1], [], []>} : vector<2x64xf32>, vector<64x32xf32>, vector<2x32xf32> -> vector<2x32xf32>
    %158 = arith.addf %153, %157 : vector<2x32xf32>
    %159 = vector.extract_strided_slice %90 {offsets = [26, 0], sizes = [2, 64], strides = [1, 1]} : vector<32x64xf32> to vector<2x64xf32>
    %c13 = arith.constant 13 : index
    %c0_102 = arith.constant 0 : index
    %c0_103 = arith.constant 0 : index
    %160 = vector.load %arg8[%c13, %c0_102, %c0_103] : memref<16x64x32xf32, #tpu.memory_space<vmem>>, vector<1x64x32xf32>
    %161 = vector.shape_cast %160 : vector<1x64x32xf32> to vector<64x32xf32>
    %cst_104 = arith.constant dense<0.000000e+00> : vector<2x32xf32>
    %162 = tpu.matmul %159, %161, %cst_104 {dimension_numbers = #tpu.dot_dimension_numbers<[1], [0], [0], [1], [0, 0, 1, 1], [], []>} : vector<2x64xf32>, vector<64x32xf32>, vector<2x32xf32> -> vector<2x32xf32>
    %163 = arith.addf %158, %162 : vector<2x32xf32>
    %164 = vector.extract_strided_slice %90 {offsets = [28, 0], sizes = [2, 64], strides = [1, 1]} : vector<32x64xf32> to vector<2x64xf32>
    %c14 = arith.constant 14 : index
    %c0_105 = arith.constant 0 : index
    %c0_106 = arith.constant 0 : index
    %165 = vector.load %arg8[%c14, %c0_105, %c0_106] : memref<16x64x32xf32, #tpu.memory_space<vmem>>, vector<1x64x32xf32>
    %166 = vector.shape_cast %165 : vector<1x64x32xf32> to vector<64x32xf32>
    %cst_107 = arith.constant dense<0.000000e+00> : vector<2x32xf32>
    %167 = tpu.matmul %164, %166, %cst_107 {dimension_numbers = #tpu.dot_dimension_numbers<[1], [0], [0], [1], [0, 0, 1, 1], [], []>} : vector<2x64xf32>, vector<64x32xf32>, vector<2x32xf32> -> vector<2x32xf32>
    %168 = arith.addf %163, %167 : vector<2x32xf32>
    %169 = vector.extract_strided_slice %90 {offsets = [30, 0], sizes = [2, 64], strides = [1, 1]} : vector<32x64xf32> to vector<2x64xf32>
    %c15 = arith.constant 15 : index
    %c0_108 = arith.constant 0 : index
    %c0_109 = arith.constant 0 : index
    %170 = vector.load %arg8[%c15, %c0_108, %c0_109] : memref<16x64x32xf32, #tpu.memory_space<vmem>>, vector<1x64x32xf32>
    %171 = vector.shape_cast %170 : vector<1x64x32xf32> to vector<64x32xf32>
    %cst_110 = arith.constant dense<0.000000e+00> : vector<2x32xf32>
    %172 = tpu.matmul %169, %171, %cst_110 {dimension_numbers = #tpu.dot_dimension_numbers<[1], [0], [0], [1], [0, 0, 1, 1], [], []>} : vector<2x64xf32>, vector<64x32xf32>, vector<2x32xf32> -> vector<2x32xf32>
    %173 = arith.addf %168, %172 : vector<2x32xf32>
    %cst_111 = arith.constant 1.000000e+00 : f32
    %174 = vector.broadcast %cst_111 : f32 to vector<2x32xf32>
    %175 = arith.subf %174, %17 : vector<2x32xf32>
    %cst_112 = arith.constant 2.000000e-01 : f32
    %176 = vector.broadcast %cst_112 : f32 to vector<2x32xf32>
    %177 = arith.mulf %176, %175 : vector<2x32xf32>
    %178 = arith.mulf %16, %177 : vector<2x32xf32>
    %179 = arith.addf %178, %173 : vector<2x32xf32>
    %cst_113 = arith.constant 5.000000e-01 : f32
    %180 = vector.broadcast %cst_113 : f32 to vector<2x32xf32>
    %181 = arith.cmpf ogt, %179, %180 : vector<2x32xf32>
    %182 = arith.extui %181 : vector<2x32xi1> to vector<2x32xi32>
    %183 = arith.sitofp %182 : vector<2x32xi32> to vector<2x32xf32>
    %cst_114 = arith.constant dense<0.000000e+00> : vector<2x9xf32>
    %184 = tpu.matmul %183, %10, %cst_114 {dimension_numbers = #tpu.dot_dimension_numbers<[1], [0], [0], [1], [0, 0, 1, 1], [], []>} : vector<2x32xf32>, vector<32x9xf32>, vector<2x9xf32> -> vector<2x9xf32>
    %185 = vector.broadcast %11 : vector<1x9xf32> to vector<2x9xf32>
    %186 = arith.addf %184, %185 : vector<2x9xf32>
    %cst_115 = arith.constant 1.000000e+00 : f32
    %187 = vector.broadcast %cst_115 : f32 to vector<2x9xf32>
    %188 = arith.subf %187, %19 : vector<2x9xf32>
    %cst_116 = arith.constant 2.000000e-01 : f32
    %189 = vector.broadcast %cst_116 : f32 to vector<2x9xf32>
    %190 = arith.mulf %189, %188 : vector<2x9xf32>
    %191 = arith.mulf %18, %190 : vector<2x9xf32>
    %192 = arith.addf %191, %186 : vector<2x9xf32>
    %cst_117 = arith.constant 5.000000e-01 : f32
    %193 = vector.broadcast %cst_117 : f32 to vector<2x9xf32>
    %194 = arith.cmpf ogt, %192, %193 : vector<2x9xf32>
    %195 = arith.extui %194 : vector<2x9xi1> to vector<2x9xi32>
    %196 = arith.sitofp %195 : vector<2x9xi32> to vector<2x9xf32>
    %197 = arith.addf %20, %196 : vector<2x9xf32>
    %c1_i32_118 = arith.constant 1 : i32
    %cst_119 = arith.constant 1.000000e+00 : f32
    %198 = vector.broadcast %cst_119 : f32 to vector<32x256xf32>
    %199 = arith.subf %198, %30 : vector<32x256xf32>
    %cst_120 = arith.constant 2.000000e-01 : f32
    %200 = vector.broadcast %cst_120 : f32 to vector<32x256xf32>
    %201 = arith.mulf %200, %199 : vector<32x256xf32>
    %202 = arith.mulf %26, %201 : vector<32x256xf32>
    %203 = arith.addf %202, %5 : vector<32x256xf32>
    %cst_121 = arith.constant 5.000000e-01 : f32
    %204 = vector.broadcast %cst_121 : f32 to vector<32x256xf32>
    %205 = arith.cmpf ogt, %203, %204 : vector<32x256xf32>
    %206 = arith.extui %205 : vector<32x256xi1> to vector<32x256xi32>
    %207 = arith.sitofp %206 : vector<32x256xi32> to vector<32x256xf32>
    %208 = arith.truncf %207 : vector<32x256xf32> to vector<32x256xbf16>
    %cst_122 = arith.constant dense<0.000000e+00> : vector<32x64xf32>
    %209 = tpu.matmul %208, %6, %cst_122 {dimension_numbers = #tpu.dot_dimension_numbers<[1], [0], [0], [1], [0, 0, 1, 1], [], []>} : vector<32x256xbf16>, vector<256x64xbf16>, vector<32x64xf32> -> vector<32x64xf32>
    %c9_i32_123 = arith.constant 9 : i32
    %210 = tpu.dynamic_rotate %209 by %c9_i32_123 dim 1 : vector<32x64xf32>, i32 -> vector<32x64xf32>
    %c0_124 = arith.constant 0 : index
    %c0_125 = arith.constant 0 : index
    %c0_126 = arith.constant 0 : index
    %211 = vector.load %arg5[%c0_124, %c0_125, %c0_126] : memref<9x1x64xf32, #tpu.memory_space<vmem>>, vector<1x1x64xf32>
    %212 = vector.shape_cast %211 : vector<1x1x64xf32> to vector<1x64xf32>
    %213 = vector.broadcast %212 : vector<1x64xf32> to vector<32x64xf32>
    %214 = arith.mulf %210, %213 : vector<32x64xf32>
    %c8_i32_127 = arith.constant 8 : i32
    %215 = tpu.dynamic_rotate %209 by %c8_i32_127 dim 1 : vector<32x64xf32>, i32 -> vector<32x64xf32>
    %c1_128 = arith.constant 1 : index
    %c0_129 = arith.constant 0 : index
    %c0_130 = arith.constant 0 : index
    %216 = vector.load %arg5[%c1_128, %c0_129, %c0_130] : memref<9x1x64xf32, #tpu.memory_space<vmem>>, vector<1x1x64xf32>
    %217 = vector.shape_cast %216 : vector<1x1x64xf32> to vector<1x64xf32>
    %218 = vector.broadcast %217 : vector<1x64xf32> to vector<32x64xf32>
    %219 = arith.mulf %215, %218 : vector<32x64xf32>
    %c7_i32_131 = arith.constant 7 : i32
    %220 = tpu.dynamic_rotate %209 by %c7_i32_131 dim 1 : vector<32x64xf32>, i32 -> vector<32x64xf32>
    %c2_132 = arith.constant 2 : index
    %c0_133 = arith.constant 0 : index
    %c0_134 = arith.constant 0 : index
    %221 = vector.load %arg5[%c2_132, %c0_133, %c0_134] : memref<9x1x64xf32, #tpu.memory_space<vmem>>, vector<1x1x64xf32>
    %222 = vector.shape_cast %221 : vector<1x1x64xf32> to vector<1x64xf32>
    %223 = vector.broadcast %222 : vector<1x64xf32> to vector<32x64xf32>
    %224 = arith.mulf %220, %223 : vector<32x64xf32>
    %c1_i32_135 = arith.constant 1 : i32
    %225 = tpu.dynamic_rotate %209 by %c1_i32_135 dim 1 : vector<32x64xf32>, i32 -> vector<32x64xf32>
    %c3_136 = arith.constant 3 : index
    %c0_137 = arith.constant 0 : index
    %c0_138 = arith.constant 0 : index
    %226 = vector.load %arg5[%c3_136, %c0_137, %c0_138] : memref<9x1x64xf32, #tpu.memory_space<vmem>>, vector<1x1x64xf32>
    %227 = vector.shape_cast %226 : vector<1x1x64xf32> to vector<1x64xf32>
    %228 = vector.broadcast %227 : vector<1x64xf32> to vector<32x64xf32>
    %229 = arith.mulf %225, %228 : vector<32x64xf32>
    %c4_139 = arith.constant 4 : index
    %c0_140 = arith.constant 0 : index
    %c0_141 = arith.constant 0 : index
    %230 = vector.load %arg5[%c4_139, %c0_140, %c0_141] : memref<9x1x64xf32, #tpu.memory_space<vmem>>, vector<1x1x64xf32>
    %231 = vector.shape_cast %230 : vector<1x1x64xf32> to vector<1x64xf32>
    %232 = vector.broadcast %231 : vector<1x64xf32> to vector<32x64xf32>
    %233 = arith.mulf %209, %232 : vector<32x64xf32>
    %c63_i32_142 = arith.constant 63 : i32
    %234 = tpu.dynamic_rotate %209 by %c63_i32_142 dim 1 : vector<32x64xf32>, i32 -> vector<32x64xf32>
    %c5_143 = arith.constant 5 : index
    %c0_144 = arith.constant 0 : index
    %c0_145 = arith.constant 0 : index
    %235 = vector.load %arg5[%c5_143, %c0_144, %c0_145] : memref<9x1x64xf32, #tpu.memory_space<vmem>>, vector<1x1x64xf32>
    %236 = vector.shape_cast %235 : vector<1x1x64xf32> to vector<1x64xf32>
    %237 = vector.broadcast %236 : vector<1x64xf32> to vector<32x64xf32>
    %238 = arith.mulf %234, %237 : vector<32x64xf32>
    %c57_i32_146 = arith.constant 57 : i32
    %239 = tpu.dynamic_rotate %209 by %c57_i32_146 dim 1 : vector<32x64xf32>, i32 -> vector<32x64xf32>
    %c6_147 = arith.constant 6 : index
    %c0_148 = arith.constant 0 : index
    %c0_149 = arith.constant 0 : index
    %240 = vector.load %arg5[%c6_147, %c0_148, %c0_149] : memref<9x1x64xf32, #tpu.memory_space<vmem>>, vector<1x1x64xf32>
    %241 = vector.shape_cast %240 : vector<1x1x64xf32> to vector<1x64xf32>
    %242 = vector.broadcast %241 : vector<1x64xf32> to vector<32x64xf32>
    %243 = arith.mulf %239, %242 : vector<32x64xf32>
    %c56_i32_150 = arith.constant 56 : i32
    %244 = tpu.dynamic_rotate %209 by %c56_i32_150 dim 1 : vector<32x64xf32>, i32 -> vector<32x64xf32>
    %c7_151 = arith.constant 7 : index
    %c0_152 = arith.constant 0 : index
    %c0_153 = arith.constant 0 : index
    %245 = vector.load %arg5[%c7_151, %c0_152, %c0_153] : memref<9x1x64xf32, #tpu.memory_space<vmem>>, vector<1x1x64xf32>
    %246 = vector.shape_cast %245 : vector<1x1x64xf32> to vector<1x64xf32>
    %247 = vector.broadcast %246 : vector<1x64xf32> to vector<32x64xf32>
    %248 = arith.mulf %244, %247 : vector<32x64xf32>
    %c55_i32_154 = arith.constant 55 : i32
    %249 = tpu.dynamic_rotate %209 by %c55_i32_154 dim 1 : vector<32x64xf32>, i32 -> vector<32x64xf32>
    %c8_155 = arith.constant 8 : index
    %c0_156 = arith.constant 0 : index
    %c0_157 = arith.constant 0 : index
    %250 = vector.load %arg5[%c8_155, %c0_156, %c0_157] : memref<9x1x64xf32, #tpu.memory_space<vmem>>, vector<1x1x64xf32>
    %251 = vector.shape_cast %250 : vector<1x1x64xf32> to vector<1x64xf32>
    %252 = vector.broadcast %251 : vector<1x64xf32> to vector<32x64xf32>
    %253 = arith.mulf %249, %252 : vector<32x64xf32>
    %254 = tpu.concatenate %214, %219, %224, %229, %233, %238, %243, %248, %253 in 0 : vector<32x64xf32>, vector<32x64xf32>, vector<32x64xf32>, vector<32x64xf32>, vector<32x64xf32>, vector<32x64xf32>, vector<32x64xf32>, vector<32x64xf32>, vector<32x64xf32> -> vector<288x64xf32>
    %cst_158 = arith.constant dense<0.000000e+00> : vector<32x64xf32>
    %255 = tpu.matmul %7, %254, %cst_158 {dimension_numbers = #tpu.dot_dimension_numbers<[1], [0], [0], [1], [0, 0, 1, 1], [], []>} : vector<32x288xf32>, vector<288x64xf32>, vector<32x64xf32> -> vector<32x64xf32>
    %256 = vector.broadcast %8 : vector<32x1xf32> to vector<32x64xf32>
    %257 = arith.addf %255, %256 : vector<32x64xf32>
    %cst_159 = arith.constant 1.000000e+00 : f32
    %258 = vector.broadcast %cst_159 : f32 to vector<32x64xf32>
    %259 = arith.subf %258, %90 : vector<32x64xf32>
    %cst_160 = arith.constant 2.000000e-01 : f32
    %260 = vector.broadcast %cst_160 : f32 to vector<32x64xf32>
    %261 = arith.mulf %260, %259 : vector<32x64xf32>
    %262 = arith.mulf %86, %261 : vector<32x64xf32>
    %263 = arith.addf %262, %257 : vector<32x64xf32>
    %cst_161 = arith.constant 5.000000e-01 : f32
    %264 = vector.broadcast %cst_161 : f32 to vector<32x64xf32>
    %265 = arith.cmpf ogt, %263, %264 : vector<32x64xf32>
    %266 = arith.extui %265 : vector<32x64xi1> to vector<32x64xi32>
    %267 = arith.sitofp %266 : vector<32x64xi32> to vector<32x64xf32>
    %cst_162 = arith.constant 0.000000e+00 : f32
    %268 = vector.broadcast %cst_162 : f32 to vector<2x32xf32>
    %269 = vector.broadcast %9 : vector<1x32xf32> to vector<2x32xf32>
    %270 = arith.addf %268, %269 : vector<2x32xf32>
    %271 = vector.extract_strided_slice %267 {offsets = [0, 0], sizes = [2, 64], strides = [1, 1]} : vector<32x64xf32> to vector<2x64xf32>
    %c0_163 = arith.constant 0 : index
    %c0_164 = arith.constant 0 : index
    %c0_165 = arith.constant 0 : index
    %272 = vector.load %arg8[%c0_163, %c0_164, %c0_165] : memref<16x64x32xf32, #tpu.memory_space<vmem>>, vector<1x64x32xf32>
    %273 = vector.shape_cast %272 : vector<1x64x32xf32> to vector<64x32xf32>
    %cst_166 = arith.constant dense<0.000000e+00> : vector<2x32xf32>
    %274 = tpu.matmul %271, %273, %cst_166 {dimension_numbers = #tpu.dot_dimension_numbers<[1], [0], [0], [1], [0, 0, 1, 1], [], []>} : vector<2x64xf32>, vector<64x32xf32>, vector<2x32xf32> -> vector<2x32xf32>
    %275 = arith.addf %270, %274 : vector<2x32xf32>
    %276 = vector.extract_strided_slice %267 {offsets = [2, 0], sizes = [2, 64], strides = [1, 1]} : vector<32x64xf32> to vector<2x64xf32>
    %c1_167 = arith.constant 1 : index
    %c0_168 = arith.constant 0 : index
    %c0_169 = arith.constant 0 : index
    %277 = vector.load %arg8[%c1_167, %c0_168, %c0_169] : memref<16x64x32xf32, #tpu.memory_space<vmem>>, vector<1x64x32xf32>
    %278 = vector.shape_cast %277 : vector<1x64x32xf32> to vector<64x32xf32>
    %cst_170 = arith.constant dense<0.000000e+00> : vector<2x32xf32>
    %279 = tpu.matmul %276, %278, %cst_170 {dimension_numbers = #tpu.dot_dimension_numbers<[1], [0], [0], [1], [0, 0, 1, 1], [], []>} : vector<2x64xf32>, vector<64x32xf32>, vector<2x32xf32> -> vector<2x32xf32>
    %280 = arith.addf %275, %279 : vector<2x32xf32>
    %281 = vector.extract_strided_slice %267 {offsets = [4, 0], sizes = [2, 64], strides = [1, 1]} : vector<32x64xf32> to vector<2x64xf32>
    %c2_171 = arith.constant 2 : index
    %c0_172 = arith.constant 0 : index
    %c0_173 = arith.constant 0 : index
    %282 = vector.load %arg8[%c2_171, %c0_172, %c0_173] : memref<16x64x32xf32, #tpu.memory_space<vmem>>, vector<1x64x32xf32>
    %283 = vector.shape_cast %282 : vector<1x64x32xf32> to vector<64x32xf32>
    %cst_174 = arith.constant dense<0.000000e+00> : vector<2x32xf32>
    %284 = tpu.matmul %281, %283, %cst_174 {dimension_numbers = #tpu.dot_dimension_numbers<[1], [0], [0], [1], [0, 0, 1, 1], [], []>} : vector<2x64xf32>, vector<64x32xf32>, vector<2x32xf32> -> vector<2x32xf32>
    %285 = arith.addf %280, %284 : vector<2x32xf32>
    %286 = vector.extract_strided_slice %267 {offsets = [6, 0], sizes = [2, 64], strides = [1, 1]} : vector<32x64xf32> to vector<2x64xf32>
    %c3_175 = arith.constant 3 : index
    %c0_176 = arith.constant 0 : index
    %c0_177 = arith.constant 0 : index
    %287 = vector.load %arg8[%c3_175, %c0_176, %c0_177] : memref<16x64x32xf32, #tpu.memory_space<vmem>>, vector<1x64x32xf32>
    %288 = vector.shape_cast %287 : vector<1x64x32xf32> to vector<64x32xf32>
    %cst_178 = arith.constant dense<0.000000e+00> : vector<2x32xf32>
    %289 = tpu.matmul %286, %288, %cst_178 {dimension_numbers = #tpu.dot_dimension_numbers<[1], [0], [0], [1], [0, 0, 1, 1], [], []>} : vector<2x64xf32>, vector<64x32xf32>, vector<2x32xf32> -> vector<2x32xf32>
    %290 = arith.addf %285, %289 : vector<2x32xf32>
    %291 = vector.extract_strided_slice %267 {offsets = [8, 0], sizes = [2, 64], strides = [1, 1]} : vector<32x64xf32> to vector<2x64xf32>
    %c4_179 = arith.constant 4 : index
    %c0_180 = arith.constant 0 : index
    %c0_181 = arith.constant 0 : index
    %292 = vector.load %arg8[%c4_179, %c0_180, %c0_181] : memref<16x64x32xf32, #tpu.memory_space<vmem>>, vector<1x64x32xf32>
    %293 = vector.shape_cast %292 : vector<1x64x32xf32> to vector<64x32xf32>
    %cst_182 = arith.constant dense<0.000000e+00> : vector<2x32xf32>
    %294 = tpu.matmul %291, %293, %cst_182 {dimension_numbers = #tpu.dot_dimension_numbers<[1], [0], [0], [1], [0, 0, 1, 1], [], []>} : vector<2x64xf32>, vector<64x32xf32>, vector<2x32xf32> -> vector<2x32xf32>
    %295 = arith.addf %290, %294 : vector<2x32xf32>
    %296 = vector.extract_strided_slice %267 {offsets = [10, 0], sizes = [2, 64], strides = [1, 1]} : vector<32x64xf32> to vector<2x64xf32>
    %c5_183 = arith.constant 5 : index
    %c0_184 = arith.constant 0 : index
    %c0_185 = arith.constant 0 : index
    %297 = vector.load %arg8[%c5_183, %c0_184, %c0_185] : memref<16x64x32xf32, #tpu.memory_space<vmem>>, vector<1x64x32xf32>
    %298 = vector.shape_cast %297 : vector<1x64x32xf32> to vector<64x32xf32>
    %cst_186 = arith.constant dense<0.000000e+00> : vector<2x32xf32>
    %299 = tpu.matmul %296, %298, %cst_186 {dimension_numbers = #tpu.dot_dimension_numbers<[1], [0], [0], [1], [0, 0, 1, 1], [], []>} : vector<2x64xf32>, vector<64x32xf32>, vector<2x32xf32> -> vector<2x32xf32>
    %300 = arith.addf %295, %299 : vector<2x32xf32>
    %301 = vector.extract_strided_slice %267 {offsets = [12, 0], sizes = [2, 64], strides = [1, 1]} : vector<32x64xf32> to vector<2x64xf32>
    %c6_187 = arith.constant 6 : index
    %c0_188 = arith.constant 0 : index
    %c0_189 = arith.constant 0 : index
    %302 = vector.load %arg8[%c6_187, %c0_188, %c0_189] : memref<16x64x32xf32, #tpu.memory_space<vmem>>, vector<1x64x32xf32>
    %303 = vector.shape_cast %302 : vector<1x64x32xf32> to vector<64x32xf32>
    %cst_190 = arith.constant dense<0.000000e+00> : vector<2x32xf32>
    %304 = tpu.matmul %301, %303, %cst_190 {dimension_numbers = #tpu.dot_dimension_numbers<[1], [0], [0], [1], [0, 0, 1, 1], [], []>} : vector<2x64xf32>, vector<64x32xf32>, vector<2x32xf32> -> vector<2x32xf32>
    %305 = arith.addf %300, %304 : vector<2x32xf32>
    %306 = vector.extract_strided_slice %267 {offsets = [14, 0], sizes = [2, 64], strides = [1, 1]} : vector<32x64xf32> to vector<2x64xf32>
    %c7_191 = arith.constant 7 : index
    %c0_192 = arith.constant 0 : index
    %c0_193 = arith.constant 0 : index
    %307 = vector.load %arg8[%c7_191, %c0_192, %c0_193] : memref<16x64x32xf32, #tpu.memory_space<vmem>>, vector<1x64x32xf32>
    %308 = vector.shape_cast %307 : vector<1x64x32xf32> to vector<64x32xf32>
    %cst_194 = arith.constant dense<0.000000e+00> : vector<2x32xf32>
    %309 = tpu.matmul %306, %308, %cst_194 {dimension_numbers = #tpu.dot_dimension_numbers<[1], [0], [0], [1], [0, 0, 1, 1], [], []>} : vector<2x64xf32>, vector<64x32xf32>, vector<2x32xf32> -> vector<2x32xf32>
    %310 = arith.addf %305, %309 : vector<2x32xf32>
    %311 = vector.extract_strided_slice %267 {offsets = [16, 0], sizes = [2, 64], strides = [1, 1]} : vector<32x64xf32> to vector<2x64xf32>
    %c8_195 = arith.constant 8 : index
    %c0_196 = arith.constant 0 : index
    %c0_197 = arith.constant 0 : index
    %312 = vector.load %arg8[%c8_195, %c0_196, %c0_197] : memref<16x64x32xf32, #tpu.memory_space<vmem>>, vector<1x64x32xf32>
    %313 = vector.shape_cast %312 : vector<1x64x32xf32> to vector<64x32xf32>
    %cst_198 = arith.constant dense<0.000000e+00> : vector<2x32xf32>
    %314 = tpu.matmul %311, %313, %cst_198 {dimension_numbers = #tpu.dot_dimension_numbers<[1], [0], [0], [1], [0, 0, 1, 1], [], []>} : vector<2x64xf32>, vector<64x32xf32>, vector<2x32xf32> -> vector<2x32xf32>
    %315 = arith.addf %310, %314 : vector<2x32xf32>
    %316 = vector.extract_strided_slice %267 {offsets = [18, 0], sizes = [2, 64], strides = [1, 1]} : vector<32x64xf32> to vector<2x64xf32>
    %c9_199 = arith.constant 9 : index
    %c0_200 = arith.constant 0 : index
    %c0_201 = arith.constant 0 : index
    %317 = vector.load %arg8[%c9_199, %c0_200, %c0_201] : memref<16x64x32xf32, #tpu.memory_space<vmem>>, vector<1x64x32xf32>
    %318 = vector.shape_cast %317 : vector<1x64x32xf32> to vector<64x32xf32>
    %cst_202 = arith.constant dense<0.000000e+00> : vector<2x32xf32>
    %319 = tpu.matmul %316, %318, %cst_202 {dimension_numbers = #tpu.dot_dimension_numbers<[1], [0], [0], [1], [0, 0, 1, 1], [], []>} : vector<2x64xf32>, vector<64x32xf32>, vector<2x32xf32> -> vector<2x32xf32>
    %320 = arith.addf %315, %319 : vector<2x32xf32>
    %321 = vector.extract_strided_slice %267 {offsets = [20, 0], sizes = [2, 64], strides = [1, 1]} : vector<32x64xf32> to vector<2x64xf32>
    %c10_203 = arith.constant 10 : index
    %c0_204 = arith.constant 0 : index
    %c0_205 = arith.constant 0 : index
    %322 = vector.load %arg8[%c10_203, %c0_204, %c0_205] : memref<16x64x32xf32, #tpu.memory_space<vmem>>, vector<1x64x32xf32>
    %323 = vector.shape_cast %322 : vector<1x64x32xf32> to vector<64x32xf32>
    %cst_206 = arith.constant dense<0.000000e+00> : vector<2x32xf32>
    %324 = tpu.matmul %321, %323, %cst_206 {dimension_numbers = #tpu.dot_dimension_numbers<[1], [0], [0], [1], [0, 0, 1, 1], [], []>} : vector<2x64xf32>, vector<64x32xf32>, vector<2x32xf32> -> vector<2x32xf32>
    %325 = arith.addf %320, %324 : vector<2x32xf32>
    %326 = vector.extract_strided_slice %267 {offsets = [22, 0], sizes = [2, 64], strides = [1, 1]} : vector<32x64xf32> to vector<2x64xf32>
    %c11_207 = arith.constant 11 : index
    %c0_208 = arith.constant 0 : index
    %c0_209 = arith.constant 0 : index
    %327 = vector.load %arg8[%c11_207, %c0_208, %c0_209] : memref<16x64x32xf32, #tpu.memory_space<vmem>>, vector<1x64x32xf32>
    %328 = vector.shape_cast %327 : vector<1x64x32xf32> to vector<64x32xf32>
    %cst_210 = arith.constant dense<0.000000e+00> : vector<2x32xf32>
    %329 = tpu.matmul %326, %328, %cst_210 {dimension_numbers = #tpu.dot_dimension_numbers<[1], [0], [0], [1], [0, 0, 1, 1], [], []>} : vector<2x64xf32>, vector<64x32xf32>, vector<2x32xf32> -> vector<2x32xf32>
    %330 = arith.addf %325, %329 : vector<2x32xf32>
    %331 = vector.extract_strided_slice %267 {offsets = [24, 0], sizes = [2, 64], strides = [1, 1]} : vector<32x64xf32> to vector<2x64xf32>
    %c12_211 = arith.constant 12 : index
    %c0_212 = arith.constant 0 : index
    %c0_213 = arith.constant 0 : index
    %332 = vector.load %arg8[%c12_211, %c0_212, %c0_213] : memref<16x64x32xf32, #tpu.memory_space<vmem>>, vector<1x64x32xf32>
    %333 = vector.shape_cast %332 : vector<1x64x32xf32> to vector<64x32xf32>
    %cst_214 = arith.constant dense<0.000000e+00> : vector<2x32xf32>
    %334 = tpu.matmul %331, %333, %cst_214 {dimension_numbers = #tpu.dot_dimension_numbers<[1], [0], [0], [1], [0, 0, 1, 1], [], []>} : vector<2x64xf32>, vector<64x32xf32>, vector<2x32xf32> -> vector<2x32xf32>
    %335 = arith.addf %330, %334 : vector<2x32xf32>
    %336 = vector.extract_strided_slice %267 {offsets = [26, 0], sizes = [2, 64], strides = [1, 1]} : vector<32x64xf32> to vector<2x64xf32>
    %c13_215 = arith.constant 13 : index
    %c0_216 = arith.constant 0 : index
    %c0_217 = arith.constant 0 : index
    %337 = vector.load %arg8[%c13_215, %c0_216, %c0_217] : memref<16x64x32xf32, #tpu.memory_space<vmem>>, vector<1x64x32xf32>
    %338 = vector.shape_cast %337 : vector<1x64x32xf32> to vector<64x32xf32>
    %cst_218 = arith.constant dense<0.000000e+00> : vector<2x32xf32>
    %339 = tpu.matmul %336, %338, %cst_218 {dimension_numbers = #tpu.dot_dimension_numbers<[1], [0], [0], [1], [0, 0, 1, 1], [], []>} : vector<2x64xf32>, vector<64x32xf32>, vector<2x32xf32> -> vector<2x32xf32>
    %340 = arith.addf %335, %339 : vector<2x32xf32>
    %341 = vector.extract_strided_slice %267 {offsets = [28, 0], sizes = [2, 64], strides = [1, 1]} : vector<32x64xf32> to vector<2x64xf32>
    %c14_219 = arith.constant 14 : index
    %c0_220 = arith.constant 0 : index
    %c0_221 = arith.constant 0 : index
    %342 = vector.load %arg8[%c14_219, %c0_220, %c0_221] : memref<16x64x32xf32, #tpu.memory_space<vmem>>, vector<1x64x32xf32>
    %343 = vector.shape_cast %342 : vector<1x64x32xf32> to vector<64x32xf32>
    %cst_222 = arith.constant dense<0.000000e+00> : vector<2x32xf32>
    %344 = tpu.matmul %341, %343, %cst_222 {dimension_numbers = #tpu.dot_dimension_numbers<[1], [0], [0], [1], [0, 0, 1, 1], [], []>} : vector<2x64xf32>, vector<64x32xf32>, vector<2x32xf32> -> vector<2x32xf32>
    %345 = arith.addf %340, %344 : vector<2x32xf32>
    %346 = vector.extract_strided_slice %267 {offsets = [30, 0], sizes = [2, 64], strides = [1, 1]} : vector<32x64xf32> to vector<2x64xf32>
    %c15_223 = arith.constant 15 : index
    %c0_224 = arith.constant 0 : index
    %c0_225 = arith.constant 0 : index
    %347 = vector.load %arg8[%c15_223, %c0_224, %c0_225] : memref<16x64x32xf32, #tpu.memory_space<vmem>>, vector<1x64x32xf32>
    %348 = vector.shape_cast %347 : vector<1x64x32xf32> to vector<64x32xf32>
    %cst_226 = arith.constant dense<0.000000e+00> : vector<2x32xf32>
    %349 = tpu.matmul %346, %348, %cst_226 {dimension_numbers = #tpu.dot_dimension_numbers<[1], [0], [0], [1], [0, 0, 1, 1], [], []>} : vector<2x64xf32>, vector<64x32xf32>, vector<2x32xf32> -> vector<2x32xf32>
    %350 = arith.addf %345, %349 : vector<2x32xf32>
    %cst_227 = arith.constant 1.000000e+00 : f32
    %351 = vector.broadcast %cst_227 : f32 to vector<2x32xf32>
    %352 = arith.subf %351, %183 : vector<2x32xf32>
    %cst_228 = arith.constant 2.000000e-01 : f32
    %353 = vector.broadcast %cst_228 : f32 to vector<2x32xf32>
    %354 = arith.mulf %353, %352 : vector<2x32xf32>
    %355 = arith.mulf %179, %354 : vector<2x32xf32>
    %356 = arith.addf %355, %350 : vector<2x32xf32>
    %cst_229 = arith.constant 5.000000e-01 : f32
    %357 = vector.broadcast %cst_229 : f32 to vector<2x32xf32>
    %358 = arith.cmpf ogt, %356, %357 : vector<2x32xf32>
    %359 = arith.extui %358 : vector<2x32xi1> to vector<2x32xi32>
    %360 = arith.sitofp %359 : vector<2x32xi32> to vector<2x32xf32>
    %cst_230 = arith.constant dense<0.000000e+00> : vector<2x9xf32>
    %361 = tpu.matmul %360, %10, %cst_230 {dimension_numbers = #tpu.dot_dimension_numbers<[1], [0], [0], [1], [0, 0, 1, 1], [], []>} : vector<2x32xf32>, vector<32x9xf32>, vector<2x9xf32> -> vector<2x9xf32>
    %362 = vector.broadcast %11 : vector<1x9xf32> to vector<2x9xf32>
    %363 = arith.addf %361, %362 : vector<2x9xf32>
    %cst_231 = arith.constant 1.000000e+00 : f32
    %364 = vector.broadcast %cst_231 : f32 to vector<2x9xf32>
    %365 = arith.subf %364, %196 : vector<2x9xf32>
    %cst_232 = arith.constant 2.000000e-01 : f32
    %366 = vector.broadcast %cst_232 : f32 to vector<2x9xf32>
    %367 = arith.mulf %366, %365 : vector<2x9xf32>
    %368 = arith.mulf %192, %367 : vector<2x9xf32>
    %369 = arith.addf %368, %363 : vector<2x9xf32>
    %cst_233 = arith.constant 5.000000e-01 : f32
    %370 = vector.broadcast %cst_233 : f32 to vector<2x9xf32>
    %371 = arith.cmpf ogt, %369, %370 : vector<2x9xf32>
    %372 = arith.extui %371 : vector<2x9xi1> to vector<2x9xi32>
    %373 = arith.sitofp %372 : vector<2x9xi32> to vector<2x9xf32>
    %374 = arith.addf %197, %373 : vector<2x9xf32>
    %c2_i32 = arith.constant 2 : i32
    %cst_234 = arith.constant 1.000000e+00 : f32
    %375 = vector.broadcast %cst_234 : f32 to vector<32x256xf32>
    %376 = arith.subf %375, %207 : vector<32x256xf32>
    %cst_235 = arith.constant 2.000000e-01 : f32
    %377 = vector.broadcast %cst_235 : f32 to vector<32x256xf32>
    %378 = arith.mulf %377, %376 : vector<32x256xf32>
    %379 = arith.mulf %203, %378 : vector<32x256xf32>
    %380 = arith.addf %379, %5 : vector<32x256xf32>
    %cst_236 = arith.constant 5.000000e-01 : f32
    %381 = vector.broadcast %cst_236 : f32 to vector<32x256xf32>
    %382 = arith.cmpf ogt, %380, %381 : vector<32x256xf32>
    %383 = arith.extui %382 : vector<32x256xi1> to vector<32x256xi32>
    %384 = arith.sitofp %383 : vector<32x256xi32> to vector<32x256xf32>
    %385 = arith.truncf %384 : vector<32x256xf32> to vector<32x256xbf16>
    %cst_237 = arith.constant dense<0.000000e+00> : vector<32x64xf32>
    %386 = tpu.matmul %385, %6, %cst_237 {dimension_numbers = #tpu.dot_dimension_numbers<[1], [0], [0], [1], [0, 0, 1, 1], [], []>} : vector<32x256xbf16>, vector<256x64xbf16>, vector<32x64xf32> -> vector<32x64xf32>
    %c9_i32_238 = arith.constant 9 : i32
    %387 = tpu.dynamic_rotate %386 by %c9_i32_238 dim 1 : vector<32x64xf32>, i32 -> vector<32x64xf32>
    %c0_239 = arith.constant 0 : index
    %c0_240 = arith.constant 0 : index
    %c0_241 = arith.constant 0 : index
    %388 = vector.load %arg5[%c0_239, %c0_240, %c0_241] : memref<9x1x64xf32, #tpu.memory_space<vmem>>, vector<1x1x64xf32>
    %389 = vector.shape_cast %388 : vector<1x1x64xf32> to vector<1x64xf32>
    %390 = vector.broadcast %389 : vector<1x64xf32> to vector<32x64xf32>
    %391 = arith.mulf %387, %390 : vector<32x64xf32>
    %c8_i32_242 = arith.constant 8 : i32
    %392 = tpu.dynamic_rotate %386 by %c8_i32_242 dim 1 : vector<32x64xf32>, i32 -> vector<32x64xf32>
    %c1_243 = arith.constant 1 : index
    %c0_244 = arith.constant 0 : index
    %c0_245 = arith.constant 0 : index
    %393 = vector.load %arg5[%c1_243, %c0_244, %c0_245] : memref<9x1x64xf32, #tpu.memory_space<vmem>>, vector<1x1x64xf32>
    %394 = vector.shape_cast %393 : vector<1x1x64xf32> to vector<1x64xf32>
    %395 = vector.broadcast %394 : vector<1x64xf32> to vector<32x64xf32>
    %396 = arith.mulf %392, %395 : vector<32x64xf32>
    %c7_i32_246 = arith.constant 7 : i32
    %397 = tpu.dynamic_rotate %386 by %c7_i32_246 dim 1 : vector<32x64xf32>, i32 -> vector<32x64xf32>
    %c2_247 = arith.constant 2 : index
    %c0_248 = arith.constant 0 : index
    %c0_249 = arith.constant 0 : index
    %398 = vector.load %arg5[%c2_247, %c0_248, %c0_249] : memref<9x1x64xf32, #tpu.memory_space<vmem>>, vector<1x1x64xf32>
    %399 = vector.shape_cast %398 : vector<1x1x64xf32> to vector<1x64xf32>
    %400 = vector.broadcast %399 : vector<1x64xf32> to vector<32x64xf32>
    %401 = arith.mulf %397, %400 : vector<32x64xf32>
    %c1_i32_250 = arith.constant 1 : i32
    %402 = tpu.dynamic_rotate %386 by %c1_i32_250 dim 1 : vector<32x64xf32>, i32 -> vector<32x64xf32>
    %c3_251 = arith.constant 3 : index
    %c0_252 = arith.constant 0 : index
    %c0_253 = arith.constant 0 : index
    %403 = vector.load %arg5[%c3_251, %c0_252, %c0_253] : memref<9x1x64xf32, #tpu.memory_space<vmem>>, vector<1x1x64xf32>
    %404 = vector.shape_cast %403 : vector<1x1x64xf32> to vector<1x64xf32>
    %405 = vector.broadcast %404 : vector<1x64xf32> to vector<32x64xf32>
    %406 = arith.mulf %402, %405 : vector<32x64xf32>
    %c4_254 = arith.constant 4 : index
    %c0_255 = arith.constant 0 : index
    %c0_256 = arith.constant 0 : index
    %407 = vector.load %arg5[%c4_254, %c0_255, %c0_256] : memref<9x1x64xf32, #tpu.memory_space<vmem>>, vector<1x1x64xf32>
    %408 = vector.shape_cast %407 : vector<1x1x64xf32> to vector<1x64xf32>
    %409 = vector.broadcast %408 : vector<1x64xf32> to vector<32x64xf32>
    %410 = arith.mulf %386, %409 : vector<32x64xf32>
    %c63_i32_257 = arith.constant 63 : i32
    %411 = tpu.dynamic_rotate %386 by %c63_i32_257 dim 1 : vector<32x64xf32>, i32 -> vector<32x64xf32>
    %c5_258 = arith.constant 5 : index
    %c0_259 = arith.constant 0 : index
    %c0_260 = arith.constant 0 : index
    %412 = vector.load %arg5[%c5_258, %c0_259, %c0_260] : memref<9x1x64xf32, #tpu.memory_space<vmem>>, vector<1x1x64xf32>
    %413 = vector.shape_cast %412 : vector<1x1x64xf32> to vector<1x64xf32>
    %414 = vector.broadcast %413 : vector<1x64xf32> to vector<32x64xf32>
    %415 = arith.mulf %411, %414 : vector<32x64xf32>
    %c57_i32_261 = arith.constant 57 : i32
    %416 = tpu.dynamic_rotate %386 by %c57_i32_261 dim 1 : vector<32x64xf32>, i32 -> vector<32x64xf32>
    %c6_262 = arith.constant 6 : index
    %c0_263 = arith.constant 0 : index
    %c0_264 = arith.constant 0 : index
    %417 = vector.load %arg5[%c6_262, %c0_263, %c0_264] : memref<9x1x64xf32, #tpu.memory_space<vmem>>, vector<1x1x64xf32>
    %418 = vector.shape_cast %417 : vector<1x1x64xf32> to vector<1x64xf32>
    %419 = vector.broadcast %418 : vector<1x64xf32> to vector<32x64xf32>
    %420 = arith.mulf %416, %419 : vector<32x64xf32>
    %c56_i32_265 = arith.constant 56 : i32
    %421 = tpu.dynamic_rotate %386 by %c56_i32_265 dim 1 : vector<32x64xf32>, i32 -> vector<32x64xf32>
    %c7_266 = arith.constant 7 : index
    %c0_267 = arith.constant 0 : index
    %c0_268 = arith.constant 0 : index
    %422 = vector.load %arg5[%c7_266, %c0_267, %c0_268] : memref<9x1x64xf32, #tpu.memory_space<vmem>>, vector<1x1x64xf32>
    %423 = vector.shape_cast %422 : vector<1x1x64xf32> to vector<1x64xf32>
    %424 = vector.broadcast %423 : vector<1x64xf32> to vector<32x64xf32>
    %425 = arith.mulf %421, %424 : vector<32x64xf32>
    %c55_i32_269 = arith.constant 55 : i32
    %426 = tpu.dynamic_rotate %386 by %c55_i32_269 dim 1 : vector<32x64xf32>, i32 -> vector<32x64xf32>
    %c8_270 = arith.constant 8 : index
    %c0_271 = arith.constant 0 : index
    %c0_272 = arith.constant 0 : index
    %427 = vector.load %arg5[%c8_270, %c0_271, %c0_272] : memref<9x1x64xf32, #tpu.memory_space<vmem>>, vector<1x1x64xf32>
    %428 = vector.shape_cast %427 : vector<1x1x64xf32> to vector<1x64xf32>
    %429 = vector.broadcast %428 : vector<1x64xf32> to vector<32x64xf32>
    %430 = arith.mulf %426, %429 : vector<32x64xf32>
    %431 = tpu.concatenate %391, %396, %401, %406, %410, %415, %420, %425, %430 in 0 : vector<32x64xf32>, vector<32x64xf32>, vector<32x64xf32>, vector<32x64xf32>, vector<32x64xf32>, vector<32x64xf32>, vector<32x64xf32>, vector<32x64xf32>, vector<32x64xf32> -> vector<288x64xf32>
    %cst_273 = arith.constant dense<0.000000e+00> : vector<32x64xf32>
    %432 = tpu.matmul %7, %431, %cst_273 {dimension_numbers = #tpu.dot_dimension_numbers<[1], [0], [0], [1], [0, 0, 1, 1], [], []>} : vector<32x288xf32>, vector<288x64xf32>, vector<32x64xf32> -> vector<32x64xf32>
    %433 = vector.broadcast %8 : vector<32x1xf32> to vector<32x64xf32>
    %434 = arith.addf %432, %433 : vector<32x64xf32>
    %cst_274 = arith.constant 1.000000e+00 : f32
    %435 = vector.broadcast %cst_274 : f32 to vector<32x64xf32>
    %436 = arith.subf %435, %267 : vector<32x64xf32>
    %cst_275 = arith.constant 2.000000e-01 : f32
    %437 = vector.broadcast %cst_275 : f32 to vector<32x64xf32>
    %438 = arith.mulf %437, %436 : vector<32x64xf32>
    %439 = arith.mulf %263, %438 : vector<32x64xf32>
    %440 = arith.addf %439, %434 : vector<32x64xf32>
    %cst_276 = arith.constant 5.000000e-01 : f32
    %441 = vector.broadcast %cst_276 : f32 to vector<32x64xf32>
    %442 = arith.cmpf ogt, %440, %441 : vector<32x64xf32>
    %443 = arith.extui %442 : vector<32x64xi1> to vector<32x64xi32>
    %444 = arith.sitofp %443 : vector<32x64xi32> to vector<32x64xf32>
    %cst_277 = arith.constant 0.000000e+00 : f32
    %445 = vector.broadcast %cst_277 : f32 to vector<2x32xf32>
    %446 = vector.broadcast %9 : vector<1x32xf32> to vector<2x32xf32>
    %447 = arith.addf %445, %446 : vector<2x32xf32>
    %448 = vector.extract_strided_slice %444 {offsets = [0, 0], sizes = [2, 64], strides = [1, 1]} : vector<32x64xf32> to vector<2x64xf32>
    %c0_278 = arith.constant 0 : index
    %c0_279 = arith.constant 0 : index
    %c0_280 = arith.constant 0 : index
    %449 = vector.load %arg8[%c0_278, %c0_279, %c0_280] : memref<16x64x32xf32, #tpu.memory_space<vmem>>, vector<1x64x32xf32>
    %450 = vector.shape_cast %449 : vector<1x64x32xf32> to vector<64x32xf32>
    %cst_281 = arith.constant dense<0.000000e+00> : vector<2x32xf32>
    %451 = tpu.matmul %448, %450, %cst_281 {dimension_numbers = #tpu.dot_dimension_numbers<[1], [0], [0], [1], [0, 0, 1, 1], [], []>} : vector<2x64xf32>, vector<64x32xf32>, vector<2x32xf32> -> vector<2x32xf32>
    %452 = arith.addf %447, %451 : vector<2x32xf32>
    %453 = vector.extract_strided_slice %444 {offsets = [2, 0], sizes = [2, 64], strides = [1, 1]} : vector<32x64xf32> to vector<2x64xf32>
    %c1_282 = arith.constant 1 : index
    %c0_283 = arith.constant 0 : index
    %c0_284 = arith.constant 0 : index
    %454 = vector.load %arg8[%c1_282, %c0_283, %c0_284] : memref<16x64x32xf32, #tpu.memory_space<vmem>>, vector<1x64x32xf32>
    %455 = vector.shape_cast %454 : vector<1x64x32xf32> to vector<64x32xf32>
    %cst_285 = arith.constant dense<0.000000e+00> : vector<2x32xf32>
    %456 = tpu.matmul %453, %455, %cst_285 {dimension_numbers = #tpu.dot_dimension_numbers<[1], [0], [0], [1], [0, 0, 1, 1], [], []>} : vector<2x64xf32>, vector<64x32xf32>, vector<2x32xf32> -> vector<2x32xf32>
    %457 = arith.addf %452, %456 : vector<2x32xf32>
    %458 = vector.extract_strided_slice %444 {offsets = [4, 0], sizes = [2, 64], strides = [1, 1]} : vector<32x64xf32> to vector<2x64xf32>
    %c2_286 = arith.constant 2 : index
    %c0_287 = arith.constant 0 : index
    %c0_288 = arith.constant 0 : index
    %459 = vector.load %arg8[%c2_286, %c0_287, %c0_288] : memref<16x64x32xf32, #tpu.memory_space<vmem>>, vector<1x64x32xf32>
    %460 = vector.shape_cast %459 : vector<1x64x32xf32> to vector<64x32xf32>
    %cst_289 = arith.constant dense<0.000000e+00> : vector<2x32xf32>
    %461 = tpu.matmul %458, %460, %cst_289 {dimension_numbers = #tpu.dot_dimension_numbers<[1], [0], [0], [1], [0, 0, 1, 1], [], []>} : vector<2x64xf32>, vector<64x32xf32>, vector<2x32xf32> -> vector<2x32xf32>
    %462 = arith.addf %457, %461 : vector<2x32xf32>
    %463 = vector.extract_strided_slice %444 {offsets = [6, 0], sizes = [2, 64], strides = [1, 1]} : vector<32x64xf32> to vector<2x64xf32>
    %c3_290 = arith.constant 3 : index
    %c0_291 = arith.constant 0 : index
    %c0_292 = arith.constant 0 : index
    %464 = vector.load %arg8[%c3_290, %c0_291, %c0_292] : memref<16x64x32xf32, #tpu.memory_space<vmem>>, vector<1x64x32xf32>
    %465 = vector.shape_cast %464 : vector<1x64x32xf32> to vector<64x32xf32>
    %cst_293 = arith.constant dense<0.000000e+00> : vector<2x32xf32>
    %466 = tpu.matmul %463, %465, %cst_293 {dimension_numbers = #tpu.dot_dimension_numbers<[1], [0], [0], [1], [0, 0, 1, 1], [], []>} : vector<2x64xf32>, vector<64x32xf32>, vector<2x32xf32> -> vector<2x32xf32>
    %467 = arith.addf %462, %466 : vector<2x32xf32>
    %468 = vector.extract_strided_slice %444 {offsets = [8, 0], sizes = [2, 64], strides = [1, 1]} : vector<32x64xf32> to vector<2x64xf32>
    %c4_294 = arith.constant 4 : index
    %c0_295 = arith.constant 0 : index
    %c0_296 = arith.constant 0 : index
    %469 = vector.load %arg8[%c4_294, %c0_295, %c0_296] : memref<16x64x32xf32, #tpu.memory_space<vmem>>, vector<1x64x32xf32>
    %470 = vector.shape_cast %469 : vector<1x64x32xf32> to vector<64x32xf32>
    %cst_297 = arith.constant dense<0.000000e+00> : vector<2x32xf32>
    %471 = tpu.matmul %468, %470, %cst_297 {dimension_numbers = #tpu.dot_dimension_numbers<[1], [0], [0], [1], [0, 0, 1, 1], [], []>} : vector<2x64xf32>, vector<64x32xf32>, vector<2x32xf32> -> vector<2x32xf32>
    %472 = arith.addf %467, %471 : vector<2x32xf32>
    %473 = vector.extract_strided_slice %444 {offsets = [10, 0], sizes = [2, 64], strides = [1, 1]} : vector<32x64xf32> to vector<2x64xf32>
    %c5_298 = arith.constant 5 : index
    %c0_299 = arith.constant 0 : index
    %c0_300 = arith.constant 0 : index
    %474 = vector.load %arg8[%c5_298, %c0_299, %c0_300] : memref<16x64x32xf32, #tpu.memory_space<vmem>>, vector<1x64x32xf32>
    %475 = vector.shape_cast %474 : vector<1x64x32xf32> to vector<64x32xf32>
    %cst_301 = arith.constant dense<0.000000e+00> : vector<2x32xf32>
    %476 = tpu.matmul %473, %475, %cst_301 {dimension_numbers = #tpu.dot_dimension_numbers<[1], [0], [0], [1], [0, 0, 1, 1], [], []>} : vector<2x64xf32>, vector<64x32xf32>, vector<2x32xf32> -> vector<2x32xf32>
    %477 = arith.addf %472, %476 : vector<2x32xf32>
    %478 = vector.extract_strided_slice %444 {offsets = [12, 0], sizes = [2, 64], strides = [1, 1]} : vector<32x64xf32> to vector<2x64xf32>
    %c6_302 = arith.constant 6 : index
    %c0_303 = arith.constant 0 : index
    %c0_304 = arith.constant 0 : index
    %479 = vector.load %arg8[%c6_302, %c0_303, %c0_304] : memref<16x64x32xf32, #tpu.memory_space<vmem>>, vector<1x64x32xf32>
    %480 = vector.shape_cast %479 : vector<1x64x32xf32> to vector<64x32xf32>
    %cst_305 = arith.constant dense<0.000000e+00> : vector<2x32xf32>
    %481 = tpu.matmul %478, %480, %cst_305 {dimension_numbers = #tpu.dot_dimension_numbers<[1], [0], [0], [1], [0, 0, 1, 1], [], []>} : vector<2x64xf32>, vector<64x32xf32>, vector<2x32xf32> -> vector<2x32xf32>
    %482 = arith.addf %477, %481 : vector<2x32xf32>
    %483 = vector.extract_strided_slice %444 {offsets = [14, 0], sizes = [2, 64], strides = [1, 1]} : vector<32x64xf32> to vector<2x64xf32>
    %c7_306 = arith.constant 7 : index
    %c0_307 = arith.constant 0 : index
    %c0_308 = arith.constant 0 : index
    %484 = vector.load %arg8[%c7_306, %c0_307, %c0_308] : memref<16x64x32xf32, #tpu.memory_space<vmem>>, vector<1x64x32xf32>
    %485 = vector.shape_cast %484 : vector<1x64x32xf32> to vector<64x32xf32>
    %cst_309 = arith.constant dense<0.000000e+00> : vector<2x32xf32>
    %486 = tpu.matmul %483, %485, %cst_309 {dimension_numbers = #tpu.dot_dimension_numbers<[1], [0], [0], [1], [0, 0, 1, 1], [], []>} : vector<2x64xf32>, vector<64x32xf32>, vector<2x32xf32> -> vector<2x32xf32>
    %487 = arith.addf %482, %486 : vector<2x32xf32>
    %488 = vector.extract_strided_slice %444 {offsets = [16, 0], sizes = [2, 64], strides = [1, 1]} : vector<32x64xf32> to vector<2x64xf32>
    %c8_310 = arith.constant 8 : index
    %c0_311 = arith.constant 0 : index
    %c0_312 = arith.constant 0 : index
    %489 = vector.load %arg8[%c8_310, %c0_311, %c0_312] : memref<16x64x32xf32, #tpu.memory_space<vmem>>, vector<1x64x32xf32>
    %490 = vector.shape_cast %489 : vector<1x64x32xf32> to vector<64x32xf32>
    %cst_313 = arith.constant dense<0.000000e+00> : vector<2x32xf32>
    %491 = tpu.matmul %488, %490, %cst_313 {dimension_numbers = #tpu.dot_dimension_numbers<[1], [0], [0], [1], [0, 0, 1, 1], [], []>} : vector<2x64xf32>, vector<64x32xf32>, vector<2x32xf32> -> vector<2x32xf32>
    %492 = arith.addf %487, %491 : vector<2x32xf32>
    %493 = vector.extract_strided_slice %444 {offsets = [18, 0], sizes = [2, 64], strides = [1, 1]} : vector<32x64xf32> to vector<2x64xf32>
    %c9_314 = arith.constant 9 : index
    %c0_315 = arith.constant 0 : index
    %c0_316 = arith.constant 0 : index
    %494 = vector.load %arg8[%c9_314, %c0_315, %c0_316] : memref<16x64x32xf32, #tpu.memory_space<vmem>>, vector<1x64x32xf32>
    %495 = vector.shape_cast %494 : vector<1x64x32xf32> to vector<64x32xf32>
    %cst_317 = arith.constant dense<0.000000e+00> : vector<2x32xf32>
    %496 = tpu.matmul %493, %495, %cst_317 {dimension_numbers = #tpu.dot_dimension_numbers<[1], [0], [0], [1], [0, 0, 1, 1], [], []>} : vector<2x64xf32>, vector<64x32xf32>, vector<2x32xf32> -> vector<2x32xf32>
    %497 = arith.addf %492, %496 : vector<2x32xf32>
    %498 = vector.extract_strided_slice %444 {offsets = [20, 0], sizes = [2, 64], strides = [1, 1]} : vector<32x64xf32> to vector<2x64xf32>
    %c10_318 = arith.constant 10 : index
    %c0_319 = arith.constant 0 : index
    %c0_320 = arith.constant 0 : index
    %499 = vector.load %arg8[%c10_318, %c0_319, %c0_320] : memref<16x64x32xf32, #tpu.memory_space<vmem>>, vector<1x64x32xf32>
    %500 = vector.shape_cast %499 : vector<1x64x32xf32> to vector<64x32xf32>
    %cst_321 = arith.constant dense<0.000000e+00> : vector<2x32xf32>
    %501 = tpu.matmul %498, %500, %cst_321 {dimension_numbers = #tpu.dot_dimension_numbers<[1], [0], [0], [1], [0, 0, 1, 1], [], []>} : vector<2x64xf32>, vector<64x32xf32>, vector<2x32xf32> -> vector<2x32xf32>
    %502 = arith.addf %497, %501 : vector<2x32xf32>
    %503 = vector.extract_strided_slice %444 {offsets = [22, 0], sizes = [2, 64], strides = [1, 1]} : vector<32x64xf32> to vector<2x64xf32>
    %c11_322 = arith.constant 11 : index
    %c0_323 = arith.constant 0 : index
    %c0_324 = arith.constant 0 : index
    %504 = vector.load %arg8[%c11_322, %c0_323, %c0_324] : memref<16x64x32xf32, #tpu.memory_space<vmem>>, vector<1x64x32xf32>
    %505 = vector.shape_cast %504 : vector<1x64x32xf32> to vector<64x32xf32>
    %cst_325 = arith.constant dense<0.000000e+00> : vector<2x32xf32>
    %506 = tpu.matmul %503, %505, %cst_325 {dimension_numbers = #tpu.dot_dimension_numbers<[1], [0], [0], [1], [0, 0, 1, 1], [], []>} : vector<2x64xf32>, vector<64x32xf32>, vector<2x32xf32> -> vector<2x32xf32>
    %507 = arith.addf %502, %506 : vector<2x32xf32>
    %508 = vector.extract_strided_slice %444 {offsets = [24, 0], sizes = [2, 64], strides = [1, 1]} : vector<32x64xf32> to vector<2x64xf32>
    %c12_326 = arith.constant 12 : index
    %c0_327 = arith.constant 0 : index
    %c0_328 = arith.constant 0 : index
    %509 = vector.load %arg8[%c12_326, %c0_327, %c0_328] : memref<16x64x32xf32, #tpu.memory_space<vmem>>, vector<1x64x32xf32>
    %510 = vector.shape_cast %509 : vector<1x64x32xf32> to vector<64x32xf32>
    %cst_329 = arith.constant dense<0.000000e+00> : vector<2x32xf32>
    %511 = tpu.matmul %508, %510, %cst_329 {dimension_numbers = #tpu.dot_dimension_numbers<[1], [0], [0], [1], [0, 0, 1, 1], [], []>} : vector<2x64xf32>, vector<64x32xf32>, vector<2x32xf32> -> vector<2x32xf32>
    %512 = arith.addf %507, %511 : vector<2x32xf32>
    %513 = vector.extract_strided_slice %444 {offsets = [26, 0], sizes = [2, 64], strides = [1, 1]} : vector<32x64xf32> to vector<2x64xf32>
    %c13_330 = arith.constant 13 : index
    %c0_331 = arith.constant 0 : index
    %c0_332 = arith.constant 0 : index
    %514 = vector.load %arg8[%c13_330, %c0_331, %c0_332] : memref<16x64x32xf32, #tpu.memory_space<vmem>>, vector<1x64x32xf32>
    %515 = vector.shape_cast %514 : vector<1x64x32xf32> to vector<64x32xf32>
    %cst_333 = arith.constant dense<0.000000e+00> : vector<2x32xf32>
    %516 = tpu.matmul %513, %515, %cst_333 {dimension_numbers = #tpu.dot_dimension_numbers<[1], [0], [0], [1], [0, 0, 1, 1], [], []>} : vector<2x64xf32>, vector<64x32xf32>, vector<2x32xf32> -> vector<2x32xf32>
    %517 = arith.addf %512, %516 : vector<2x32xf32>
    %518 = vector.extract_strided_slice %444 {offsets = [28, 0], sizes = [2, 64], strides = [1, 1]} : vector<32x64xf32> to vector<2x64xf32>
    %c14_334 = arith.constant 14 : index
    %c0_335 = arith.constant 0 : index
    %c0_336 = arith.constant 0 : index
    %519 = vector.load %arg8[%c14_334, %c0_335, %c0_336] : memref<16x64x32xf32, #tpu.memory_space<vmem>>, vector<1x64x32xf32>
    %520 = vector.shape_cast %519 : vector<1x64x32xf32> to vector<64x32xf32>
    %cst_337 = arith.constant dense<0.000000e+00> : vector<2x32xf32>
    %521 = tpu.matmul %518, %520, %cst_337 {dimension_numbers = #tpu.dot_dimension_numbers<[1], [0], [0], [1], [0, 0, 1, 1], [], []>} : vector<2x64xf32>, vector<64x32xf32>, vector<2x32xf32> -> vector<2x32xf32>
    %522 = arith.addf %517, %521 : vector<2x32xf32>
    %523 = vector.extract_strided_slice %444 {offsets = [30, 0], sizes = [2, 64], strides = [1, 1]} : vector<32x64xf32> to vector<2x64xf32>
    %c15_338 = arith.constant 15 : index
    %c0_339 = arith.constant 0 : index
    %c0_340 = arith.constant 0 : index
    %524 = vector.load %arg8[%c15_338, %c0_339, %c0_340] : memref<16x64x32xf32, #tpu.memory_space<vmem>>, vector<1x64x32xf32>
    %525 = vector.shape_cast %524 : vector<1x64x32xf32> to vector<64x32xf32>
    %cst_341 = arith.constant dense<0.000000e+00> : vector<2x32xf32>
    %526 = tpu.matmul %523, %525, %cst_341 {dimension_numbers = #tpu.dot_dimension_numbers<[1], [0], [0], [1], [0, 0, 1, 1], [], []>} : vector<2x64xf32>, vector<64x32xf32>, vector<2x32xf32> -> vector<2x32xf32>
    %527 = arith.addf %522, %526 : vector<2x32xf32>
    %cst_342 = arith.constant 1.000000e+00 : f32
    %528 = vector.broadcast %cst_342 : f32 to vector<2x32xf32>
    %529 = arith.subf %528, %360 : vector<2x32xf32>
    %cst_343 = arith.constant 2.000000e-01 : f32
    %530 = vector.broadcast %cst_343 : f32 to vector<2x32xf32>
    %531 = arith.mulf %530, %529 : vector<2x32xf32>
    %532 = arith.mulf %356, %531 : vector<2x32xf32>
    %533 = arith.addf %532, %527 : vector<2x32xf32>
    %cst_344 = arith.constant 5.000000e-01 : f32
    %534 = vector.broadcast %cst_344 : f32 to vector<2x32xf32>
    %535 = arith.cmpf ogt, %533, %534 : vector<2x32xf32>
    %536 = arith.extui %535 : vector<2x32xi1> to vector<2x32xi32>
    %537 = arith.sitofp %536 : vector<2x32xi32> to vector<2x32xf32>
    %cst_345 = arith.constant dense<0.000000e+00> : vector<2x9xf32>
    %538 = tpu.matmul %537, %10, %cst_345 {dimension_numbers = #tpu.dot_dimension_numbers<[1], [0], [0], [1], [0, 0, 1, 1], [], []>} : vector<2x32xf32>, vector<32x9xf32>, vector<2x9xf32> -> vector<2x9xf32>
    %539 = vector.broadcast %11 : vector<1x9xf32> to vector<2x9xf32>
    %540 = arith.addf %538, %539 : vector<2x9xf32>
    %cst_346 = arith.constant 1.000000e+00 : f32
    %541 = vector.broadcast %cst_346 : f32 to vector<2x9xf32>
    %542 = arith.subf %541, %373 : vector<2x9xf32>
    %cst_347 = arith.constant 2.000000e-01 : f32
    %543 = vector.broadcast %cst_347 : f32 to vector<2x9xf32>
    %544 = arith.mulf %543, %542 : vector<2x9xf32>
    %545 = arith.mulf %369, %544 : vector<2x9xf32>
    %546 = arith.addf %545, %540 : vector<2x9xf32>
    %cst_348 = arith.constant 5.000000e-01 : f32
    %547 = vector.broadcast %cst_348 : f32 to vector<2x9xf32>
    %548 = arith.cmpf ogt, %546, %547 : vector<2x9xf32>
    %549 = arith.extui %548 : vector<2x9xi1> to vector<2x9xi32>
    %550 = arith.sitofp %549 : vector<2x9xi32> to vector<2x9xf32>
    %551 = arith.addf %374, %550 : vector<2x9xf32>
    %c3_i32 = arith.constant 3 : i32
    %cst_349 = arith.constant 1.000000e+00 : f32
    %552 = vector.broadcast %cst_349 : f32 to vector<32x256xf32>
    %553 = arith.subf %552, %384 : vector<32x256xf32>
    %cst_350 = arith.constant 2.000000e-01 : f32
    %554 = vector.broadcast %cst_350 : f32 to vector<32x256xf32>
    %555 = arith.mulf %554, %553 : vector<32x256xf32>
    %556 = arith.mulf %380, %555 : vector<32x256xf32>
    %557 = arith.addf %556, %5 : vector<32x256xf32>
    %cst_351 = arith.constant 5.000000e-01 : f32
    %558 = vector.broadcast %cst_351 : f32 to vector<32x256xf32>
    %559 = arith.cmpf ogt, %557, %558 : vector<32x256xf32>
    %560 = arith.extui %559 : vector<32x256xi1> to vector<32x256xi32>
    %561 = arith.sitofp %560 : vector<32x256xi32> to vector<32x256xf32>
    %562 = arith.truncf %561 : vector<32x256xf32> to vector<32x256xbf16>
    %cst_352 = arith.constant dense<0.000000e+00> : vector<32x64xf32>
    %563 = tpu.matmul %562, %6, %cst_352 {dimension_numbers = #tpu.dot_dimension_numbers<[1], [0], [0], [1], [0, 0, 1, 1], [], []>} : vector<32x256xbf16>, vector<256x64xbf16>, vector<32x64xf32> -> vector<32x64xf32>
    %c9_i32_353 = arith.constant 9 : i32
    %564 = tpu.dynamic_rotate %563 by %c9_i32_353 dim 1 : vector<32x64xf32>, i32 -> vector<32x64xf32>
    %c0_354 = arith.constant 0 : index
    %c0_355 = arith.constant 0 : index
    %c0_356 = arith.constant 0 : index
    %565 = vector.load %arg5[%c0_354, %c0_355, %c0_356] : memref<9x1x64xf32, #tpu.memory_space<vmem>>, vector<1x1x64xf32>
    %566 = vector.shape_cast %565 : vector<1x1x64xf32> to vector<1x64xf32>
    %567 = vector.broadcast %566 : vector<1x64xf32> to vector<32x64xf32>
    %568 = arith.mulf %564, %567 : vector<32x64xf32>
    %c8_i32_357 = arith.constant 8 : i32
    %569 = tpu.dynamic_rotate %563 by %c8_i32_357 dim 1 : vector<32x64xf32>, i32 -> vector<32x64xf32>
    %c1_358 = arith.constant 1 : index
    %c0_359 = arith.constant 0 : index
    %c0_360 = arith.constant 0 : index
    %570 = vector.load %arg5[%c1_358, %c0_359, %c0_360] : memref<9x1x64xf32, #tpu.memory_space<vmem>>, vector<1x1x64xf32>
    %571 = vector.shape_cast %570 : vector<1x1x64xf32> to vector<1x64xf32>
    %572 = vector.broadcast %571 : vector<1x64xf32> to vector<32x64xf32>
    %573 = arith.mulf %569, %572 : vector<32x64xf32>
    %c7_i32_361 = arith.constant 7 : i32
    %574 = tpu.dynamic_rotate %563 by %c7_i32_361 dim 1 : vector<32x64xf32>, i32 -> vector<32x64xf32>
    %c2_362 = arith.constant 2 : index
    %c0_363 = arith.constant 0 : index
    %c0_364 = arith.constant 0 : index
    %575 = vector.load %arg5[%c2_362, %c0_363, %c0_364] : memref<9x1x64xf32, #tpu.memory_space<vmem>>, vector<1x1x64xf32>
    %576 = vector.shape_cast %575 : vector<1x1x64xf32> to vector<1x64xf32>
    %577 = vector.broadcast %576 : vector<1x64xf32> to vector<32x64xf32>
    %578 = arith.mulf %574, %577 : vector<32x64xf32>
    %c1_i32_365 = arith.constant 1 : i32
    %579 = tpu.dynamic_rotate %563 by %c1_i32_365 dim 1 : vector<32x64xf32>, i32 -> vector<32x64xf32>
    %c3_366 = arith.constant 3 : index
    %c0_367 = arith.constant 0 : index
    %c0_368 = arith.constant 0 : index
    %580 = vector.load %arg5[%c3_366, %c0_367, %c0_368] : memref<9x1x64xf32, #tpu.memory_space<vmem>>, vector<1x1x64xf32>
    %581 = vector.shape_cast %580 : vector<1x1x64xf32> to vector<1x64xf32>
    %582 = vector.broadcast %581 : vector<1x64xf32> to vector<32x64xf32>
    %583 = arith.mulf %579, %582 : vector<32x64xf32>
    %c4_369 = arith.constant 4 : index
    %c0_370 = arith.constant 0 : index
    %c0_371 = arith.constant 0 : index
    %584 = vector.load %arg5[%c4_369, %c0_370, %c0_371] : memref<9x1x64xf32, #tpu.memory_space<vmem>>, vector<1x1x64xf32>
    %585 = vector.shape_cast %584 : vector<1x1x64xf32> to vector<1x64xf32>
    %586 = vector.broadcast %585 : vector<1x64xf32> to vector<32x64xf32>
    %587 = arith.mulf %563, %586 : vector<32x64xf32>
    %c63_i32_372 = arith.constant 63 : i32
    %588 = tpu.dynamic_rotate %563 by %c63_i32_372 dim 1 : vector<32x64xf32>, i32 -> vector<32x64xf32>
    %c5_373 = arith.constant 5 : index
    %c0_374 = arith.constant 0 : index
    %c0_375 = arith.constant 0 : index
    %589 = vector.load %arg5[%c5_373, %c0_374, %c0_375] : memref<9x1x64xf32, #tpu.memory_space<vmem>>, vector<1x1x64xf32>
    %590 = vector.shape_cast %589 : vector<1x1x64xf32> to vector<1x64xf32>
    %591 = vector.broadcast %590 : vector<1x64xf32> to vector<32x64xf32>
    %592 = arith.mulf %588, %591 : vector<32x64xf32>
    %c57_i32_376 = arith.constant 57 : i32
    %593 = tpu.dynamic_rotate %563 by %c57_i32_376 dim 1 : vector<32x64xf32>, i32 -> vector<32x64xf32>
    %c6_377 = arith.constant 6 : index
    %c0_378 = arith.constant 0 : index
    %c0_379 = arith.constant 0 : index
    %594 = vector.load %arg5[%c6_377, %c0_378, %c0_379] : memref<9x1x64xf32, #tpu.memory_space<vmem>>, vector<1x1x64xf32>
    %595 = vector.shape_cast %594 : vector<1x1x64xf32> to vector<1x64xf32>
    %596 = vector.broadcast %595 : vector<1x64xf32> to vector<32x64xf32>
    %597 = arith.mulf %593, %596 : vector<32x64xf32>
    %c56_i32_380 = arith.constant 56 : i32
    %598 = tpu.dynamic_rotate %563 by %c56_i32_380 dim 1 : vector<32x64xf32>, i32 -> vector<32x64xf32>
    %c7_381 = arith.constant 7 : index
    %c0_382 = arith.constant 0 : index
    %c0_383 = arith.constant 0 : index
    %599 = vector.load %arg5[%c7_381, %c0_382, %c0_383] : memref<9x1x64xf32, #tpu.memory_space<vmem>>, vector<1x1x64xf32>
    %600 = vector.shape_cast %599 : vector<1x1x64xf32> to vector<1x64xf32>
    %601 = vector.broadcast %600 : vector<1x64xf32> to vector<32x64xf32>
    %602 = arith.mulf %598, %601 : vector<32x64xf32>
    %c55_i32_384 = arith.constant 55 : i32
    %603 = tpu.dynamic_rotate %563 by %c55_i32_384 dim 1 : vector<32x64xf32>, i32 -> vector<32x64xf32>
    %c8_385 = arith.constant 8 : index
    %c0_386 = arith.constant 0 : index
    %c0_387 = arith.constant 0 : index
    %604 = vector.load %arg5[%c8_385, %c0_386, %c0_387] : memref<9x1x64xf32, #tpu.memory_space<vmem>>, vector<1x1x64xf32>
    %605 = vector.shape_cast %604 : vector<1x1x64xf32> to vector<1x64xf32>
    %606 = vector.broadcast %605 : vector<1x64xf32> to vector<32x64xf32>
    %607 = arith.mulf %603, %606 : vector<32x64xf32>
    %608 = tpu.concatenate %568, %573, %578, %583, %587, %592, %597, %602, %607 in 0 : vector<32x64xf32>, vector<32x64xf32>, vector<32x64xf32>, vector<32x64xf32>, vector<32x64xf32>, vector<32x64xf32>, vector<32x64xf32>, vector<32x64xf32>, vector<32x64xf32> -> vector<288x64xf32>
    %cst_388 = arith.constant dense<0.000000e+00> : vector<32x64xf32>
    %609 = tpu.matmul %7, %608, %cst_388 {dimension_numbers = #tpu.dot_dimension_numbers<[1], [0], [0], [1], [0, 0, 1, 1], [], []>} : vector<32x288xf32>, vector<288x64xf32>, vector<32x64xf32> -> vector<32x64xf32>
    %610 = vector.broadcast %8 : vector<32x1xf32> to vector<32x64xf32>
    %611 = arith.addf %609, %610 : vector<32x64xf32>
    %cst_389 = arith.constant 1.000000e+00 : f32
    %612 = vector.broadcast %cst_389 : f32 to vector<32x64xf32>
    %613 = arith.subf %612, %444 : vector<32x64xf32>
    %cst_390 = arith.constant 2.000000e-01 : f32
    %614 = vector.broadcast %cst_390 : f32 to vector<32x64xf32>
    %615 = arith.mulf %614, %613 : vector<32x64xf32>
    %616 = arith.mulf %440, %615 : vector<32x64xf32>
    %617 = arith.addf %616, %611 : vector<32x64xf32>
    %cst_391 = arith.constant 5.000000e-01 : f32
    %618 = vector.broadcast %cst_391 : f32 to vector<32x64xf32>
    %619 = arith.cmpf ogt, %617, %618 : vector<32x64xf32>
    %620 = arith.extui %619 : vector<32x64xi1> to vector<32x64xi32>
    %621 = arith.sitofp %620 : vector<32x64xi32> to vector<32x64xf32>
    %cst_392 = arith.constant 0.000000e+00 : f32
    %622 = vector.broadcast %cst_392 : f32 to vector<2x32xf32>
    %623 = vector.broadcast %9 : vector<1x32xf32> to vector<2x32xf32>
    %624 = arith.addf %622, %623 : vector<2x32xf32>
    %625 = vector.extract_strided_slice %621 {offsets = [0, 0], sizes = [2, 64], strides = [1, 1]} : vector<32x64xf32> to vector<2x64xf32>
    %c0_393 = arith.constant 0 : index
    %c0_394 = arith.constant 0 : index
    %c0_395 = arith.constant 0 : index
    %626 = vector.load %arg8[%c0_393, %c0_394, %c0_395] : memref<16x64x32xf32, #tpu.memory_space<vmem>>, vector<1x64x32xf32>
    %627 = vector.shape_cast %626 : vector<1x64x32xf32> to vector<64x32xf32>
    %cst_396 = arith.constant dense<0.000000e+00> : vector<2x32xf32>
    %628 = tpu.matmul %625, %627, %cst_396 {dimension_numbers = #tpu.dot_dimension_numbers<[1], [0], [0], [1], [0, 0, 1, 1], [], []>} : vector<2x64xf32>, vector<64x32xf32>, vector<2x32xf32> -> vector<2x32xf32>
    %629 = arith.addf %624, %628 : vector<2x32xf32>
    %630 = vector.extract_strided_slice %621 {offsets = [2, 0], sizes = [2, 64], strides = [1, 1]} : vector<32x64xf32> to vector<2x64xf32>
    %c1_397 = arith.constant 1 : index
    %c0_398 = arith.constant 0 : index
    %c0_399 = arith.constant 0 : index
    %631 = vector.load %arg8[%c1_397, %c0_398, %c0_399] : memref<16x64x32xf32, #tpu.memory_space<vmem>>, vector<1x64x32xf32>
    %632 = vector.shape_cast %631 : vector<1x64x32xf32> to vector<64x32xf32>
    %cst_400 = arith.constant dense<0.000000e+00> : vector<2x32xf32>
    %633 = tpu.matmul %630, %632, %cst_400 {dimension_numbers = #tpu.dot_dimension_numbers<[1], [0], [0], [1], [0, 0, 1, 1], [], []>} : vector<2x64xf32>, vector<64x32xf32>, vector<2x32xf32> -> vector<2x32xf32>
    %634 = arith.addf %629, %633 : vector<2x32xf32>
    %635 = vector.extract_strided_slice %621 {offsets = [4, 0], sizes = [2, 64], strides = [1, 1]} : vector<32x64xf32> to vector<2x64xf32>
    %c2_401 = arith.constant 2 : index
    %c0_402 = arith.constant 0 : index
    %c0_403 = arith.constant 0 : index
    %636 = vector.load %arg8[%c2_401, %c0_402, %c0_403] : memref<16x64x32xf32, #tpu.memory_space<vmem>>, vector<1x64x32xf32>
    %637 = vector.shape_cast %636 : vector<1x64x32xf32> to vector<64x32xf32>
    %cst_404 = arith.constant dense<0.000000e+00> : vector<2x32xf32>
    %638 = tpu.matmul %635, %637, %cst_404 {dimension_numbers = #tpu.dot_dimension_numbers<[1], [0], [0], [1], [0, 0, 1, 1], [], []>} : vector<2x64xf32>, vector<64x32xf32>, vector<2x32xf32> -> vector<2x32xf32>
    %639 = arith.addf %634, %638 : vector<2x32xf32>
    %640 = vector.extract_strided_slice %621 {offsets = [6, 0], sizes = [2, 64], strides = [1, 1]} : vector<32x64xf32> to vector<2x64xf32>
    %c3_405 = arith.constant 3 : index
    %c0_406 = arith.constant 0 : index
    %c0_407 = arith.constant 0 : index
    %641 = vector.load %arg8[%c3_405, %c0_406, %c0_407] : memref<16x64x32xf32, #tpu.memory_space<vmem>>, vector<1x64x32xf32>
    %642 = vector.shape_cast %641 : vector<1x64x32xf32> to vector<64x32xf32>
    %cst_408 = arith.constant dense<0.000000e+00> : vector<2x32xf32>
    %643 = tpu.matmul %640, %642, %cst_408 {dimension_numbers = #tpu.dot_dimension_numbers<[1], [0], [0], [1], [0, 0, 1, 1], [], []>} : vector<2x64xf32>, vector<64x32xf32>, vector<2x32xf32> -> vector<2x32xf32>
    %644 = arith.addf %639, %643 : vector<2x32xf32>
    %645 = vector.extract_strided_slice %621 {offsets = [8, 0], sizes = [2, 64], strides = [1, 1]} : vector<32x64xf32> to vector<2x64xf32>
    %c4_409 = arith.constant 4 : index
    %c0_410 = arith.constant 0 : index
    %c0_411 = arith.constant 0 : index
    %646 = vector.load %arg8[%c4_409, %c0_410, %c0_411] : memref<16x64x32xf32, #tpu.memory_space<vmem>>, vector<1x64x32xf32>
    %647 = vector.shape_cast %646 : vector<1x64x32xf32> to vector<64x32xf32>
    %cst_412 = arith.constant dense<0.000000e+00> : vector<2x32xf32>
    %648 = tpu.matmul %645, %647, %cst_412 {dimension_numbers = #tpu.dot_dimension_numbers<[1], [0], [0], [1], [0, 0, 1, 1], [], []>} : vector<2x64xf32>, vector<64x32xf32>, vector<2x32xf32> -> vector<2x32xf32>
    %649 = arith.addf %644, %648 : vector<2x32xf32>
    %650 = vector.extract_strided_slice %621 {offsets = [10, 0], sizes = [2, 64], strides = [1, 1]} : vector<32x64xf32> to vector<2x64xf32>
    %c5_413 = arith.constant 5 : index
    %c0_414 = arith.constant 0 : index
    %c0_415 = arith.constant 0 : index
    %651 = vector.load %arg8[%c5_413, %c0_414, %c0_415] : memref<16x64x32xf32, #tpu.memory_space<vmem>>, vector<1x64x32xf32>
    %652 = vector.shape_cast %651 : vector<1x64x32xf32> to vector<64x32xf32>
    %cst_416 = arith.constant dense<0.000000e+00> : vector<2x32xf32>
    %653 = tpu.matmul %650, %652, %cst_416 {dimension_numbers = #tpu.dot_dimension_numbers<[1], [0], [0], [1], [0, 0, 1, 1], [], []>} : vector<2x64xf32>, vector<64x32xf32>, vector<2x32xf32> -> vector<2x32xf32>
    %654 = arith.addf %649, %653 : vector<2x32xf32>
    %655 = vector.extract_strided_slice %621 {offsets = [12, 0], sizes = [2, 64], strides = [1, 1]} : vector<32x64xf32> to vector<2x64xf32>
    %c6_417 = arith.constant 6 : index
    %c0_418 = arith.constant 0 : index
    %c0_419 = arith.constant 0 : index
    %656 = vector.load %arg8[%c6_417, %c0_418, %c0_419] : memref<16x64x32xf32, #tpu.memory_space<vmem>>, vector<1x64x32xf32>
    %657 = vector.shape_cast %656 : vector<1x64x32xf32> to vector<64x32xf32>
    %cst_420 = arith.constant dense<0.000000e+00> : vector<2x32xf32>
    %658 = tpu.matmul %655, %657, %cst_420 {dimension_numbers = #tpu.dot_dimension_numbers<[1], [0], [0], [1], [0, 0, 1, 1], [], []>} : vector<2x64xf32>, vector<64x32xf32>, vector<2x32xf32> -> vector<2x32xf32>
    %659 = arith.addf %654, %658 : vector<2x32xf32>
    %660 = vector.extract_strided_slice %621 {offsets = [14, 0], sizes = [2, 64], strides = [1, 1]} : vector<32x64xf32> to vector<2x64xf32>
    %c7_421 = arith.constant 7 : index
    %c0_422 = arith.constant 0 : index
    %c0_423 = arith.constant 0 : index
    %661 = vector.load %arg8[%c7_421, %c0_422, %c0_423] : memref<16x64x32xf32, #tpu.memory_space<vmem>>, vector<1x64x32xf32>
    %662 = vector.shape_cast %661 : vector<1x64x32xf32> to vector<64x32xf32>
    %cst_424 = arith.constant dense<0.000000e+00> : vector<2x32xf32>
    %663 = tpu.matmul %660, %662, %cst_424 {dimension_numbers = #tpu.dot_dimension_numbers<[1], [0], [0], [1], [0, 0, 1, 1], [], []>} : vector<2x64xf32>, vector<64x32xf32>, vector<2x32xf32> -> vector<2x32xf32>
    %664 = arith.addf %659, %663 : vector<2x32xf32>
    %665 = vector.extract_strided_slice %621 {offsets = [16, 0], sizes = [2, 64], strides = [1, 1]} : vector<32x64xf32> to vector<2x64xf32>
    %c8_425 = arith.constant 8 : index
    %c0_426 = arith.constant 0 : index
    %c0_427 = arith.constant 0 : index
    %666 = vector.load %arg8[%c8_425, %c0_426, %c0_427] : memref<16x64x32xf32, #tpu.memory_space<vmem>>, vector<1x64x32xf32>
    %667 = vector.shape_cast %666 : vector<1x64x32xf32> to vector<64x32xf32>
    %cst_428 = arith.constant dense<0.000000e+00> : vector<2x32xf32>
    %668 = tpu.matmul %665, %667, %cst_428 {dimension_numbers = #tpu.dot_dimension_numbers<[1], [0], [0], [1], [0, 0, 1, 1], [], []>} : vector<2x64xf32>, vector<64x32xf32>, vector<2x32xf32> -> vector<2x32xf32>
    %669 = arith.addf %664, %668 : vector<2x32xf32>
    %670 = vector.extract_strided_slice %621 {offsets = [18, 0], sizes = [2, 64], strides = [1, 1]} : vector<32x64xf32> to vector<2x64xf32>
    %c9_429 = arith.constant 9 : index
    %c0_430 = arith.constant 0 : index
    %c0_431 = arith.constant 0 : index
    %671 = vector.load %arg8[%c9_429, %c0_430, %c0_431] : memref<16x64x32xf32, #tpu.memory_space<vmem>>, vector<1x64x32xf32>
    %672 = vector.shape_cast %671 : vector<1x64x32xf32> to vector<64x32xf32>
    %cst_432 = arith.constant dense<0.000000e+00> : vector<2x32xf32>
    %673 = tpu.matmul %670, %672, %cst_432 {dimension_numbers = #tpu.dot_dimension_numbers<[1], [0], [0], [1], [0, 0, 1, 1], [], []>} : vector<2x64xf32>, vector<64x32xf32>, vector<2x32xf32> -> vector<2x32xf32>
    %674 = arith.addf %669, %673 : vector<2x32xf32>
    %675 = vector.extract_strided_slice %621 {offsets = [20, 0], sizes = [2, 64], strides = [1, 1]} : vector<32x64xf32> to vector<2x64xf32>
    %c10_433 = arith.constant 10 : index
    %c0_434 = arith.constant 0 : index
    %c0_435 = arith.constant 0 : index
    %676 = vector.load %arg8[%c10_433, %c0_434, %c0_435] : memref<16x64x32xf32, #tpu.memory_space<vmem>>, vector<1x64x32xf32>
    %677 = vector.shape_cast %676 : vector<1x64x32xf32> to vector<64x32xf32>
    %cst_436 = arith.constant dense<0.000000e+00> : vector<2x32xf32>
    %678 = tpu.matmul %675, %677, %cst_436 {dimension_numbers = #tpu.dot_dimension_numbers<[1], [0], [0], [1], [0, 0, 1, 1], [], []>} : vector<2x64xf32>, vector<64x32xf32>, vector<2x32xf32> -> vector<2x32xf32>
    %679 = arith.addf %674, %678 : vector<2x32xf32>
    %680 = vector.extract_strided_slice %621 {offsets = [22, 0], sizes = [2, 64], strides = [1, 1]} : vector<32x64xf32> to vector<2x64xf32>
    %c11_437 = arith.constant 11 : index
    %c0_438 = arith.constant 0 : index
    %c0_439 = arith.constant 0 : index
    %681 = vector.load %arg8[%c11_437, %c0_438, %c0_439] : memref<16x64x32xf32, #tpu.memory_space<vmem>>, vector<1x64x32xf32>
    %682 = vector.shape_cast %681 : vector<1x64x32xf32> to vector<64x32xf32>
    %cst_440 = arith.constant dense<0.000000e+00> : vector<2x32xf32>
    %683 = tpu.matmul %680, %682, %cst_440 {dimension_numbers = #tpu.dot_dimension_numbers<[1], [0], [0], [1], [0, 0, 1, 1], [], []>} : vector<2x64xf32>, vector<64x32xf32>, vector<2x32xf32> -> vector<2x32xf32>
    %684 = arith.addf %679, %683 : vector<2x32xf32>
    %685 = vector.extract_strided_slice %621 {offsets = [24, 0], sizes = [2, 64], strides = [1, 1]} : vector<32x64xf32> to vector<2x64xf32>
    %c12_441 = arith.constant 12 : index
    %c0_442 = arith.constant 0 : index
    %c0_443 = arith.constant 0 : index
    %686 = vector.load %arg8[%c12_441, %c0_442, %c0_443] : memref<16x64x32xf32, #tpu.memory_space<vmem>>, vector<1x64x32xf32>
    %687 = vector.shape_cast %686 : vector<1x64x32xf32> to vector<64x32xf32>
    %cst_444 = arith.constant dense<0.000000e+00> : vector<2x32xf32>
    %688 = tpu.matmul %685, %687, %cst_444 {dimension_numbers = #tpu.dot_dimension_numbers<[1], [0], [0], [1], [0, 0, 1, 1], [], []>} : vector<2x64xf32>, vector<64x32xf32>, vector<2x32xf32> -> vector<2x32xf32>
    %689 = arith.addf %684, %688 : vector<2x32xf32>
    %690 = vector.extract_strided_slice %621 {offsets = [26, 0], sizes = [2, 64], strides = [1, 1]} : vector<32x64xf32> to vector<2x64xf32>
    %c13_445 = arith.constant 13 : index
    %c0_446 = arith.constant 0 : index
    %c0_447 = arith.constant 0 : index
    %691 = vector.load %arg8[%c13_445, %c0_446, %c0_447] : memref<16x64x32xf32, #tpu.memory_space<vmem>>, vector<1x64x32xf32>
    %692 = vector.shape_cast %691 : vector<1x64x32xf32> to vector<64x32xf32>
    %cst_448 = arith.constant dense<0.000000e+00> : vector<2x32xf32>
    %693 = tpu.matmul %690, %692, %cst_448 {dimension_numbers = #tpu.dot_dimension_numbers<[1], [0], [0], [1], [0, 0, 1, 1], [], []>} : vector<2x64xf32>, vector<64x32xf32>, vector<2x32xf32> -> vector<2x32xf32>
    %694 = arith.addf %689, %693 : vector<2x32xf32>
    %695 = vector.extract_strided_slice %621 {offsets = [28, 0], sizes = [2, 64], strides = [1, 1]} : vector<32x64xf32> to vector<2x64xf32>
    %c14_449 = arith.constant 14 : index
    %c0_450 = arith.constant 0 : index
    %c0_451 = arith.constant 0 : index
    %696 = vector.load %arg8[%c14_449, %c0_450, %c0_451] : memref<16x64x32xf32, #tpu.memory_space<vmem>>, vector<1x64x32xf32>
    %697 = vector.shape_cast %696 : vector<1x64x32xf32> to vector<64x32xf32>
    %cst_452 = arith.constant dense<0.000000e+00> : vector<2x32xf32>
    %698 = tpu.matmul %695, %697, %cst_452 {dimension_numbers = #tpu.dot_dimension_numbers<[1], [0], [0], [1], [0, 0, 1, 1], [], []>} : vector<2x64xf32>, vector<64x32xf32>, vector<2x32xf32> -> vector<2x32xf32>
    %699 = arith.addf %694, %698 : vector<2x32xf32>
    %700 = vector.extract_strided_slice %621 {offsets = [30, 0], sizes = [2, 64], strides = [1, 1]} : vector<32x64xf32> to vector<2x64xf32>
    %c15_453 = arith.constant 15 : index
    %c0_454 = arith.constant 0 : index
    %c0_455 = arith.constant 0 : index
    %701 = vector.load %arg8[%c15_453, %c0_454, %c0_455] : memref<16x64x32xf32, #tpu.memory_space<vmem>>, vector<1x64x32xf32>
    %702 = vector.shape_cast %701 : vector<1x64x32xf32> to vector<64x32xf32>
    %cst_456 = arith.constant dense<0.000000e+00> : vector<2x32xf32>
    %703 = tpu.matmul %700, %702, %cst_456 {dimension_numbers = #tpu.dot_dimension_numbers<[1], [0], [0], [1], [0, 0, 1, 1], [], []>} : vector<2x64xf32>, vector<64x32xf32>, vector<2x32xf32> -> vector<2x32xf32>
    %704 = arith.addf %699, %703 : vector<2x32xf32>
    %cst_457 = arith.constant 1.000000e+00 : f32
    %705 = vector.broadcast %cst_457 : f32 to vector<2x32xf32>
    %706 = arith.subf %705, %537 : vector<2x32xf32>
    %cst_458 = arith.constant 2.000000e-01 : f32
    %707 = vector.broadcast %cst_458 : f32 to vector<2x32xf32>
    %708 = arith.mulf %707, %706 : vector<2x32xf32>
    %709 = arith.mulf %533, %708 : vector<2x32xf32>
    %710 = arith.addf %709, %704 : vector<2x32xf32>
    %cst_459 = arith.constant 5.000000e-01 : f32
    %711 = vector.broadcast %cst_459 : f32 to vector<2x32xf32>
    %712 = arith.cmpf ogt, %710, %711 : vector<2x32xf32>
    %713 = arith.extui %712 : vector<2x32xi1> to vector<2x32xi32>
    %714 = arith.sitofp %713 : vector<2x32xi32> to vector<2x32xf32>
    %cst_460 = arith.constant dense<0.000000e+00> : vector<2x9xf32>
    %715 = tpu.matmul %714, %10, %cst_460 {dimension_numbers = #tpu.dot_dimension_numbers<[1], [0], [0], [1], [0, 0, 1, 1], [], []>} : vector<2x32xf32>, vector<32x9xf32>, vector<2x9xf32> -> vector<2x9xf32>
    %716 = vector.broadcast %11 : vector<1x9xf32> to vector<2x9xf32>
    %717 = arith.addf %715, %716 : vector<2x9xf32>
    %cst_461 = arith.constant 1.000000e+00 : f32
    %718 = vector.broadcast %cst_461 : f32 to vector<2x9xf32>
    %719 = arith.subf %718, %550 : vector<2x9xf32>
    %cst_462 = arith.constant 2.000000e-01 : f32
    %720 = vector.broadcast %cst_462 : f32 to vector<2x9xf32>
    %721 = arith.mulf %720, %719 : vector<2x9xf32>
    %722 = arith.mulf %546, %721 : vector<2x9xf32>
    %723 = arith.addf %722, %717 : vector<2x9xf32>
    %cst_463 = arith.constant 5.000000e-01 : f32
    %724 = vector.broadcast %cst_463 : f32 to vector<2x9xf32>
    %725 = arith.cmpf ogt, %723, %724 : vector<2x9xf32>
    %726 = arith.extui %725 : vector<2x9xi1> to vector<2x9xi32>
    %727 = arith.sitofp %726 : vector<2x9xi32> to vector<2x9xf32>
    %728 = arith.addf %551, %727 : vector<2x9xf32>
    %cst_464 = arith.constant 2.500000e-01 : f32
    %729 = vector.broadcast %cst_464 : f32 to vector<2x9xf32>
    %730 = arith.mulf %728, %729 : vector<2x9xf32>
    %c0_465 = arith.constant 0 : index
    %c0_466 = arith.constant 0 : index
    %731 = vector.load %arg12[%c0_465, %c0_466] : memref<2x9xf32, #tpu.memory_space<vmem>>, vector<2x9xf32>
    tpu.vector_store %arg12[%c0_465, %c0_466], %730 {strides = array<i32>} : memref<2x9xf32, #tpu.memory_space<vmem>>, vector<2x9xf32>,
    return
  }
  func.func @transform_0(%arg0: i32) -> (i32, i32) {
    %c0_i32 = arith.constant 0 : i32
    %c0_i32_0 = arith.constant 0 : i32
    %c0_i32_1 = arith.constant 0 : i32
    return %c0_i32, %c0_i32_0 : i32, i32
  }
  func.func @transform_1(%arg0: i32) -> (i32, i32) {
    %c0_i32 = arith.constant 0 : i32
    %c0_i32_0 = arith.constant 0 : i32
    %c0_i32_1 = arith.constant 0 : i32
    return %c0_i32, %c0_i32_0 : i32, i32
  }
  func.func @transform_2(%arg0: i32) -> (i32, i32) {
    %c0_i32 = arith.constant 0 : i32
    %c0_i32_0 = arith.constant 0 : i32
    %c0_i32_1 = arith.constant 0 : i32
    return %c0_i32, %c0_i32_0 : i32, i32
  }
  func.func @transform_3(%arg0: i32) -> (i32, i32) {
    %c0_i32 = arith.constant 0 : i32
    %c0_i32_0 = arith.constant 0 : i32
    %c0_i32_1 = arith.constant 0 : i32
    return %c0_i32, %c0_i32_0 : i32, i32
  }
  func.func @transform_4(%arg0: i32) -> (i32, i32, i32) {
    %c0_i32 = arith.constant 0 : i32
    %c0_i32_0 = arith.constant 0 : i32
    %c0_i32_1 = arith.constant 0 : i32
    %c0_i32_2 = arith.constant 0 : i32
    return %c0_i32, %c0_i32_0, %c0_i32_1 : i32, i32, i32
  }
  func.func @transform_5(%arg0: i32) -> (i32, i32) {
    %c0_i32 = arith.constant 0 : i32
    %c0_i32_0 = arith.constant 0 : i32
    %c0_i32_1 = arith.constant 0 : i32
    return %c0_i32, %c0_i32_0 : i32, i32
  }
  func.func @transform_6(%arg0: i32) -> (i32, i32) {
    %c0_i32 = arith.constant 0 : i32
    %c0_i32_0 = arith.constant 0 : i32
    %c0_i32_1 = arith.constant 0 : i32
    return %c0_i32, %c0_i32_0 : i32, i32
  }
  func.func @transform_7(%arg0: i32) -> (i32, i32, i32) {
    %c0_i32 = arith.constant 0 : i32
    %c0_i32_0 = arith.constant 0 : i32
    %c0_i32_1 = arith.constant 0 : i32
    %c0_i32_2 = arith.constant 0 : i32
    return %c0_i32, %c0_i32_0, %c0_i32_1 : i32, i32, i32
  }
  func.func @transform_8(%arg0: i32) -> (i32, i32) {
    %c0_i32 = arith.constant 0 : i32
    %c0_i32_0 = arith.constant 0 : i32
    %c0_i32_1 = arith.constant 0 : i32
    return %c0_i32, %c0_i32_0 : i32, i32
  }
  func.func @transform_9(%arg0: i32) -> (i32, i32) {
    %c0_i32 = arith.constant 0 : i32
    %c0_i32_0 = arith.constant 0 : i32
    %c0_i32_1 = arith.constant 0 : i32
    return %c0_i32, %c0_i32_0 : i32, i32
  }
  func.func @transform_10(%arg0: i32) -> (i32, i32) {
    %c0_i32 = arith.constant 0 : i32
    %c0_i32_0 = arith.constant 0 : i32
    %c0_i32_1 = arith.constant 0 : i32
    return %c0_i32, %c0_i32_0 : i32, i32
  }
  func.func @transform_11(%arg0: i32) -> (i32, i32) {
    %c0_i32 = arith.constant 0 : i32
    %c0_i32_0 = arith.constant 0 : i32
    %c0_i32_1 = arith.constant 0 : i32
    return %c0_i32, %c0_i32_0 : i32, i32
  }
}

</mosaic_0001>

<llo_original>
// kernel: mul.1
$region0: #{mul.1}
  %s0 = inlined_call_operand.vmem [shape: f32[16,3,3], index: 0, kind: input, shape index: {}]
  %s1 = inlined_call_operand.vmem [shape: f32[16,9], index: 1, kind: output, shape index: {}]
  $region1: #{mul.1} parent=0
    #allocation0 [shape = 'u8[12288]{0}', space=vmem, size = 0x3000, scoped, tag = 'scoped mem for input reshape']
    %s3 = sshllo.u32 0, 4
    %s4 = smul.addr 4, 2
    %s5 = scalar_lea.vmem %s0, %s4
    %v6 = vld [vmem:[%s5] sm:%s3]
    %s7 = scalar_lea.vmem [#allocation0], 16
    %8 = vst [vmem:[%s7] sm:%s3] %v6
    %s9 = scalar_lea.vmem %s0, 4
    %v10 = vld [vmem:[%s9] sm:%s3]
    %s11 = scalar_lea.vmem [#allocation0], 8
    %12 = vst [vmem:[%s11] sm:%s3] %v10
    %v13 = vld [vmem:[%s0] sm:%s3]
    %14 = vst [vmem:[#allocation0] sm:%s3] %v13
    %v15 = vld [vmem:[#allocation0] sm:$0x7]
    %vm16 = vcmask 130048
    %17 = vst.msk [vmem:[%s1] sm:$0x7] %vm16, %v15
    %s18 = scalar_lea.vmem [#allocation0], 8
    %v19 = vld [vmem:[%s18] sm:$0x7]
    %vm20 = vcmask 130048
    %s21 = scalar_lea.vmem %s1, 3
    %22 = vst.msk [vmem:[%s21] sm:$0x7] %vm20, %v19
    %s23 = scalar_lea.vmem [#allocation0], 16
    %v24 = vld [vmem:[%s23] sm:$0x7]
    %vm25 = vcmask 130048
    %s26 = scalar_lea.vmem %s1, 6
    %27 = vst.msk [vmem:[%s26] sm:$0x7] %vm25, %v24

// kernel: scnn_forward.1
$region0: #{scnn_forward.1}
  #allocation0 [shape = 'u32[]', space=smem, size = 0x4, offset = 0x4, fixed_abs, tag = 'smem constant byte address 0x4 - core index']
  #allocation1 [shape = 'u32[144,128]{1,0:T(1,128)}', space=vmem, size = 0x12000, scoped, tag = 'internal scratch']
  %s0 = inlined_call_operand.vmem [shape: f32[18,256], index: 0, kind: input, shape index: {}]
  %s1 = inlined_call_operand.vmem [shape: f32[32,18], index: 1, kind: input, shape index: {}]
  %s2 = inlined_call_operand.vmem [shape: f32[32,1], index: 2, kind: input, shape index: {}]
  %s3 = inlined_call_operand.vmem [shape: bf16[256,64], index: 3, kind: input, shape index: {}]
  %s4 = inlined_call_operand.vmem [shape: f32[9,1,64], index: 4, kind: input, shape index: {}]
  %s5 = inlined_call_operand.vmem [shape: f32[32,288], index: 5, kind: input, shape index: {}]
  %s6 = inlined_call_operand.vmem [shape: f32[32,1], index: 6, kind: input, shape index: {}]
  %s7 = inlined_call_operand.vmem [shape: f32[16,64,32], index: 7, kind: input, shape index: {}]
  %s8 = inlined_call_operand.vmem [shape: f32[1,32], index: 8, kind: input, shape index: {}]
  %s9 = inlined_call_operand.vmem [shape: f32[32,9], index: 9, kind: input, shape index: {}]
  %s10 = inlined_call_operand.vmem [shape: f32[1,9], index: 10, kind: input, shape index: {}]
  %s11 = inlined_call_operand.hbm [shape: f32[2,9], index: 11, kind: output, shape index: {}]
  %s12 = sld [smem:[#allocation0]]
  $region54: #{scnn_forward.1} parent=0
    _
  %s14 = ssub.s32 1, %s12
  %s15 = scalar_select 0, %s14, %s12
  $region1: #{scnn_forward.1} parent=0
    #allocation2 [shape = 'u8[1024]{0}', space=vmem, size = 0x400, scoped, tag = 'output window, operand 0, single buffered']
    #allocation3 [shape = 's32[1]{0}', space=sflag, size = 0x4, scoped, tag = 'scoped memory for scnn_forward.1']
    %16 = vsyncpa [#allocation3], 0
    // Predicated region
    $region2: #{scnn_forward.1} parent=1 // pred_check
      _
    $region3: #{scnn_forward.1} parent=1 // pred_check_branch
      %18 = sbr.rel (0) target = $region5
    $region4: #{scnn_forward.1} parent=1 // pred_region
      _
    $region5: #{scnn_forward.1} parent=1 // pred_fallthru
      _
    // Predicated region
    $region6: #{scnn_forward.1} parent=1 // pred_check
      _
    $region7: #{scnn_forward.1} parent=1 // pred_check_branch
      %20 = sbr.rel (0) target = $region9
    $region8: #{scnn_forward.1} parent=1 // pred_region
      _
    $region9: #{scnn_forward.1} parent=1 // pred_fallthru
      _
    // Predicated region
    $region10: #{scnn_forward.1} parent=1 // pred_check
      _
    $region11: #{scnn_forward.1} parent=1 // pred_check_branch
      %22 = sbr.rel (0) target = $region13
    $region12: #{scnn_forward.1} parent=1 // pred_region
      _
    $region13: #{scnn_forward.1} parent=1 // pred_fallthru
      _
    // Predicated region
    $region14: #{scnn_forward.1} parent=1 // pred_check
      _
    $region15: #{scnn_forward.1} parent=1 // pred_check_branch
      %24 = sbr.rel (0) target = $region17
    $region16: #{scnn_forward.1} parent=1 // pred_region
      _
    $region17: #{scnn_forward.1} parent=1 // pred_fallthru
      _
    // Predicated region
    $region18: #{scnn_forward.1} parent=1 // pred_check
      _
    $region19: #{scnn_forward.1} parent=1 // pred_check_branch
      %26 = sbr.rel (0) target = $region21
    $region20: #{scnn_forward.1} parent=1 // pred_region
      _
    $region21: #{scnn_forward.1} parent=1 // pred_fallthru
      _
    // Predicated region
    $region22: #{scnn_forward.1} parent=1 // pred_check
      _
    $region23: #{scnn_forward.1} parent=1 // pred_check_branch
      %28 = sbr.rel (0) target = $region25
    $region24: #{scnn_forward.1} parent=1 // pred_region
      _
    $region25: #{scnn_forward.1} parent=1 // pred_fallthru
      _
    // Predicated region
    $region26: #{scnn_forward.1} parent=1 // pred_check
      _
    $region27: #{scnn_forward.1} parent=1 // pred_check_branch
      %30 = sbr.rel (0) target = $region29
    $region28: #{scnn_forward.1} parent=1 // pred_region
      _
    $region29: #{scnn_forward.1} parent=1 // pred_fallthru
      _
    // Predicated region
    $region30: #{scnn_forward.1} parent=1 // pred_check
      _
    $region31: #{scnn_forward.1} parent=1 // pred_check_branch
      %32 = sbr.rel (0) target = $region33
    $region32: #{scnn_forward.1} parent=1 // pred_region
      _
    $region33: #{scnn_forward.1} parent=1 // pred_fallthru
      _
    // Predicated region
    $region34: #{scnn_forward.1} parent=1 // pred_check
      _
    $region35: #{scnn_forward.1} parent=1 // pred_check_branch
      %34 = sbr.rel (0) target = $region37
    $region36: #{scnn_forward.1} parent=1 // pred_region
      _
    $region37: #{scnn_forward.1} parent=1 // pred_fallthru
      _
    // Predicated region
    $region38: #{scnn_forward.1} parent=1 // pred_check
      _
    $region39: #{scnn_forward.1} parent=1 // pred_check_branch
      %36 = sbr.rel (0) target = $region41
    $region40: #{scnn_forward.1} parent=1 // pred_region
      _
    $region41: #{scnn_forward.1} parent=1 // pred_fallthru
      _
    // Predicated region
    $region42: #{scnn_forward.1} parent=1 // pred_check
      _
    $region43: #{scnn_forward.1} parent=1 // pred_check_branch
      %38 = sbr.rel (0) target = $region45
    $region44: #{scnn_forward.1} parent=1 // pred_region
      _
    $region45: #{scnn_forward.1} parent=1 // pred_fallthru
      _
    %v40 = vld [vmem:[%s1] sm:$0xff]
    %v41 = vld [vmem:[%s1 + $0x8] sm:$0xff]
    %v42 = vld [vmem:[%s1 + $0x10] sm:$0xff]
    %v43 = vld [vmem:[%s1 + $0x18] sm:$0xff]
    %v44 = vld [vmem:[%s0] sm:$0xff]
    %v45 = vld [vmem:[%s0 + $0x8] sm:$0xff]
    %v46 = vld [vmem:[%s0 + $0x10] sm:$0xff]
    %v47 = vld [vmem:[%s0 + $0x18] sm:$0xff]
    %v48 = vld [vmem:[%s0 + $0x20] sm:$0x3]
    %v49 = vld [vmem:[%s0 + $0x28] sm:$0x3]
    %v50 = vld [vmem:[%s2] sm:$0xff]
    %v51 = vld [vmem:[%s2 + $0x8] sm:$0xff]
    %v52 = vld [vmem:[%s2 + $0x10] sm:$0xff]
    %v53 = vld [vmem:[%s2 + $0x18] sm:$0xff]
    %55 = vset.pattern.permute.xlu0 0
    %56 = vperm.xlu0 %55, %v50
    %v57 = vpop.permute.xlu0 %56
    %60 = vset.pattern.permute.xlu0 0
    %61 = vperm.xlu0 %60, %v51
    %v62 = vpop.permute.xlu0 %61
    %65 = vset.pattern.permute.xlu0 0
    %66 = vperm.xlu0 %65, %v52
    %v67 = vpop.permute.xlu0 %66
    %70 = vset.pattern.permute.xlu0 0
    %71 = vperm.xlu0 %70, %v53
    %v72 = vpop.permute.xlu0 %71
    %vm74 = vcmask 146432
    %v76 = vsel %vm74, %v40, 0
    %v79 = vsel %vm74, %v41, 0
    %v82 = vsel %vm74, %v42, 0
    %v85 = vsel %vm74, %v43, 0
    %vm87 = vcmask 1041408
    %v89 = vsel %vm87, %v48, 0
    %v92 = vsel %vm87, %v49, 0
    %94 = vmatprep.subr.mxu0 %v45
    %95 = vmatpush1.msra.mxu0 %v44
    %96 = vmatprep.subr.mxu0 %v47
    %97 = vmatpush1.msra.mxu0 %v46
    %98 = vmatprep.subr.mxu0 %v92
    %99 = vmatpush1.msra.mxu0 %v89
    %100 = vmatprep.subr.mxu0 0.0
    %101 = vmatpush1.msra.mxu0 0.0
    %102 = vmatprep.subr.mxu0 0.0
    %103 = vmatpush1.msra.mxu0 0.0
    %104 = vmatprep.subr.mxu0 0.0
    %105 = vmatpush1.msra.mxu0 0.0
    %106 = vmatprep.subr.mxu0 0.0
    %107 = vmatpush1.msra.mxu0 0.0
    %108 = vmatprep.subr.mxu0 0.0
    %109 = vmatpush1.msra.mxu0 0.0
    %110 = vmatprep.subr.mxu0 0.0
    %111 = vmatpush1.msra.mxu0 0.0
    %112 = vmatprep.subr.mxu0 0.0
    %113 = vmatpush1.msra.mxu0 0.0
    %114 = vmatprep.subr.mxu0 0.0
    %115 = vmatpush1.msra.mxu0 0.0
    %116 = vmatprep.subr.mxu0 0.0
    %117 = vmatpush1.msra.mxu0 0.0
    %118 = vmatprep.subr.mxu0 0.0
    %119 = vmatpush1.msra.mxu0 0.0
    %120 = vmatprep.subr.mxu0 0.0
    %121 = vmatpush1.msra.mxu0 0.0
    %122 = vmatprep.subr.mxu0 0.0
    %123 = vmatpush1.msra.mxu0 0.0
    %124 = vmatprep.subr.mxu0 0.0
    %125 = vmatpush1.msra.mxu0 0.0
    %126 = vmatprep.subr.mxu0 0.0
    %127 = vmatpush1.msra.mxu0 0.0
    %128 = vmatprep.subr.mxu0 0.0
    %129 = vmatpush1.msra.mxu0 0.0
    %130 = vmatprep.subr.mxu0 0.0
    %131 = vmatpush1.msra.mxu0 0.0
    %132 = vmatprep.subr.mxu0 0.0
    %133 = vmatpush1.msra.mxu0 0.0
    %134 = vmatprep.subr.mxu0 0.0
    %135 = vmatpush1.msra.mxu0 0.0
    %136 = vmatprep.subr.mxu0 0.0
    %137 = vmatpush1.msra.mxu0 0.0
    %138 = vmatprep.subr.mxu0 0.0
    %139 = vmatpush1.msra.mxu0 0.0
    %140 = vmatprep.subr.mxu0 0.0
    %141 = vmatpush1.msra.mxu0 0.0
    %142 = vmatprep.subr.mxu0 0.0
    %143 = vmatpush1.msra.mxu0 0.0
    %144 = vmatprep.subr.mxu0 0.0
    %145 = vmatpush1.msra.mxu0 0.0
    %146 = vmatprep.subr.mxu0 0.0
    %147 = vmatpush1.msra.mxu0 0.0
    %148 = vmatprep.subr.mxu0 0.0
    %149 = vmatpush1.msra.mxu0 0.0
    %150 = vmatprep.subr.mxu0 0.0
    %151 = vmatpush1.msra.mxu0 0.0
    %152 = vmatprep.subr.mxu0 0.0
    %153 = vmatpush1.msra.mxu0 0.0
    %154 = vmatprep.subr.mxu0 0.0
    %155 = vmatpush1.msra.mxu0 0.0
    %156 = vmatprep.subr.mxu0 0.0
    %157 = vmatpush1.msra.mxu0 0.0
    %158 = vmatprep.mubr.f32.mxu0 0.0
    %159 = vmatmul.mubr.f32.gmra.mrb[0].mxu0 %v76
    %v160 = vpop.f32.mrb[0].mxu0
    %v161 = vadd.f32 %v57, %v160
    %v162 = vpop.f32.mrb[0].mxu0
    %v163 = vadd.f32 %v57, %v162
    %164 = vmatprep.mubr.f32.mxu0 0.0
    %165 = vmatmul.mubr.f32.gmra.mrb[0].mxu0 %v79
    %v166 = vpop.f32.mrb[0].mxu0
    %v167 = vadd.f32 %v62, %v166
    %v168 = vpop.f32.mrb[0].mxu0
    %v169 = vadd.f32 %v62, %v168
    %170 = vmatprep.mubr.f32.mxu0 0.0
    %171 = vmatmul.mubr.f32.gmra.mrb[0].mxu0 %v82
    %v172 = vpop.f32.mrb[0].mxu0
    %v173 = vadd.f32 %v67, %v172
    %v174 = vpop.f32.mrb[0].mxu0
    %v175 = vadd.f32 %v67, %v174
    %176 = vmatprep.mubr.f32.mxu0 0.0
    %177 = vmatmul.mubr.f32.gmra.mrb[0].mxu0 %v85
    %v178 = vpop.f32.mrb[0].mxu0
    %v179 = vadd.f32 %v72, %v178
    %v180 = vpop.f32.mrb[0].mxu0
    %v181 = vadd.f32 %v72, %v180
    %182 = vdwg.mxu0
    %v183 = vld [vmem:[%s3] sm:$0xf]
    %v184 = vld [vmem:[%s3 + $0x4] sm:$0xf]
    %v185 = vld [vmem:[%s3 + $0x8] sm:$0xf]
    %v186 = vld [vmem:[%s3 + $0xc] sm:$0xf]
    %v187 = vld [vmem:[%s3 + $0x10] sm:$0xf]
    %v188 = vld [vmem:[%s3 + $0x14] sm:$0xf]
    %v189 = vld [vmem:[%s3 + $0x18] sm:$0xf]
    %v190 = vld [vmem:[%s3 + $0x1c] sm:$0xf]
    %v191 = vld [vmem:[%s3 + $0x20] sm:$0xf]
    %v192 = vld [vmem:[%s3 + $0x24] sm:$0xf]
    %v193 = vld [vmem:[%s3 + $0x28] sm:$0xf]
    %v194 = vld [vmem:[%s3 + $0x2c] sm:$0xf]
    %v195 = vld [vmem:[%s3 + $0x30] sm:$0xf]
    %v196 = vld [vmem:[%s3 + $0x34] sm:$0xf]
    %v197 = vld [vmem:[%s3 + $0x38] sm:$0xf]
    %v198 = vld [vmem:[%s3 + $0x3c] sm:$0xf]
    %v199 = vld [vmem:[%s3 + $0x40] sm:$0xf]
    %v200 = vld [vmem:[%s3 + $0x44] sm:$0xf]
    %v201 = vld [vmem:[%s3 + $0x48] sm:$0xf]
    %v202 = vld [vmem:[%s3 + $0x4c] sm:$0xf]
    %v203 = vld [vmem:[%s3 + $0x50] sm:$0xf]
    %v204 = vld [vmem:[%s3 + $0x54] sm:$0xf]
    %v205 = vld [vmem:[%s3 + $0x58] sm:$0xf]
    %v206 = vld [vmem:[%s3 + $0x5c] sm:$0xf]
    %v207 = vld [vmem:[%s3 + $0x60] sm:$0xf]
    %v208 = vld [vmem:[%s3 + $0x64] sm:$0xf]
    %v209 = vld [vmem:[%s3 + $0x68] sm:$0xf]
    %v210 = vld [vmem:[%s3 + $0x6c] sm:$0xf]
    %v211 = vld [vmem:[%s3 + $0x70] sm:$0xf]
    %v212 = vld [vmem:[%s3 + $0x74] sm:$0xf]
    %v213 = vld [vmem:[%s3 + $0x78] sm:$0xf]
    %v214 = vld [vmem:[%s3 + $0x7c] sm:$0xf]
    %v215 = vld [vmem:[%s5] sm:$0xff]
    %v216 = vld [vmem:[%s5 + $0x8] sm:$0xff]
    %v217 = vld [vmem:[%s5 + $0x10] sm:$0xff]
    %v218 = vld [vmem:[%s5 + $0x18] sm:$0xff]
    %v219 = vld [vmem:[%s5 + $0x20] sm:$0xff]
    %v220 = vld [vmem:[%s5 + $0x28] sm:$0xff]
    %v221 = vld [vmem:[%s5 + $0x30] sm:$0xff]
    %v222 = vld [vmem:[%s5 + $0x38] sm:$0xff]
    %v223 = vld [vmem:[%s5 + $0x40] sm:$0xff]
    %v224 = vld [vmem:[%s5 + $0x48] sm:$0xff]
    %v225 = vld [vmem:[%s5 + $0x50] sm:$0xff]
    %v226 = vld [vmem:[%s5 + $0x58] sm:$0xff]
    %v227 = vld [vmem:[%s6] sm:$0xff]
    %v228 = vld [vmem:[%s6 + $0x8] sm:$0xff]
    %v229 = vld [vmem:[%s6 + $0x10] sm:$0xff]
    %v230 = vld [vmem:[%s6 + $0x18] sm:$0xff]
    %v231 = vld [vmem:[%s8] sm:$0x1]
    %v232 = vld [vmem:[%s9] sm:$0xff]
    %v233 = vld [vmem:[%s9 + $0x8] sm:$0xff]
    %v234 = vld [vmem:[%s9 + $0x10] sm:$0xff]
    %v235 = vld [vmem:[%s9 + $0x18] sm:$0xff]
    %v236 = vld [vmem:[%s10] sm:$0x1]
    %v237 = vadd.f32 %v161, 0.0
    %v238 = vadd.f32 %v163, 0.0
    %v239 = vadd.f32 %v167, 0.0
    %v240 = vadd.f32 %v169, 0.0
    %v241 = vadd.f32 %v173, 0.0
    %v242 = vadd.f32 %v175, 0.0
    %v243 = vadd.f32 %v179, 0.0
    %v244 = vadd.f32 %v181, 0.0
    %vm245 = vcmp.gt.f32.partialorder %v237, 0.5
    %vm246 = vcmp.gt.f32.partialorder %v238, 0.5
    %vm247 = vcmp.gt.f32.partialorder %v239, 0.5
    %vm248 = vcmp.gt.f32.partialorder %v240, 0.5
    %vm249 = vcmp.gt.f32.partialorder %v241, 0.5
    %vm250 = vcmp.gt.f32.partialorder %v242, 0.5
    %vm251 = vcmp.gt.f32.partialorder %v243, 0.5
    %vm252 = vcmp.gt.f32.partialorder %v244, 0.5
    %v253 = vsel %vm245, 1, 0
    %v254 = vsel %vm246, 1, 0
    %v255 = vsel %vm247, 1, 0
    %v256 = vsel %vm248, 1, 0
    %v257 = vsel %vm249, 1, 0
    %v258 = vsel %vm250, 1, 0
    %v259 = vsel %vm251, 1, 0
    %v260 = vsel %vm252, 1, 0
    %v261 = vcvt.s32.f32 %v253
    %v262 = vcvt.s32.f32 %v254
    %v263 = vcvt.s32.f32 %v255
    %v264 = vcvt.s32.f32 %v256
    %v265 = vcvt.s32.f32 %v257
    %v266 = vcvt.s32.f32 %v258
    %v267 = vcvt.s32.f32 %v259
    %v268 = vcvt.s32.f32 %v260
    %v269 = vpack.c.bf16 %v263, %v261
    %v270 = vpack.c.bf16 %v264, %v262
    %v271 = vpack.c.bf16 %v267, %v265
    %v272 = vpack.c.bf16 %v268, %v266
    %v305 = vunpack.c.l.b16 %v183
    %v306 = vunpack.c.l.b16 %v184
    %v307 = vunpack.c.l.b16 %v185
    %v308 = vunpack.c.l.b16 %v186
    %v309 = vunpack.c.l.b16 %v187
    %v310 = vunpack.c.l.b16 %v188
    %v311 = vunpack.c.l.b16 %v189
    %v312 = vunpack.c.l.b16 %v190
    %v313 = vunpack.c.l.b16 %v191
    %v314 = vunpack.c.l.b16 %v192
    %v315 = vunpack.c.l.b16 %v193
    %v316 = vunpack.c.l.b16 %v194
    %v317 = vunpack.c.l.b16 %v195
    %v318 = vunpack.c.l.b16 %v196
    %v319 = vunpack.c.l.b16 %v197
    %v320 = vunpack.c.l.b16 %v198
    %v321 = vunpack.c.l.b16 %v199
    %v322 = vunpack.c.l.b16 %v200
    %v323 = vunpack.c.l.b16 %v201
    %v324 = vunpack.c.l.b16 %v202
    %v325 = vunpack.c.l.b16 %v203
    %v326 = vunpack.c.l.b16 %v204
    %v327 = vunpack.c.l.b16 %v205
    %v328 = vunpack.c.l.b16 %v206
    %v329 = vunpack.c.l.b16 %v207
    %v330 = vunpack.c.l.b16 %v208
    %v331 = vunpack.c.l.b16 %v209
    %v332 = vunpack.c.l.b16 %v210
    %v333 = vunpack.c.l.b16 %v211
    %v334 = vunpack.c.l.b16 %v212
    %v335 = vunpack.c.l.b16 %v213
    %v336 = vunpack.c.l.b16 %v214
    %v337 = vpack.c.b16 %v306, %v305
    %v338 = vpack.c.b16 %v308, %v307
    %v339 = vpack.c.b16 %v310, %v309
    %v340 = vpack.c.b16 %v312, %v311
    %v341 = vpack.c.b16 %v314, %v313
    %v342 = vpack.c.b16 %v316, %v315
    %v343 = vpack.c.b16 %v318, %v317
    %v344 = vpack.c.b16 %v320, %v319
    %v345 = vpack.c.b16 %v322, %v321
    %v346 = vpack.c.b16 %v324, %v323
    %v347 = vpack.c.b16 %v326, %v325
    %v348 = vpack.c.b16 %v328, %v327
    %v349 = vpack.c.b16 %v330, %v329
    %v350 = vpack.c.b16 %v332, %v331
    %v351 = vpack.c.b16 %v334, %v333
    %v352 = vpack.c.b16 %v336, %v335
    %369 = vmatprep.subr.bf16.mxu0 0
    %370 = vmatpush1.bf16.msra.mxu0 %v337
    %371 = vmatprep.subr.bf16.mxu0 0
    %372 = vmatpush1.bf16.msra.mxu0 %v338
    %373 = vmatprep.subr.bf16.mxu0 0
    %374 = vmatpush1.bf16.msra.mxu0 %v339
    %375 = vmatprep.subr.bf16.mxu0 0
    %376 = vmatpush1.bf16.msra.mxu0 %v340
    %377 = vmatprep.subr.bf16.mxu0 0
    %378 = vmatpush1.bf16.msra.mxu0 %v341
    %379 = vmatprep.subr.bf16.mxu0 0
    %380 = vmatpush1.bf16.msra.mxu0 %v342
    %381 = vmatprep.subr.bf16.mxu0 0
    %382 = vmatpush1.bf16.msra.mxu0 %v343
    %383 = vmatprep.subr.bf16.mxu0 0
    %384 = vmatpush1.bf16.msra.mxu0 %v344
    %385 = vmatprep.subr.bf16.mxu0 0
    %386 = vmatpush1.bf16.msra.mxu0 %v345
    %387 = vmatprep.subr.bf16.mxu0 0
    %388 = vmatpush1.bf16.msra.mxu0 %v346
    %389 = vmatprep.subr.bf16.mxu0 0
    %390 = vmatpush1.bf16.msra.mxu0 %v347
    %391 = vmatprep.subr.bf16.mxu0 0
    %392 = vmatpush1.bf16.msra.mxu0 %v348
    %393 = vmatprep.subr.bf16.mxu0 0
    %394 = vmatpush1.bf16.msra.mxu0 %v349
    %395 = vmatprep.subr.bf16.mxu0 0
    %396 = vmatpush1.bf16.msra.mxu0 %v350
    %397 = vmatprep.subr.bf16.mxu0 0
    %398 = vmatpush1.bf16.msra.mxu0 %v351
    %399 = vmatprep.subr.bf16.mxu0 0
    %400 = vmatpush1.bf16.msra.mxu0 %v352
    %401 = vmatprep.mubr.bf16.mxu0 %v270
    %402 = vmatmul.mubr.bf16.gmra.mrb[0].mxu0 %v269
    %v403 = vpop.f32.mrb[0].mxu0
    %v404 = vadd.f32 0.0, %v403
    %v405 = vpop.f32.mrb[0].mxu0
    %v406 = vpop.f32.mrb[0].mxu0
    %v407 = vadd.f32 0.0, %v406
    %v408 = vpop.f32.mrb[0].mxu0
    %409 = vmatprep.mubr.bf16.mxu0 %v272
    %410 = vmatmul.mubr.bf16.gmra.mrb[0].mxu0 %v271
    %v411 = vpop.f32.mrb[0].mxu0
    %v412 = vadd.f32 0.0, %v411
    %v413 = vpop.f32.mrb[0].mxu0
    %v414 = vpop.f32.mrb[0].mxu0
    %v415 = vadd.f32 0.0, %v414
    %v416 = vpop.f32.mrb[0].mxu0
    %417 = vdwg.mxu0
    %vm418 = vcmask 1048064
    %419 = vrot.lane.b32.xlu0 %v404, 64
    %v420 = vpop.permute.xlu0 %419
    %v421 = vsel %vm418, %v420, %v404
    %422 = vrot.lane.b32.xlu0 %v407, 64
    %v423 = vpop.permute.xlu0 %422
    %v424 = vsel %vm418, %v423, %v407
    %425 = vrot.lane.b32.xlu0 %v412, 64
    %v426 = vpop.permute.xlu0 %425
    %v427 = vsel %vm418, %v426, %v412
    %428 = vrot.lane.b32.xlu0 %v415, 64
    %v429 = vpop.permute.xlu0 %428
    %v430 = vsel %vm418, %v429, %v415
    %431 = vrot.lane.b32.xlu0 %v421, 64
    %v432 = vpop.permute.xlu0 %431
    %433 = vrot.lane.b32.xlu0 %v424, 64
    %v434 = vpop.permute.xlu0 %433
    %435 = vrot.lane.b32.xlu0 %v427, 64
    %v436 = vpop.permute.xlu0 %435
    %437 = vrot.lane.b32.xlu0 %v430, 64
    %v438 = vpop.permute.xlu0 %437
    %v439 = vsel %vm418, %v432, %v404
    %v440 = vsel %vm418, %v434, %v407
    %v441 = vsel %vm418, %v436, %v412
    %v442 = vsel %vm418, %v438, %v415
    %v443 = vld [vmem:[%s4] sm:$0x1]
    %v445 = vlaneseq
    %v446 = vshrl.u32 %v445, 7
    %v447 = vsub.s32 0, %v446
    %v448 = vrot.slane %v443, %v447
    %449 = vrot.lane.b32.xlu0 %v448, 55
    %v450 = vpop.permute.xlu0 %449
    %v452 = vmul.f32 %v439, %v450
    %v453 = vmul.f32 %v440, %v450
    %v454 = vmul.f32 %v441, %v450
    %v455 = vmul.f32 %v442, %v450
    %s456 = scalar_lea.vmem %s4, 1
    %v457 = vld [vmem:[%s456] sm:$0x1]
    %v459 = vlaneseq
    %v460 = vshrl.u32 %v459, 7
    %v461 = vsub.s32 0, %v460
    %v462 = vrot.slane %v457, %v461
    %463 = vrot.lane.b32.xlu0 %v462, 56
    %v464 = vpop.permute.xlu0 %463
    %v466 = vmul.f32 %v439, %v464
    %v467 = vmul.f32 %v440, %v464
    %v468 = vmul.f32 %v441, %v464
    %v469 = vmul.f32 %v442, %v464
    %s470 = scalar_lea.vmem %s4, 2
    %v471 = vld [vmem:[%s470] sm:$0x1]
    %v473 = vlaneseq
    %v474 = vshrl.u32 %v473, 7
    %v475 = vsub.s32 0, %v474
    %v476 = vrot.slane %v471, %v475
    %477 = vrot.lane.b32.xlu0 %v476, 57
    %v478 = vpop.permute.xlu0 %477
    %v480 = vmul.f32 %v439, %v478
    %v481 = vmul.f32 %v440, %v478
    %v482 = vmul.f32 %v441, %v478
    %v483 = vmul.f32 %v442, %v478
    %s484 = scalar_lea.vmem %s4, 3
    %v485 = vld [vmem:[%s484] sm:$0x1]
    %v487 = vlaneseq
    %v488 = vshrl.u32 %v487, 7
    %v489 = vsub.s32 0, %v488
    %v490 = vrot.slane %v485, %v489
    %491 = vrot.lane.b32.xlu0 %v490, 63
    %v492 = vpop.permute.xlu0 %491
    %v494 = vmul.f32 %v439, %v492
    %v495 = vmul.f32 %v440, %v492
    %v496 = vmul.f32 %v441, %v492
    %v497 = vmul.f32 %v442, %v492
    %s498 = scalar_lea.vmem %s4, 4
    %v499 = vld [vmem:[%s498] sm:$0x1]
    %v501 = vlaneseq
    %v502 = vshrl.u32 %v501, 7
    %v503 = vsub.s32 0, %v502
    %v504 = vrot.slane %v499, %v503
    %v506 = vmul.f32 %v404, %v504
    %v507 = vmul.f32 %v407, %v504
    %v508 = vmul.f32 %v412, %v504
    %v509 = vmul.f32 %v415, %v504
    %s510 = scalar_lea.vmem %s4, 5
    %v511 = vld [vmem:[%s510] sm:$0x1]
    %v513 = vlaneseq
    %v514 = vshrl.u32 %v513, 7
    %v515 = vsub.s32 0, %v514
    %v516 = vrot.slane %v511, %v515
    %517 = vrot.lane.b32.xlu0 %v516, 1
    %v518 = vpop.permute.xlu0 %517
    %v520 = vmul.f32 %v439, %v518
    %v521 = vmul.f32 %v440, %v518
    %v522 = vmul.f32 %v441, %v518
    %v523 = vmul.f32 %v442, %v518
    %s524 = scalar_lea.vmem %s4, 6
    %v525 = vld [vmem:[%s524] sm:$0x1]
    %v527 = vlaneseq
    %v528 = vshrl.u32 %v527, 7
    %v529 = vsub.s32 0, %v528
    %v530 = vrot.slane %v525, %v529
    %531 = vrot.lane.b32.xlu0 %v530, 7
    %v532 = vpop.permute.xlu0 %531
    %v534 = vmul.f32 %v439, %v532
    %v535 = vmul.f32 %v440, %v532
    %v536 = vmul.f32 %v441, %v532
    %v537 = vmul.f32 %v442, %v532
    %s538 = scalar_lea.vmem %s4, 7
    %v539 = vld [vmem:[%s538] sm:$0x1]
    %v541 = vlaneseq
    %v542 = vshrl.u32 %v541, 7
    %v543 = vsub.s32 0, %v542
    %v544 = vrot.slane %v539, %v543
    %545 = vrot.lane.b32.xlu0 %v544, 8
    %v546 = vpop.permute.xlu0 %545
    %v548 = vmul.f32 %v439, %v546
    %v549 = vmul.f32 %v440, %v546
    %v550 = vmul.f32 %v441, %v546
    %v551 = vmul.f32 %v442, %v546
    %s552 = scalar_lea.vmem %s4, 8
    %v553 = vld [vmem:[%s552] sm:$0x1]
    %v555 = vlaneseq
    %v556 = vshrl.u32 %v555, 7
    %v557 = vsub.s32 0, %v556
    %v558 = vrot.slane %v553, %v557
    %559 = vrot.lane.b32.xlu0 %v558, 9
    %v560 = vpop.permute.xlu0 %559
    %v562 = vmul.f32 %v439, %v560
    %v563 = vmul.f32 %v440, %v560
    %v564 = vmul.f32 %v441, %v560
    %v565 = vmul.f32 %v442, %v560
    %570 = vrot.lane.b32.xlu0 %v466, 127
    %v571 = vpop.permute.xlu0 %570
    %572 = vrot.lane.b32.xlu0 %v467, 127
    %v573 = vpop.permute.xlu0 %572
    %574 = vrot.lane.b32.xlu0 %v468, 127
    %v575 = vpop.permute.xlu0 %574
    %576 = vrot.lane.b32.xlu0 %v469, 127
    %v577 = vpop.permute.xlu0 %576
    %582 = vrot.lane.b32.xlu0 %v480, 126
    %v583 = vpop.permute.xlu0 %582
    %584 = vrot.lane.b32.xlu0 %v481, 126
    %v585 = vpop.permute.xlu0 %584
    %586 = vrot.lane.b32.xlu0 %v482, 126
    %v587 = vpop.permute.xlu0 %586
    %588 = vrot.lane.b32.xlu0 %v483, 126
    %v589 = vpop.permute.xlu0 %588
    %594 = vrot.lane.b32.xlu0 %v494, 120
    %v595 = vpop.permute.xlu0 %594
    %596 = vrot.lane.b32.xlu0 %v495, 120
    %v597 = vpop.permute.xlu0 %596
    %598 = vrot.lane.b32.xlu0 %v496, 120
    %v599 = vpop.permute.xlu0 %598
    %600 = vrot.lane.b32.xlu0 %v497, 120
    %v601 = vpop.permute.xlu0 %600
    %606 = vrot.lane.b32.xlu0 %v506, 55
    %v607 = vpop.permute.xlu0 %606
    %608 = vrot.lane.b32.xlu0 %v507, 55
    %v609 = vpop.permute.xlu0 %608
    %610 = vrot.lane.b32.xlu0 %v508, 55
    %v611 = vpop.permute.xlu0 %610
    %612 = vrot.lane.b32.xlu0 %v509, 55
    %v613 = vpop.permute.xlu0 %612
    %618 = vrot.lane.b32.xlu0 %v520, 54
    %v619 = vpop.permute.xlu0 %618
    %620 = vrot.lane.b32.xlu0 %v521, 54
    %v621 = vpop.permute.xlu0 %620
    %622 = vrot.lane.b32.xlu0 %v522, 54
    %v623 = vpop.permute.xlu0 %622
    %624 = vrot.lane.b32.xlu0 %v523, 54
    %v625 = vpop.permute.xlu0 %624
    %630 = vrot.lane.b32.xlu0 %v534, 48
    %v631 = vpop.permute.xlu0 %630
    %632 = vrot.lane.b32.xlu0 %v535, 48
    %v633 = vpop.permute.xlu0 %632
    %634 = vrot.lane.b32.xlu0 %v536, 48
    %v635 = vpop.permute.xlu0 %634
    %636 = vrot.lane.b32.xlu0 %v537, 48
    %v637 = vpop.permute.xlu0 %636
    %642 = vrot.lane.b32.xlu0 %v548, 47
    %v643 = vpop.permute.xlu0 %642
    %644 = vrot.lane.b32.xlu0 %v549, 47
    %v645 = vpop.permute.xlu0 %644
    %646 = vrot.lane.b32.xlu0 %v550, 47
    %v647 = vpop.permute.xlu0 %646
    %648 = vrot.lane.b32.xlu0 %v551, 47
    %v649 = vpop.permute.xlu0 %648
    %654 = vrot.lane.b32.xlu0 %v562, 46
    %v655 = vpop.permute.xlu0 %654
    %656 = vrot.lane.b32.xlu0 %v563, 46
    %v657 = vpop.permute.xlu0 %656
    %658 = vrot.lane.b32.xlu0 %v564, 46
    %v659 = vpop.permute.xlu0 %658
    %660 = vrot.lane.b32.xlu0 %v565, 46
    %v661 = vpop.permute.xlu0 %660
    %663 = vset.pattern.permute.xlu0 0
    %664 = vperm.xlu0 %663, %v227
    %v665 = vpop.permute.xlu0 %664
    %668 = vset.pattern.permute.xlu0 0
    %669 = vperm.xlu0 %668, %v228
    %v670 = vpop.permute.xlu0 %669
    %673 = vset.pattern.permute.xlu0 0
    %674 = vperm.xlu0 %673, %v229
    %v675 = vpop.permute.xlu0 %674
    %678 = vset.pattern.permute.xlu0 0
    %679 = vperm.xlu0 %678, %v230
    %v680 = vpop.permute.xlu0 %679
    %686 = vrot.lane.b32.xlu0 %v452, 73
    %v687 = vpop.permute.xlu0 %686
    %688 = vrot.lane.b32.xlu0 %v453, 73
    %v689 = vpop.permute.xlu0 %688
    %690 = vrot.lane.b32.xlu0 %v454, 73
    %v691 = vpop.permute.xlu0 %690
    %692 = vrot.lane.b32.xlu0 %v455, 73
    %v693 = vpop.permute.xlu0 %692
    %694 = vrot.lane.b32.xlu0 %v571, 73
    %v695 = vpop.permute.xlu0 %694
    %696 = vrot.lane.b32.xlu0 %v573, 73
    %v697 = vpop.permute.xlu0 %696
    %698 = vrot.lane.b32.xlu0 %v575, 73
    %v699 = vpop.permute.xlu0 %698
    %700 = vrot.lane.b32.xlu0 %v577, 73
    %v701 = vpop.permute.xlu0 %700
    %702 = vrot.lane.b32.xlu0 %v583, 73
    %v703 = vpop.permute.xlu0 %702
    %704 = vrot.lane.b32.xlu0 %v585, 73
    %v705 = vpop.permute.xlu0 %704
    %706 = vrot.lane.b32.xlu0 %v587, 73
    %v707 = vpop.permute.xlu0 %706
    %708 = vrot.lane.b32.xlu0 %v589, 73
    %v709 = vpop.permute.xlu0 %708
    %710 = vrot.lane.b32.xlu0 %v595, 73
    %v711 = vpop.permute.xlu0 %710
    %712 = vrot.lane.b32.xlu0 %v597, 73
    %v713 = vpop.permute.xlu0 %712
    %714 = vrot.lane.b32.xlu0 %v599, 73
    %v715 = vpop.permute.xlu0 %714
    %716 = vrot.lane.b32.xlu0 %v601, 73
    %v717 = vpop.permute.xlu0 %716
    %718 = vrot.lane.b32.xlu0 %v607, 73
    %v719 = vpop.permute.xlu0 %718
    %720 = vrot.lane.b32.xlu0 %v609, 73
    %v721 = vpop.permute.xlu0 %720
    %722 = vrot.lane.b32.xlu0 %v611, 73
    %v723 = vpop.permute.xlu0 %722
    %724 = vrot.lane.b32.xlu0 %v613, 73
    %v725 = vpop.permute.xlu0 %724
    %726 = vrot.lane.b32.xlu0 %v619, 73
    %v727 = vpop.permute.xlu0 %726
    %728 = vrot.lane.b32.xlu0 %v621, 73
    %v729 = vpop.permute.xlu0 %728
    %730 = vrot.lane.b32.xlu0 %v623, 73
    %v731 = vpop.permute.xlu0 %730
    %732 = vrot.lane.b32.xlu0 %v625, 73
    %v733 = vpop.permute.xlu0 %732
    %734 = vrot.lane.b32.xlu0 %v631, 73
    %v735 = vpop.permute.xlu0 %734
    %736 = vrot.lane.b32.xlu0 %v633, 73
    %v737 = vpop.permute.xlu0 %736
    %738 = vrot.lane.b32.xlu0 %v635, 73
    %v739 = vpop.permute.xlu0 %738
    %740 = vrot.lane.b32.xlu0 %v637, 73
    %v741 = vpop.permute.xlu0 %740
    %742 = vrot.lane.b32.xlu0 %v643, 73
    %v743 = vpop.permute.xlu0 %742
    %744 = vrot.lane.b32.xlu0 %v645, 73
    %v745 = vpop.permute.xlu0 %744
    %746 = vrot.lane.b32.xlu0 %v647, 73
    %v747 = vpop.permute.xlu0 %746
    %748 = vrot.lane.b32.xlu0 %v649, 73
    %v749 = vpop.permute.xlu0 %748
    %750 = vrot.lane.b32.xlu0 %v655, 73
    %v751 = vpop.permute.xlu0 %750
    %752 = vrot.lane.b32.xlu0 %v657, 73
    %v753 = vpop.permute.xlu0 %752
    %754 = vrot.lane.b32.xlu0 %v659, 73
    %v755 = vpop.permute.xlu0 %754
    %756 = vrot.lane.b32.xlu0 %v661, 73
    %v757 = vpop.permute.xlu0 %756
    %vm794 = vcmask 261120
    %v796 = vsel %vm794, %v217, 0
    %v799 = vsel %vm794, %v220, 0
    %v802 = vsel %vm794, %v223, 0
    %v805 = vsel %vm794, %v226, 0
    %807 = vmatprep.subr.mxu0 0.0
    %808 = vmatpush1.msra.mxu0 %v687
    %809 = vmatprep.subr.mxu0 0.0
    %810 = vmatpush1.msra.mxu0 %v689
    %811 = vmatprep.subr.mxu0 0.0
    %812 = vmatpush1.msra.mxu0 %v691
    %813 = vmatprep.subr.mxu0 0.0
    %814 = vmatpush1.msra.mxu0 %v693
    %815 = vmatprep.subr.mxu0 0.0
    %816 = vmatpush1.msra.mxu0 %v695
    %817 = vmatprep.subr.mxu0 0.0
    %818 = vmatpush1.msra.mxu0 %v697
    %819 = vmatprep.subr.mxu0 0.0
    %820 = vmatpush1.msra.mxu0 %v699
    %821 = vmatprep.subr.mxu0 0.0
    %822 = vmatpush1.msra.mxu0 %v701
    %823 = vmatprep.subr.mxu0 0.0
    %824 = vmatpush1.msra.mxu0 %v703
    %825 = vmatprep.subr.mxu0 0.0
    %826 = vmatpush1.msra.mxu0 %v705
    %827 = vmatprep.subr.mxu0 0.0
    %828 = vmatpush1.msra.mxu0 %v707
    %829 = vmatprep.subr.mxu0 0.0
    %830 = vmatpush1.msra.mxu0 %v709
    %831 = vmatprep.subr.mxu0 0.0
    %832 = vmatpush1.msra.mxu0 %v711
    %833 = vmatprep.subr.mxu0 0.0
    %834 = vmatpush1.msra.mxu0 %v713
    %835 = vmatprep.subr.mxu0 0.0
    %836 = vmatpush1.msra.mxu0 %v715
    %837 = vmatprep.subr.mxu0 0.0
    %838 = vmatpush1.msra.mxu0 %v717
    %839 = vmatprep.subr.mxu0 0.0
    %840 = vmatpush1.msra.mxu0 %v719
    %841 = vmatprep.subr.mxu0 0.0
    %842 = vmatpush1.msra.mxu0 %v721
    %843 = vmatprep.subr.mxu0 0.0
    %844 = vmatpush1.msra.mxu0 %v723
    %845 = vmatprep.subr.mxu0 0.0
    %846 = vmatpush1.msra.mxu0 %v725
    %847 = vmatprep.subr.mxu0 0.0
    %848 = vmatpush1.msra.mxu0 %v727
    %849 = vmatprep.subr.mxu0 0.0
    %850 = vmatpush1.msra.mxu0 %v729
    %851 = vmatprep.subr.mxu0 0.0
    %852 = vmatpush1.msra.mxu0 %v731
    %853 = vmatprep.subr.mxu0 0.0
    %854 = vmatpush1.msra.mxu0 %v733
    %855 = vmatprep.subr.mxu0 0.0
    %856 = vmatpush1.msra.mxu0 %v735
    %857 = vmatprep.subr.mxu0 0.0
    %858 = vmatpush1.msra.mxu0 %v737
    %859 = vmatprep.subr.mxu0 0.0
    %860 = vmatpush1.msra.mxu0 %v739
    %861 = vmatprep.subr.mxu0 0.0
    %862 = vmatpush1.msra.mxu0 %v741
    %863 = vmatprep.subr.mxu0 0.0
    %864 = vmatpush1.msra.mxu0 %v743
    %865 = vmatprep.subr.mxu0 0.0
    %866 = vmatpush1.msra.mxu0 %v745
    %867 = vmatprep.subr.mxu0 0.0
    %868 = vmatpush1.msra.mxu0 %v747
    %869 = vmatprep.subr.mxu0 0.0
    %870 = vmatpush1.msra.mxu0 %v749
    %871 = vmatprep.mubr.f32.mxu0 %v216
    %872 = vmatmul.mubr.f32.gmra.mrb[0].mxu0 %v215
    %v873 = vpop.f32.mrb[0].mxu0
    %v874 = vadd.f32 %v665, %v873
    %v875 = vpop.f32.mrb[0].mxu0
    %876 = vmatprep.mubr.f32.mxu0 %v219
    %877 = vmatmul.mubr.f32.gmra.mrb[0].mxu0 %v218
    %v878 = vpop.f32.mrb[0].mxu0
    %v879 = vadd.f32 %v670, %v878
    %v880 = vpop.f32.mrb[0].mxu0
    %881 = vmatprep.mubr.f32.mxu0 %v222
    %882 = vmatmul.mubr.f32.gmra.mrb[0].mxu0 %v221
    %v883 = vpop.f32.mrb[0].mxu0
    %v884 = vadd.f32 %v675, %v883
    %v885 = vpop.f32.mrb[0].mxu0
    %886 = vmatprep.mubr.f32.mxu0 %v225
    %887 = vmatmul.mubr.f32.gmra.mrb[0].mxu0 %v224
    %v888 = vpop.f32.mrb[0].mxu0
    %v889 = vadd.f32 %v680, %v888
    %v890 = vpop.f32.mrb[0].mxu0
    %891 = vdwg.mxu0
    %892 = vmatprep.subr.mxu0 0.0
    %893 = vmatpush1.msra.mxu0 %v751
    %894 = vmatprep.subr.mxu0 0.0
    %895 = vmatpush1.msra.mxu0 %v753
    %896 = vmatprep.subr.mxu0 0.0
    %897 = vmatpush1.msra.mxu0 %v755
    %898 = vmatprep.subr.mxu0 0.0
    %899 = vmatpush1.msra.mxu0 %v757
    %900 = vmatprep.subr.mxu0 0.0
    %901 = vmatpush1.msra.mxu0 0.0
    %902 = vmatprep.subr.mxu0 0.0
    %903 = vmatpush1.msra.mxu0 0.0
    %904 = vmatprep.subr.mxu0 0.0
    %905 = vmatpush1.msra.mxu0 0.0
    %906 = vmatprep.subr.mxu0 0.0
    %907 = vmatpush1.msra.mxu0 0.0
    %908 = vmatprep.subr.mxu0 0.0
    %909 = vmatpush1.msra.mxu0 0.0
    %910 = vmatprep.subr.mxu0 0.0
    %911 = vmatpush1.msra.mxu0 0.0
    %912 = vmatprep.subr.mxu0 0.0
    %913 = vmatpush1.msra.mxu0 0.0
    %914 = vmatprep.subr.mxu0 0.0
    %915 = vmatpush1.msra.mxu0 0.0
    %916 = vmatprep.subr.mxu0 0.0
    %917 = vmatpush1.msra.mxu0 0.0
    %918 = vmatprep.subr.mxu0 0.0
    %919 = vmatpush1.msra.mxu0 0.0
    %920 = vmatprep.subr.mxu0 0.0
    %921 = vmatpush1.msra.mxu0 0.0
    %922 = vmatprep.subr.mxu0 0.0
    %923 = vmatpush1.msra.mxu0 0.0
    %924 = vmatprep.subr.mxu0 0.0
    %925 = vmatpush1.msra.mxu0 0.0
    %926 = vmatprep.subr.mxu0 0.0
    %927 = vmatpush1.msra.mxu0 0.0
    %928 = vmatprep.subr.mxu0 0.0
    %929 = vmatpush1.msra.mxu0 0.0
    %930 = vmatprep.subr.mxu0 0.0
    %931 = vmatpush1.msra.mxu0 0.0
    %932 = vmatprep.subr.mxu0 0.0
    %933 = vmatpush1.msra.mxu0 0.0
    %934 = vmatprep.subr.mxu0 0.0
    %935 = vmatpush1.msra.mxu0 0.0
    %936 = vmatprep.subr.mxu0 0.0
    %937 = vmatpush1.msra.mxu0 0.0
    %938 = vmatprep.subr.mxu0 0.0
    %939 = vmatpush1.msra.mxu0 0.0
    %940 = vmatprep.subr.mxu0 0.0
    %941 = vmatpush1.msra.mxu0 0.0
    %942 = vmatprep.subr.mxu0 0.0
    %943 = vmatpush1.msra.mxu0 0.0
    %944 = vmatprep.subr.mxu0 0.0
    %945 = vmatpush1.msra.mxu0 0.0
    %946 = vmatprep.subr.mxu0 0.0
    %947 = vmatpush1.msra.mxu0 0.0
    %948 = vmatprep.subr.mxu0 0.0
    %949 = vmatpush1.msra.mxu0 0.0
    %950 = vmatprep.subr.mxu0 0.0
    %951 = vmatpush1.msra.mxu0 0.0
    %952 = vmatprep.subr.mxu0 0.0
    %953 = vmatpush1.msra.mxu0 0.0
    %954 = vmatprep.subr.mxu0 0.0
    %955 = vmatpush1.msra.mxu0 0.0
    %956 = vmatprep.mubr.f32.mxu0 0.0
    %957 = vmatmul.mubr.f32.gmra.mrb[0].mxu0 %v796
    %v958 = vpop.f32.mrb[0].mxu0
    %v959 = vadd.f32 %v874, %v958
    %v960 = vpop.f32.mrb[0].mxu0
    %961 = vmatprep.mubr.f32.mxu0 0.0
    %962 = vmatmul.mubr.f32.gmra.mrb[0].mxu0 %v799
    %v963 = vpop.f32.mrb[0].mxu0
    %v964 = vadd.f32 %v879, %v963
    %v965 = vpop.f32.mrb[0].mxu0
    %966 = vmatprep.mubr.f32.mxu0 0.0
    %967 = vmatmul.mubr.f32.gmra.mrb[0].mxu0 %v802
    %v968 = vpop.f32.mrb[0].mxu0
    %v969 = vadd.f32 %v884, %v968
    %v970 = vpop.f32.mrb[0].mxu0
    %971 = vmatprep.mubr.f32.mxu0 0.0
    %972 = vmatmul.mubr.f32.gmra.mrb[0].mxu0 %v805
    %v973 = vpop.f32.mrb[0].mxu0
    %v974 = vadd.f32 %v889, %v973
    %v975 = vpop.f32.mrb[0].mxu0
    %976 = vdwg.mxu0
    %v977 = vadd.f32 %v959, 0.0
    %v978 = vadd.f32 %v964, 0.0
    %v979 = vadd.f32 %v969, 0.0
    %v980 = vadd.f32 %v974, 0.0
    %vm981 = vcmp.gt.f32.partialorder %v977, 0.5
    %vm982 = vcmp.gt.f32.partialorder %v978, 0.5
    %vm983 = vcmp.gt.f32.partialorder %v979, 0.5
    %vm984 = vcmp.gt.f32.partialorder %v980, 0.5
    %v985 = vsel %vm981, 1, 0
    %v986 = vsel %vm982, 1, 0
    %v987 = vsel %vm983, 1, 0
    %v988 = vsel %vm984, 1, 0
    %v989 = vcvt.s32.f32 %v985
    %v990 = vcvt.s32.f32 %v986
    %v991 = vcvt.s32.f32 %v987
    %v992 = vcvt.s32.f32 %v988
    %v994 = vlaneseq
    %v995 = vshrl.u32 %v994, 7
    %v996 = vsub.s32 0, %v995
    %v997 = vrot.slane %v231, %v996
    %v999 = vadd.f32 %v997, 0.0
    %v1000 = vld [vmem:[%s7] sm:$0xff]
    %v1001 = vld [vmem:[%s7 + $0x8] sm:$0xff]
    %v1002 = vld [vmem:[%s7 + $0x10] sm:$0xff]
    %v1003 = vld [vmem:[%s7 + $0x18] sm:$0xff]
    %v1004 = vld [vmem:[%s7 + $0x20] sm:$0xff]
    %v1005 = vld [vmem:[%s7 + $0x28] sm:$0xff]
    %v1006 = vld [vmem:[%s7 + $0x30] sm:$0xff]
    %v1007 = vld [vmem:[%s7 + $0x38] sm:$0xff]
    %vm1008 = vcmask 523264
    %v1010 = vsel %vm1008, %v989, 0
    %1012 = vmatprep.subr.mxu0 0.0
    %1013 = vmatpush1.msra.mxu0 %v1000
    %1014 = vmatprep.subr.mxu0 0.0
    %1015 = vmatpush1.msra.mxu0 %v1001
    %1016 = vmatprep.subr.mxu0 0.0
    %1017 = vmatpush1.msra.mxu0 %v1002
    %1018 = vmatprep.subr.mxu0 0.0
    %1019 = vmatpush1.msra.mxu0 %v1003
    %1020 = vmatprep.subr.mxu0 0.0
    %1021 = vmatpush1.msra.mxu0 %v1004
    %1022 = vmatprep.subr.mxu0 0.0
    %1023 = vmatpush1.msra.mxu0 %v1005
    %1024 = vmatprep.subr.mxu0 0.0
    %1025 = vmatpush1.msra.mxu0 %v1006
    %1026 = vmatprep.subr.mxu0 0.0
    %1027 = vmatpush1.msra.mxu0 %v1007
    %1028 = vmatprep.subr.mxu0 0.0
    %1029 = vmatpush1.msra.mxu0 0.0
    %1030 = vmatprep.subr.mxu0 0.0
    %1031 = vmatpush1.msra.mxu0 0.0
    %1032 = vmatprep.subr.mxu0 0.0
    %1033 = vmatpush1.msra.mxu0 0.0
    %1034 = vmatprep.subr.mxu0 0.0
    %1035 = vmatpush1.msra.mxu0 0.0
    %1036 = vmatprep.subr.mxu0 0.0
    %1037 = vmatpush1.msra.mxu0 0.0
    %1038 = vmatprep.subr.mxu0 0.0
    %1039 = vmatpush1.msra.mxu0 0.0
    %1040 = vmatprep.subr.mxu0 0.0
    %1041 = vmatpush1.msra.mxu0 0.0
    %1042 = vmatprep.subr.mxu0 0.0
    %1043 = vmatpush1.msra.mxu0 0.0
    %1044 = vmatprep.subr.mxu0 0.0
    %1045 = vmatpush1.msra.mxu0 0.0
    %1046 = vmatprep.subr.mxu0 0.0
    %1047 = vmatpush1.msra.mxu0 0.0
    %1048 = vmatprep.subr.mxu0 0.0
    %1049 = vmatpush1.msra.mxu0 0.0
    %1050 = vmatprep.subr.mxu0 0.0
    %1051 = vmatpush1.msra.mxu0 0.0
    %1052 = vmatprep.subr.mxu0 0.0
    %1053 = vmatpush1.msra.mxu0 0.0
    %1054 = vmatprep.subr.mxu0 0.0
    %1055 = vmatpush1.msra.mxu0 0.0
    %1056 = vmatprep.subr.mxu0 0.0
    %1057 = vmatpush1.msra.mxu0 0.0
    %1058 = vmatprep.subr.mxu0 0.0
    %1059 = vmatpush1.msra.mxu0 0.0
    %1060 = vmatprep.subr.mxu0 0.0
    %1061 = vmatpush1.msra.mxu0 0.0
    %1062 = vmatprep.subr.mxu0 0.0
    %1063 = vmatpush1.msra.mxu0 0.0
    %1064 = vmatprep.subr.mxu0 0.0
    %1065 = vmatpush1.msra.mxu0 0.0
    %1066 = vmatprep.subr.mxu0 0.0
    %1067 = vmatpush1.msra.mxu0 0.0
    %1068 = vmatprep.subr.mxu0 0.0
    %1069 = vmatpush1.msra.mxu0 0.0
    %1070 = vmatprep.subr.mxu0 0.0
    %1071 = vmatpush1.msra.mxu0 0.0
    %1072 = vmatprep.subr.mxu0 0.0
    %1073 = vmatpush1.msra.mxu0 0.0
    %1074 = vmatprep.subr.mxu0 0.0
    %1075 = vmatpush1.msra.mxu0 0.0
    %1076 = vmatprep.mubr.f32.mxu0 0.0
    %1077 = vmatmul.mubr.f32.gmra.mrb[0].mxu0 %v1010
    %v1078 = vpop.f32.mrb[0].mxu0
    %v1079 = vadd.f32 0.0, %v1078
    %v1080 = vpop.f32.mrb[0].mxu0
    %1081 = vdwg.mxu0
    %v1082 = vadd.f32 %v999, %v1079
    %s1083 = scalar_lea.vmem %s7, 64
    %v1084 = vld [vmem:[%s1083] sm:$0xff]
    %v1085 = vld [vmem:[%s1083 + $0x8] sm:$0xff]
    %v1086 = vld [vmem:[%s1083 + $0x10] sm:$0xff]
    %v1087 = vld [vmem:[%s1083 + $0x18] sm:$0xff]
    %v1088 = vld [vmem:[%s1083 + $0x20] sm:$0xff]
    %v1089 = vld [vmem:[%s1083 + $0x28] sm:$0xff]
    %v1090 = vld [vmem:[%s1083 + $0x30] sm:$0xff]
    %v1091 = vld [vmem:[%s1083 + $0x38] sm:$0xff]
    %v1092 = vrot.slane %v989, 2
    %v1093 = vsel %vm1008, %v1092, 0
    %1095 = vmatprep.subr.mxu0 0.0
    %1096 = vmatpush1.msra.mxu0 %v1084
    %1097 = vmatprep.subr.mxu0 0.0
    %1098 = vmatpush1.msra.mxu0 %v1085
    %1099 = vmatprep.subr.mxu0 0.0
    %1100 = vmatpush1.msra.mxu0 %v1086
    %1101 = vmatprep.subr.mxu0 0.0
    %1102 = vmatpush1.msra.mxu0 %v1087
    %1103 = vmatprep.subr.mxu0 0.0
    %1104 = vmatpush1.msra.mxu0 %v1088
    %1105 = vmatprep.subr.mxu0 0.0
    %1106 = vmatpush1.msra.mxu0 %v1089
    %1107 = vmatprep.subr.mxu0 0.0
    %1108 = vmatpush1.msra.mxu0 %v1090
    %1109 = vmatprep.subr.mxu0 0.0
    %1110 = vmatpush1.msra.mxu0 %v1091
    %1111 = vmatprep.subr.mxu0 0.0
    %1112 = vmatpush1.msra.mxu0 0.0
    %1113 = vmatprep.subr.mxu0 0.0
    %1114 = vmatpush1.msra.mxu0 0.0
    %1115 = vmatprep.subr.mxu0 0.0
    %1116 = vmatpush1.msra.mxu0 0.0
    %1117 = vmatprep.subr.mxu0 0.0
    %1118 = vmatpush1.msra.mxu0 0.0
    %1119 = vmatprep.subr.mxu0 0.0
    %1120 = vmatpush1.msra.mxu0 0.0
    %1121 = vmatprep.subr.mxu0 0.0
    %1122 = vmatpush1.msra.mxu0 0.0
    %1123 = vmatprep.subr.mxu0 0.0
    %1124 = vmatpush1.msra.mxu0 0.0
    %1125 = vmatprep.subr.mxu0 0.0
    %1126 = vmatpush1.msra.mxu0 0.0
    %1127 = vmatprep.subr.mxu0 0.0
    %1128 = vmatpush1.msra.mxu0 0.0
    %1129 = vmatprep.subr.mxu0 0.0
    %1130 = vmatpush1.msra.mxu0 0.0
    %1131 = vmatprep.subr.mxu0 0.0
    %1132 = vmatpush1.msra.mxu0 0.0
    %1133 = vmatprep.subr.mxu0 0.0
    %1134 = vmatpush1.msra.mxu0 0.0
    %1135 = vmatprep.subr.mxu0 0.0
    %1136 = vmatpush1.msra.mxu0 0.0
    %1137 = vmatprep.subr.mxu0 0.0
    %1138 = vmatpush1.msra.mxu0 0.0
    %1139 = vmatprep.subr.mxu0 0.0
    %1140 = vmatpush1.msra.mxu0 0.0
    %1141 = vmatprep.subr.mxu0 0.0
    %1142 = vmatpush1.msra.mxu0 0.0
    %1143 = vmatprep.subr.mxu0 0.0
    %1144 = vmatpush1.msra.mxu0 0.0
    %1145 = vmatprep.subr.mxu0 0.0
    %1146 = vmatpush1.msra.mxu0 0.0
    %1147 = vmatprep.subr.mxu0 0.0
    %1148 = vmatpush1.msra.mxu0 0.0
    %1149 = vmatprep.subr.mxu0 0.0
    %1150 = vmatpush1.msra.mxu0 0.0
    %1151 = vmatprep.subr.mxu0 0.0
    %1152 = vmatpush1.msra.mxu0 0.0
    %1153 = vmatprep.subr.mxu0 0.0
    %1154 = vmatpush1.msra.mxu0 0.0
    %1155 = vmatprep.subr.mxu0 0.0
    %1156 = vmatpush1.msra.mxu0 0.0
    %1157 = vmatprep.subr.mxu0 0.0
    %1158 = vmatpush1.msra.mxu0 0.0
    %1159 = vmatprep.mubr.f32.mxu0 0.0
    %1160 = vmatmul.mubr.f32.gmra.mrb[0].mxu0 %v1093
    %v1161 = vpop.f32.mrb[0].mxu0
    %v1162 = vadd.f32 0.0, %v1161
    %v1163 = vpop.f32.mrb[0].mxu0
    %1164 = vdwg.mxu0
    %v1165 = vadd.f32 %v1082, %v1162
    %s1166 = scalar_lea.vmem %s7, 128
    %v1167 = vld [vmem:[%s1166] sm:$0xff]
    %v1168 = vld [vmem:[%s1166 + $0x8] sm:$0xff]
    %v1169 = vld [vmem:[%s1166 + $0x10] sm:$0xff]
    %v1170 = vld [vmem:[%s1166 + $0x18] sm:$0xff]
    %v1171 = vld [vmem:[%s1166 + $0x20] sm:$0xff]
    %v1172 = vld [vmem:[%s1166 + $0x28] sm:$0xff]
    %v1173 = vld [vmem:[%s1166 + $0x30] sm:$0xff]
    %v1174 = vld [vmem:[%s1166 + $0x38] sm:$0xff]
    %v1175 = vrot.slane %v989, 4
    %v1176 = vsel %vm1008, %v1175, 0
    %1178 = vmatprep.subr.mxu0 0.0
    %1179 = vmatpush1.msra.mxu0 %v1167
    %1180 = vmatprep.subr.mxu0 0.0
    %1181 = vmatpush1.msra.mxu0 %v1168
    %1182 = vmatprep.subr.mxu0 0.0
    %1183 = vmatpush1.msra.mxu0 %v1169
    %1184 = vmatprep.subr.mxu0 0.0
    %1185 = vmatpush1.msra.mxu0 %v1170
    %1186 = vmatprep.subr.mxu0 0.0
    %1187 = vmatpush1.msra.mxu0 %v1171
    %1188 = vmatprep.subr.mxu0 0.0
    %1189 = vmatpush1.msra.mxu0 %v1172
    %1190 = vmatprep.subr.mxu0 0.0
    %1191 = vmatpush1.msra.mxu0 %v1173
    %1192 = vmatprep.subr.mxu0 0.0
    %1193 = vmatpush1.msra.mxu0 %v1174
    %1194 = vmatprep.subr.mxu0 0.0
    %1195 = vmatpush1.msra.mxu0 0.0
    %1196 = vmatprep.subr.mxu0 0.0
    %1197 = vmatpush1.msra.mxu0 0.0
    %1198 = vmatprep.subr.mxu0 0.0
    %1199 = vmatpush1.msra.mxu0 0.0
    %1200 = vmatprep.subr.mxu0 0.0
    %1201 = vmatpush1.msra.mxu0 0.0
    %1202 = vmatprep.subr.mxu0 0.0
    %1203 = vmatpush1.msra.mxu0 0.0
    %1204 = vmatprep.subr.mxu0 0.0
    %1205 = vmatpush1.msra.mxu0 0.0
    %1206 = vmatprep.subr.mxu0 0.0
    %1207 = vmatpush1.msra.mxu0 0.0
    %1208 = vmatprep.subr.mxu0 0.0
    %1209 = vmatpush1.msra.mxu0 0.0
    %1210 = vmatprep.subr.mxu0 0.0
    %1211 = vmatpush1.msra.mxu0 0.0
    %1212 = vmatprep.subr.mxu0 0.0
    %1213 = vmatpush1.msra.mxu0 0.0
    %1214 = vmatprep.subr.mxu0 0.0
    %1215 = vmatpush1.msra.mxu0 0.0
    %1216 = vmatprep.subr.mxu0 0.0
    %1217 = vmatpush1.msra.mxu0 0.0
    %1218 = vmatprep.subr.mxu0 0.0
    %1219 = vmatpush1.msra.mxu0 0.0
    %1220 = vmatprep.subr.mxu0 0.0
    %1221 = vmatpush1.msra.mxu0 0.0
    %1222 = vmatprep.subr.mxu0 0.0
    %1223 = vmatpush1.msra.mxu0 0.0
    %1224 = vmatprep.subr.mxu0 0.0
    %1225 = vmatpush1.msra.mxu0 0.0
    %1226 = vmatprep.subr.mxu0 0.0
    %1227 = vmatpush1.msra.mxu0 0.0
    %1228 = vmatprep.subr.mxu0 0.0
    %1229 = vmatpush1.msra.mxu0 0.0
    %1230 = vmatprep.subr.mxu0 0.0
    %1231 = vmatpush1.msra.mxu0 0.0
    %1232 = vmatprep.subr.mxu0 0.0
    %1233 = vmatpush1.msra.mxu0 0.0
    %1234 = vmatprep.subr.mxu0 0.0
    %1235 = vmatpush1.msra.mxu0 0.0
    %1236 = vmatprep.subr.mxu0 0.0
    %1237 = vmatpush1.msra.mxu0 0.0
    %1238 = vmatprep.subr.mxu0 0.0
    %1239 = vmatpush1.msra.mxu0 0.0
    %1240 = vmatprep.subr.mxu0 0.0
    %1241 = vmatpush1.msra.mxu0 0.0
    %1242 = vmatprep.mubr.f32.mxu0 0.0
    %1243 = vmatmul.mubr.f32.gmra.mrb[0].mxu0 %v1176
    %v1244 = vpop.f32.mrb[0].mxu0
    %v1245 = vadd.f32 0.0, %v1244
    %v1246 = vpop.f32.mrb[0].mxu0
    %1247 = vdwg.mxu0
    %v1248 = vadd.f32 %v1165, %v1245
    %s1249 = scalar_lea.vmem %s7, 192
    %v1250 = vld [vmem:[%s1249] sm:$0xff]
    %v1251 = vld [vmem:[%s1249 + $0x8] sm:$0xff]
    %v1252 = vld [vmem:[%s1249 + $0x10] sm:$0xff]
    %v1253 = vld [vmem:[%s1249 + $0x18] sm:$0xff]
    %v1254 = vld [vmem:[%s1249 + $0x20] sm:$0xff]
    %v1255 = vld [vmem:[%s1249 + $0x28] sm:$0xff]
    %v1256 = vld [vmem:[%s1249 + $0x30] sm:$0xff]
    %v1257 = vld [vmem:[%s1249 + $0x38] sm:$0xff]
    %v1258 = vrot.slane %v989, 6
    %v1259 = vsel %vm1008, %v1258, 0
    %1261 = vmatprep.subr.mxu0 0.0
    %1262 = vmatpush1.msra.mxu0 %v1250
    %1263 = vmatprep.subr.mxu0 0.0
    %1264 = vmatpush1.msra.mxu0 %v1251
    %1265 = vmatprep.subr.mxu0 0.0
    %1266 = vmatpush1.msra.mxu0 %v1252
    %1267 = vmatprep.subr.mxu0 0.0
    %1268 = vmatpush1.msra.mxu0 %v1253
    %1269 = vmatprep.subr.mxu0 0.0
    %1270 = vmatpush1.msra.mxu0 %v1254
    %1271 = vmatprep.subr.mxu0 0.0
    %1272 = vmatpush1.msra.mxu0 %v1255
    %1273 = vmatprep.subr.mxu0 0.0
    %1274 = vmatpush1.msra.mxu0 %v1256
    %1275 = vmatprep.subr.mxu0 0.0
    %1276 = vmatpush1.msra.mxu0 %v1257
    %1277 = vmatprep.subr.mxu0 0.0
    %1278 = vmatpush1.msra.mxu0 0.0
    %1279 = vmatprep.subr.mxu0 0.0
    %1280 = vmatpush1.msra.mxu0 0.0
    %1281 = vmatprep.subr.mxu0 0.0
    %1282 = vmatpush1.msra.mxu0 0.0
    %1283 = vmatprep.subr.mxu0 0.0
    %1284 = vmatpush1.msra.mxu0 0.0
    %1285 = vmatprep.subr.mxu0 0.0
    %1286 = vmatpush1.msra.mxu0 0.0
    %1287 = vmatprep.subr.mxu0 0.0
    %1288 = vmatpush1.msra.mxu0 0.0
    %1289 = vmatprep.subr.mxu0 0.0
    %1290 = vmatpush1.msra.mxu0 0.0
    %1291 = vmatprep.subr.mxu0 0.0
    %1292 = vmatpush1.msra.mxu0 0.0
    %1293 = vmatprep.subr.mxu0 0.0
    %1294 = vmatpush1.msra.mxu0 0.0
    %1295 = vmatprep.subr.mxu0 0.0
    %1296 = vmatpush1.msra.mxu0 0.0
    %1297 = vmatprep.subr.mxu0 0.0
    %1298 = vmatpush1.msra.mxu0 0.0
    %1299 = vmatprep.subr.mxu0 0.0
    %1300 = vmatpush1.msra.mxu0 0.0
    %1301 = vmatprep.subr.mxu0 0.0
    %1302 = vmatpush1.msra.mxu0 0.0
    %1303 = vmatprep.subr.mxu0 0.0
    %1304 = vmatpush1.msra.mxu0 0.0
    %1305 = vmatprep.subr.mxu0 0.0
    %1306 = vmatpush1.msra.mxu0 0.0
    %1307 = vmatprep.subr.mxu0 0.0
    %1308 = vmatpush1.msra.mxu0 0.0
    %1309 = vmatprep.subr.mxu0 0.0
    %1310 = vmatpush1.msra.mxu0 0.0
    %1311 = vmatprep.subr.mxu0 0.0
    %1312 = vmatpush1.msra.mxu0 0.0
    %1313 = vmatprep.subr.mxu0 0.0
    %1314 = vmatpush1.msra.mxu0 0.0
    %1315 = vmatprep.subr.mxu0 0.0
    %1316 = vmatpush1.msra.mxu0 0.0
    %1317 = vmatprep.subr.mxu0 0.0
    %1318 = vmatpush1.msra.mxu0 0.0
    %1319 = vmatprep.subr.mxu0 0.0
    %1320 = vmatpush1.msra.mxu0 0.0
    %1321 = vmatprep.subr.mxu0 0.0
    %1322 = vmatpush1.msra.mxu0 0.0
    %1323 = vmatprep.subr.mxu0 0.0
    %1324 = vmatpush1.msra.mxu0 0.0
    %1325 = vmatprep.mubr.f32.mxu0 0.0
    %1326 = vmatmul.mubr.f32.gmra.mrb[0].mxu0 %v1259
    %v1327 = vpop.f32.mrb[0].mxu0
    %v1328 = vadd.f32 0.0, %v1327
    %v1329 = vpop.f32.mrb[0].mxu0
    %1330 = vdwg.mxu0
    %v1331 = vadd.f32 %v1248, %v1328
    %s1332 = scalar_lea.vmem %s7, 256
    %v1333 = vld [vmem:[%s1332] sm:$0xff]
    %v1334 = vld [vmem:[%s1332 + $0x8] sm:$0xff]
    %v1335 = vld [vmem:[%s1332 + $0x10] sm:$0xff]
    %v1336 = vld [vmem:[%s1332 + $0x18] sm:$0xff]
    %v1337 = vld [vmem:[%s1332 + $0x20] sm:$0xff]
    %v1338 = vld [vmem:[%s1332 + $0x28] sm:$0xff]
    %v1339 = vld [vmem:[%s1332 + $0x30] sm:$0xff]
    %v1340 = vld [vmem:[%s1332 + $0x38] sm:$0xff]
    %v1342 = vsel %vm1008, %v990, 0
    %1344 = vmatprep.subr.mxu0 0.0
    %1345 = vmatpush1.msra.mxu0 %v1333
    %1346 = vmatprep.subr.mxu0 0.0
    %1347 = vmatpush1.msra.mxu0 %v1334
    %1348 = vmatprep.subr.mxu0 0.0
    %1349 = vmatpush1.msra.mxu0 %v1335
    %1350 = vmatprep.subr.mxu0 0.0
    %1351 = vmatpush1.msra.mxu0 %v1336
    %1352 = vmatprep.subr.mxu0 0.0
    %1353 = vmatpush1.msra.mxu0 %v1337
    %1354 = vmatprep.subr.mxu0 0.0
    %1355 = vmatpush1.msra.mxu0 %v1338
    %1356 = vmatprep.subr.mxu0 0.0
    %1357 = vmatpush1.msra.mxu0 %v1339
    %1358 = vmatprep.subr.mxu0 0.0
    %1359 = vmatpush1.msra.mxu0 %v1340
    %1360 = vmatprep.subr.mxu0 0.0
    %1361 = vmatpush1.msra.mxu0 0.0
    %1362 = vmatprep.subr.mxu0 0.0
    %1363 = vmatpush1.msra.mxu0 0.0
    %1364 = vmatprep.subr.mxu0 0.0
    %1365 = vmatpush1.msra.mxu0 0.0
    %1366 = vmatprep.subr.mxu0 0.0
    %1367 = vmatpush1.msra.mxu0 0.0
    %1368 = vmatprep.subr.mxu0 0.0
    %1369 = vmatpush1.msra.mxu0 0.0
    %1370 = vmatprep.subr.mxu0 0.0
    %1371 = vmatpush1.msra.mxu0 0.0
    %1372 = vmatprep.subr.mxu0 0.0
    %1373 = vmatpush1.msra.mxu0 0.0
    %1374 = vmatprep.subr.mxu0 0.0
    %1375 = vmatpush1.msra.mxu0 0.0
    %1376 = vmatprep.subr.mxu0 0.0
    %1377 = vmatpush1.msra.mxu0 0.0
    %1378 = vmatprep.subr.mxu0 0.0
    %1379 = vmatpush1.msra.mxu0 0.0
    %1380 = vmatprep.subr.mxu0 0.0
    %1381 = vmatpush1.msra.mxu0 0.0
    %1382 = vmatprep.subr.mxu0 0.0
    %1383 = vmatpush1.msra.mxu0 0.0
    %1384 = vmatprep.subr.mxu0 0.0
    %1385 = vmatpush1.msra.mxu0 0.0
    %1386 = vmatprep.subr.mxu0 0.0
    %1387 = vmatpush1.msra.mxu0 0.0
    %1388 = vmatprep.subr.mxu0 0.0
    %1389 = vmatpush1.msra.mxu0 0.0
    %1390 = vmatprep.subr.mxu0 0.0
    %1391 = vmatpush1.msra.mxu0 0.0
    %1392 = vmatprep.subr.mxu0 0.0
    %1393 = vmatpush1.msra.mxu0 0.0
    %1394 = vmatprep.subr.mxu0 0.0
    %1395 = vmatpush1.msra.mxu0 0.0
    %1396 = vmatprep.subr.mxu0 0.0
    %1397 = vmatpush1.msra.mxu0 0.0
    %1398 = vmatprep.subr.mxu0 0.0
    %1399 = vmatpush1.msra.mxu0 0.0
    %1400 = vmatprep.subr.mxu0 0.0
    %1401 = vmatpush1.msra.mxu0 0.0
    %1402 = vmatprep.subr.mxu0 0.0
    %1403 = vmatpush1.msra.mxu0 0.0
    %1404 = vmatprep.subr.mxu0 0.0
    %1405 = vmatpush1.msra.mxu0 0.0
    %1406 = vmatprep.subr.mxu0 0.0
    %1407 = vmatpush1.msra.mxu0 0.0
    %1408 = vmatprep.mubr.f32.mxu0 0.0
    %1409 = vmatmul.mubr.f32.gmra.mrb[0].mxu0 %v1342
    %v1410 = vpop.f32.mrb[0].mxu0
    %v1411 = vadd.f32 0.0, %v1410
    %v1412 = vpop.f32.mrb[0].mxu0
    %1413 = vdwg.mxu0
    %v1414 = vadd.f32 %v1331, %v1411
    %s1415 = scalar_lea.vmem %s7, 320
    %v1416 = vld [vmem:[%s1415] sm:$0xff]
    %v1417 = vld [vmem:[%s1415 + $0x8] sm:$0xff]
    %v1418 = vld [vmem:[%s1415 + $0x10] sm:$0xff]
    %v1419 = vld [vmem:[%s1415 + $0x18] sm:$0xff]
    %v1420 = vld [vmem:[%s1415 + $0x20] sm:$0xff]
    %v1421 = vld [vmem:[%s1415 + $0x28] sm:$0xff]
    %v1422 = vld [vmem:[%s1415 + $0x30] sm:$0xff]
    %v1423 = vld [vmem:[%s1415 + $0x38] sm:$0xff]
    %v1424 = vrot.slane %v990, 2
    %v1425 = vsel %vm1008, %v1424, 0
    %1427 = vmatprep.subr.mxu0 0.0
    %1428 = vmatpush1.msra.mxu0 %v1416
    %1429 = vmatprep.subr.mxu0 0.0
    %1430 = vmatpush1.msra.mxu0 %v1417
    %1431 = vmatprep.subr.mxu0 0.0
    %1432 = vmatpush1.msra.mxu0 %v1418
    %1433 = vmatprep.subr.mxu0 0.0
    %1434 = vmatpush1.msra.mxu0 %v1419
    %1435 = vmatprep.subr.mxu0 0.0
    %1436 = vmatpush1.msra.mxu0 %v1420
    %1437 = vmatprep.subr.mxu0 0.0
    %1438 = vmatpush1.msra.mxu0 %v1421
    %1439 = vmatprep.subr.mxu0 0.0
    %1440 = vmatpush1.msra.mxu0 %v1422
    %1441 = vmatprep.subr.mxu0 0.0
    %1442 = vmatpush1.msra.mxu0 %v1423
    %1443 = vmatprep.subr.mxu0 0.0
    %1444 = vmatpush1.msra.mxu0 0.0
    %1445 = vmatprep.subr.mxu0 0.0
    %1446 = vmatpush1.msra.mxu0 0.0
    %1447 = vmatprep.subr.mxu0 0.0
    %1448 = vmatpush1.msra.mxu0 0.0
    %1449 = vmatprep.subr.mxu0 0.0
    %1450 = vmatpush1.msra.mxu0 0.0
    %1451 = vmatprep.subr.mxu0 0.0
    %1452 = vmatpush1.msra.mxu0 0.0
    %1453 = vmatprep.subr.mxu0 0.0
    %1454 = vmatpush1.msra.mxu0 0.0
    %1455 = vmatprep.subr.mxu0 0.0
    %1456 = vmatpush1.msra.mxu0 0.0
    %1457 = vmatprep.subr.mxu0 0.0
    %1458 = vmatpush1.msra.mxu0 0.0
    %1459 = vmatprep.subr.mxu0 0.0
    %1460 = vmatpush1.msra.mxu0 0.0
    %1461 = vmatprep.subr.mxu0 0.0
    %1462 = vmatpush1.msra.mxu0 0.0
    %1463 = vmatprep.subr.mxu0 0.0
    %1464 = vmatpush1.msra.mxu0 0.0
    %1465 = vmatprep.subr.mxu0 0.0
    %1466 = vmatpush1.msra.mxu0 0.0
    %1467 = vmatprep.subr.mxu0 0.0
    %1468 = vmatpush1.msra.mxu0 0.0
    %1469 = vmatprep.subr.mxu0 0.0
    %1470 = vmatpush1.msra.mxu0 0.0
    %1471 = vmatprep.subr.mxu0 0.0
    %1472 = vmatpush1.msra.mxu0 0.0
    %1473 = vmatprep.subr.mxu0 0.0
    %1474 = vmatpush1.msra.mxu0 0.0
    %1475 = vmatprep.subr.mxu0 0.0
    %1476 = vmatpush1.msra.mxu0 0.0
    %1477 = vmatprep.subr.mxu0 0.0
    %1478 = vmatpush1.msra.mxu0 0.0
    %1479 = vmatprep.subr.mxu0 0.0
    %1480 = vmatpush1.msra.mxu0 0.0
    %1481 = vmatprep.subr.mxu0 0.0
    %1482 = vmatpush1.msra.mxu0 0.0
    %1483 = vmatprep.subr.mxu0 0.0
    %1484 = vmatpush1.msra.mxu0 0.0
    %1485 = vmatprep.subr.mxu0 0.0
    %1486 = vmatpush1.msra.mxu0 0.0
    %1487 = vmatprep.subr.mxu0 0.0
    %1488 = vmatpush1.msra.mxu0 0.0
    %1489 = vmatprep.subr.mxu0 0.0
    %1490 = vmatpush1.msra.mxu0 0.0
    %1491 = vmatprep.mubr.f32.mxu0 0.0
    %1492 = vmatmul.mubr.f32.gmra.mrb[0].mxu0 %v1425
    %v1493 = vpop.f32.mrb[0].mxu0
    %v1494 = vadd.f32 0.0, %v1493
    %v1495 = vpop.f32.mrb[0].mxu0
    %1496 = vdwg.mxu0
    %v1497 = vadd.f32 %v1414, %v1494
    %s1498 = scalar_lea.vmem %s7, 384
    %v1499 = vld [vmem:[%s1498] sm:$0xff]
    %v1500 = vld [vmem:[%s1498 + $0x8] sm:$0xff]
    %v1501 = vld [vmem:[%s1498 + $0x10] sm:$0xff]
    %v1502 = vld [vmem:[%s1498 + $0x18] sm:$0xff]
    %v1503 = vld [vmem:[%s1498 + $0x20] sm:$0xff]
    %v1504 = vld [vmem:[%s1498 + $0x28] sm:$0xff]
    %v1505 = vld [vmem:[%s1498 + $0x30] sm:$0xff]
    %v1506 = vld [vmem:[%s1498 + $0x38] sm:$0xff]
    %v1507 = vrot.slane %v990, 4
    %v1508 = vsel %vm1008, %v1507, 0
    %1510 = vmatprep.subr.mxu0 0.0
    %1511 = vmatpush1.msra.mxu0 %v1499
    %1512 = vmatprep.subr.mxu0 0.0
    %1513 = vmatpush1.msra.mxu0 %v1500
    %1514 = vmatprep.subr.mxu0 0.0
    %1515 = vmatpush1.msra.mxu0 %v1501
    %1516 = vmatprep.subr.mxu0 0.0
    %1517 = vmatpush1.msra.mxu0 %v1502
    %1518 = vmatprep.subr.mxu0 0.0
    %1519 = vmatpush1.msra.mxu0 %v1503
    %1520 = vmatprep.subr.mxu0 0.0
    %1521 = vmatpush1.msra.mxu0 %v1504
    %1522 = vmatprep.subr.mxu0 0.0
    %1523 = vmatpush1.msra.mxu0 %v1505
    %1524 = vmatprep.subr.mxu0 0.0
    %1525 = vmatpush1.msra.mxu0 %v1506
    %1526 = vmatprep.subr.mxu0 0.0
    %1527 = vmatpush1.msra.mxu0 0.0
    %1528 = vmatprep.subr.mxu0 0.0
    %1529 = vmatpush1.msra.mxu0 0.0
    %1530 = vmatprep.subr.mxu0 0.0
    %1531 = vmatpush1.msra.mxu0 0.0
    %1532 = vmatprep.subr.mxu0 0.0
    %1533 = vmatpush1.msra.mxu0 0.0
    %1534 = vmatprep.subr.mxu0 0.0
    %1535 = vmatpush1.msra.mxu0 0.0
    %1536 = vmatprep.subr.mxu0 0.0
    %1537 = vmatpush1.msra.mxu0 0.0
    %1538 = vmatprep.subr.mxu0 0.0
    %1539 = vmatpush1.msra.mxu0 0.0
    %1540 = vmatprep.subr.mxu0 0.0
    %1541 = vmatpush1.msra.mxu0 0.0
    %1542 = vmatprep.subr.mxu0 0.0
    %1543 = vmatpush1.msra.mxu0 0.0
    %1544 = vmatprep.subr.mxu0 0.0
    %1545 = vmatpush1.msra.mxu0 0.0
    %1546 = vmatprep.subr.mxu0 0.0
    %1547 = vmatpush1.msra.mxu0 0.0
    %1548 = vmatprep.subr.mxu0 0.0
    %1549 = vmatpush1.msra.mxu0 0.0
    %1550 = vmatprep.subr.mxu0 0.0
    %1551 = vmatpush1.msra.mxu0 0.0
    %1552 = vmatprep.subr.mxu0 0.0
    %1553 = vmatpush1.msra.mxu0 0.0
    %1554 = vmatprep.subr.mxu0 0.0
    %1555 = vmatpush1.msra.mxu0 0.0
    %1556 = vmatprep.subr.mxu0 0.0
    %1557 = vmatpush1.msra.mxu0 0.0
    %1558 = vmatprep.subr.mxu0 0.0
    %1559 = vmatpush1.msra.mxu0 0.0
    %1560 = vmatprep.subr.mxu0 0.0
    %1561 = vmatpush1.msra.mxu0 0.0
    %1562 = vmatprep.subr.mxu0 0.0
    %1563 = vmatpush1.msra.mxu0 0.0
    %1564 = vmatprep.subr.mxu0 0.0
    %1565 = vmatpush1.msra.mxu0 0.0
    %1566 = vmatprep.subr.mxu0 0.0
    %1567 = vmatpush1.msra.mxu0 0.0
    %1568 = vmatprep.subr.mxu0 0.0
    %1569 = vmatpush1.msra.mxu0 0.0
    %1570 = vmatprep.subr.mxu0 0.0
    %1571 = vmatpush1.msra.mxu0 0.0
    %1572 = vmatprep.subr.mxu0 0.0
    %1573 = vmatpush1.msra.mxu0 0.0
    %1574 = vmatprep.mubr.f32.mxu0 0.0
    %1575 = vmatmul.mubr.f32.gmra.mrb[0].mxu0 %v1508
    %v1576 = vpop.f32.mrb[0].mxu0
    %v1577 = vadd.f32 0.0, %v1576
    %v1578 = vpop.f32.mrb[0].mxu0
    %1579 = vdwg.mxu0
    %v1580 = vadd.f32 %v1497, %v1577
    %s1581 = scalar_lea.vmem %s7, 448
    %v1582 = vld [vmem:[%s1581] sm:$0xff]
    %v1583 = vld [vmem:[%s1581 + $0x8] sm:$0xff]
    %v1584 = vld [vmem:[%s1581 + $0x10] sm:$0xff]
    %v1585 = vld [vmem:[%s1581 + $0x18] sm:$0xff]
    %v1586 = vld [vmem:[%s1581 + $0x20] sm:$0xff]
    %v1587 = vld [vmem:[%s1581 + $0x28] sm:$0xff]
    %v1588 = vld [vmem:[%s1581 + $0x30] sm:$0xff]
    %v1589 = vld [vmem:[%s1581 + $0x38] sm:$0xff]
    %v1590 = vrot.slane %v990, 6
    %v1591 = vsel %vm1008, %v1590, 0
    %1593 = vmatprep.subr.mxu0 0.0
    %1594 = vmatpush1.msra.mxu0 %v1582
    %1595 = vmatprep.subr.mxu0 0.0
    %1596 = vmatpush1.msra.mxu0 %v1583
    %1597 = vmatprep.subr.mxu0 0.0
    %1598 = vmatpush1.msra.mxu0 %v1584
    %1599 = vmatprep.subr.mxu0 0.0
    %1600 = vmatpush1.msra.mxu0 %v1585
    %1601 = vmatprep.subr.mxu0 0.0
    %1602 = vmatpush1.msra.mxu0 %v1586
    %1603 = vmatprep.subr.mxu0 0.0
    %1604 = vmatpush1.msra.mxu0 %v1587
    %1605 = vmatprep.subr.mxu0 0.0
    %1606 = vmatpush1.msra.mxu0 %v1588
    %1607 = vmatprep.subr.mxu0 0.0
    %1608 = vmatpush1.msra.mxu0 %v1589
    %1609 = vmatprep.subr.mxu0 0.0
    %1610 = vmatpush1.msra.mxu0 0.0
    %1611 = vmatprep.subr.mxu0 0.0
    %1612 = vmatpush1.msra.mxu0 0.0
    %1613 = vmatprep.subr.mxu0 0.0
    %1614 = vmatpush1.msra.mxu0 0.0
    %1615 = vmatprep.subr.mxu0 0.0
    %1616 = vmatpush1.msra.mxu0 0.0
    %1617 = vmatprep.subr.mxu0 0.0
    %1618 = vmatpush1.msra.mxu0 0.0
    %1619 = vmatprep.subr.mxu0 0.0
    %1620 = vmatpush1.msra.mxu0 0.0
    %1621 = vmatprep.subr.mxu0 0.0
    %1622 = vmatpush1.msra.mxu0 0.0
    %1623 = vmatprep.subr.mxu0 0.0
    %1624 = vmatpush1.msra.mxu0 0.0
    %1625 = vmatprep.subr.mxu0 0.0
    %1626 = vmatpush1.msra.mxu0 0.0
    %1627 = vmatprep.subr.mxu0 0.0
    %1628 = vmatpush1.msra.mxu0 0.0
    %1629 = vmatprep.subr.mxu0 0.0
    %1630 = vmatpush1.msra.mxu0 0.0
    %1631 = vmatprep.subr.mxu0 0.0
    %1632 = vmatpush1.msra.mxu0 0.0
    %1633 = vmatprep.subr.mxu0 0.0
    %1634 = vmatpush1.msra.mxu0 0.0
    %1635 = vmatprep.subr.mxu0 0.0
    %1636 = vmatpush1.msra.mxu0 0.0
    %1637 = vmatprep.subr.mxu0 0.0
    %1638 = vmatpush1.msra.mxu0 0.0
    %1639 = vmatprep.subr.mxu0 0.0
    %1640 = vmatpush1.msra.mxu0 0.0
    %1641 = vmatprep.subr.mxu0 0.0
    %1642 = vmatpush1.msra.mxu0 0.0
    %1643 = vmatprep.subr.mxu0 0.0
    %1644 = vmatpush1.msra.mxu0 0.0
    %1645 = vmatprep.subr.mxu0 0.0
    %1646 = vmatpush1.msra.mxu0 0.0
    %1647 = vmatprep.subr.mxu0 0.0
    %1648 = vmatpush1.msra.mxu0 0.0
    %1649 = vmatprep.subr.mxu0 0.0
    %1650 = vmatpush1.msra.mxu0 0.0
    %1651 = vmatprep.subr.mxu0 0.0
    %1652 = vmatpush1.msra.mxu0 0.0
    %1653 = vmatprep.subr.mxu0 0.0
    %1654 = vmatpush1.msra.mxu0 0.0
    %1655 = vmatprep.subr.mxu0 0.0
    %1656 = vmatpush1.msra.mxu0 0.0
    %1657 = vmatprep.mubr.f32.mxu0 0.0
    %1658 = vmatmul.mubr.f32.gmra.mrb[0].mxu0 %v1591
    %v1659 = vpop.f32.mrb[0].mxu0
    %v1660 = vadd.f32 0.0, %v1659
    %v1661 = vpop.f32.mrb[0].mxu0
    %1662 = vdwg.mxu0
    %v1663 = vadd.f32 %v1580, %v1660
    %s1664 = scalar_lea.vmem %s7, 512
    %v1665 = vld [vmem:[%s1664] sm:$0xff]
    %v1666 = vld [vmem:[%s1664 + $0x8] sm:$0xff]
    %v1667 = vld [vmem:[%s1664 + $0x10] sm:$0xff]
    %v1668 = vld [vmem:[%s1664 + $0x18] sm:$0xff]
    %v1669 = vld [vmem:[%s1664 + $0x20] sm:$0xff]
    %v1670 = vld [vmem:[%s1664 + $0x28] sm:$0xff]
    %v1671 = vld [vmem:[%s1664 + $0x30] sm:$0xff]
    %v1672 = vld [vmem:[%s1664 + $0x38] sm:$0xff]
    %v1674 = vsel %vm1008, %v991, 0
    %1676 = vmatprep.subr.mxu0 0.0
    %1677 = vmatpush1.msra.mxu0 %v1665
    %1678 = vmatprep.subr.mxu0 0.0
    %1679 = vmatpush1.msra.mxu0 %v1666
    %1680 = vmatprep.subr.mxu0 0.0
    %1681 = vmatpush1.msra.mxu0 %v1667
    %1682 = vmatprep.subr.mxu0 0.0
    %1683 = vmatpush1.msra.mxu0 %v1668
    %1684 = vmatprep.subr.mxu0 0.0
    %1685 = vmatpush1.msra.mxu0 %v1669
    %1686 = vmatprep.subr.mxu0 0.0
    %1687 = vmatpush1.msra.mxu0 %v1670
    %1688 = vmatprep.subr.mxu0 0.0
    %1689 = vmatpush1.msra.mxu0 %v1671
    %1690 = vmatprep.subr.mxu0 0.0
    %1691 = vmatpush1.msra.mxu0 %v1672
    %1692 = vmatprep.subr.mxu0 0.0
    %1693 = vmatpush1.msra.mxu0 0.0
    %1694 = vmatprep.subr.mxu0 0.0
    %1695 = vmatpush1.msra.mxu0 0.0
    %1696 = vmatprep.subr.mxu0 0.0
    %1697 = vmatpush1.msra.mxu0 0.0
    %1698 = vmatprep.subr.mxu0 0.0
    %1699 = vmatpush1.msra.mxu0 0.0
    %1700 = vmatprep.subr.mxu0 0.0
    %1701 = vmatpush1.msra.mxu0 0.0
    %1702 = vmatprep.subr.mxu0 0.0
    %1703 = vmatpush1.msra.mxu0 0.0
    %1704 = vmatprep.subr.mxu0 0.0
    %1705 = vmatpush1.msra.mxu0 0.0
    %1706 = vmatprep.subr.mxu0 0.0
    %1707 = vmatpush1.msra.mxu0 0.0
    %1708 = vmatprep.subr.mxu0 0.0
    %1709 = vmatpush1.msra.mxu0 0.0
    %1710 = vmatprep.subr.mxu0 0.0
    %1711 = vmatpush1.msra.mxu0 0.0
    %1712 = vmatprep.subr.mxu0 0.0
    %1713 = vmatpush1.msra.mxu0 0.0
    %1714 = vmatprep.subr.mxu0 0.0
    %1715 = vmatpush1.msra.mxu0 0.0
    %1716 = vmatprep.subr.mxu0 0.0
    %1717 = vmatpush1.msra.mxu0 0.0
    %1718 = vmatprep.subr.mxu0 0.0
    %1719 = vmatpush1.msra.mxu0 0.0
    %1720 = vmatprep.subr.mxu0 0.0
    %1721 = vmatpush1.msra.mxu0 0.0
    %1722 = vmatprep.subr.mxu0 0.0
    %1723 = vmatpush1.msra.mxu0 0.0
    %1724 = vmatprep.subr.mxu0 0.0
    %1725 = vmatpush1.msra.mxu0 0.0
    %1726 = vmatprep.subr.mxu0 0.0
    %1727 = vmatpush1.msra.mxu0 0.0
    %1728 = vmatprep.subr.mxu0 0.0
    %1729 = vmatpush1.msra.mxu0 0.0
    %1730 = vmatprep.subr.mxu0 0.0
    %1731 = vmatpush1.msra.mxu0 0.0
    %1732 = vmatprep.subr.mxu0 0.0
    %1733 = vmatpush1.msra.mxu0 0.0
    %1734 = vmatprep.subr.mxu0 0.0
    %1735 = vmatpush1.msra.mxu0 0.0
    %1736 = vmatprep.subr.mxu0 0.0
    %1737 = vmatpush1.msra.mxu0 0.0
    %1738 = vmatprep.subr.mxu0 0.0
    %1739 = vmatpush1.msra.mxu0 0.0
    %1740 = vmatprep.mubr.f32.mxu0 0.0
    %1741 = vmatmul.mubr.f32.gmra.mrb[0].mxu0 %v1674
    %v1742 = vpop.f32.mrb[0].mxu0
    %v1743 = vadd.f32 0.0, %v1742
    %v1744 = vpop.f32.mrb[0].mxu0
    %1745 = vdwg.mxu0
    %v1746 = vadd.f32 %v1663, %v1743
    %s1747 = scalar_lea.vmem %s7, 576
    %v1748 = vld [vmem:[%s1747] sm:$0xff]
    %v1749 = vld [vmem:[%s1747 + $0x8] sm:$0xff]
    %v1750 = vld [vmem:[%s1747 + $0x10] sm:$0xff]
    %v1751 = vld [vmem:[%s1747 + $0x18] sm:$0xff]
    %v1752 = vld [vmem:[%s1747 + $0x20] sm:$0xff]
    %v1753 = vld [vmem:[%s1747 + $0x28] sm:$0xff]
    %v1754 = vld [vmem:[%s1747 + $0x30] sm:$0xff]
    %v1755 = vld [vmem:[%s1747 + $0x38] sm:$0xff]
    %v1756 = vrot.slane %v991, 2
    %v1757 = vsel %vm1008, %v1756, 0
    %1759 = vmatprep.subr.mxu0 0.0
    %1760 = vmatpush1.msra.mxu0 %v1748
    %1761 = vmatprep.subr.mxu0 0.0
    %1762 = vmatpush1.msra.mxu0 %v1749
    %1763 = vmatprep.subr.mxu0 0.0
    %1764 = vmatpush1.msra.mxu0 %v1750
    %1765 = vmatprep.subr.mxu0 0.0
    %1766 = vmatpush1.msra.mxu0 %v1751
    %1767 = vmatprep.subr.mxu0 0.0
    %1768 = vmatpush1.msra.mxu0 %v1752
    %1769 = vmatprep.subr.mxu0 0.0
    %1770 = vmatpush1.msra.mxu0 %v1753
    %1771 = vmatprep.subr.mxu0 0.0
    %1772 = vmatpush1.msra.mxu0 %v1754
    %1773 = vmatprep.subr.mxu0 0.0
    %1774 = vmatpush1.msra.mxu0 %v1755
    %1775 = vmatprep.subr.mxu0 0.0
    %1776 = vmatpush1.msra.mxu0 0.0
    %1777 = vmatprep.subr.mxu0 0.0
    %1778 = vmatpush1.msra.mxu0 0.0
    %1779 = vmatprep.subr.mxu0 0.0
    %1780 = vmatpush1.msra.mxu0 0.0
    %1781 = vmatprep.subr.mxu0 0.0
    %1782 = vmatpush1.msra.mxu0 0.0
    %1783 = vmatprep.subr.mxu0 0.0
    %1784 = vmatpush1.msra.mxu0 0.0
    %1785 = vmatprep.subr.mxu0 0.0
    %1786 = vmatpush1.msra.mxu0 0.0
    %1787 = vmatprep.subr.mxu0 0.0
    %1788 = vmatpush1.msra.mxu0 0.0
    %1789 = vmatprep.subr.mxu0 0.0
    %1790 = vmatpush1.msra.mxu0 0.0
    %1791 = vmatprep.subr.mxu0 0.0
    %1792 = vmatpush1.msra.mxu0 0.0
    %1793 = vmatprep.subr.mxu0 0.0
    %1794 = vmatpush1.msra.mxu0 0.0
    %1795 = vmatprep.subr.mxu0 0.0
    %1796 = vmatpush1.msra.mxu0 0.0
    %1797 = vmatprep.subr.mxu0 0.0
    %1798 = vmatpush1.msra.mxu0 0.0
    %1799 = vmatprep.subr.mxu0 0.0
    %1800 = vmatpush1.msra.mxu0 0.0
    %1801 = vmatprep.subr.mxu0 0.0
    %1802 = vmatpush1.msra.mxu0 0.0
    %1803 = vmatprep.subr.mxu0 0.0
    %1804 = vmatpush1.msra.mxu0 0.0
    %1805 = vmatprep.subr.mxu0 0.0
    %1806 = vmatpush1.msra.mxu0 0.0
    %1807 = vmatprep.subr.mxu0 0.0
    %1808 = vmatpush1.msra.mxu0 0.0
    %1809 = vmatprep.subr.mxu0 0.0
    %1810 = vmatpush1.msra.mxu0 0.0
    %1811 = vmatprep.subr.mxu0 0.0
    %1812 = vmatpush1.msra.mxu0 0.0
    %1813 = vmatprep.subr.mxu0 0.0
    %1814 = vmatpush1.msra.mxu0 0.0
    %1815 = vmatprep.subr.mxu0 0.0
    %1816 = vmatpush1.msra.mxu0 0.0
    %1817 = vmatprep.subr.mxu0 0.0
    %1818 = vmatpush1.msra.mxu0 0.0
    %1819 = vmatprep.subr.mxu0 0.0
    %1820 = vmatpush1.msra.mxu0 0.0
    %1821 = vmatprep.subr.mxu0 0.0
    %1822 = vmatpush1.msra.mxu0 0.0
    %1823 = vmatprep.mubr.f32.mxu0 0.0
    %1824 = vmatmul.mubr.f32.gmra.mrb[0].mxu0 %v1757
    %v1825 = vpop.f32.mrb[0].mxu0
    %v1826 = vadd.f32 0.0, %v1825
    %v1827 = vpop.f32.mrb[0].mxu0
    %1828 = vdwg.mxu0
    %v1829 = vadd.f32 %v1746, %v1826
    %s1830 = scalar_lea.vmem %s7, 640
    %v1831 = vld [vmem:[%s1830] sm:$0xff]
    %v1832 = vld [vmem:[%s1830 + $0x8] sm:$0xff]
    %v1833 = vld [vmem:[%s1830 + $0x10] sm:$0xff]
    %v1834 = vld [vmem:[%s1830 + $0x18] sm:$0xff]
    %v1835 = vld [vmem:[%s1830 + $0x20] sm:$0xff]
    %v1836 = vld [vmem:[%s1830 + $0x28] sm:$0xff]
    %v1837 = vld [vmem:[%s1830 + $0x30] sm:$0xff]
    %v1838 = vld [vmem:[%s1830 + $0x38] sm:$0xff]
    %v1839 = vrot.slane %v991, 4
    %v1840 = vsel %vm1008, %v1839, 0
    %1842 = vmatprep.subr.mxu0 0.0
    %1843 = vmatpush1.msra.mxu0 %v1831
    %1844 = vmatprep.subr.mxu0 0.0
    %1845 = vmatpush1.msra.mxu0 %v1832
    %1846 = vmatprep.subr.mxu0 0.0
    %1847 = vmatpush1.msra.mxu0 %v1833
    %1848 = vmatprep.subr.mxu0 0.0
    %1849 = vmatpush1.msra.mxu0 %v1834
    %1850 = vmatprep.subr.mxu0 0.0
    %1851 = vmatpush1.msra.mxu0 %v1835
    %1852 = vmatprep.subr.mxu0 0.0
    %1853 = vmatpush1.msra.mxu0 %v1836
    %1854 = vmatprep.subr.mxu0 0.0
    %1855 = vmatpush1.msra.mxu0 %v1837
    %1856 = vmatprep.subr.mxu0 0.0
    %1857 = vmatpush1.msra.mxu0 %v1838
    %1858 = vmatprep.subr.mxu0 0.0
    %1859 = vmatpush1.msra.mxu0 0.0
    %1860 = vmatprep.subr.mxu0 0.0
    %1861 = vmatpush1.msra.mxu0 0.0
    %1862 = vmatprep.subr.mxu0 0.0
    %1863 = vmatpush1.msra.mxu0 0.0
    %1864 = vmatprep.subr.mxu0 0.0
    %1865 = vmatpush1.msra.mxu0 0.0
    %1866 = vmatprep.subr.mxu0 0.0
    %1867 = vmatpush1.msra.mxu0 0.0
    %1868 = vmatprep.subr.mxu0 0.0
    %1869 = vmatpush1.msra.mxu0 0.0
    %1870 = vmatprep.subr.mxu0 0.0
    %1871 = vmatpush1.msra.mxu0 0.0
    %1872 = vmatprep.subr.mxu0 0.0
    %1873 = vmatpush1.msra.mxu0 0.0
    %1874 = vmatprep.subr.mxu0 0.0
    %1875 = vmatpush1.msra.mxu0 0.0
    %1876 = vmatprep.subr.mxu0 0.0
    %1877 = vmatpush1.msra.mxu0 0.0
    %1878 = vmatprep.subr.mxu0 0.0
    %1879 = vmatpush1.msra.mxu0 0.0
    %1880 = vmatprep.subr.mxu0 0.0
    %1881 = vmatpush1.msra.mxu0 0.0
    %1882 = vmatprep.subr.mxu0 0.0
    %1883 = vmatpush1.msra.mxu0 0.0
    %1884 = vmatprep.subr.mxu0 0.0
    %1885 = vmatpush1.msra.mxu0 0.0
    %1886 = vmatprep.subr.mxu0 0.0
    %1887 = vmatpush1.msra.mxu0 0.0
    %1888 = vmatprep.subr.mxu0 0.0
    %1889 = vmatpush1.msra.mxu0 0.0
    %1890 = vmatprep.subr.mxu0 0.0
    %1891 = vmatpush1.msra.mxu0 0.0
    %1892 = vmatprep.subr.mxu0 0.0
    %1893 = vmatpush1.msra.mxu0 0.0
    %1894 = vmatprep.subr.mxu0 0.0
    %1895 = vmatpush1.msra.mxu0 0.0
    %1896 = vmatprep.subr.mxu0 0.0
    %1897 = vmatpush1.msra.mxu0 0.0
    %1898 = vmatprep.subr.mxu0 0.0
    %1899 = vmatpush1.msra.mxu0 0.0
    %1900 = vmatprep.subr.mxu0 0.0
    %1901 = vmatpush1.msra.mxu0 0.0
    %1902 = vmatprep.subr.mxu0 0.0
    %1903 = vmatpush1.msra.mxu0 0.0
    %1904 = vmatprep.subr.mxu0 0.0
    %1905 = vmatpush1.msra.mxu0 0.0
    %1906 = vmatprep.mubr.f32.mxu0 0.0
    %1907 = vmatmul.mubr.f32.gmra.mrb[0].mxu0 %v1840
    %v1908 = vpop.f32.mrb[0].mxu0
    %v1909 = vadd.f32 0.0, %v1908
    %v1910 = vpop.f32.mrb[0].mxu0
    %1911 = vdwg.mxu0
    %v1912 = vadd.f32 %v1829, %v1909
    %s1913 = scalar_lea.vmem %s7, 704
    %v1914 = vld [vmem:[%s1913] sm:$0xff]
    %v1915 = vld [vmem:[%s1913 + $0x8] sm:$0xff]
    %v1916 = vld [vmem:[%s1913 + $0x10] sm:$0xff]
    %v1917 = vld [vmem:[%s1913 + $0x18] sm:$0xff]
    %v1918 = vld [vmem:[%s1913 + $0x20] sm:$0xff]
    %v1919 = vld [vmem:[%s1913 + $0x28] sm:$0xff]
    %v1920 = vld [vmem:[%s1913 + $0x30] sm:$0xff]
    %v1921 = vld [vmem:[%s1913 + $0x38] sm:$0xff]
    %v1922 = vrot.slane %v991, 6
    %v1923 = vsel %vm1008, %v1922, 0
    %1925 = vmatprep.subr.mxu0 0.0
    %1926 = vmatpush1.msra.mxu0 %v1914
    %1927 = vmatprep.subr.mxu0 0.0
    %1928 = vmatpush1.msra.mxu0 %v1915
    %1929 = vmatprep.subr.mxu0 0.0
    %1930 = vmatpush1.msra.mxu0 %v1916
    %1931 = vmatprep.subr.mxu0 0.0
    %1932 = vmatpush1.msra.mxu0 %v1917
    %1933 = vmatprep.subr.mxu0 0.0
    %1934 = vmatpush1.msra.mxu0 %v1918
    %1935 = vmatprep.subr.mxu0 0.0
    %1936 = vmatpush1.msra.mxu0 %v1919
    %1937 = vmatprep.subr.mxu0 0.0
    %1938 = vmatpush1.msra.mxu0 %v1920
    %1939 = vmatprep.subr.mxu0 0.0
    %1940 = vmatpush1.msra.mxu0 %v1921
    %1941 = vmatprep.subr.mxu0 0.0
    %1942 = vmatpush1.msra.mxu0 0.0
    %1943 = vmatprep.subr.mxu0 0.0
    %1944 = vmatpush1.msra.mxu0 0.0
    %1945 = vmatprep.subr.mxu0 0.0
    %1946 = vmatpush1.msra.mxu0 0.0
    %1947 = vmatprep.subr.mxu0 0.0
    %1948 = vmatpush1.msra.mxu0 0.0
    %1949 = vmatprep.subr.mxu0 0.0
    %1950 = vmatpush1.msra.mxu0 0.0
    %1951 = vmatprep.subr.mxu0 0.0
    %1952 = vmatpush1.msra.mxu0 0.0
    %1953 = vmatprep.subr.mxu0 0.0
    %1954 = vmatpush1.msra.mxu0 0.0
    %1955 = vmatprep.subr.mxu0 0.0
    %1956 = vmatpush1.msra.mxu0 0.0
    %1957 = vmatprep.subr.mxu0 0.0
    %1958 = vmatpush1.msra.mxu0 0.0
    %1959 = vmatprep.subr.mxu0 0.0
    %1960 = vmatpush1.msra.mxu0 0.0
    %1961 = vmatprep.subr.mxu0 0.0
    %1962 = vmatpush1.msra.mxu0 0.0
    %1963 = vmatprep.subr.mxu0 0.0
    %1964 = vmatpush1.msra.mxu0 0.0
    %1965 = vmatprep.subr.mxu0 0.0
    %1966 = vmatpush1.msra.mxu0 0.0
    %1967 = vmatprep.subr.mxu0 0.0
    %1968 = vmatpush1.msra.mxu0 0.0
    %1969 = vmatprep.subr.mxu0 0.0
    %1970 = vmatpush1.msra.mxu0 0.0
    %1971 = vmatprep.subr.mxu0 0.0
    %1972 = vmatpush1.msra.mxu0 0.0
    %1973 = vmatprep.subr.mxu0 0.0
    %1974 = vmatpush1.msra.mxu0 0.0
    %1975 = vmatprep.subr.mxu0 0.0
    %1976 = vmatpush1.msra.mxu0 0.0
    %1977 = vmatprep.subr.mxu0 0.0
    %1978 = vmatpush1.msra.mxu0 0.0
    %1979 = vmatprep.subr.mxu0 0.0
    %1980 = vmatpush1.msra.mxu0 0.0
    %1981 = vmatprep.subr.mxu0 0.0
    %1982 = vmatpush1.msra.mxu0 0.0
    %1983 = vmatprep.subr.mxu0 0.0
    %1984 = vmatpush1.msra.mxu0 0.0
    %1985 = vmatprep.subr.mxu0 0.0
    %1986 = vmatpush1.msra.mxu0 0.0
    %1987 = vmatprep.subr.mxu0 0.0
    %1988 = vmatpush1.msra.mxu0 0.0
    %1989 = vmatprep.mubr.f32.mxu0 0.0
    %1990 = vmatmul.mubr.f32.gmra.mrb[0].mxu0 %v1923
    %v1991 = vpop.f32.mrb[0].mxu0
    %v1992 = vadd.f32 0.0, %v1991
    %v1993 = vpop.f32.mrb[0].mxu0
    %1994 = vdwg.mxu0
    %v1995 = vadd.f32 %v1912, %v1992
    %s1996 = scalar_lea.vmem %s7, 768
    %v1997 = vld [vmem:[%s1996] sm:$0xff]
    %v1998 = vld [vmem:[%s1996 + $0x8] sm:$0xff]
    %v1999 = vld [vmem:[%s1996 + $0x10] sm:$0xff]
    %v2000 = vld [vmem:[%s1996 + $0x18] sm:$0xff]
    %v2001 = vld [vmem:[%s1996 + $0x20] sm:$0xff]
    %v2002 = vld [vmem:[%s1996 + $0x28] sm:$0xff]
    %v2003 = vld [vmem:[%s1996 + $0x30] sm:$0xff]
    %v2004 = vld [vmem:[%s1996 + $0x38] sm:$0xff]
    %v2006 = vsel %vm1008, %v992, 0
    %2008 = vmatprep.subr.mxu0 0.0
    %2009 = vmatpush1.msra.mxu0 %v1997
    %2010 = vmatprep.subr.mxu0 0.0
    %2011 = vmatpush1.msra.mxu0 %v1998
    %2012 = vmatprep.subr.mxu0 0.0
    %2013 = vmatpush1.msra.mxu0 %v1999
    %2014 = vmatprep.subr.mxu0 0.0
    %2015 = vmatpush1.msra.mxu0 %v2000
    %2016 = vmatprep.subr.mxu0 0.0
    %2017 = vmatpush1.msra.mxu0 %v2001
    %2018 = vmatprep.subr.mxu0 0.0
    %2019 = vmatpush1.msra.mxu0 %v2002
    %2020 = vmatprep.subr.mxu0 0.0
    %2021 = vmatpush1.msra.mxu0 %v2003
    %2022 = vmatprep.subr.mxu0 0.0
    %2023 = vmatpush1.msra.mxu0 %v2004
    %2024 = vmatprep.subr.mxu0 0.0
    %2025 = vmatpush1.msra.mxu0 0.0
    %2026 = vmatprep.subr.mxu0 0.0
    %2027 = vmatpush1.msra.mxu0 0.0
    %2028 = vmatprep.subr.mxu0 0.0
    %2029 = vmatpush1.msra.mxu0 0.0
    %2030 = vmatprep.subr.mxu0 0.0
    %2031 = vmatpush1.msra.mxu0 0.0
    %2032 = vmatprep.subr.mxu0 0.0
    %2033 = vmatpush1.msra.mxu0 0.0
    %2034 = vmatprep.subr.mxu0 0.0
    %2035 = vmatpush1.msra.mxu0 0.0
    %2036 = vmatprep.subr.mxu0 0.0
    %2037 = vmatpush1.msra.mxu0 0.0
    %2038 = vmatprep.subr.mxu0 0.0
    %2039 = vmatpush1.msra.mxu0 0.0
    %2040 = vmatprep.subr.mxu0 0.0
    %2041 = vmatpush1.msra.mxu0 0.0
    %2042 = vmatprep.subr.mxu0 0.0
    %2043 = vmatpush1.msra.mxu0 0.0
    %2044 = vmatprep.subr.mxu0 0.0
    %2045 = vmatpush1.msra.mxu0 0.0
    %2046 = vmatprep.subr.mxu0 0.0
    %2047 = vmatpush1.msra.mxu0 0.0
    %2048 = vmatprep.subr.mxu0 0.0
    %2049 = vmatpush1.msra.mxu0 0.0
    %2050 = vmatprep.subr.mxu0 0.0
    %2051 = vmatpush1.msra.mxu0 0.0
    %2052 = vmatprep.subr.mxu0 0.0
    %2053 = vmatpush1.msra.mxu0 0.0
    %2054 = vmatprep.subr.mxu0 0.0
    %2055 = vmatpush1.msra.mxu0 0.0
    %2056 = vmatprep.subr.mxu0 0.0
    %2057 = vmatpush1.msra.mxu0 0.0
    %2058 = vmatprep.subr.mxu0 0.0
    %2059 = vmatpush1.msra.mxu0 0.0
    %2060 = vmatprep.subr.mxu0 0.0
    %2061 = vmatpush1.msra.mxu0 0.0
    %2062 = vmatprep.subr.mxu0 0.0
    %2063 = vmatpush1.msra.mxu0 0.0
    %2064 = vmatprep.subr.mxu0 0.0
    %2065 = vmatpush1.msra.mxu0 0.0
    %2066 = vmatprep.subr.mxu0 0.0
    %2067 = vmatpush1.msra.mxu0 0.0
    %2068 = vmatprep.subr.mxu0 0.0
    %2069 = vmatpush1.msra.mxu0 0.0
    %2070 = vmatprep.subr.mxu0 0.0
    %2071 = vmatpush1.msra.mxu0 0.0
    %2072 = vmatprep.mubr.f32.mxu0 0.0
    %2073 = vmatmul.mubr.f32.gmra.mrb[0].mxu0 %v2006
    %v2074 = vpop.f32.mrb[0].mxu0
    %v2075 = vadd.f32 0.0, %v2074
    %v2076 = vpop.f32.mrb[0].mxu0
    %2077 = vdwg.mxu0
    %v2078 = vadd.f32 %v1995, %v2075
    %s2079 = scalar_lea.vmem %s7, 832
    %v2080 = vld [vmem:[%s2079] sm:$0xff]
    %v2081 = vld [vmem:[%s2079 + $0x8] sm:$0xff]
    %v2082 = vld [vmem:[%s2079 + $0x10] sm:$0xff]
    %v2083 = vld [vmem:[%s2079 + $0x18] sm:$0xff]
    %v2084 = vld [vmem:[%s2079 + $0x20] sm:$0xff]
    %v2085 = vld [vmem:[%s2079 + $0x28] sm:$0xff]
    %v2086 = vld [vmem:[%s2079 + $0x30] sm:$0xff]
    %v2087 = vld [vmem:[%s2079 + $0x38] sm:$0xff]
    %v2088 = vrot.slane %v992, 2
    %v2089 = vsel %vm1008, %v2088, 0
    %2091 = vmatprep.subr.mxu0 0.0
    %2092 = vmatpush1.msra.mxu0 %v2080
    %2093 = vmatprep.subr.mxu0 0.0
    %2094 = vmatpush1.msra.mxu0 %v2081
    %2095 = vmatprep.subr.mxu0 0.0
    %2096 = vmatpush1.msra.mxu0 %v2082
    %2097 = vmatprep.subr.mxu0 0.0
    %2098 = vmatpush1.msra.mxu0 %v2083
    %2099 = vmatprep.subr.mxu0 0.0
    %2100 = vmatpush1.msra.mxu0 %v2084
    %2101 = vmatprep.subr.mxu0 0.0
    %2102 = vmatpush1.msra.mxu0 %v2085
    %2103 = vmatprep.subr.mxu0 0.0
    %2104 = vmatpush1.msra.mxu0 %v2086
    %2105 = vmatprep.subr.mxu0 0.0
    %2106 = vmatpush1.msra.mxu0 %v2087
    %2107 = vmatprep.subr.mxu0 0.0
    %2108 = vmatpush1.msra.mxu0 0.0
    %2109 = vmatprep.subr.mxu0 0.0
    %2110 = vmatpush1.msra.mxu0 0.0
    %2111 = vmatprep.subr.mxu0 0.0
    %2112 = vmatpush1.msra.mxu0 0.0
    %2113 = vmatprep.subr.mxu0 0.0
    %2114 = vmatpush1.msra.mxu0 0.0
    %2115 = vmatprep.subr.mxu0 0.0
    %2116 = vmatpush1.msra.mxu0 0.0
    %2117 = vmatprep.subr.mxu0 0.0
    %2118 = vmatpush1.msra.mxu0 0.0
    %2119 = vmatprep.subr.mxu0 0.0
    %2120 = vmatpush1.msra.mxu0 0.0
    %2121 = vmatprep.subr.mxu0 0.0
    %2122 = vmatpush1.msra.mxu0 0.0
    %2123 = vmatprep.subr.mxu0 0.0
    %2124 = vmatpush1.msra.mxu0 0.0
    %2125 = vmatprep.subr.mxu0 0.0
    %2126 = vmatpush1.msra.mxu0 0.0
    %2127 = vmatprep.subr.mxu0 0.0
    %2128 = vmatpush1.msra.mxu0 0.0
    %2129 = vmatprep.subr.mxu0 0.0
    %2130 = vmatpush1.msra.mxu0 0.0
    %2131 = vmatprep.subr.mxu0 0.0
    %2132 = vmatpush1.msra.mxu0 0.0
    %2133 = vmatprep.subr.mxu0 0.0
    %2134 = vmatpush1.msra.mxu0 0.0
    %2135 = vmatprep.subr.mxu0 0.0
    %2136 = vmatpush1.msra.mxu0 0.0
    %2137 = vmatprep.subr.mxu0 0.0
    %2138 = vmatpush1.msra.mxu0 0.0
    %2139 = vmatprep.subr.mxu0 0.0
    %2140 = vmatpush1.msra.mxu0 0.0
    %2141 = vmatprep.subr.mxu0 0.0
    %2142 = vmatpush1.msra.mxu0 0.0
    %2143 = vmatprep.subr.mxu0 0.0
    %2144 = vmatpush1.msra.mxu0 0.0
    %2145 = vmatprep.subr.mxu0 0.0
    %2146 = vmatpush1.msra.mxu0 0.0
    %2147 = vmatprep.subr.mxu0 0.0
    %2148 = vmatpush1.msra.mxu0 0.0
    %2149 = vmatprep.subr.mxu0 0.0
    %2150 = vmatpush1.msra.mxu0 0.0
    %2151 = vmatprep.subr.mxu0 0.0
    %2152 = vmatpush1.msra.mxu0 0.0
    %2153 = vmatprep.subr.mxu0 0.0
    %2154 = vmatpush1.msra.mxu0 0.0
    %2155 = vmatprep.mubr.f32.mxu0 0.0
    %2156 = vmatmul.mubr.f32.gmra.mrb[0].mxu0 %v2089
    %v2157 = vpop.f32.mrb[0].mxu0
    %v2158 = vadd.f32 0.0, %v2157
    %v2159 = vpop.f32.mrb[0].mxu0
    %2160 = vdwg.mxu0
    %v2161 = vadd.f32 %v2078, %v2158
    %s2162 = scalar_lea.vmem %s7, 896
    %v2163 = vld [vmem:[%s2162] sm:$0xff]
    %v2164 = vld [vmem:[%s2162 + $0x8] sm:$0xff]
    %v2165 = vld [vmem:[%s2162 + $0x10] sm:$0xff]
    %v2166 = vld [vmem:[%s2162 + $0x18] sm:$0xff]
    %v2167 = vld [vmem:[%s2162 + $0x20] sm:$0xff]
    %v2168 = vld [vmem:[%s2162 + $0x28] sm:$0xff]
    %v2169 = vld [vmem:[%s2162 + $0x30] sm:$0xff]
    %v2170 = vld [vmem:[%s2162 + $0x38] sm:$0xff]
    %v2171 = vrot.slane %v992, 4
    %v2172 = vsel %vm1008, %v2171, 0
    %2174 = vmatprep.subr.mxu0 0.0
    %2175 = vmatpush1.msra.mxu0 %v2163
    %2176 = vmatprep.subr.mxu0 0.0
    %2177 = vmatpush1.msra.mxu0 %v2164
    %2178 = vmatprep.subr.mxu0 0.0
    %2179 = vmatpush1.msra.mxu0 %v2165
    %2180 = vmatprep.subr.mxu0 0.0
    %2181 = vmatpush1.msra.mxu0 %v2166
    %2182 = vmatprep.subr.mxu0 0.0
    %2183 = vmatpush1.msra.mxu0 %v2167
    %2184 = vmatprep.subr.mxu0 0.0
    %2185 = vmatpush1.msra.mxu0 %v2168
    %2186 = vmatprep.subr.mxu0 0.0
    %2187 = vmatpush1.msra.mxu0 %v2169
    %2188 = vmatprep.subr.mxu0 0.0
    %2189 = vmatpush1.msra.mxu0 %v2170
    %2190 = vmatprep.subr.mxu0 0.0
    %2191 = vmatpush1.msra.mxu0 0.0
    %2192 = vmatprep.subr.mxu0 0.0
    %2193 = vmatpush1.msra.mxu0 0.0
    %2194 = vmatprep.subr.mxu0 0.0
    %2195 = vmatpush1.msra.mxu0 0.0
    %2196 = vmatprep.subr.mxu0 0.0
    %2197 = vmatpush1.msra.mxu0 0.0
    %2198 = vmatprep.subr.mxu0 0.0
    %2199 = vmatpush1.msra.mxu0 0.0
    %2200 = vmatprep.subr.mxu0 0.0
    %2201 = vmatpush1.msra.mxu0 0.0
    %2202 = vmatprep.subr.mxu0 0.0
    %2203 = vmatpush1.msra.mxu0 0.0
    %2204 = vmatprep.subr.mxu0 0.0
    %2205 = vmatpush1.msra.mxu0 0.0
    %2206 = vmatprep.subr.mxu0 0.0
    %2207 = vmatpush1.msra.mxu0 0.0
    %2208 = vmatprep.subr.mxu0 0.0
    %2209 = vmatpush1.msra.mxu0 0.0
    %2210 = vmatprep.subr.mxu0 0.0
    %2211 = vmatpush1.msra.mxu0 0.0
    %2212 = vmatprep.subr.mxu0 0.0
    %2213 = vmatpush1.msra.mxu0 0.0
    %2214 = vmatprep.subr.mxu0 0.0
    %2215 = vmatpush1.msra.mxu0 0.0
    %2216 = vmatprep.subr.mxu0 0.0
    %2217 = vmatpush1.msra.mxu0 0.0
    %2218 = vmatprep.subr.mxu0 0.0
    %2219 = vmatpush1.msra.mxu0 0.0
    %2220 = vmatprep.subr.mxu0 0.0
    %2221 = vmatpush1.msra.mxu0 0.0
    %2222 = vmatprep.subr.mxu0 0.0
    %2223 = vmatpush1.msra.mxu0 0.0
    %2224 = vmatprep.subr.mxu0 0.0
    %2225 = vmatpush1.msra.mxu0 0.0
    %2226 = vmatprep.subr.mxu0 0.0
    %2227 = vmatpush1.msra.mxu0 0.0
    %2228 = vmatprep.subr.mxu0 0.0
    %2229 = vmatpush1.msra.mxu0 0.0
    %2230 = vmatprep.subr.mxu0 0.0
    %2231 = vmatpush1.msra.mxu0 0.0
    %2232 = vmatprep.subr.mxu0 0.0
    %2233 = vmatpush1.msra.mxu0 0.0
    %2234 = vmatprep.subr.mxu0 0.0
    %2235 = vmatpush1.msra.mxu0 0.0
    %2236 = vmatprep.subr.mxu0 0.0
    %2237 = vmatpush1.msra.mxu0 0.0
    %2238 = vmatprep.mubr.f32.mxu0 0.0
    %2239 = vmatmul.mubr.f32.gmra.mrb[0].mxu0 %v2172
    %v2240 = vpop.f32.mrb[0].mxu0
    %v2241 = vadd.f32 0.0, %v2240
    %v2242 = vpop.f32.mrb[0].mxu0
    %2243 = vdwg.mxu0
    %v2244 = vadd.f32 %v2161, %v2241
    %s2245 = scalar_lea.vmem %s7, 960
    %v2246 = vld [vmem:[%s2245] sm:$0xff]
    %v2247 = vld [vmem:[%s2245 + $0x8] sm:$0xff]
    %v2248 = vld [vmem:[%s2245 + $0x10] sm:$0xff]
    %v2249 = vld [vmem:[%s2245 + $0x18] sm:$0xff]
    %v2250 = vld [vmem:[%s2245 + $0x20] sm:$0xff]
    %v2251 = vld [vmem:[%s2245 + $0x28] sm:$0xff]
    %v2252 = vld [vmem:[%s2245 + $0x30] sm:$0xff]
    %v2253 = vld [vmem:[%s2245 + $0x38] sm:$0xff]
    %v2254 = vrot.slane %v992, 6
    %v2255 = vsel %vm1008, %v2254, 0
    %2257 = vmatprep.subr.mxu0 0.0
    %2258 = vmatpush1.msra.mxu0 %v2246
    %2259 = vmatprep.subr.mxu0 0.0
    %2260 = vmatpush1.msra.mxu0 %v2247
    %2261 = vmatprep.subr.mxu0 0.0
    %2262 = vmatpush1.msra.mxu0 %v2248
    %2263 = vmatprep.subr.mxu0 0.0
    %2264 = vmatpush1.msra.mxu0 %v2249
    %2265 = vmatprep.subr.mxu0 0.0
    %2266 = vmatpush1.msra.mxu0 %v2250
    %2267 = vmatprep.subr.mxu0 0.0
    %2268 = vmatpush1.msra.mxu0 %v2251
    %2269 = vmatprep.subr.mxu0 0.0
    %2270 = vmatpush1.msra.mxu0 %v2252
    %2271 = vmatprep.subr.mxu0 0.0
    %2272 = vmatpush1.msra.mxu0 %v2253
    %2273 = vmatprep.subr.mxu0 0.0
    %2274 = vmatpush1.msra.mxu0 0.0
    %2275 = vmatprep.subr.mxu0 0.0
    %2276 = vmatpush1.msra.mxu0 0.0
    %2277 = vmatprep.subr.mxu0 0.0
    %2278 = vmatpush1.msra.mxu0 0.0
    %2279 = vmatprep.subr.mxu0 0.0
    %2280 = vmatpush1.msra.mxu0 0.0
    %2281 = vmatprep.subr.mxu0 0.0
    %2282 = vmatpush1.msra.mxu0 0.0
    %2283 = vmatprep.subr.mxu0 0.0
    %2284 = vmatpush1.msra.mxu0 0.0
    %2285 = vmatprep.subr.mxu0 0.0
    %2286 = vmatpush1.msra.mxu0 0.0
    %2287 = vmatprep.subr.mxu0 0.0
    %2288 = vmatpush1.msra.mxu0 0.0
    %2289 = vmatprep.subr.mxu0 0.0
    %2290 = vmatpush1.msra.mxu0 0.0
    %2291 = vmatprep.subr.mxu0 0.0
    %2292 = vmatpush1.msra.mxu0 0.0
    %2293 = vmatprep.subr.mxu0 0.0
    %2294 = vmatpush1.msra.mxu0 0.0
    %2295 = vmatprep.subr.mxu0 0.0
    %2296 = vmatpush1.msra.mxu0 0.0
    %2297 = vmatprep.subr.mxu0 0.0
    %2298 = vmatpush1.msra.mxu0 0.0
    %2299 = vmatprep.subr.mxu0 0.0
    %2300 = vmatpush1.msra.mxu0 0.0
    %2301 = vmatprep.subr.mxu0 0.0
    %2302 = vmatpush1.msra.mxu0 0.0
    %2303 = vmatprep.subr.mxu0 0.0
    %2304 = vmatpush1.msra.mxu0 0.0
    %2305 = vmatprep.subr.mxu0 0.0
    %2306 = vmatpush1.msra.mxu0 0.0
    %2307 = vmatprep.subr.mxu0 0.0
    %2308 = vmatpush1.msra.mxu0 0.0
    %2309 = vmatprep.subr.mxu0 0.0
    %2310 = vmatpush1.msra.mxu0 0.0
    %2311 = vmatprep.subr.mxu0 0.0
    %2312 = vmatpush1.msra.mxu0 0.0
    %2313 = vmatprep.subr.mxu0 0.0
    %2314 = vmatpush1.msra.mxu0 0.0
    %2315 = vmatprep.subr.mxu0 0.0
    %2316 = vmatpush1.msra.mxu0 0.0
    %2317 = vmatprep.subr.mxu0 0.0
    %2318 = vmatpush1.msra.mxu0 0.0
    %2319 = vmatprep.subr.mxu0 0.0
    %2320 = vmatpush1.msra.mxu0 0.0
    %2321 = vmatprep.mubr.f32.mxu0 0.0
    %2322 = vmatmul.mubr.f32.gmra.mrb[0].mxu0 %v2255
    %v2323 = vpop.f32.mrb[0].mxu0
    %v2324 = vadd.f32 0.0, %v2323
    %v2325 = vpop.f32.mrb[0].mxu0
    %2326 = vdwg.mxu0
    %v2327 = vadd.f32 %v2244, %v2324
    %v2328 = vadd.f32 %v2327, 0.0
    %vm2329 = vcmp.gt.f32.partialorder %v2328, 0.5
    %v2330 = vsel %vm2329, 1, 0
    %v2331 = vcvt.s32.f32 %v2330
    %v2333 = vlaneseq
    %v2334 = vshrl.u32 %v2333, 7
    %v2335 = vsub.s32 0, %v2334
    %v2336 = vrot.slane %v236, %v2335
    %v2339 = vsel %vm794, %v2331, 0
    %2341 = vmatprep.subr.mxu0 0.0
    %2342 = vmatpush1.msra.mxu0 %v232
    %2343 = vmatprep.subr.mxu0 0.0
    %2344 = vmatpush1.msra.mxu0 %v233
    %2345 = vmatprep.subr.mxu0 0.0
    %2346 = vmatpush1.msra.mxu0 %v234
    %2347 = vmatprep.subr.mxu0 0.0
    %2348 = vmatpush1.msra.mxu0 %v235
    %2349 = vmatprep.subr.mxu0 0.0
    %2350 = vmatpush1.msra.mxu0 0.0
    %2351 = vmatprep.subr.mxu0 0.0
    %2352 = vmatpush1.msra.mxu0 0.0
    %2353 = vmatprep.subr.mxu0 0.0
    %2354 = vmatpush1.msra.mxu0 0.0
    %2355 = vmatprep.subr.mxu0 0.0
    %2356 = vmatpush1.msra.mxu0 0.0
    %2357 = vmatprep.subr.mxu0 0.0
    %2358 = vmatpush1.msra.mxu0 0.0
    %2359 = vmatprep.subr.mxu0 0.0
    %2360 = vmatpush1.msra.mxu0 0.0
    %2361 = vmatprep.subr.mxu0 0.0
    %2362 = vmatpush1.msra.mxu0 0.0
    %2363 = vmatprep.subr.mxu0 0.0
    %2364 = vmatpush1.msra.mxu0 0.0
    %2365 = vmatprep.subr.mxu0 0.0
    %2366 = vmatpush1.msra.mxu0 0.0
    %2367 = vmatprep.subr.mxu0 0.0
    %2368 = vmatpush1.msra.mxu0 0.0
    %2369 = vmatprep.subr.mxu0 0.0
    %2370 = vmatpush1.msra.mxu0 0.0
    %2371 = vmatprep.subr.mxu0 0.0
    %2372 = vmatpush1.msra.mxu0 0.0
    %2373 = vmatprep.subr.mxu0 0.0
    %2374 = vmatpush1.msra.mxu0 0.0
    %2375 = vmatprep.subr.mxu0 0.0
    %2376 = vmatpush1.msra.mxu0 0.0
    %2377 = vmatprep.subr.mxu0 0.0
    %2378 = vmatpush1.msra.mxu0 0.0
    %2379 = vmatprep.subr.mxu0 0.0
    %2380 = vmatpush1.msra.mxu0 0.0
    %2381 = vmatprep.subr.mxu0 0.0
    %2382 = vmatpush1.msra.mxu0 0.0
    %2383 = vmatprep.subr.mxu0 0.0
    %2384 = vmatpush1.msra.mxu0 0.0
    %2385 = vmatprep.subr.mxu0 0.0
    %2386 = vmatpush1.msra.mxu0 0.0
    %2387 = vmatprep.subr.mxu0 0.0
    %2388 = vmatpush1.msra.mxu0 0.0
    %2389 = vmatprep.subr.mxu0 0.0
    %2390 = vmatpush1.msra.mxu0 0.0
    %2391 = vmatprep.subr.mxu0 0.0
    %2392 = vmatpush1.msra.mxu0 0.0
    %2393 = vmatprep.subr.mxu0 0.0
    %2394 = vmatpush1.msra.mxu0 0.0
    %2395 = vmatprep.subr.mxu0 0.0
    %2396 = vmatpush1.msra.mxu0 0.0
    %2397 = vmatprep.subr.mxu0 0.0
    %2398 = vmatpush1.msra.mxu0 0.0
    %2399 = vmatprep.subr.mxu0 0.0
    %2400 = vmatpush1.msra.mxu0 0.0
    %2401 = vmatprep.subr.mxu0 0.0
    %2402 = vmatpush1.msra.mxu0 0.0
    %2403 = vmatprep.subr.mxu0 0.0
    %2404 = vmatpush1.msra.mxu0 0.0
    %2405 = vmatprep.mubr.f32.mxu0 0.0
    %2406 = vmatmul.mubr.f32.gmra.mrb[0].mxu0 %v2339
    %v2407 = vpop.f32.mrb[0].mxu0
    %v2408 = vadd.f32 %v2336, %v2407
    %v2409 = vpop.f32.mrb[0].mxu0
    %2410 = vdwg.mxu0
    %v2411 = vadd.f32 %v2408, 0.0
    %vm2412 = vcmp.gt.f32.partialorder %v2411, 0.5
    %v2413 = vsel %vm2412, 1, 0
    %v2414 = vcvt.s32.f32 %v2413
    %v2415 = vadd.f32 %v2414, 0.0
    %v2416 = vsub.f32 1.0, %v261
    %v2417 = vsub.f32 1.0, %v262
    %v2418 = vsub.f32 1.0, %v263
    %v2419 = vsub.f32 1.0, %v264
    %v2420 = vsub.f32 1.0, %v265
    %v2421 = vsub.f32 1.0, %v266
    %v2422 = vsub.f32 1.0, %v267
    %v2423 = vsub.f32 1.0, %v268
    %v2424 = vmul.f32 %v2416, 0.2
    %v2425 = vmul.f32 %v2417, 0.2
    %v2426 = vmul.f32 %v2418, 0.2
    %v2427 = vmul.f32 %v2419, 0.2
    %v2428 = vmul.f32 %v2420, 0.2
    %v2429 = vmul.f32 %v2421, 0.2
    %v2430 = vmul.f32 %v2422, 0.2
    %v2431 = vmul.f32 %v2423, 0.2
    %v2432 = vmul.f32 %v237, %v2424
    %v2433 = vmul.f32 %v238, %v2425
    %v2434 = vmul.f32 %v239, %v2426
    %v2435 = vmul.f32 %v240, %v2427
    %v2436 = vmul.f32 %v241, %v2428
    %v2437 = vmul.f32 %v242, %v2429
    %v2438 = vmul.f32 %v243, %v2430
    %v2439 = vmul.f32 %v244, %v2431
    %v2440 = vadd.f32 %v2432, %v161
    %v2441 = vadd.f32 %v2433, %v163
    %v2442 = vadd.f32 %v2434, %v167
    %v2443 = vadd.f32 %v2435, %v169
    %v2444 = vadd.f32 %v2436, %v173
    %v2445 = vadd.f32 %v2437, %v175
    %v2446 = vadd.f32 %v2438, %v179
    %v2447 = vadd.f32 %v2439, %v181
    %vm2448 = vcmp.gt.f32.partialorder %v2440, 0.5
    %vm2449 = vcmp.gt.f32.partialorder %v2441, 0.5
    %vm2450 = vcmp.gt.f32.partialorder %v2442, 0.5
    %vm2451 = vcmp.gt.f32.partialorder %v2443, 0.5
    %vm2452 = vcmp.gt.f32.partialorder %v2444, 0.5
    %vm2453 = vcmp.gt.f32.partialorder %v2445, 0.5
    %vm2454 = vcmp.gt.f32.partialorder %v2446, 0.5
    %vm2455 = vcmp.gt.f32.partialorder %v2447, 0.5
    %v2456 = vsel %vm2448, 1, 0
    %v2457 = vsel %vm2449, 1, 0
    %v2458 = vsel %vm2450, 1, 0
    %v2459 = vsel %vm2451, 1, 0
    %v2460 = vsel %vm2452, 1, 0
    %v2461 = vsel %vm2453, 1, 0
    %v2462 = vsel %vm2454, 1, 0
    %v2463 = vsel %vm2455, 1, 0
    %v2464 = vcvt.s32.f32 %v2456
    %v2465 = vcvt.s32.f32 %v2457
    %v2466 = vcvt.s32.f32 %v2458
    %v2467 = vcvt.s32.f32 %v2459
    %v2468 = vcvt.s32.f32 %v2460
    %v2469 = vcvt.s32.f32 %v2461
    %v2470 = vcvt.s32.f32 %v2462
    %v2471 = vcvt.s32.f32 %v2463
    %v2472 = vpack.c.bf16 %v2466, %v2464
    %v2473 = vpack.c.bf16 %v2467, %v2465
    %v2474 = vpack.c.bf16 %v2470, %v2468
    %v2475 = vpack.c.bf16 %v2471, %v2469
    %2476 = vmatprep.subr.bf16.mxu0 0
    %2477 = vmatpush1.bf16.msra.mxu0 %v337
    %2478 = vmatprep.subr.bf16.mxu0 0
    %2479 = vmatpush1.bf16.msra.mxu0 %v338
    %2480 = vmatprep.subr.bf16.mxu0 0
    %2481 = vmatpush1.bf16.msra.mxu0 %v339
    %2482 = vmatprep.subr.bf16.mxu0 0
    %2483 = vmatpush1.bf16.msra.mxu0 %v340
    %2484 = vmatprep.subr.bf16.mxu0 0
    %2485 = vmatpush1.bf16.msra.mxu0 %v341
    %2486 = vmatprep.subr.bf16.mxu0 0
    %2487 = vmatpush1.bf16.msra.mxu0 %v342
    %2488 = vmatprep.subr.bf16.mxu0 0
    %2489 = vmatpush1.bf16.msra.mxu0 %v343
    %2490 = vmatprep.subr.bf16.mxu0 0
    %2491 = vmatpush1.bf16.msra.mxu0 %v344
    %2492 = vmatprep.subr.bf16.mxu0 0
    %2493 = vmatpush1.bf16.msra.mxu0 %v345
    %2494 = vmatprep.subr.bf16.mxu0 0
    %2495 = vmatpush1.bf16.msra.mxu0 %v346
    %2496 = vmatprep.subr.bf16.mxu0 0
    %2497 = vmatpush1.bf16.msra.mxu0 %v347
    %2498 = vmatprep.subr.bf16.mxu0 0
    %2499 = vmatpush1.bf16.msra.mxu0 %v348
    %2500 = vmatprep.subr.bf16.mxu0 0
    %2501 = vmatpush1.bf16.msra.mxu0 %v349
    %2502 = vmatprep.subr.bf16.mxu0 0
    %2503 = vmatpush1.bf16.msra.mxu0 %v350
    %2504 = vmatprep.subr.bf16.mxu0 0
    %2505 = vmatpush1.bf16.msra.mxu0 %v351
    %2506 = vmatprep.subr.bf16.mxu0 0
    %2507 = vmatpush1.bf16.msra.mxu0 %v352
    %2508 = vmatprep.mubr.bf16.mxu0 %v2473
    %2509 = vmatmul.mubr.bf16.gmra.mrb[0].mxu0 %v2472
    %v2510 = vpop.f32.mrb[0].mxu0
    %v2511 = vadd.f32 0.0, %v2510
    %v2512 = vpop.f32.mrb[0].mxu0
    %v2513 = vpop.f32.mrb[0].mxu0
    %v2514 = vadd.f32 0.0, %v2513
    %v2515 = vpop.f32.mrb[0].mxu0
    %2516 = vmatprep.mubr.bf16.mxu0 %v2475
    %2517 = vmatmul.mubr.bf16.gmra.mrb[0].mxu0 %v2474
    %v2518 = vpop.f32.mrb[0].mxu0
    %v2519 = vadd.f32 0.0, %v2518
    %v2520 = vpop.f32.mrb[0].mxu0
    %v2521 = vpop.f32.mrb[0].mxu0
    %v2522 = vadd.f32 0.0, %v2521
    %v2523 = vpop.f32.mrb[0].mxu0
    %2524 = vdwg.mxu0
    %2525 = vrot.lane.b32.xlu0 %v2511, 64
    %v2526 = vpop.permute.xlu0 %2525
    %v2527 = vsel %vm418, %v2526, %v2511
    %2528 = vrot.lane.b32.xlu0 %v2514, 64
    %v2529 = vpop.permute.xlu0 %2528
    %v2530 = vsel %vm418, %v2529, %v2514
    %2531 = vrot.lane.b32.xlu0 %v2519, 64
    %v2532 = vpop.permute.xlu0 %2531
    %v2533 = vsel %vm418, %v2532, %v2519
    %2534 = vrot.lane.b32.xlu0 %v2522, 64
    %v2535 = vpop.permute.xlu0 %2534
    %v2536 = vsel %vm418, %v2535, %v2522
    %2537 = vrot.lane.b32.xlu0 %v2527, 64
    %v2538 = vpop.permute.xlu0 %2537
    %2539 = vrot.lane.b32.xlu0 %v2530, 64
    %v2540 = vpop.permute.xlu0 %2539
    %2541 = vrot.lane.b32.xlu0 %v2533, 64
    %v2542 = vpop.permute.xlu0 %2541
    %2543 = vrot.lane.b32.xlu0 %v2536, 64
    %v2544 = vpop.permute.xlu0 %2543
    %v2545 = vsel %vm418, %v2538, %v2511
    %v2546 = vsel %vm418, %v2540, %v2514
    %v2547 = vsel %vm418, %v2542, %v2519
    %v2548 = vsel %vm418, %v2544, %v2522
    %v2549 = vmul.f32 %v2545, %v450
    %v2550 = vmul.f32 %v2546, %v450
    %v2551 = vmul.f32 %v2547, %v450
    %v2552 = vmul.f32 %v2548, %v450
    %v2553 = vmul.f32 %v2545, %v464
    %v2554 = vmul.f32 %v2546, %v464
    %v2555 = vmul.f32 %v2547, %v464
    %v2556 = vmul.f32 %v2548, %v464
    %v2557 = vmul.f32 %v2545, %v478
    %v2558 = vmul.f32 %v2546, %v478
    %v2559 = vmul.f32 %v2547, %v478
    %v2560 = vmul.f32 %v2548, %v478
    %v2561 = vmul.f32 %v2545, %v492
    %v2562 = vmul.f32 %v2546, %v492
    %v2563 = vmul.f32 %v2547, %v492
    %v2564 = vmul.f32 %v2548, %v492
    %v2565 = vmul.f32 %v2511, %v504
    %v2566 = vmul.f32 %v2514, %v504
    %v2567 = vmul.f32 %v2519, %v504
    %v2568 = vmul.f32 %v2522, %v504
    %v2569 = vmul.f32 %v2545, %v518
    %v2570 = vmul.f32 %v2546, %v518
    %v2571 = vmul.f32 %v2547, %v518
    %v2572 = vmul.f32 %v2548, %v518
    %v2573 = vmul.f32 %v2545, %v532
    %v2574 = vmul.f32 %v2546, %v532
    %v2575 = vmul.f32 %v2547, %v532
    %v2576 = vmul.f32 %v2548, %v532
    %v2577 = vmul.f32 %v2545, %v546
    %v2578 = vmul.f32 %v2546, %v546
    %v2579 = vmul.f32 %v2547, %v546
    %v2580 = vmul.f32 %v2548, %v546
    %v2581 = vmul.f32 %v2545, %v560
    %v2582 = vmul.f32 %v2546, %v560
    %v2583 = vmul.f32 %v2547, %v560
    %v2584 = vmul.f32 %v2548, %v560
    %2589 = vrot.lane.b32.xlu0 %v2553, 127
    %v2590 = vpop.permute.xlu0 %2589
    %2591 = vrot.lane.b32.xlu0 %v2554, 127
    %v2592 = vpop.permute.xlu0 %2591
    %2593 = vrot.lane.b32.xlu0 %v2555, 127
    %v2594 = vpop.permute.xlu0 %2593
    %2595 = vrot.lane.b32.xlu0 %v2556, 127
    %v2596 = vpop.permute.xlu0 %2595
    %2601 = vrot.lane.b32.xlu0 %v2557, 126
    %v2602 = vpop.permute.xlu0 %2601
    %2603 = vrot.lane.b32.xlu0 %v2558, 126
    %v2604 = vpop.permute.xlu0 %2603
    %2605 = vrot.lane.b32.xlu0 %v2559, 126
    %v2606 = vpop.permute.xlu0 %2605
    %2607 = vrot.lane.b32.xlu0 %v2560, 126
    %v2608 = vpop.permute.xlu0 %2607
    %2613 = vrot.lane.b32.xlu0 %v2561, 120
    %v2614 = vpop.permute.xlu0 %2613
    %2615 = vrot.lane.b32.xlu0 %v2562, 120
    %v2616 = vpop.permute.xlu0 %2615
    %2617 = vrot.lane.b32.xlu0 %v2563, 120
    %v2618 = vpop.permute.xlu0 %2617
    %2619 = vrot.lane.b32.xlu0 %v2564, 120
    %v2620 = vpop.permute.xlu0 %2619
    %2625 = vrot.lane.b32.xlu0 %v2565, 55
    %v2626 = vpop.permute.xlu0 %2625
    %2627 = vrot.lane.b32.xlu0 %v2566, 55
    %v2628 = vpop.permute.xlu0 %2627
    %2629 = vrot.lane.b32.xlu0 %v2567, 55
    %v2630 = vpop.permute.xlu0 %2629
    %2631 = vrot.lane.b32.xlu0 %v2568, 55
    %v2632 = vpop.permute.xlu0 %2631
    %2637 = vrot.lane.b32.xlu0 %v2569, 54
    %v2638 = vpop.permute.xlu0 %2637
    %2639 = vrot.lane.b32.xlu0 %v2570, 54
    %v2640 = vpop.permute.xlu0 %2639
    %2641 = vrot.lane.b32.xlu0 %v2571, 54
    %v2642 = vpop.permute.xlu0 %2641
    %2643 = vrot.lane.b32.xlu0 %v2572, 54
    %v2644 = vpop.permute.xlu0 %2643
    %2649 = vrot.lane.b32.xlu0 %v2573, 48
    %v2650 = vpop.permute.xlu0 %2649
    %2651 = vrot.lane.b32.xlu0 %v2574, 48
    %v2652 = vpop.permute.xlu0 %2651
    %2653 = vrot.lane.b32.xlu0 %v2575, 48
    %v2654 = vpop.permute.xlu0 %2653
    %2655 = vrot.lane.b32.xlu0 %v2576, 48
    %v2656 = vpop.permute.xlu0 %2655
    %2661 = vrot.lane.b32.xlu0 %v2577, 47
    %v2662 = vpop.permute.xlu0 %2661
    %2663 = vrot.lane.b32.xlu0 %v2578, 47
    %v2664 = vpop.permute.xlu0 %2663
    %2665 = vrot.lane.b32.xlu0 %v2579, 47
    %v2666 = vpop.permute.xlu0 %2665
    %2667 = vrot.lane.b32.xlu0 %v2580, 47
    %v2668 = vpop.permute.xlu0 %2667
    %2673 = vrot.lane.b32.xlu0 %v2581, 46
    %v2674 = vpop.permute.xlu0 %2673
    %2675 = vrot.lane.b32.xlu0 %v2582, 46
    %v2676 = vpop.permute.xlu0 %2675
    %2677 = vrot.lane.b32.xlu0 %v2583, 46
    %v2678 = vpop.permute.xlu0 %2677
    %2679 = vrot.lane.b32.xlu0 %v2584, 46
    %v2680 = vpop.permute.xlu0 %2679
    %2685 = vrot.lane.b32.xlu0 %v2549, 73
    %v2686 = vpop.permute.xlu0 %2685
    %2687 = vrot.lane.b32.xlu0 %v2550, 73
    %v2688 = vpop.permute.xlu0 %2687
    %2689 = vrot.lane.b32.xlu0 %v2551, 73
    %v2690 = vpop.permute.xlu0 %2689
    %2691 = vrot.lane.b32.xlu0 %v2552, 73
    %v2692 = vpop.permute.xlu0 %2691
    %2693 = vrot.lane.b32.xlu0 %v2590, 73
    %v2694 = vpop.permute.xlu0 %2693
    %2695 = vrot.lane.b32.xlu0 %v2592, 73
    %v2696 = vpop.permute.xlu0 %2695
    %2697 = vrot.lane.b32.xlu0 %v2594, 73
    %v2698 = vpop.permute.xlu0 %2697
    %2699 = vrot.lane.b32.xlu0 %v2596, 73
    %v2700 = vpop.permute.xlu0 %2699
    %2701 = vrot.lane.b32.xlu0 %v2602, 73
    %v2702 = vpop.permute.xlu0 %2701
    %2703 = vrot.lane.b32.xlu0 %v2604, 73
    %v2704 = vpop.permute.xlu0 %2703
    %2705 = vrot.lane.b32.xlu0 %v2606, 73
    %v2706 = vpop.permute.xlu0 %2705
    %2707 = vrot.lane.b32.xlu0 %v2608, 73
    %v2708 = vpop.permute.xlu0 %2707
    %2709 = vrot.lane.b32.xlu0 %v2614, 73
    %v2710 = vpop.permute.xlu0 %2709
    %2711 = vrot.lane.b32.xlu0 %v2616, 73
    %v2712 = vpop.permute.xlu0 %2711
    %2713 = vrot.lane.b32.xlu0 %v2618, 73
    %v2714 = vpop.permute.xlu0 %2713
    %2715 = vrot.lane.b32.xlu0 %v2620, 73
    %v2716 = vpop.permute.xlu0 %2715
    %2717 = vrot.lane.b32.xlu0 %v2626, 73
    %v2718 = vpop.permute.xlu0 %2717
    %2719 = vrot.lane.b32.xlu0 %v2628, 73
    %v2720 = vpop.permute.xlu0 %2719
    %2721 = vrot.lane.b32.xlu0 %v2630, 73
    %v2722 = vpop.permute.xlu0 %2721
    %2723 = vrot.lane.b32.xlu0 %v2632, 73
    %v2724 = vpop.permute.xlu0 %2723
    %2725 = vrot.lane.b32.xlu0 %v2638, 73
    %v2726 = vpop.permute.xlu0 %2725
    %2727 = vrot.lane.b32.xlu0 %v2640, 73
    %v2728 = vpop.permute.xlu0 %2727
    %2729 = vrot.lane.b32.xlu0 %v2642, 73
    %v2730 = vpop.permute.xlu0 %2729
    %2731 = vrot.lane.b32.xlu0 %v2644, 73
    %v2732 = vpop.permute.xlu0 %2731
    %2733 = vrot.lane.b32.xlu0 %v2650, 73
    %v2734 = vpop.permute.xlu0 %2733
    %2735 = vrot.lane.b32.xlu0 %v2652, 73
    %v2736 = vpop.permute.xlu0 %2735
    %2737 = vrot.lane.b32.xlu0 %v2654, 73
    %v2738 = vpop.permute.xlu0 %2737
    %2739 = vrot.lane.b32.xlu0 %v2656, 73
    %v2740 = vpop.permute.xlu0 %2739
    %2741 = vrot.lane.b32.xlu0 %v2662, 73
    %v2742 = vpop.permute.xlu0 %2741
    %2743 = vrot.lane.b32.xlu0 %v2664, 73
    %v2744 = vpop.permute.xlu0 %2743
    %2745 = vrot.lane.b32.xlu0 %v2666, 73
    %v2746 = vpop.permute.xlu0 %2745
    %2747 = vrot.lane.b32.xlu0 %v2668, 73
    %v2748 = vpop.permute.xlu0 %2747
    %2749 = vrot.lane.b32.xlu0 %v2674, 73
    %v2750 = vpop.permute.xlu0 %2749
    %2751 = vrot.lane.b32.xlu0 %v2676, 73
    %v2752 = vpop.permute.xlu0 %2751
    %2753 = vrot.lane.b32.xlu0 %v2678, 73
    %v2754 = vpop.permute.xlu0 %2753
    %2755 = vrot.lane.b32.xlu0 %v2680, 73
    %v2756 = vpop.permute.xlu0 %2755
    %2793 = vmatprep.subr.mxu0 0.0
    %2794 = vmatpush1.msra.mxu0 %v2686
    %2795 = vmatprep.subr.mxu0 0.0
    %2796 = vmatpush1.msra.mxu0 %v2688
    %2797 = vmatprep.subr.mxu0 0.0
    %2798 = vmatpush1.msra.mxu0 %v2690
    %2799 = vmatprep.subr.mxu0 0.0
    %2800 = vmatpush1.msra.mxu0 %v2692
    %2801 = vmatprep.subr.mxu0 0.0
    %2802 = vmatpush1.msra.mxu0 %v2694
    %2803 = vmatprep.subr.mxu0 0.0
    %2804 = vmatpush1.msra.mxu0 %v2696
    %2805 = vmatprep.subr.mxu0 0.0
    %2806 = vmatpush1.msra.mxu0 %v2698
    %2807 = vmatprep.subr.mxu0 0.0
    %2808 = vmatpush1.msra.mxu0 %v2700
    %2809 = vmatprep.subr.mxu0 0.0
    %2810 = vmatpush1.msra.mxu0 %v2702
    %2811 = vmatprep.subr.mxu0 0.0
    %2812 = vmatpush1.msra.mxu0 %v2704
    %2813 = vmatprep.subr.mxu0 0.0
    %2814 = vmatpush1.msra.mxu0 %v2706
    %2815 = vmatprep.subr.mxu0 0.0
    %2816 = vmatpush1.msra.mxu0 %v2708
    %2817 = vmatprep.subr.mxu0 0.0
    %2818 = vmatpush1.msra.mxu0 %v2710
    %2819 = vmatprep.subr.mxu0 0.0
    %2820 = vmatpush1.msra.mxu0 %v2712
    %2821 = vmatprep.subr.mxu0 0.0
    %2822 = vmatpush1.msra.mxu0 %v2714
    %2823 = vmatprep.subr.mxu0 0.0
    %2824 = vmatpush1.msra.mxu0 %v2716
    %2825 = vmatprep.subr.mxu0 0.0
    %2826 = vmatpush1.msra.mxu0 %v2718
    %2827 = vmatprep.subr.mxu0 0.0
    %2828 = vmatpush1.msra.mxu0 %v2720
    %2829 = vmatprep.subr.mxu0 0.0
    %2830 = vmatpush1.msra.mxu0 %v2722
    %2831 = vmatprep.subr.mxu0 0.0
    %2832 = vmatpush1.msra.mxu0 %v2724
    %2833 = vmatprep.subr.mxu0 0.0
    %2834 = vmatpush1.msra.mxu0 %v2726
    %2835 = vmatprep.subr.mxu0 0.0
    %2836 = vmatpush1.msra.mxu0 %v2728
    %2837 = vmatprep.subr.mxu0 0.0
    %2838 = vmatpush1.msra.mxu0 %v2730
    %2839 = vmatprep.subr.mxu0 0.0
    %2840 = vmatpush1.msra.mxu0 %v2732
    %2841 = vmatprep.subr.mxu0 0.0
    %2842 = vmatpush1.msra.mxu0 %v2734
    %2843 = vmatprep.subr.mxu0 0.0
    %2844 = vmatpush1.msra.mxu0 %v2736
    %2845 = vmatprep.subr.mxu0 0.0
    %2846 = vmatpush1.msra.mxu0 %v2738
    %2847 = vmatprep.subr.mxu0 0.0
    %2848 = vmatpush1.msra.mxu0 %v2740
    %2849 = vmatprep.subr.mxu0 0.0
    %2850 = vmatpush1.msra.mxu0 %v2742
    %2851 = vmatprep.subr.mxu0 0.0
    %2852 = vmatpush1.msra.mxu0 %v2744
    %2853 = vmatprep.subr.mxu0 0.0
    %2854 = vmatpush1.msra.mxu0 %v2746
    %2855 = vmatprep.subr.mxu0 0.0
    %2856 = vmatpush1.msra.mxu0 %v2748
    %2857 = vmatprep.mubr.f32.mxu0 %v216
    %2858 = vmatmul.mubr.f32.gmra.mrb[0].mxu0 %v215
    %v2859 = vpop.f32.mrb[0].mxu0
    %v2860 = vadd.f32 %v665, %v2859
    %v2861 = vpop.f32.mrb[0].mxu0
    %2862 = vmatprep.mubr.f32.mxu0 %v219
    %2863 = vmatmul.mubr.f32.gmra.mrb[0].mxu0 %v218
    %v2864 = vpop.f32.mrb[0].mxu0
    %v2865 = vadd.f32 %v670, %v2864
    %v2866 = vpop.f32.mrb[0].mxu0
    %2867 = vmatprep.mubr.f32.mxu0 %v222
    %2868 = vmatmul.mubr.f32.gmra.mrb[0].mxu0 %v221
    %v2869 = vpop.f32.mrb[0].mxu0
    %v2870 = vadd.f32 %v675, %v2869
    %v2871 = vpop.f32.mrb[0].mxu0
    %2872 = vmatprep.mubr.f32.mxu0 %v225
    %2873 = vmatmul.mubr.f32.gmra.mrb[0].mxu0 %v224
    %v2874 = vpop.f32.mrb[0].mxu0
    %v2875 = vadd.f32 %v680, %v2874
    %v2876 = vpop.f32.mrb[0].mxu0
    %2877 = vdwg.mxu0
    %2878 = vmatprep.subr.mxu0 0.0
    %2879 = vmatpush1.msra.mxu0 %v2750
    %2880 = vmatprep.subr.mxu0 0.0
    %2881 = vmatpush1.msra.mxu0 %v2752
    %2882 = vmatprep.subr.mxu0 0.0
    %2883 = vmatpush1.msra.mxu0 %v2754
    %2884 = vmatprep.subr.mxu0 0.0
    %2885 = vmatpush1.msra.mxu0 %v2756
    %2886 = vmatprep.subr.mxu0 0.0
    %2887 = vmatpush1.msra.mxu0 0.0
    %2888 = vmatprep.subr.mxu0 0.0
    %2889 = vmatpush1.msra.mxu0 0.0
    %2890 = vmatprep.subr.mxu0 0.0
    %2891 = vmatpush1.msra.mxu0 0.0
    %2892 = vmatprep.subr.mxu0 0.0
    %2893 = vmatpush1.msra.mxu0 0.0
    %2894 = vmatprep.subr.mxu0 0.0
    %2895 = vmatpush1.msra.mxu0 0.0
    %2896 = vmatprep.subr.mxu0 0.0
    %2897 = vmatpush1.msra.mxu0 0.0
    %2898 = vmatprep.subr.mxu0 0.0
    %2899 = vmatpush1.msra.mxu0 0.0
    %2900 = vmatprep.subr.mxu0 0.0
    %2901 = vmatpush1.msra.mxu0 0.0
    %2902 = vmatprep.subr.mxu0 0.0
    %2903 = vmatpush1.msra.mxu0 0.0
    %2904 = vmatprep.subr.mxu0 0.0
    %2905 = vmatpush1.msra.mxu0 0.0
    %2906 = vmatprep.subr.mxu0 0.0
    %2907 = vmatpush1.msra.mxu0 0.0
    %2908 = vmatprep.subr.mxu0 0.0
    %2909 = vmatpush1.msra.mxu0 0.0
    %2910 = vmatprep.subr.mxu0 0.0
    %2911 = vmatpush1.msra.mxu0 0.0
    %2912 = vmatprep.subr.mxu0 0.0
    %2913 = vmatpush1.msra.mxu0 0.0
    %2914 = vmatprep.subr.mxu0 0.0
    %2915 = vmatpush1.msra.mxu0 0.0
    %2916 = vmatprep.subr.mxu0 0.0
    %2917 = vmatpush1.msra.mxu0 0.0
    %2918 = vmatprep.subr.mxu0 0.0
    %2919 = vmatpush1.msra.mxu0 0.0
    %2920 = vmatprep.subr.mxu0 0.0
    %2921 = vmatpush1.msra.mxu0 0.0
    %2922 = vmatprep.subr.mxu0 0.0
    %2923 = vmatpush1.msra.mxu0 0.0
    %2924 = vmatprep.subr.mxu0 0.0
    %2925 = vmatpush1.msra.mxu0 0.0
    %2926 = vmatprep.subr.mxu0 0.0
    %2927 = vmatpush1.msra.mxu0 0.0
    %2928 = vmatprep.subr.mxu0 0.0
    %2929 = vmatpush1.msra.mxu0 0.0
    %2930 = vmatprep.subr.mxu0 0.0
    %2931 = vmatpush1.msra.mxu0 0.0
    %2932 = vmatprep.subr.mxu0 0.0
    %2933 = vmatpush1.msra.mxu0 0.0
    %2934 = vmatprep.subr.mxu0 0.0
    %2935 = vmatpush1.msra.mxu0 0.0
    %2936 = vmatprep.subr.mxu0 0.0
    %2937 = vmatpush1.msra.mxu0 0.0
    %2938 = vmatprep.subr.mxu0 0.0
    %2939 = vmatpush1.msra.mxu0 0.0
    %2940 = vmatprep.subr.mxu0 0.0
    %2941 = vmatpush1.msra.mxu0 0.0
    %2942 = vmatprep.mubr.f32.mxu0 0.0
    %2943 = vmatmul.mubr.f32.gmra.mrb[0].mxu0 %v796
    %v2944 = vpop.f32.mrb[0].mxu0
    %v2945 = vadd.f32 %v2860, %v2944
    %v2946 = vpop.f32.mrb[0].mxu0
    %2947 = vmatprep.mubr.f32.mxu0 0.0
    %2948 = vmatmul.mubr.f32.gmra.mrb[0].mxu0 %v799
    %v2949 = vpop.f32.mrb[0].mxu0
    %v2950 = vadd.f32 %v2865, %v2949
    %v2951 = vpop.f32.mrb[0].mxu0
    %2952 = vmatprep.mubr.f32.mxu0 0.0
    %2953 = vmatmul.mubr.f32.gmra.mrb[0].mxu0 %v802
    %v2954 = vpop.f32.mrb[0].mxu0
    %v2955 = vadd.f32 %v2870, %v2954
    %v2956 = vpop.f32.mrb[0].mxu0
    %2957 = vmatprep.mubr.f32.mxu0 0.0
    %2958 = vmatmul.mubr.f32.gmra.mrb[0].mxu0 %v805
    %v2959 = vpop.f32.mrb[0].mxu0
    %v2960 = vadd.f32 %v2875, %v2959
    %v2961 = vpop.f32.mrb[0].mxu0
    %2962 = vdwg.mxu0
    %v2963 = vsub.f32 1.0, %v989
    %v2964 = vsub.f32 1.0, %v990
    %v2965 = vsub.f32 1.0, %v991
    %v2966 = vsub.f32 1.0, %v992
    %v2967 = vmul.f32 %v2963, 0.2
    %v2968 = vmul.f32 %v2964, 0.2
    %v2969 = vmul.f32 %v2965, 0.2
    %v2970 = vmul.f32 %v2966, 0.2
    %v2971 = vmul.f32 %v977, %v2967
    %v2972 = vmul.f32 %v978, %v2968
    %v2973 = vmul.f32 %v979, %v2969
    %v2974 = vmul.f32 %v980, %v2970
    %v2975 = vadd.f32 %v2971, %v2945
    %v2976 = vadd.f32 %v2972, %v2950
    %v2977 = vadd.f32 %v2973, %v2955
    %v2978 = vadd.f32 %v2974, %v2960
    %vm2979 = vcmp.gt.f32.partialorder %v2975, 0.5
    %vm2980 = vcmp.gt.f32.partialorder %v2976, 0.5
    %vm2981 = vcmp.gt.f32.partialorder %v2977, 0.5
    %vm2982 = vcmp.gt.f32.partialorder %v2978, 0.5
    %v2983 = vsel %vm2979, 1, 0
    %v2984 = vsel %vm2980, 1, 0
    %v2985 = vsel %vm2981, 1, 0
    %v2986 = vsel %vm2982, 1, 0
    %v2987 = vcvt.s32.f32 %v2983
    %v2988 = vcvt.s32.f32 %v2984
    %v2989 = vcvt.s32.f32 %v2985
    %v2990 = vcvt.s32.f32 %v2986
    %v2992 = vsel %vm1008, %v2987, 0
    %2994 = vmatprep.subr.mxu0 0.0
    %2995 = vmatpush1.msra.mxu0 %v1000
    %2996 = vmatprep.subr.mxu0 0.0
    %2997 = vmatpush1.msra.mxu0 %v1001
    %2998 = vmatprep.subr.mxu0 0.0
    %2999 = vmatpush1.msra.mxu0 %v1002
    %3000 = vmatprep.subr.mxu0 0.0
    %3001 = vmatpush1.msra.mxu0 %v1003
    %3002 = vmatprep.subr.mxu0 0.0
    %3003 = vmatpush1.msra.mxu0 %v1004
    %3004 = vmatprep.subr.mxu0 0.0
    %3005 = vmatpush1.msra.mxu0 %v1005
    %3006 = vmatprep.subr.mxu0 0.0
    %3007 = vmatpush1.msra.mxu0 %v1006
    %3008 = vmatprep.subr.mxu0 0.0
    %3009 = vmatpush1.msra.mxu0 %v1007
    %3010 = vmatprep.subr.mxu0 0.0
    %3011 = vmatpush1.msra.mxu0 0.0
    %3012 = vmatprep.subr.mxu0 0.0
    %3013 = vmatpush1.msra.mxu0 0.0
    %3014 = vmatprep.subr.mxu0 0.0
    %3015 = vmatpush1.msra.mxu0 0.0
    %3016 = vmatprep.subr.mxu0 0.0
    %3017 = vmatpush1.msra.mxu0 0.0
    %3018 = vmatprep.subr.mxu0 0.0
    %3019 = vmatpush1.msra.mxu0 0.0
    %3020 = vmatprep.subr.mxu0 0.0
    %3021 = vmatpush1.msra.mxu0 0.0
    %3022 = vmatprep.subr.mxu0 0.0
    %3023 = vmatpush1.msra.mxu0 0.0
    %3024 = vmatprep.subr.mxu0 0.0
    %3025 = vmatpush1.msra.mxu0 0.0
    %3026 = vmatprep.subr.mxu0 0.0
    %3027 = vmatpush1.msra.mxu0 0.0
    %3028 = vmatprep.subr.mxu0 0.0
    %3029 = vmatpush1.msra.mxu0 0.0
    %3030 = vmatprep.subr.mxu0 0.0
    %3031 = vmatpush1.msra.mxu0 0.0
    %3032 = vmatprep.subr.mxu0 0.0
    %3033 = vmatpush1.msra.mxu0 0.0
    %3034 = vmatprep.subr.mxu0 0.0
    %3035 = vmatpush1.msra.mxu0 0.0
    %3036 = vmatprep.subr.mxu0 0.0
    %3037 = vmatpush1.msra.mxu0 0.0
    %3038 = vmatprep.subr.mxu0 0.0
    %3039 = vmatpush1.msra.mxu0 0.0
    %3040 = vmatprep.subr.mxu0 0.0
    %3041 = vmatpush1.msra.mxu0 0.0
    %3042 = vmatprep.subr.mxu0 0.0
    %3043 = vmatpush1.msra.mxu0 0.0
    %3044 = vmatprep.subr.mxu0 0.0
    %3045 = vmatpush1.msra.mxu0 0.0
    %3046 = vmatprep.subr.mxu0 0.0
    %3047 = vmatpush1.msra.mxu0 0.0
    %3048 = vmatprep.subr.mxu0 0.0
    %3049 = vmatpush1.msra.mxu0 0.0
    %3050 = vmatprep.subr.mxu0 0.0
    %3051 = vmatpush1.msra.mxu0 0.0
    %3052 = vmatprep.subr.mxu0 0.0
    %3053 = vmatpush1.msra.mxu0 0.0
    %3054 = vmatprep.subr.mxu0 0.0
    %3055 = vmatpush1.msra.mxu0 0.0
    %3056 = vmatprep.subr.mxu0 0.0
    %3057 = vmatpush1.msra.mxu0 0.0
    %3058 = vmatprep.mubr.f32.mxu0 0.0
    %3059 = vmatmul.mubr.f32.gmra.mrb[0].mxu0 %v2992
    %v3060 = vpop.f32.mrb[0].mxu0
    %v3061 = vadd.f32 0.0, %v3060
    %v3062 = vpop.f32.mrb[0].mxu0
    %3063 = vdwg.mxu0
    %v3064 = vadd.f32 %v999, %v3061
    %v3065 = vrot.slane %v2987, 2
    %v3066 = vsel %vm1008, %v3065, 0
    %3068 = vmatprep.subr.mxu0 0.0
    %3069 = vmatpush1.msra.mxu0 %v1084
    %3070 = vmatprep.subr.mxu0 0.0
    %3071 = vmatpush1.msra.mxu0 %v1085
    %3072 = vmatprep.subr.mxu0 0.0
    %3073 = vmatpush1.msra.mxu0 %v1086
    %3074 = vmatprep.subr.mxu0 0.0
    %3075 = vmatpush1.msra.mxu0 %v1087
    %3076 = vmatprep.subr.mxu0 0.0
    %3077 = vmatpush1.msra.mxu0 %v1088
    %3078 = vmatprep.subr.mxu0 0.0
    %3079 = vmatpush1.msra.mxu0 %v1089
    %3080 = vmatprep.subr.mxu0 0.0
    %3081 = vmatpush1.msra.mxu0 %v1090
    %3082 = vmatprep.subr.mxu0 0.0
    %3083 = vmatpush1.msra.mxu0 %v1091
    %3084 = vmatprep.subr.mxu0 0.0
    %3085 = vmatpush1.msra.mxu0 0.0
    %3086 = vmatprep.subr.mxu0 0.0
    %3087 = vmatpush1.msra.mxu0 0.0
    %3088 = vmatprep.subr.mxu0 0.0
    %3089 = vmatpush1.msra.mxu0 0.0
    %3090 = vmatprep.subr.mxu0 0.0
    %3091 = vmatpush1.msra.mxu0 0.0
    %3092 = vmatprep.subr.mxu0 0.0
    %3093 = vmatpush1.msra.mxu0 0.0
    %3094 = vmatprep.subr.mxu0 0.0
    %3095 = vmatpush1.msra.mxu0 0.0
    %3096 = vmatprep.subr.mxu0 0.0
    %3097 = vmatpush1.msra.mxu0 0.0
    %3098 = vmatprep.subr.mxu0 0.0
    %3099 = vmatpush1.msra.mxu0 0.0
    %3100 = vmatprep.subr.mxu0 0.0
    %3101 = vmatpush1.msra.mxu0 0.0
    %3102 = vmatprep.subr.mxu0 0.0
    %3103 = vmatpush1.msra.mxu0 0.0
    %3104 = vmatprep.subr.mxu0 0.0
    %3105 = vmatpush1.msra.mxu0 0.0
    %3106 = vmatprep.subr.mxu0 0.0
    %3107 = vmatpush1.msra.mxu0 0.0
    %3108 = vmatprep.subr.mxu0 0.0
    %3109 = vmatpush1.msra.mxu0 0.0
    %3110 = vmatprep.subr.mxu0 0.0
    %3111 = vmatpush1.msra.mxu0 0.0
    %3112 = vmatprep.subr.mxu0 0.0
    %3113 = vmatpush1.msra.mxu0 0.0
    %3114 = vmatprep.subr.mxu0 0.0
    %3115 = vmatpush1.msra.mxu0 0.0
    %3116 = vmatprep.subr.mxu0 0.0
    %3117 = vmatpush1.msra.mxu0 0.0
    %3118 = vmatprep.subr.mxu0 0.0
    %3119 = vmatpush1.msra.mxu0 0.0
    %3120 = vmatprep.subr.mxu0 0.0
    %3121 = vmatpush1.msra.mxu0 0.0
    %3122 = vmatprep.subr.mxu0 0.0
    %3123 = vmatpush1.msra.mxu0 0.0
    %3124 = vmatprep.subr.mxu0 0.0
    %3125 = vmatpush1.msra.mxu0 0.0
    %3126 = vmatprep.subr.mxu0 0.0
    %3127 = vmatpush1.msra.mxu0 0.0
    %3128 = vmatprep.subr.mxu0 0.0
    %3129 = vmatpush1.msra.mxu0 0.0
    %3130 = vmatprep.subr.mxu0 0.0
    %3131 = vmatpush1.msra.mxu0 0.0
    %3132 = vmatprep.mubr.f32.mxu0 0.0
    %3133 = vmatmul.mubr.f32.gmra.mrb[0].mxu0 %v3066
    %v3134 = vpop.f32.mrb[0].mxu0
    %v3135 = vadd.f32 0.0, %v3134
    %v3136 = vpop.f32.mrb[0].mxu0
    %3137 = vdwg.mxu0
    %v3138 = vadd.f32 %v3064, %v3135
    %v3139 = vrot.slane %v2987, 4
    %v3140 = vsel %vm1008, %v3139, 0
    %3142 = vmatprep.subr.mxu0 0.0
    %3143 = vmatpush1.msra.mxu0 %v1167
    %3144 = vmatprep.subr.mxu0 0.0
    %3145 = vmatpush1.msra.mxu0 %v1168
    %3146 = vmatprep.subr.mxu0 0.0
    %3147 = vmatpush1.msra.mxu0 %v1169
    %3148 = vmatprep.subr.mxu0 0.0
    %3149 = vmatpush1.msra.mxu0 %v1170
    %3150 = vmatprep.subr.mxu0 0.0
    %3151 = vmatpush1.msra.mxu0 %v1171
    %3152 = vmatprep.subr.mxu0 0.0
    %3153 = vmatpush1.msra.mxu0 %v1172
    %3154 = vmatprep.subr.mxu0 0.0
    %3155 = vmatpush1.msra.mxu0 %v1173
    %3156 = vmatprep.subr.mxu0 0.0
    %3157 = vmatpush1.msra.mxu0 %v1174
    %3158 = vmatprep.subr.mxu0 0.0
    %3159 = vmatpush1.msra.mxu0 0.0
    %3160 = vmatprep.subr.mxu0 0.0
    %3161 = vmatpush1.msra.mxu0 0.0
    %3162 = vmatprep.subr.mxu0 0.0
    %3163 = vmatpush1.msra.mxu0 0.0
    %3164 = vmatprep.subr.mxu0 0.0
    %3165 = vmatpush1.msra.mxu0 0.0
    %3166 = vmatprep.subr.mxu0 0.0
    %3167 = vmatpush1.msra.mxu0 0.0
    %3168 = vmatprep.subr.mxu0 0.0
    %3169 = vmatpush1.msra.mxu0 0.0
    %3170 = vmatprep.subr.mxu0 0.0
    %3171 = vmatpush1.msra.mxu0 0.0
    %3172 = vmatprep.subr.mxu0 0.0
    %3173 = vmatpush1.msra.mxu0 0.0
    %3174 = vmatprep.subr.mxu0 0.0
    %3175 = vmatpush1.msra.mxu0 0.0
    %3176 = vmatprep.subr.mxu0 0.0
    %3177 = vmatpush1.msra.mxu0 0.0
    %3178 = vmatprep.subr.mxu0 0.0
    %3179 = vmatpush1.msra.mxu0 0.0
    %3180 = vmatprep.subr.mxu0 0.0
    %3181 = vmatpush1.msra.mxu0 0.0
    %3182 = vmatprep.subr.mxu0 0.0
    %3183 = vmatpush1.msra.mxu0 0.0
    %3184 = vmatprep.subr.mxu0 0.0
    %3185 = vmatpush1.msra.mxu0 0.0
    %3186 = vmatprep.subr.mxu0 0.0
    %3187 = vmatpush1.msra.mxu0 0.0
    %3188 = vmatprep.subr.mxu0 0.0
    %3189 = vmatpush1.msra.mxu0 0.0
    %3190 = vmatprep.subr.mxu0 0.0
    %3191 = vmatpush1.msra.mxu0 0.0
    %3192 = vmatprep.subr.mxu0 0.0
    %3193 = vmatpush1.msra.mxu0 0.0
    %3194 = vmatprep.subr.mxu0 0.0
    %3195 = vmatpush1.msra.mxu0 0.0
    %3196 = vmatprep.subr.mxu0 0.0
    %3197 = vmatpush1.msra.mxu0 0.0
    %3198 = vmatprep.subr.mxu0 0.0
    %3199 = vmatpush1.msra.mxu0 0.0
    %3200 = vmatprep.subr.mxu0 0.0
    %3201 = vmatpush1.msra.mxu0 0.0
    %3202 = vmatprep.subr.mxu0 0.0
    %3203 = vmatpush1.msra.mxu0 0.0
    %3204 = vmatprep.subr.mxu0 0.0
    %3205 = vmatpush1.msra.mxu0 0.0
    %3206 = vmatprep.mubr.f32.mxu0 0.0
    %3207 = vmatmul.mubr.f32.gmra.mrb[0].mxu0 %v3140
    %v3208 = vpop.f32.mrb[0].mxu0
    %v3209 = vadd.f32 0.0, %v3208
    %v3210 = vpop.f32.mrb[0].mxu0
    %3211 = vdwg.mxu0
    %v3212 = vadd.f32 %v3138, %v3209
    %v3213 = vrot.slane %v2987, 6
    %v3214 = vsel %vm1008, %v3213, 0
    %3216 = vmatprep.subr.mxu0 0.0
    %3217 = vmatpush1.msra.mxu0 %v1250
    %3218 = vmatprep.subr.mxu0 0.0
    %3219 = vmatpush1.msra.mxu0 %v1251
    %3220 = vmatprep.subr.mxu0 0.0
    %3221 = vmatpush1.msra.mxu0 %v1252
    %3222 = vmatprep.subr.mxu0 0.0
    %3223 = vmatpush1.msra.mxu0 %v1253
    %3224 = vmatprep.subr.mxu0 0.0
    %3225 = vmatpush1.msra.mxu0 %v1254
    %3226 = vmatprep.subr.mxu0 0.0
    %3227 = vmatpush1.msra.mxu0 %v1255
    %3228 = vmatprep.subr.mxu0 0.0
    %3229 = vmatpush1.msra.mxu0 %v1256
    %3230 = vmatprep.subr.mxu0 0.0
    %3231 = vmatpush1.msra.mxu0 %v1257
    %3232 = vmatprep.subr.mxu0 0.0
    %3233 = vmatpush1.msra.mxu0 0.0
    %3234 = vmatprep.subr.mxu0 0.0
    %3235 = vmatpush1.msra.mxu0 0.0
    %3236 = vmatprep.subr.mxu0 0.0
    %3237 = vmatpush1.msra.mxu0 0.0
    %3238 = vmatprep.subr.mxu0 0.0
    %3239 = vmatpush1.msra.mxu0 0.0
    %3240 = vmatprep.subr.mxu0 0.0
    %3241 = vmatpush1.msra.mxu0 0.0
    %3242 = vmatprep.subr.mxu0 0.0
    %3243 = vmatpush1.msra.mxu0 0.0
    %3244 = vmatprep.subr.mxu0 0.0
    %3245 = vmatpush1.msra.mxu0 0.0
    %3246 = vmatprep.subr.mxu0 0.0
    %3247 = vmatpush1.msra.mxu0 0.0
    %3248 = vmatprep.subr.mxu0 0.0
    %3249 = vmatpush1.msra.mxu0 0.0
    %3250 = vmatprep.subr.mxu0 0.0
    %3251 = vmatpush1.msra.mxu0 0.0
    %3252 = vmatprep.subr.mxu0 0.0
    %3253 = vmatpush1.msra.mxu0 0.0
    %3254 = vmatprep.subr.mxu0 0.0
    %3255 = vmatpush1.msra.mxu0 0.0
    %3256 = vmatprep.subr.mxu0 0.0
    %3257 = vmatpush1.msra.mxu0 0.0
    %3258 = vmatprep.subr.mxu0 0.0
    %3259 = vmatpush1.msra.mxu0 0.0
    %3260 = vmatprep.subr.mxu0 0.0
    %3261 = vmatpush1.msra.mxu0 0.0
    %3262 = vmatprep.subr.mxu0 0.0
    %3263 = vmatpush1.msra.mxu0 0.0
    %3264 = vmatprep.subr.mxu0 0.0
    %3265 = vmatpush1.msra.mxu0 0.0
    %3266 = vmatprep.subr.mxu0 0.0
    %3267 = vmatpush1.msra.mxu0 0.0
    %3268 = vmatprep.subr.mxu0 0.0
    %3269 = vmatpush1.msra.mxu0 0.0
    %3270 = vmatprep.subr.mxu0 0.0
    %3271 = vmatpush1.msra.mxu0 0.0
    %3272 = vmatprep.subr.mxu0 0.0
    %3273 = vmatpush1.msra.mxu0 0.0
    %3274 = vmatprep.subr.mxu0 0.0
    %3275 = vmatpush1.msra.mxu0 0.0
    %3276 = vmatprep.subr.mxu0 0.0
    %3277 = vmatpush1.msra.mxu0 0.0
    %3278 = vmatprep.subr.mxu0 0.0
    %3279 = vmatpush1.msra.mxu0 0.0
    %3280 = vmatprep.mubr.f32.mxu0 0.0
    %3281 = vmatmul.mubr.f32.gmra.mrb[0].mxu0 %v3214
    %v3282 = vpop.f32.mrb[0].mxu0
    %v3283 = vadd.f32 0.0, %v3282
    %v3284 = vpop.f32.mrb[0].mxu0
    %3285 = vdwg.mxu0
    %v3286 = vadd.f32 %v3212, %v3283
    %v3288 = vsel %vm1008, %v2988, 0
    %3290 = vmatprep.subr.mxu0 0.0
    %3291 = vmatpush1.msra.mxu0 %v1333
    %3292 = vmatprep.subr.mxu0 0.0
    %3293 = vmatpush1.msra.mxu0 %v1334
    %3294 = vmatprep.subr.mxu0 0.0
    %3295 = vmatpush1.msra.mxu0 %v1335
    %3296 = vmatprep.subr.mxu0 0.0
    %3297 = vmatpush1.msra.mxu0 %v1336
    %3298 = vmatprep.subr.mxu0 0.0
    %3299 = vmatpush1.msra.mxu0 %v1337
    %3300 = vmatprep.subr.mxu0 0.0
    %3301 = vmatpush1.msra.mxu0 %v1338
    %3302 = vmatprep.subr.mxu0 0.0
    %3303 = vmatpush1.msra.mxu0 %v1339
    %3304 = vmatprep.subr.mxu0 0.0
    %3305 = vmatpush1.msra.mxu0 %v1340
    %3306 = vmatprep.subr.mxu0 0.0
    %3307 = vmatpush1.msra.mxu0 0.0
    %3308 = vmatprep.subr.mxu0 0.0
    %3309 = vmatpush1.msra.mxu0 0.0
    %3310 = vmatprep.subr.mxu0 0.0
    %3311 = vmatpush1.msra.mxu0 0.0
    %3312 = vmatprep.subr.mxu0 0.0
    %3313 = vmatpush1.msra.mxu0 0.0
    %3314 = vmatprep.subr.mxu0 0.0
    %3315 = vmatpush1.msra.mxu0 0.0
    %3316 = vmatprep.subr.mxu0 0.0
    %3317 = vmatpush1.msra.mxu0 0.0
    %3318 = vmatprep.subr.mxu0 0.0
    %3319 = vmatpush1.msra.mxu0 0.0
    %3320 = vmatprep.subr.mxu0 0.0
    %3321 = vmatpush1.msra.mxu0 0.0
    %3322 = vmatprep.subr.mxu0 0.0
    %3323 = vmatpush1.msra.mxu0 0.0
    %3324 = vmatprep.subr.mxu0 0.0
    %3325 = vmatpush1.msra.mxu0 0.0
    %3326 = vmatprep.subr.mxu0 0.0
    %3327 = vmatpush1.msra.mxu0 0.0
    %3328 = vmatprep.subr.mxu0 0.0
    %3329 = vmatpush1.msra.mxu0 0.0
    %3330 = vmatprep.subr.mxu0 0.0
    %3331 = vmatpush1.msra.mxu0 0.0
    %3332 = vmatprep.subr.mxu0 0.0
    %3333 = vmatpush1.msra.mxu0 0.0
    %3334 = vmatprep.subr.mxu0 0.0
    %3335 = vmatpush1.msra.mxu0 0.0
    %3336 = vmatprep.subr.mxu0 0.0
    %3337 = vmatpush1.msra.mxu0 0.0
    %3338 = vmatprep.subr.mxu0 0.0
    %3339 = vmatpush1.msra.mxu0 0.0
    %3340 = vmatprep.subr.mxu0 0.0
    %3341 = vmatpush1.msra.mxu0 0.0
    %3342 = vmatprep.subr.mxu0 0.0
    %3343 = vmatpush1.msra.mxu0 0.0
    %3344 = vmatprep.subr.mxu0 0.0
    %3345 = vmatpush1.msra.mxu0 0.0
    %3346 = vmatprep.subr.mxu0 0.0
    %3347 = vmatpush1.msra.mxu0 0.0
    %3348 = vmatprep.subr.mxu0 0.0
    %3349 = vmatpush1.msra.mxu0 0.0
    %3350 = vmatprep.subr.mxu0 0.0
    %3351 = vmatpush1.msra.mxu0 0.0
    %3352 = vmatprep.subr.mxu0 0.0
    %3353 = vmatpush1.msra.mxu0 0.0
    %3354 = vmatprep.mubr.f32.mxu0 0.0
    %3355 = vmatmul.mubr.f32.gmra.mrb[0].mxu0 %v3288
    %v3356 = vpop.f32.mrb[0].mxu0
    %v3357 = vadd.f32 0.0, %v3356
    %v3358 = vpop.f32.mrb[0].mxu0
    %3359 = vdwg.mxu0
    %v3360 = vadd.f32 %v3286, %v3357
    %v3361 = vrot.slane %v2988, 2
    %v3362 = vsel %vm1008, %v3361, 0
    %3364 = vmatprep.subr.mxu0 0.0
    %3365 = vmatpush1.msra.mxu0 %v1416
    %3366 = vmatprep.subr.mxu0 0.0
    %3367 = vmatpush1.msra.mxu0 %v1417
    %3368 = vmatprep.subr.mxu0 0.0
    %3369 = vmatpush1.msra.mxu0 %v1418
    %3370 = vmatprep.subr.mxu0 0.0
    %3371 = vmatpush1.msra.mxu0 %v1419
    %3372 = vmatprep.subr.mxu0 0.0
    %3373 = vmatpush1.msra.mxu0 %v1420
    %3374 = vmatprep.subr.mxu0 0.0
    %3375 = vmatpush1.msra.mxu0 %v1421
    %3376 = vmatprep.subr.mxu0 0.0
    %3377 = vmatpush1.msra.mxu0 %v1422
    %3378 = vmatprep.subr.mxu0 0.0
    %3379 = vmatpush1.msra.mxu0 %v1423
    %3380 = vmatprep.subr.mxu0 0.0
    %3381 = vmatpush1.msra.mxu0 0.0
    %3382 = vmatprep.subr.mxu0 0.0
    %3383 = vmatpush1.msra.mxu0 0.0
    %3384 = vmatprep.subr.mxu0 0.0
    %3385 = vmatpush1.msra.mxu0 0.0
    %3386 = vmatprep.subr.mxu0 0.0
    %3387 = vmatpush1.msra.mxu0 0.0
    %3388 = vmatprep.subr.mxu0 0.0
    %3389 = vmatpush1.msra.mxu0 0.0
    %3390 = vmatprep.subr.mxu0 0.0
    %3391 = vmatpush1.msra.mxu0 0.0
    %3392 = vmatprep.subr.mxu0 0.0
    %3393 = vmatpush1.msra.mxu0 0.0
    %3394 = vmatprep.subr.mxu0 0.0
    %3395 = vmatpush1.msra.mxu0 0.0
    %3396 = vmatprep.subr.mxu0 0.0
    %3397 = vmatpush1.msra.mxu0 0.0
    %3398 = vmatprep.subr.mxu0 0.0
    %3399 = vmatpush1.msra.mxu0 0.0
    %3400 = vmatprep.subr.mxu0 0.0
    %3401 = vmatpush1.msra.mxu0 0.0
    %3402 = vmatprep.subr.mxu0 0.0
    %3403 = vmatpush1.msra.mxu0 0.0
    %3404 = vmatprep.subr.mxu0 0.0
    %3405 = vmatpush1.msra.mxu0 0.0
    %3406 = vmatprep.subr.mxu0 0.0
    %3407 = vmatpush1.msra.mxu0 0.0
    %3408 = vmatprep.subr.mxu0 0.0
    %3409 = vmatpush1.msra.mxu0 0.0
    %3410 = vmatprep.subr.mxu0 0.0
    %3411 = vmatpush1.msra.mxu0 0.0
    %3412 = vmatprep.subr.mxu0 0.0
    %3413 = vmatpush1.msra.mxu0 0.0
    %3414 = vmatprep.subr.mxu0 0.0
    %3415 = vmatpush1.msra.mxu0 0.0
    %3416 = vmatprep.subr.mxu0 0.0
    %3417 = vmatpush1.msra.mxu0 0.0
    %3418 = vmatprep.subr.mxu0 0.0
    %3419 = vmatpush1.msra.mxu0 0.0
    %3420 = vmatprep.subr.mxu0 0.0
    %3421 = vmatpush1.msra.mxu0 0.0
    %3422 = vmatprep.subr.mxu0 0.0
    %3423 = vmatpush1.msra.mxu0 0.0
    %3424 = vmatprep.subr.mxu0 0.0
    %3425 = vmatpush1.msra.mxu0 0.0
    %3426 = vmatprep.subr.mxu0 0.0
    %3427 = vmatpush1.msra.mxu0 0.0
    %3428 = vmatprep.mubr.f32.mxu0 0.0
    %3429 = vmatmul.mubr.f32.gmra.mrb[0].mxu0 %v3362
    %v3430 = vpop.f32.mrb[0].mxu0
    %v3431 = vadd.f32 0.0, %v3430
    %v3432 = vpop.f32.mrb[0].mxu0
    %3433 = vdwg.mxu0
    %v3434 = vadd.f32 %v3360, %v3431
    %v3435 = vrot.slane %v2988, 4
    %v3436 = vsel %vm1008, %v3435, 0
    %3438 = vmatprep.subr.mxu0 0.0
    %3439 = vmatpush1.msra.mxu0 %v1499
    %3440 = vmatprep.subr.mxu0 0.0
    %3441 = vmatpush1.msra.mxu0 %v1500
    %3442 = vmatprep.subr.mxu0 0.0
    %3443 = vmatpush1.msra.mxu0 %v1501
    %3444 = vmatprep.subr.mxu0 0.0
    %3445 = vmatpush1.msra.mxu0 %v1502
    %3446 = vmatprep.subr.mxu0 0.0
    %3447 = vmatpush1.msra.mxu0 %v1503
    %3448 = vmatprep.subr.mxu0 0.0
    %3449 = vmatpush1.msra.mxu0 %v1504
    %3450 = vmatprep.subr.mxu0 0.0
    %3451 = vmatpush1.msra.mxu0 %v1505
    %3452 = vmatprep.subr.mxu0 0.0
    %3453 = vmatpush1.msra.mxu0 %v1506
    %3454 = vmatprep.subr.mxu0 0.0
    %3455 = vmatpush1.msra.mxu0 0.0
    %3456 = vmatprep.subr.mxu0 0.0
    %3457 = vmatpush1.msra.mxu0 0.0
    %3458 = vmatprep.subr.mxu0 0.0
    %3459 = vmatpush1.msra.mxu0 0.0
    %3460 = vmatprep.subr.mxu0 0.0
    %3461 = vmatpush1.msra.mxu0 0.0
    %3462 = vmatprep.subr.mxu0 0.0
    %3463 = vmatpush1.msra.mxu0 0.0
    %3464 = vmatprep.subr.mxu0 0.0
    %3465 = vmatpush1.msra.mxu0 0.0
    %3466 = vmatprep.subr.mxu0 0.0
    %3467 = vmatpush1.msra.mxu0 0.0
    %3468 = vmatprep.subr.mxu0 0.0
    %3469 = vmatpush1.msra.mxu0 0.0
    %3470 = vmatprep.subr.mxu0 0.0
    %3471 = vmatpush1.msra.mxu0 0.0
    %3472 = vmatprep.subr.mxu0 0.0
    %3473 = vmatpush1.msra.mxu0 0.0
    %3474 = vmatprep.subr.mxu0 0.0
    %3475 = vmatpush1.msra.mxu0 0.0
    %3476 = vmatprep.subr.mxu0 0.0
    %3477 = vmatpush1.msra.mxu0 0.0
    %3478 = vmatprep.subr.mxu0 0.0
    %3479 = vmatpush1.msra.mxu0 0.0
    %3480 = vmatprep.subr.mxu0 0.0
    %3481 = vmatpush1.msra.mxu0 0.0
    %3482 = vmatprep.subr.mxu0 0.0
    %3483 = vmatpush1.msra.mxu0 0.0
    %3484 = vmatprep.subr.mxu0 0.0
    %3485 = vmatpush1.msra.mxu0 0.0
    %3486 = vmatprep.subr.mxu0 0.0
    %3487 = vmatpush1.msra.mxu0 0.0
    %3488 = vmatprep.subr.mxu0 0.0
    %3489 = vmatpush1.msra.mxu0 0.0
    %3490 = vmatprep.subr.mxu0 0.0
    %3491 = vmatpush1.msra.mxu0 0.0
    %3492 = vmatprep.subr.mxu0 0.0
    %3493 = vmatpush1.msra.mxu0 0.0
    %3494 = vmatprep.subr.mxu0 0.0
    %3495 = vmatpush1.msra.mxu0 0.0
    %3496 = vmatprep.subr.mxu0 0.0
    %3497 = vmatpush1.msra.mxu0 0.0
    %3498 = vmatprep.subr.mxu0 0.0
    %3499 = vmatpush1.msra.mxu0 0.0
    %3500 = vmatprep.subr.mxu0 0.0
    %3501 = vmatpush1.msra.mxu0 0.0
    %3502 = vmatprep.mubr.f32.mxu0 0.0
    %3503 = vmatmul.mubr.f32.gmra.mrb[0].mxu0 %v3436
    %v3504 = vpop.f32.mrb[0].mxu0
    %v3505 = vadd.f32 0.0, %v3504
    %v3506 = vpop.f32.mrb[0].mxu0
    %3507 = vdwg.mxu0
    %v3508 = vadd.f32 %v3434, %v3505
    %v3509 = vrot.slane %v2988, 6
    %v3510 = vsel %vm1008, %v3509, 0
    %3512 = vmatprep.subr.mxu0 0.0
    %3513 = vmatpush1.msra.mxu0 %v1582
    %3514 = vmatprep.subr.mxu0 0.0
    %3515 = vmatpush1.msra.mxu0 %v1583
    %3516 = vmatprep.subr.mxu0 0.0
    %3517 = vmatpush1.msra.mxu0 %v1584
    %3518 = vmatprep.subr.mxu0 0.0
    %3519 = vmatpush1.msra.mxu0 %v1585
    %3520 = vmatprep.subr.mxu0 0.0
    %3521 = vmatpush1.msra.mxu0 %v1586
    %3522 = vmatprep.subr.mxu0 0.0
    %3523 = vmatpush1.msra.mxu0 %v1587
    %3524 = vmatprep.subr.mxu0 0.0
    %3525 = vmatpush1.msra.mxu0 %v1588
    %3526 = vmatprep.subr.mxu0 0.0
    %3527 = vmatpush1.msra.mxu0 %v1589
    %3528 = vmatprep.subr.mxu0 0.0
    %3529 = vmatpush1.msra.mxu0 0.0
    %3530 = vmatprep.subr.mxu0 0.0
    %3531 = vmatpush1.msra.mxu0 0.0
    %3532 = vmatprep.subr.mxu0 0.0
    %3533 = vmatpush1.msra.mxu0 0.0
    %3534 = vmatprep.subr.mxu0 0.0
    %3535 = vmatpush1.msra.mxu0 0.0
    %3536 = vmatprep.subr.mxu0 0.0
    %3537 = vmatpush1.msra.mxu0 0.0
    %3538 = vmatprep.subr.mxu0 0.0
    %3539 = vmatpush1.msra.mxu0 0.0
    %3540 = vmatprep.subr.mxu0 0.0
    %3541 = vmatpush1.msra.mxu0 0.0
    %3542 = vmatprep.subr.mxu0 0.0
    %3543 = vmatpush1.msra.mxu0 0.0
    %3544 = vmatprep.subr.mxu0 0.0
    %3545 = vmatpush1.msra.mxu0 0.0
    %3546 = vmatprep.subr.mxu0 0.0
    %3547 = vmatpush1.msra.mxu0 0.0
    %3548 = vmatprep.subr.mxu0 0.0
    %3549 = vmatpush1.msra.mxu0 0.0
    %3550 = vmatprep.subr.mxu0 0.0
    %3551 = vmatpush1.msra.mxu0 0.0
    %3552 = vmatprep.subr.mxu0 0.0
    %3553 = vmatpush1.msra.mxu0 0.0
    %3554 = vmatprep.subr.mxu0 0.0
    %3555 = vmatpush1.msra.mxu0 0.0
    %3556 = vmatprep.subr.mxu0 0.0
    %3557 = vmatpush1.msra.mxu0 0.0
    %3558 = vmatprep.subr.mxu0 0.0
    %3559 = vmatpush1.msra.mxu0 0.0
    %3560 = vmatprep.subr.mxu0 0.0
    %3561 = vmatpush1.msra.mxu0 0.0
    %3562 = vmatprep.subr.mxu0 0.0
    %3563 = vmatpush1.msra.mxu0 0.0
    %3564 = vmatprep.subr.mxu0 0.0
    %3565 = vmatpush1.msra.mxu0 0.0
    %3566 = vmatprep.subr.mxu0 0.0
    %3567 = vmatpush1.msra.mxu0 0.0
    %3568 = vmatprep.subr.mxu0 0.0
    %3569 = vmatpush1.msra.mxu0 0.0
    %3570 = vmatprep.subr.mxu0 0.0
    %3571 = vmatpush1.msra.mxu0 0.0
    %3572 = vmatprep.subr.mxu0 0.0
    %3573 = vmatpush1.msra.mxu0 0.0
    %3574 = vmatprep.subr.mxu0 0.0
    %3575 = vmatpush1.msra.mxu0 0.0
    %3576 = vmatprep.mubr.f32.mxu0 0.0
    %3577 = vmatmul.mubr.f32.gmra.mrb[0].mxu0 %v3510
    %v3578 = vpop.f32.mrb[0].mxu0
    %v3579 = vadd.f32 0.0, %v3578
    %v3580 = vpop.f32.mrb[0].mxu0
    %3581 = vdwg.mxu0
    %v3582 = vadd.f32 %v3508, %v3579
    %v3584 = vsel %vm1008, %v2989, 0
    %3586 = vmatprep.subr.mxu0 0.0
    %3587 = vmatpush1.msra.mxu0 %v1665
    %3588 = vmatprep.subr.mxu0 0.0
    %3589 = vmatpush1.msra.mxu0 %v1666
    %3590 = vmatprep.subr.mxu0 0.0
    %3591 = vmatpush1.msra.mxu0 %v1667
    %3592 = vmatprep.subr.mxu0 0.0
    %3593 = vmatpush1.msra.mxu0 %v1668
    %3594 = vmatprep.subr.mxu0 0.0
    %3595 = vmatpush1.msra.mxu0 %v1669
    %3596 = vmatprep.subr.mxu0 0.0
    %3597 = vmatpush1.msra.mxu0 %v1670
    %3598 = vmatprep.subr.mxu0 0.0
    %3599 = vmatpush1.msra.mxu0 %v1671
    %3600 = vmatprep.subr.mxu0 0.0
    %3601 = vmatpush1.msra.mxu0 %v1672
    %3602 = vmatprep.subr.mxu0 0.0
    %3603 = vmatpush1.msra.mxu0 0.0
    %3604 = vmatprep.subr.mxu0 0.0
    %3605 = vmatpush1.msra.mxu0 0.0
    %3606 = vmatprep.subr.mxu0 0.0
    %3607 = vmatpush1.msra.mxu0 0.0
    %3608 = vmatprep.subr.mxu0 0.0
    %3609 = vmatpush1.msra.mxu0 0.0
    %3610 = vmatprep.subr.mxu0 0.0
    %3611 = vmatpush1.msra.mxu0 0.0
    %3612 = vmatprep.subr.mxu0 0.0
    %3613 = vmatpush1.msra.mxu0 0.0
    %3614 = vmatprep.subr.mxu0 0.0
    %3615 = vmatpush1.msra.mxu0 0.0
    %3616 = vmatprep.subr.mxu0 0.0
    %3617 = vmatpush1.msra.mxu0 0.0
    %3618 = vmatprep.subr.mxu0 0.0
    %3619 = vmatpush1.msra.mxu0 0.0
    %3620 = vmatprep.subr.mxu0 0.0
    %3621 = vmatpush1.msra.mxu0 0.0
    %3622 = vmatprep.subr.mxu0 0.0
    %3623 = vmatpush1.msra.mxu0 0.0
    %3624 = vmatprep.subr.mxu0 0.0
    %3625 = vmatpush1.msra.mxu0 0.0
    %3626 = vmatprep.subr.mxu0 0.0
    %3627 = vmatpush1.msra.mxu0 0.0
    %3628 = vmatprep.subr.mxu0 0.0
    %3629 = vmatpush1.msra.mxu0 0.0
    %3630 = vmatprep.subr.mxu0 0.0
    %3631 = vmatpush1.msra.mxu0 0.0
    %3632 = vmatprep.subr.mxu0 0.0
    %3633 = vmatpush1.msra.mxu0 0.0
    %3634 = vmatprep.subr.mxu0 0.0
    %3635 = vmatpush1.msra.mxu0 0.0
    %3636 = vmatprep.subr.mxu0 0.0
    %3637 = vmatpush1.msra.mxu0 0.0
    %3638 = vmatprep.subr.mxu0 0.0
    %3639 = vmatpush1.msra.mxu0 0.0
    %3640 = vmatprep.subr.mxu0 0.0
    %3641 = vmatpush1.msra.mxu0 0.0
    %3642 = vmatprep.subr.mxu0 0.0
    %3643 = vmatpush1.msra.mxu0 0.0
    %3644 = vmatprep.subr.mxu0 0.0
    %3645 = vmatpush1.msra.mxu0 0.0
    %3646 = vmatprep.subr.mxu0 0.0
    %3647 = vmatpush1.msra.mxu0 0.0
    %3648 = vmatprep.subr.mxu0 0.0
    %3649 = vmatpush1.msra.mxu0 0.0
    %3650 = vmatprep.mubr.f32.mxu0 0.0
    %3651 = vmatmul.mubr.f32.gmra.mrb[0].mxu0 %v3584
    %v3652 = vpop.f32.mrb[0].mxu0
    %v3653 = vadd.f32 0.0, %v3652
    %v3654 = vpop.f32.mrb[0].mxu0
    %3655 = vdwg.mxu0
    %v3656 = vadd.f32 %v3582, %v3653
    %v3657 = vrot.slane %v2989, 2
    %v3658 = vsel %vm1008, %v3657, 0
    %3660 = vmatprep.subr.mxu0 0.0
    %3661 = vmatpush1.msra.mxu0 %v1748
    %3662 = vmatprep.subr.mxu0 0.0
    %3663 = vmatpush1.msra.mxu0 %v1749
    %3664 = vmatprep.subr.mxu0 0.0
    %3665 = vmatpush1.msra.mxu0 %v1750
    %3666 = vmatprep.subr.mxu0 0.0
    %3667 = vmatpush1.msra.mxu0 %v1751
    %3668 = vmatprep.subr.mxu0 0.0
    %3669 = vmatpush1.msra.mxu0 %v1752
    %3670 = vmatprep.subr.mxu0 0.0
    %3671 = vmatpush1.msra.mxu0 %v1753
    %3672 = vmatprep.subr.mxu0 0.0
    %3673 = vmatpush1.msra.mxu0 %v1754
    %3674 = vmatprep.subr.mxu0 0.0
    %3675 = vmatpush1.msra.mxu0 %v1755
    %3676 = vmatprep.subr.mxu0 0.0
    %3677 = vmatpush1.msra.mxu0 0.0
    %3678 = vmatprep.subr.mxu0 0.0
    %3679 = vmatpush1.msra.mxu0 0.0
    %3680 = vmatprep.subr.mxu0 0.0
    %3681 = vmatpush1.msra.mxu0 0.0
    %3682 = vmatprep.subr.mxu0 0.0
    %3683 = vmatpush1.msra.mxu0 0.0
    %3684 = vmatprep.subr.mxu0 0.0
    %3685 = vmatpush1.msra.mxu0 0.0
    %3686 = vmatprep.subr.mxu0 0.0
    %3687 = vmatpush1.msra.mxu0 0.0
    %3688 = vmatprep.subr.mxu0 0.0
    %3689 = vmatpush1.msra.mxu0 0.0
    %3690 = vmatprep.subr.mxu0 0.0
    %3691 = vmatpush1.msra.mxu0 0.0
    %3692 = vmatprep.subr.mxu0 0.0
    %3693 = vmatpush1.msra.mxu0 0.0
    %3694 = vmatprep.subr.mxu0 0.0
    %3695 = vmatpush1.msra.mxu0 0.0
    %3696 = vmatprep.subr.mxu0 0.0
    %3697 = vmatpush1.msra.mxu0 0.0
    %3698 = vmatprep.subr.mxu0 0.0
    %3699 = vmatpush1.msra.mxu0 0.0
    %3700 = vmatprep.subr.mxu0 0.0
    %3701 = vmatpush1.msra.mxu0 0.0
    %3702 = vmatprep.subr.mxu0 0.0
    %3703 = vmatpush1.msra.mxu0 0.0
    %3704 = vmatprep.subr.mxu0 0.0
    %3705 = vmatpush1.msra.mxu0 0.0
    %3706 = vmatprep.subr.mxu0 0.0
    %3707 = vmatpush1.msra.mxu0 0.0
    %3708 = vmatprep.subr.mxu0 0.0
    %3709 = vmatpush1.msra.mxu0 0.0
    %3710 = vmatprep.subr.mxu0 0.0
    %3711 = vmatpush1.msra.mxu0 0.0
    %3712 = vmatprep.subr.mxu0 0.0
    %3713 = vmatpush1.msra.mxu0 0.0
    %3714 = vmatprep.subr.mxu0 0.0
    %3715 = vmatpush1.msra.mxu0 0.0
    %3716 = vmatprep.subr.mxu0 0.0
    %3717 = vmatpush1.msra.mxu0 0.0
    %3718 = vmatprep.subr.mxu0 0.0
    %3719 = vmatpush1.msra.mxu0 0.0
    %3720 = vmatprep.subr.mxu0 0.0
    %3721 = vmatpush1.msra.mxu0 0.0
    %3722 = vmatprep.subr.mxu0 0.0
    %3723 = vmatpush1.msra.mxu0 0.0
    %3724 = vmatprep.mubr.f32.mxu0 0.0
    %3725 = vmatmul.mubr.f32.gmra.mrb[0].mxu0 %v3658
    %v3726 = vpop.f32.mrb[0].mxu0
    %v3727 = vadd.f32 0.0, %v3726
    %v3728 = vpop.f32.mrb[0].mxu0
    %3729 = vdwg.mxu0
    %v3730 = vadd.f32 %v3656, %v3727
    %v3731 = vrot.slane %v2989, 4
    %v3732 = vsel %vm1008, %v3731, 0
    %3734 = vmatprep.subr.mxu0 0.0
    %3735 = vmatpush1.msra.mxu0 %v1831
    %3736 = vmatprep.subr.mxu0 0.0
    %3737 = vmatpush1.msra.mxu0 %v1832
    %3738 = vmatprep.subr.mxu0 0.0
    %3739 = vmatpush1.msra.mxu0 %v1833
    %3740 = vmatprep.subr.mxu0 0.0
    %3741 = vmatpush1.msra.mxu0 %v1834
    %3742 = vmatprep.subr.mxu0 0.0
    %3743 = vmatpush1.msra.mxu0 %v1835
    %3744 = vmatprep.subr.mxu0 0.0
    %3745 = vmatpush1.msra.mxu0 %v1836
    %3746 = vmatprep.subr.mxu0 0.0
    %3747 = vmatpush1.msra.mxu0 %v1837
    %3748 = vmatprep.subr.mxu0 0.0
    %3749 = vmatpush1.msra.mxu0 %v1838
    %3750 = vmatprep.subr.mxu0 0.0
    %3751 = vmatpush1.msra.mxu0 0.0
    %3752 = vmatprep.subr.mxu0 0.0
    %3753 = vmatpush1.msra.mxu0 0.0
    %3754 = vmatprep.subr.mxu0 0.0
    %3755 = vmatpush1.msra.mxu0 0.0
    %3756 = vmatprep.subr.mxu0 0.0
    %3757 = vmatpush1.msra.mxu0 0.0
    %3758 = vmatprep.subr.mxu0 0.0
    %3759 = vmatpush1.msra.mxu0 0.0
    %3760 = vmatprep.subr.mxu0 0.0
    %3761 = vmatpush1.msra.mxu0 0.0
    %3762 = vmatprep.subr.mxu0 0.0
    %3763 = vmatpush1.msra.mxu0 0.0
    %3764 = vmatprep.subr.mxu0 0.0
    %3765 = vmatpush1.msra.mxu0 0.0
    %3766 = vmatprep.subr.mxu0 0.0
    %3767 = vmatpush1.msra.mxu0 0.0
    %3768 = vmatprep.subr.mxu0 0.0
    %3769 = vmatpush1.msra.mxu0 0.0
    %3770 = vmatprep.subr.mxu0 0.0
    %3771 = vmatpush1.msra.mxu0 0.0
    %3772 = vmatprep.subr.mxu0 0.0
    %3773 = vmatpush1.msra.mxu0 0.0
    %3774 = vmatprep.subr.mxu0 0.0
    %3775 = vmatpush1.msra.mxu0 0.0
    %3776 = vmatprep.subr.mxu0 0.0
    %3777 = vmatpush1.msra.mxu0 0.0
    %3778 = vmatprep.subr.mxu0 0.0
    %3779 = vmatpush1.msra.mxu0 0.0
    %3780 = vmatprep.subr.mxu0 0.0
    %3781 = vmatpush1.msra.mxu0 0.0
    %3782 = vmatprep.subr.mxu0 0.0
    %3783 = vmatpush1.msra.mxu0 0.0
    %3784 = vmatprep.subr.mxu0 0.0
    %3785 = vmatpush1.msra.mxu0 0.0
    %3786 = vmatprep.subr.mxu0 0.0
    %3787 = vmatpush1.msra.mxu0 0.0
    %3788 = vmatprep.subr.mxu0 0.0
    %3789 = vmatpush1.msra.mxu0 0.0
    %3790 = vmatprep.subr.mxu0 0.0
    %3791 = vmatpush1.msra.mxu0 0.0
    %3792 = vmatprep.subr.mxu0 0.0
    %3793 = vmatpush1.msra.mxu0 0.0
    %3794 = vmatprep.subr.mxu0 0.0
    %3795 = vmatpush1.msra.mxu0 0.0
    %3796 = vmatprep.subr.mxu0 0.0
    %3797 = vmatpush1.msra.mxu0 0.0
    %3798 = vmatprep.mubr.f32.mxu0 0.0
    %3799 = vmatmul.mubr.f32.gmra.mrb[0].mxu0 %v3732
    %v3800 = vpop.f32.mrb[0].mxu0
    %v3801 = vadd.f32 0.0, %v3800
    %v3802 = vpop.f32.mrb[0].mxu0
    %3803 = vdwg.mxu0
    %v3804 = vadd.f32 %v3730, %v3801
    %v3805 = vrot.slane %v2989, 6
    %v3806 = vsel %vm1008, %v3805, 0
    %3808 = vmatprep.subr.mxu0 0.0
    %3809 = vmatpush1.msra.mxu0 %v1914
    %3810 = vmatprep.subr.mxu0 0.0
    %3811 = vmatpush1.msra.mxu0 %v1915
    %3812 = vmatprep.subr.mxu0 0.0
    %3813 = vmatpush1.msra.mxu0 %v1916
    %3814 = vmatprep.subr.mxu0 0.0
    %3815 = vmatpush1.msra.mxu0 %v1917
    %3816 = vmatprep.subr.mxu0 0.0
    %3817 = vmatpush1.msra.mxu0 %v1918
    %3818 = vmatprep.subr.mxu0 0.0
    %3819 = vmatpush1.msra.mxu0 %v1919
    %3820 = vmatprep.subr.mxu0 0.0
    %3821 = vmatpush1.msra.mxu0 %v1920
    %3822 = vmatprep.subr.mxu0 0.0
    %3823 = vmatpush1.msra.mxu0 %v1921
    %3824 = vmatprep.subr.mxu0 0.0
    %3825 = vmatpush1.msra.mxu0 0.0
    %3826 = vmatprep.subr.mxu0 0.0
    %3827 = vmatpush1.msra.mxu0 0.0
    %3828 = vmatprep.subr.mxu0 0.0
    %3829 = vmatpush1.msra.mxu0 0.0
    %3830 = vmatprep.subr.mxu0 0.0
    %3831 = vmatpush1.msra.mxu0 0.0
    %3832 = vmatprep.subr.mxu0 0.0
    %3833 = vmatpush1.msra.mxu0 0.0
    %3834 = vmatprep.subr.mxu0 0.0
    %3835 = vmatpush1.msra.mxu0 0.0
    %3836 = vmatprep.subr.mxu0 0.0
    %3837 = vmatpush1.msra.mxu0 0.0
    %3838 = vmatprep.subr.mxu0 0.0
    %3839 = vmatpush1.msra.mxu0 0.0
    %3840 = vmatprep.subr.mxu0 0.0
    %3841 = vmatpush1.msra.mxu0 0.0
    %3842 = vmatprep.subr.mxu0 0.0
    %3843 = vmatpush1.msra.mxu0 0.0
    %3844 = vmatprep.subr.mxu0 0.0
    %3845 = vmatpush1.msra.mxu0 0.0
    %3846 = vmatprep.subr.mxu0 0.0
    %3847 = vmatpush1.msra.mxu0 0.0
    %3848 = vmatprep.subr.mxu0 0.0
    %3849 = vmatpush1.msra.mxu0 0.0
    %3850 = vmatprep.subr.mxu0 0.0
    %3851 = vmatpush1.msra.mxu0 0.0
    %3852 = vmatprep.subr.mxu0 0.0
    %3853 = vmatpush1.msra.mxu0 0.0
    %3854 = vmatprep.subr.mxu0 0.0
    %3855 = vmatpush1.msra.mxu0 0.0
    %3856 = vmatprep.subr.mxu0 0.0
    %3857 = vmatpush1.msra.mxu0 0.0
    %3858 = vmatprep.subr.mxu0 0.0
    %3859 = vmatpush1.msra.mxu0 0.0
    %3860 = vmatprep.subr.mxu0 0.0
    %3861 = vmatpush1.msra.mxu0 0.0
    %3862 = vmatprep.subr.mxu0 0.0
    %3863 = vmatpush1.msra.mxu0 0.0
    %3864 = vmatprep.subr.mxu0 0.0
    %3865 = vmatpush1.msra.mxu0 0.0
    %3866 = vmatprep.subr.mxu0 0.0
    %3867 = vmatpush1.msra.mxu0 0.0
    %3868 = vmatprep.subr.mxu0 0.0
    %3869 = vmatpush1.msra.mxu0 0.0
    %3870 = vmatprep.subr.mxu0 0.0
    %3871 = vmatpush1.msra.mxu0 0.0
    %3872 = vmatprep.mubr.f32.mxu0 0.0
    %3873 = vmatmul.mubr.f32.gmra.mrb[0].mxu0 %v3806
    %v3874 = vpop.f32.mrb[0].mxu0
    %v3875 = vadd.f32 0.0, %v3874
    %v3876 = vpop.f32.mrb[0].mxu0
    %3877 = vdwg.mxu0
    %v3878 = vadd.f32 %v3804, %v3875
    %v3880 = vsel %vm1008, %v2990, 0
    %3882 = vmatprep.subr.mxu0 0.0
    %3883 = vmatpush1.msra.mxu0 %v1997
    %3884 = vmatprep.subr.mxu0 0.0
    %3885 = vmatpush1.msra.mxu0 %v1998
    %3886 = vmatprep.subr.mxu0 0.0
    %3887 = vmatpush1.msra.mxu0 %v1999
    %3888 = vmatprep.subr.mxu0 0.0
    %3889 = vmatpush1.msra.mxu0 %v2000
    %3890 = vmatprep.subr.mxu0 0.0
    %3891 = vmatpush1.msra.mxu0 %v2001
    %3892 = vmatprep.subr.mxu0 0.0
    %3893 = vmatpush1.msra.mxu0 %v2002
    %3894 = vmatprep.subr.mxu0 0.0
    %3895 = vmatpush1.msra.mxu0 %v2003
    %3896 = vmatprep.subr.mxu0 0.0
    %3897 = vmatpush1.msra.mxu0 %v2004
    %3898 = vmatprep.subr.mxu0 0.0
    %3899 = vmatpush1.msra.mxu0 0.0
    %3900 = vmatprep.subr.mxu0 0.0
    %3901 = vmatpush1.msra.mxu0 0.0
    %3902 = vmatprep.subr.mxu0 0.0
    %3903 = vmatpush1.msra.mxu0 0.0
    %3904 = vmatprep.subr.mxu0 0.0
    %3905 = vmatpush1.msra.mxu0 0.0
    %3906 = vmatprep.subr.mxu0 0.0
    %3907 = vmatpush1.msra.mxu0 0.0
    %3908 = vmatprep.subr.mxu0 0.0
    %3909 = vmatpush1.msra.mxu0 0.0
    %3910 = vmatprep.subr.mxu0 0.0
    %3911 = vmatpush1.msra.mxu0 0.0
    %3912 = vmatprep.subr.mxu0 0.0
    %3913 = vmatpush1.msra.mxu0 0.0
    %3914 = vmatprep.subr.mxu0 0.0
    %3915 = vmatpush1.msra.mxu0 0.0
    %3916 = vmatprep.subr.mxu0 0.0
    %3917 = vmatpush1.msra.mxu0 0.0
    %3918 = vmatprep.subr.mxu0 0.0
    %3919 = vmatpush1.msra.mxu0 0.0
    %3920 = vmatprep.subr.mxu0 0.0
    %3921 = vmatpush1.msra.mxu0 0.0
    %3922 = vmatprep.subr.mxu0 0.0
    %3923 = vmatpush1.msra.mxu0 0.0
    %3924 = vmatprep.subr.mxu0 0.0
    %3925 = vmatpush1.msra.mxu0 0.0
    %3926 = vmatprep.subr.mxu0 0.0
    %3927 = vmatpush1.msra.mxu0 0.0
    %3928 = vmatprep.subr.mxu0 0.0
    %3929 = vmatpush1.msra.mxu0 0.0
    %3930 = vmatprep.subr.mxu0 0.0
    %3931 = vmatpush1.msra.mxu0 0.0
    %3932 = vmatprep.subr.mxu0 0.0
    %3933 = vmatpush1.msra.mxu0 0.0
    %3934 = vmatprep.subr.mxu0 0.0
    %3935 = vmatpush1.msra.mxu0 0.0
    %3936 = vmatprep.subr.mxu0 0.0
    %3937 = vmatpush1.msra.mxu0 0.0
    %3938 = vmatprep.subr.mxu0 0.0
    %3939 = vmatpush1.msra.mxu0 0.0
    %3940 = vmatprep.subr.mxu0 0.0
    %3941 = vmatpush1.msra.mxu0 0.0
    %3942 = vmatprep.subr.mxu0 0.0
    %3943 = vmatpush1.msra.mxu0 0.0
    %3944 = vmatprep.subr.mxu0 0.0
    %3945 = vmatpush1.msra.mxu0 0.0
    %3946 = vmatprep.mubr.f32.mxu0 0.0
    %3947 = vmatmul.mubr.f32.gmra.mrb[0].mxu0 %v3880
    %v3948 = vpop.f32.mrb[0].mxu0
    %v3949 = vadd.f32 0.0, %v3948
    %v3950 = vpop.f32.mrb[0].mxu0
    %3951 = vdwg.mxu0
    %v3952 = vadd.f32 %v3878, %v3949
    %v3953 = vrot.slane %v2990, 2
    %v3954 = vsel %vm1008, %v3953, 0
    %3956 = vmatprep.subr.mxu0 0.0
    %3957 = vmatpush1.msra.mxu0 %v2080
    %3958 = vmatprep.subr.mxu0 0.0
    %3959 = vmatpush1.msra.mxu0 %v2081
    %3960 = vmatprep.subr.mxu0 0.0
    %3961 = vmatpush1.msra.mxu0 %v2082
    %3962 = vmatprep.subr.mxu0 0.0
    %3963 = vmatpush1.msra.mxu0 %v2083
    %3964 = vmatprep.subr.mxu0 0.0
    %3965 = vmatpush1.msra.mxu0 %v2084
    %3966 = vmatprep.subr.mxu0 0.0
    %3967 = vmatpush1.msra.mxu0 %v2085
    %3968 = vmatprep.subr.mxu0 0.0
    %3969 = vmatpush1.msra.mxu0 %v2086
    %3970 = vmatprep.subr.mxu0 0.0
    %3971 = vmatpush1.msra.mxu0 %v2087
    %3972 = vmatprep.subr.mxu0 0.0
    %3973 = vmatpush1.msra.mxu0 0.0
    %3974 = vmatprep.subr.mxu0 0.0
    %3975 = vmatpush1.msra.mxu0 0.0
    %3976 = vmatprep.subr.mxu0 0.0
    %3977 = vmatpush1.msra.mxu0 0.0
    %3978 = vmatprep.subr.mxu0 0.0
    %3979 = vmatpush1.msra.mxu0 0.0
    %3980 = vmatprep.subr.mxu0 0.0
    %3981 = vmatpush1.msra.mxu0 0.0
    %3982 = vmatprep.subr.mxu0 0.0
    %3983 = vmatpush1.msra.mxu0 0.0
    %3984 = vmatprep.subr.mxu0 0.0
    %3985 = vmatpush1.msra.mxu0 0.0
    %3986 = vmatprep.subr.mxu0 0.0
    %3987 = vmatpush1.msra.mxu0 0.0
    %3988 = vmatprep.subr.mxu0 0.0
    %3989 = vmatpush1.msra.mxu0 0.0
    %3990 = vmatprep.subr.mxu0 0.0
    %3991 = vmatpush1.msra.mxu0 0.0
    %3992 = vmatprep.subr.mxu0 0.0
    %3993 = vmatpush1.msra.mxu0 0.0
    %3994 = vmatprep.subr.mxu0 0.0
    %3995 = vmatpush1.msra.mxu0 0.0
    %3996 = vmatprep.subr.mxu0 0.0
    %3997 = vmatpush1.msra.mxu0 0.0
    %3998 = vmatprep.subr.mxu0 0.0
    %3999 = vmatpush1.msra.mxu0 0.0
    %4000 = vmatprep.subr.mxu0 0.0
    %4001 = vmatpush1.msra.mxu0 0.0
    %4002 = vmatprep.subr.mxu0 0.0
    %4003 = vmatpush1.msra.mxu0 0.0
    %4004 = vmatprep.subr.mxu0 0.0
    %4005 = vmatpush1.msra.mxu0 0.0
    %4006 = vmatprep.subr.mxu0 0.0
    %4007 = vmatpush1.msra.mxu0 0.0
    %4008 = vmatprep.subr.mxu0 0.0
    %4009 = vmatpush1.msra.mxu0 0.0
    %4010 = vmatprep.subr.mxu0 0.0
    %4011 = vmatpush1.msra.mxu0 0.0
    %4012 = vmatprep.subr.mxu0 0.0
    %4013 = vmatpush1.msra.mxu0 0.0
    %4014 = vmatprep.subr.mxu0 0.0
    %4015 = vmatpush1.msra.mxu0 0.0
    %4016 = vmatprep.subr.mxu0 0.0
    %4017 = vmatpush1.msra.mxu0 0.0
    %4018 = vmatprep.subr.mxu0 0.0
    %4019 = vmatpush1.msra.mxu0 0.0
    %4020 = vmatprep.mubr.f32.mxu0 0.0
    %4021 = vmatmul.mubr.f32.gmra.mrb[0].mxu0 %v3954
    %v4022 = vpop.f32.mrb[0].mxu0
    %v4023 = vadd.f32 0.0, %v4022
    %v4024 = vpop.f32.mrb[0].mxu0
    %4025 = vdwg.mxu0
    %v4026 = vadd.f32 %v3952, %v4023
    %v4027 = vrot.slane %v2990, 4
    %v4028 = vsel %vm1008, %v4027, 0
    %4030 = vmatprep.subr.mxu0 0.0
    %4031 = vmatpush1.msra.mxu0 %v2163
    %4032 = vmatprep.subr.mxu0 0.0
    %4033 = vmatpush1.msra.mxu0 %v2164
    %4034 = vmatprep.subr.mxu0 0.0
    %4035 = vmatpush1.msra.mxu0 %v2165
    %4036 = vmatprep.subr.mxu0 0.0
    %4037 = vmatpush1.msra.mxu0 %v2166
    %4038 = vmatprep.subr.mxu0 0.0
    %4039 = vmatpush1.msra.mxu0 %v2167
    %4040 = vmatprep.subr.mxu0 0.0
    %4041 = vmatpush1.msra.mxu0 %v2168
    %4042 = vmatprep.subr.mxu0 0.0
    %4043 = vmatpush1.msra.mxu0 %v2169
    %4044 = vmatprep.subr.mxu0 0.0
    %4045 = vmatpush1.msra.mxu0 %v2170
    %4046 = vmatprep.subr.mxu0 0.0
    %4047 = vmatpush1.msra.mxu0 0.0
    %4048 = vmatprep.subr.mxu0 0.0
    %4049 = vmatpush1.msra.mxu0 0.0
    %4050 = vmatprep.subr.mxu0 0.0
    %4051 = vmatpush1.msra.mxu0 0.0
    %4052 = vmatprep.subr.mxu0 0.0
    %4053 = vmatpush1.msra.mxu0 0.0
    %4054 = vmatprep.subr.mxu0 0.0
    %4055 = vmatpush1.msra.mxu0 0.0
    %4056 = vmatprep.subr.mxu0 0.0
    %4057 = vmatpush1.msra.mxu0 0.0
    %4058 = vmatprep.subr.mxu0 0.0
    %4059 = vmatpush1.msra.mxu0 0.0
    %4060 = vmatprep.subr.mxu0 0.0
    %4061 = vmatpush1.msra.mxu0 0.0
    %4062 = vmatprep.subr.mxu0 0.0
    %4063 = vmatpush1.msra.mxu0 0.0
    %4064 = vmatprep.subr.mxu0 0.0
    %4065 = vmatpush1.msra.mxu0 0.0
    %4066 = vmatprep.subr.mxu0 0.0
    %4067 = vmatpush1.msra.mxu0 0.0
    %4068 = vmatprep.subr.mxu0 0.0
    %4069 = vmatpush1.msra.mxu0 0.0
    %4070 = vmatprep.subr.mxu0 0.0
    %4071 = vmatpush1.msra.mxu0 0.0
    %4072 = vmatprep.subr.mxu0 0.0
    %4073 = vmatpush1.msra.mxu0 0.0
    %4074 = vmatprep.subr.mxu0 0.0
    %4075 = vmatpush1.msra.mxu0 0.0
    %4076 = vmatprep.subr.mxu0 0.0
    %4077 = vmatpush1.msra.mxu0 0.0
    %4078 = vmatprep.subr.mxu0 0.0
    %4079 = vmatpush1.msra.mxu0 0.0
    %4080 = vmatprep.subr.mxu0 0.0
    %4081 = vmatpush1.msra.mxu0 0.0
    %4082 = vmatprep.subr.mxu0 0.0
    %4083 = vmatpush1.msra.mxu0 0.0
    %4084 = vmatprep.subr.mxu0 0.0
    %4085 = vmatpush1.msra.mxu0 0.0
    %4086 = vmatprep.subr.mxu0 0.0
    %4087 = vmatpush1.msra.mxu0 0.0
    %4088 = vmatprep.subr.mxu0 0.0
    %4089 = vmatpush1.msra.mxu0 0.0
    %4090 = vmatprep.subr.mxu0 0.0
    %4091 = vmatpush1.msra.mxu0 0.0
    %4092 = vmatprep.subr.mxu0 0.0
    %4093 = vmatpush1.msra.mxu0 0.0
    %4094 = vmatprep.mubr.f32.mxu0 0.0
    %4095 = vmatmul.mubr.f32.gmra.mrb[0].mxu0 %v4028
    %v4096 = vpop.f32.mrb[0].mxu0
    %v4097 = vadd.f32 0.0, %v4096
    %v4098 = vpop.f32.mrb[0].mxu0
    %4099 = vdwg.mxu0
    %v4100 = vadd.f32 %v4026, %v4097
    %v4101 = vrot.slane %v2990, 6
    %v4102 = vsel %vm1008, %v4101, 0
    %4104 = vmatprep.subr.mxu0 0.0
    %4105 = vmatpush1.msra.mxu0 %v2246
    %4106 = vmatprep.subr.mxu0 0.0
    %4107 = vmatpush1.msra.mxu0 %v2247
    %4108 = vmatprep.subr.mxu0 0.0
    %4109 = vmatpush1.msra.mxu0 %v2248
    %4110 = vmatprep.subr.mxu0 0.0
    %4111 = vmatpush1.msra.mxu0 %v2249
    %4112 = vmatprep.subr.mxu0 0.0
    %4113 = vmatpush1.msra.mxu0 %v2250
    %4114 = vmatprep.subr.mxu0 0.0
    %4115 = vmatpush1.msra.mxu0 %v2251
    %4116 = vmatprep.subr.mxu0 0.0
    %4117 = vmatpush1.msra.mxu0 %v2252
    %4118 = vmatprep.subr.mxu0 0.0
    %4119 = vmatpush1.msra.mxu0 %v2253
    %4120 = vmatprep.subr.mxu0 0.0
    %4121 = vmatpush1.msra.mxu0 0.0
    %4122 = vmatprep.subr.mxu0 0.0
    %4123 = vmatpush1.msra.mxu0 0.0
    %4124 = vmatprep.subr.mxu0 0.0
    %4125 = vmatpush1.msra.mxu0 0.0
    %4126 = vmatprep.subr.mxu0 0.0
    %4127 = vmatpush1.msra.mxu0 0.0
    %4128 = vmatprep.subr.mxu0 0.0
    %4129 = vmatpush1.msra.mxu0 0.0
    %4130 = vmatprep.subr.mxu0 0.0
    %4131 = vmatpush1.msra.mxu0 0.0
    %4132 = vmatprep.subr.mxu0 0.0
    %4133 = vmatpush1.msra.mxu0 0.0
    %4134 = vmatprep.subr.mxu0 0.0
    %4135 = vmatpush1.msra.mxu0 0.0
    %4136 = vmatprep.subr.mxu0 0.0
    %4137 = vmatpush1.msra.mxu0 0.0
    %4138 = vmatprep.subr.mxu0 0.0
    %4139 = vmatpush1.msra.mxu0 0.0
    %4140 = vmatprep.subr.mxu0 0.0
    %4141 = vmatpush1.msra.mxu0 0.0
    %4142 = vmatprep.subr.mxu0 0.0
    %4143 = vmatpush1.msra.mxu0 0.0
    %4144 = vmatprep.subr.mxu0 0.0
    %4145 = vmatpush1.msra.mxu0 0.0
    %4146 = vmatprep.subr.mxu0 0.0
    %4147 = vmatpush1.msra.mxu0 0.0
    %4148 = vmatprep.subr.mxu0 0.0
    %4149 = vmatpush1.msra.mxu0 0.0
    %4150 = vmatprep.subr.mxu0 0.0
    %4151 = vmatpush1.msra.mxu0 0.0
    %4152 = vmatprep.subr.mxu0 0.0
    %4153 = vmatpush1.msra.mxu0 0.0
    %4154 = vmatprep.subr.mxu0 0.0
    %4155 = vmatpush1.msra.mxu0 0.0
    %4156 = vmatprep.subr.mxu0 0.0
    %4157 = vmatpush1.msra.mxu0 0.0
    %4158 = vmatprep.subr.mxu0 0.0
    %4159 = vmatpush1.msra.mxu0 0.0
    %4160 = vmatprep.subr.mxu0 0.0
    %4161 = vmatpush1.msra.mxu0 0.0
    %4162 = vmatprep.subr.mxu0 0.0
    %4163 = vmatpush1.msra.mxu0 0.0
    %4164 = vmatprep.subr.mxu0 0.0
    %4165 = vmatpush1.msra.mxu0 0.0
    %4166 = vmatprep.subr.mxu0 0.0
    %4167 = vmatpush1.msra.mxu0 0.0
    %4168 = vmatprep.mubr.f32.mxu0 0.0
    %4169 = vmatmul.mubr.f32.gmra.mrb[0].mxu0 %v4102
    %v4170 = vpop.f32.mrb[0].mxu0
    %v4171 = vadd.f32 0.0, %v4170
    %v4172 = vpop.f32.mrb[0].mxu0
    %4173 = vdwg.mxu0
    %v4174 = vadd.f32 %v4100, %v4171
    %v4175 = vsub.f32 1.0, %v2331
    %v4176 = vmul.f32 %v4175, 0.2
    %v4177 = vmul.f32 %v2328, %v4176
    %v4178 = vadd.f32 %v4177, %v4174
    %vm4179 = vcmp.gt.f32.partialorder %v4178, 0.5
    %v4180 = vsel %vm4179, 1, 0
    %v4181 = vcvt.s32.f32 %v4180
    %v4183 = vsel %vm794, %v4181, 0
    %4185 = vmatprep.subr.mxu0 0.0
    %4186 = vmatpush1.msra.mxu0 %v232
    %4187 = vmatprep.subr.mxu0 0.0
    %4188 = vmatpush1.msra.mxu0 %v233
    %4189 = vmatprep.subr.mxu0 0.0
    %4190 = vmatpush1.msra.mxu0 %v234
    %4191 = vmatprep.subr.mxu0 0.0
    %4192 = vmatpush1.msra.mxu0 %v235
    %4193 = vmatprep.subr.mxu0 0.0
    %4194 = vmatpush1.msra.mxu0 0.0
    %4195 = vmatprep.subr.mxu0 0.0
    %4196 = vmatpush1.msra.mxu0 0.0
    %4197 = vmatprep.subr.mxu0 0.0
    %4198 = vmatpush1.msra.mxu0 0.0
    %4199 = vmatprep.subr.mxu0 0.0
    %4200 = vmatpush1.msra.mxu0 0.0
    %4201 = vmatprep.subr.mxu0 0.0
    %4202 = vmatpush1.msra.mxu0 0.0
    %4203 = vmatprep.subr.mxu0 0.0
    %4204 = vmatpush1.msra.mxu0 0.0
    %4205 = vmatprep.subr.mxu0 0.0
    %4206 = vmatpush1.msra.mxu0 0.0
    %4207 = vmatprep.subr.mxu0 0.0
    %4208 = vmatpush1.msra.mxu0 0.0
    %4209 = vmatprep.subr.mxu0 0.0
    %4210 = vmatpush1.msra.mxu0 0.0
    %4211 = vmatprep.subr.mxu0 0.0
    %4212 = vmatpush1.msra.mxu0 0.0
    %4213 = vmatprep.subr.mxu0 0.0
    %4214 = vmatpush1.msra.mxu0 0.0
    %4215 = vmatprep.subr.mxu0 0.0
    %4216 = vmatpush1.msra.mxu0 0.0
    %4217 = vmatprep.subr.mxu0 0.0
    %4218 = vmatpush1.msra.mxu0 0.0
    %4219 = vmatprep.subr.mxu0 0.0
    %4220 = vmatpush1.msra.mxu0 0.0
    %4221 = vmatprep.subr.mxu0 0.0
    %4222 = vmatpush1.msra.mxu0 0.0
    %4223 = vmatprep.subr.mxu0 0.0
    %4224 = vmatpush1.msra.mxu0 0.0
    %4225 = vmatprep.subr.mxu0 0.0
    %4226 = vmatpush1.msra.mxu0 0.0
    %4227 = vmatprep.subr.mxu0 0.0
    %4228 = vmatpush1.msra.mxu0 0.0
    %4229 = vmatprep.subr.mxu0 0.0
    %4230 = vmatpush1.msra.mxu0 0.0
    %4231 = vmatprep.subr.mxu0 0.0
    %4232 = vmatpush1.msra.mxu0 0.0
    %4233 = vmatprep.subr.mxu0 0.0
    %4234 = vmatpush1.msra.mxu0 0.0
    %4235 = vmatprep.subr.mxu0 0.0
    %4236 = vmatpush1.msra.mxu0 0.0
    %4237 = vmatprep.subr.mxu0 0.0
    %4238 = vmatpush1.msra.mxu0 0.0
    %4239 = vmatprep.subr.mxu0 0.0
    %4240 = vmatpush1.msra.mxu0 0.0
    %4241 = vmatprep.subr.mxu0 0.0
    %4242 = vmatpush1.msra.mxu0 0.0
    %4243 = vmatprep.subr.mxu0 0.0
    %4244 = vmatpush1.msra.mxu0 0.0
    %4245 = vmatprep.subr.mxu0 0.0
    %4246 = vmatpush1.msra.mxu0 0.0
    %4247 = vmatprep.subr.mxu0 0.0
    %4248 = vmatpush1.msra.mxu0 0.0
    %4249 = vmatprep.mubr.f32.mxu0 0.0
    %4250 = vmatmul.mubr.f32.gmra.mrb[0].mxu0 %v4183
    %v4251 = vpop.f32.mrb[0].mxu0
    %v4252 = vadd.f32 %v2336, %v4251
    %v4253 = vpop.f32.mrb[0].mxu0
    %4254 = vdwg.mxu0
    %v4255 = vsub.f32 1.0, %v2414
    %v4256 = vmul.f32 %v4255, 0.2
    %v4257 = vmul.f32 %v2411, %v4256
    %v4258 = vadd.f32 %v4257, %v4252
    %vm4259 = vcmp.gt.f32.partialorder %v4258, 0.5
    %v4260 = vsel %vm4259, 1, 0
    %v4261 = vcvt.s32.f32 %v4260
    %v4262 = vadd.f32 %v2415, %v4261
    %v4263 = vsub.f32 1.0, %v2464
    %v4264 = vsub.f32 1.0, %v2465
    %v4265 = vsub.f32 1.0, %v2466
    %v4266 = vsub.f32 1.0, %v2467
    %v4267 = vsub.f32 1.0, %v2468
    %v4268 = vsub.f32 1.0, %v2469
    %v4269 = vsub.f32 1.0, %v2470
    %v4270 = vsub.f32 1.0, %v2471
    %v4271 = vmul.f32 %v4263, 0.2
    %v4272 = vmul.f32 %v4264, 0.2
    %v4273 = vmul.f32 %v4265, 0.2
    %v4274 = vmul.f32 %v4266, 0.2
    %v4275 = vmul.f32 %v4267, 0.2
    %v4276 = vmul.f32 %v4268, 0.2
    %v4277 = vmul.f32 %v4269, 0.2
    %v4278 = vmul.f32 %v4270, 0.2
    %v4279 = vmul.f32 %v2440, %v4271
    %v4280 = vmul.f32 %v2441, %v4272
    %v4281 = vmul.f32 %v2442, %v4273
    %v4282 = vmul.f32 %v2443, %v4274
    %v4283 = vmul.f32 %v2444, %v4275
    %v4284 = vmul.f32 %v2445, %v4276
    %v4285 = vmul.f32 %v2446, %v4277
    %v4286 = vmul.f32 %v2447, %v4278
    %v4287 = vadd.f32 %v4279, %v161
    %v4288 = vadd.f32 %v4280, %v163
    %v4289 = vadd.f32 %v4281, %v167
    %v4290 = vadd.f32 %v4282, %v169
    %v4291 = vadd.f32 %v4283, %v173
    %v4292 = vadd.f32 %v4284, %v175
    %v4293 = vadd.f32 %v4285, %v179
    %v4294 = vadd.f32 %v4286, %v181
    %vm4295 = vcmp.gt.f32.partialorder %v4287, 0.5
    %vm4296 = vcmp.gt.f32.partialorder %v4288, 0.5
    %vm4297 = vcmp.gt.f32.partialorder %v4289, 0.5
    %vm4298 = vcmp.gt.f32.partialorder %v4290, 0.5
    %vm4299 = vcmp.gt.f32.partialorder %v4291, 0.5
    %vm4300 = vcmp.gt.f32.partialorder %v4292, 0.5
    %vm4301 = vcmp.gt.f32.partialorder %v4293, 0.5
    %vm4302 = vcmp.gt.f32.partialorder %v4294, 0.5
    %v4303 = vsel %vm4295, 1, 0
    %v4304 = vsel %vm4296, 1, 0
    %v4305 = vsel %vm4297, 1, 0
    %v4306 = vsel %vm4298, 1, 0
    %v4307 = vsel %vm4299, 1, 0
    %v4308 = vsel %vm4300, 1, 0
    %v4309 = vsel %vm4301, 1, 0
    %v4310 = vsel %vm4302, 1, 0
    %v4311 = vcvt.s32.f32 %v4303
    %v4312 = vcvt.s32.f32 %v4304
    %v4313 = vcvt.s32.f32 %v4305
    %v4314 = vcvt.s32.f32 %v4306
    %v4315 = vcvt.s32.f32 %v4307
    %v4316 = vcvt.s32.f32 %v4308
    %v4317 = vcvt.s32.f32 %v4309
    %v4318 = vcvt.s32.f32 %v4310
    %v4319 = vpack.c.bf16 %v4313, %v4311
    %v4320 = vpack.c.bf16 %v4314, %v4312
    %v4321 = vpack.c.bf16 %v4317, %v4315
    %v4322 = vpack.c.bf16 %v4318, %v4316
    %4323 = vmatprep.subr.bf16.mxu0 0
    %4324 = vmatpush1.bf16.msra.mxu0 %v337
    %4325 = vmatprep.subr.bf16.mxu0 0
    %4326 = vmatpush1.bf16.msra.mxu0 %v338
    %4327 = vmatprep.subr.bf16.mxu0 0
    %4328 = vmatpush1.bf16.msra.mxu0 %v339
    %4329 = vmatprep.subr.bf16.mxu0 0
    %4330 = vmatpush1.bf16.msra.mxu0 %v340
    %4331 = vmatprep.subr.bf16.mxu0 0
    %4332 = vmatpush1.bf16.msra.mxu0 %v341
    %4333 = vmatprep.subr.bf16.mxu0 0
    %4334 = vmatpush1.bf16.msra.mxu0 %v342
    %4335 = vmatprep.subr.bf16.mxu0 0
    %4336 = vmatpush1.bf16.msra.mxu0 %v343
    %4337 = vmatprep.subr.bf16.mxu0 0
    %4338 = vmatpush1.bf16.msra.mxu0 %v344
    %4339 = vmatprep.subr.bf16.mxu0 0
    %4340 = vmatpush1.bf16.msra.mxu0 %v345
    %4341 = vmatprep.subr.bf16.mxu0 0
    %4342 = vmatpush1.bf16.msra.mxu0 %v346
    %4343 = vmatprep.subr.bf16.mxu0 0
    %4344 = vmatpush1.bf16.msra.mxu0 %v347
    %4345 = vmatprep.subr.bf16.mxu0 0
    %4346 = vmatpush1.bf16.msra.mxu0 %v348
    %4347 = vmatprep.subr.bf16.mxu0 0
    %4348 = vmatpush1.bf16.msra.mxu0 %v349
    %4349 = vmatprep.subr.bf16.mxu0 0
    %4350 = vmatpush1.bf16.msra.mxu0 %v350
    %4351 = vmatprep.subr.bf16.mxu0 0
    %4352 = vmatpush1.bf16.msra.mxu0 %v351
    %4353 = vmatprep.subr.bf16.mxu0 0
    %4354 = vmatpush1.bf16.msra.mxu0 %v352
    %4355 = vmatprep.mubr.bf16.mxu0 %v4320
    %4356 = vmatmul.mubr.bf16.gmra.mrb[0].mxu0 %v4319
    %v4357 = vpop.f32.mrb[0].mxu0
    %v4358 = vadd.f32 0.0, %v4357
    %v4359 = vpop.f32.mrb[0].mxu0
    %v4360 = vpop.f32.mrb[0].mxu0
    %v4361 = vadd.f32 0.0, %v4360
    %v4362 = vpop.f32.mrb[0].mxu0
    %4363 = vmatprep.mubr.bf16.mxu0 %v4322
    %4364 = vmatmul.mubr.bf16.gmra.mrb[0].mxu0 %v4321
    %v4365 = vpop.f32.mrb[0].mxu0
    %v4366 = vadd.f32 0.0, %v4365
    %v4367 = vpop.f32.mrb[0].mxu0
    %v4368 = vpop.f32.mrb[0].mxu0
    %v4369 = vadd.f32 0.0, %v4368
    %v4370 = vpop.f32.mrb[0].mxu0
    %4371 = vdwg.mxu0
    %4372 = vrot.lane.b32.xlu0 %v4358, 64
    %v4373 = vpop.permute.xlu0 %4372
    %v4374 = vsel %vm418, %v4373, %v4358
    %4375 = vrot.lane.b32.xlu0 %v4361, 64
    %v4376 = vpop.permute.xlu0 %4375
    %v4377 = vsel %vm418, %v4376, %v4361
    %4378 = vrot.lane.b32.xlu0 %v4366, 64
    %v4379 = vpop.permute.xlu0 %4378
    %v4380 = vsel %vm418, %v4379, %v4366
    %4381 = vrot.lane.b32.xlu0 %v4369, 64
    %v4382 = vpop.permute.xlu0 %4381
    %v4383 = vsel %vm418, %v4382, %v4369
    %4384 = vrot.lane.b32.xlu0 %v4374, 64
    %v4385 = vpop.permute.xlu0 %4384
    %4386 = vrot.lane.b32.xlu0 %v4377, 64
    %v4387 = vpop.permute.xlu0 %4386
    %4388 = vrot.lane.b32.xlu0 %v4380, 64
    %v4389 = vpop.permute.xlu0 %4388
    %4390 = vrot.lane.b32.xlu0 %v4383, 64
    %v4391 = vpop.permute.xlu0 %4390
    %v4392 = vsel %vm418, %v4385, %v4358
    %v4393 = vsel %vm418, %v4387, %v4361
    %v4394 = vsel %vm418, %v4389, %v4366
    %v4395 = vsel %vm418, %v4391, %v4369
    %v4396 = vmul.f32 %v4392, %v450
    %v4397 = vmul.f32 %v4393, %v450
    %v4398 = vmul.f32 %v4394, %v450
    %v4399 = vmul.f32 %v4395, %v450
    %v4400 = vmul.f32 %v4392, %v464
    %v4401 = vmul.f32 %v4393, %v464
    %v4402 = vmul.f32 %v4394, %v464
    %v4403 = vmul.f32 %v4395, %v464
    %v4404 = vmul.f32 %v4392, %v478
    %v4405 = vmul.f32 %v4393, %v478
    %v4406 = vmul.f32 %v4394, %v478
    %v4407 = vmul.f32 %v4395, %v478
    %v4408 = vmul.f32 %v4392, %v492
    %v4409 = vmul.f32 %v4393, %v492
    %v4410 = vmul.f32 %v4394, %v492
    %v4411 = vmul.f32 %v4395, %v492
    %v4412 = vmul.f32 %v4358, %v504
    %v4413 = vmul.f32 %v4361, %v504
    %v4414 = vmul.f32 %v4366, %v504
    %v4415 = vmul.f32 %v4369, %v504
    %v4416 = vmul.f32 %v4392, %v518
    %v4417 = vmul.f32 %v4393, %v518
    %v4418 = vmul.f32 %v4394, %v518
    %v4419 = vmul.f32 %v4395, %v518
    %v4420 = vmul.f32 %v4392, %v532
    %v4421 = vmul.f32 %v4393, %v532
    %v4422 = vmul.f32 %v4394, %v532
    %v4423 = vmul.f32 %v4395, %v532
    %v4424 = vmul.f32 %v4392, %v546
    %v4425 = vmul.f32 %v4393, %v546
    %v4426 = vmul.f32 %v4394, %v546
    %v4427 = vmul.f32 %v4395, %v546
    %v4428 = vmul.f32 %v4392, %v560
    %v4429 = vmul.f32 %v4393, %v560
    %v4430 = vmul.f32 %v4394, %v560
    %v4431 = vmul.f32 %v4395, %v560
    %4436 = vrot.lane.b32.xlu0 %v4400, 127
    %v4437 = vpop.permute.xlu0 %4436
    %4438 = vrot.lane.b32.xlu0 %v4401, 127
    %v4439 = vpop.permute.xlu0 %4438
    %4440 = vrot.lane.b32.xlu0 %v4402, 127
    %v4441 = vpop.permute.xlu0 %4440
    %4442 = vrot.lane.b32.xlu0 %v4403, 127
    %v4443 = vpop.permute.xlu0 %4442
    %4448 = vrot.lane.b32.xlu0 %v4404, 126
    %v4449 = vpop.permute.xlu0 %4448
    %4450 = vrot.lane.b32.xlu0 %v4405, 126
    %v4451 = vpop.permute.xlu0 %4450
    %4452 = vrot.lane.b32.xlu0 %v4406, 126
    %v4453 = vpop.permute.xlu0 %4452
    %4454 = vrot.lane.b32.xlu0 %v4407, 126
    %v4455 = vpop.permute.xlu0 %4454
    %4460 = vrot.lane.b32.xlu0 %v4408, 120
    %v4461 = vpop.permute.xlu0 %4460
    %4462 = vrot.lane.b32.xlu0 %v4409, 120
    %v4463 = vpop.permute.xlu0 %4462
    %4464 = vrot.lane.b32.xlu0 %v4410, 120
    %v4465 = vpop.permute.xlu0 %4464
    %4466 = vrot.lane.b32.xlu0 %v4411, 120
    %v4467 = vpop.permute.xlu0 %4466
    %4472 = vrot.lane.b32.xlu0 %v4412, 55
    %v4473 = vpop.permute.xlu0 %4472
    %4474 = vrot.lane.b32.xlu0 %v4413, 55
    %v4475 = vpop.permute.xlu0 %4474
    %4476 = vrot.lane.b32.xlu0 %v4414, 55
    %v4477 = vpop.permute.xlu0 %4476
    %4478 = vrot.lane.b32.xlu0 %v4415, 55
    %v4479 = vpop.permute.xlu0 %4478
    %4484 = vrot.lane.b32.xlu0 %v4416, 54
    %v4485 = vpop.permute.xlu0 %4484
    %4486 = vrot.lane.b32.xlu0 %v4417, 54
    %v4487 = vpop.permute.xlu0 %4486
    %4488 = vrot.lane.b32.xlu0 %v4418, 54
    %v4489 = vpop.permute.xlu0 %4488
    %4490 = vrot.lane.b32.xlu0 %v4419, 54
    %v4491 = vpop.permute.xlu0 %4490
    %4496 = vrot.lane.b32.xlu0 %v4420, 48
    %v4497 = vpop.permute.xlu0 %4496
    %4498 = vrot.lane.b32.xlu0 %v4421, 48
    %v4499 = vpop.permute.xlu0 %4498
    %4500 = vrot.lane.b32.xlu0 %v4422, 48
    %v4501 = vpop.permute.xlu0 %4500
    %4502 = vrot.lane.b32.xlu0 %v4423, 48
    %v4503 = vpop.permute.xlu0 %4502
    %4508 = vrot.lane.b32.xlu0 %v4424, 47
    %v4509 = vpop.permute.xlu0 %4508
    %4510 = vrot.lane.b32.xlu0 %v4425, 47
    %v4511 = vpop.permute.xlu0 %4510
    %4512 = vrot.lane.b32.xlu0 %v4426, 47
    %v4513 = vpop.permute.xlu0 %4512
    %4514 = vrot.lane.b32.xlu0 %v4427, 47
    %v4515 = vpop.permute.xlu0 %4514
    %4520 = vrot.lane.b32.xlu0 %v4428, 46
    %v4521 = vpop.permute.xlu0 %4520
    %4522 = vrot.lane.b32.xlu0 %v4429, 46
    %v4523 = vpop.permute.xlu0 %4522
    %4524 = vrot.lane.b32.xlu0 %v4430, 46
    %v4525 = vpop.permute.xlu0 %4524
    %4526 = vrot.lane.b32.xlu0 %v4431, 46
    %v4527 = vpop.permute.xlu0 %4526
    %4532 = vrot.lane.b32.xlu0 %v4396, 73
    %v4533 = vpop.permute.xlu0 %4532
    %4534 = vrot.lane.b32.xlu0 %v4397, 73
    %v4535 = vpop.permute.xlu0 %4534
    %4536 = vrot.lane.b32.xlu0 %v4398, 73
    %v4537 = vpop.permute.xlu0 %4536
    %4538 = vrot.lane.b32.xlu0 %v4399, 73
    %v4539 = vpop.permute.xlu0 %4538
    %4540 = vrot.lane.b32.xlu0 %v4437, 73
    %v4541 = vpop.permute.xlu0 %4540
    %4542 = vrot.lane.b32.xlu0 %v4439, 73
    %v4543 = vpop.permute.xlu0 %4542
    %4544 = vrot.lane.b32.xlu0 %v4441, 73
    %v4545 = vpop.permute.xlu0 %4544
    %4546 = vrot.lane.b32.xlu0 %v4443, 73
    %v4547 = vpop.permute.xlu0 %4546
    %4548 = vrot.lane.b32.xlu0 %v4449, 73
    %v4549 = vpop.permute.xlu0 %4548
    %4550 = vrot.lane.b32.xlu0 %v4451, 73
    %v4551 = vpop.permute.xlu0 %4550
    %4552 = vrot.lane.b32.xlu0 %v4453, 73
    %v4553 = vpop.permute.xlu0 %4552
    %4554 = vrot.lane.b32.xlu0 %v4455, 73
    %v4555 = vpop.permute.xlu0 %4554
    %4556 = vrot.lane.b32.xlu0 %v4461, 73
    %v4557 = vpop.permute.xlu0 %4556
    %4558 = vrot.lane.b32.xlu0 %v4463, 73
    %v4559 = vpop.permute.xlu0 %4558
    %4560 = vrot.lane.b32.xlu0 %v4465, 73
    %v4561 = vpop.permute.xlu0 %4560
    %4562 = vrot.lane.b32.xlu0 %v4467, 73
    %v4563 = vpop.permute.xlu0 %4562
    %4564 = vrot.lane.b32.xlu0 %v4473, 73
    %v4565 = vpop.permute.xlu0 %4564
    %4566 = vrot.lane.b32.xlu0 %v4475, 73
    %v4567 = vpop.permute.xlu0 %4566
    %4568 = vrot.lane.b32.xlu0 %v4477, 73
    %v4569 = vpop.permute.xlu0 %4568
    %4570 = vrot.lane.b32.xlu0 %v4479, 73
    %v4571 = vpop.permute.xlu0 %4570
    %4572 = vrot.lane.b32.xlu0 %v4485, 73
    %v4573 = vpop.permute.xlu0 %4572
    %4574 = vrot.lane.b32.xlu0 %v4487, 73
    %v4575 = vpop.permute.xlu0 %4574
    %4576 = vrot.lane.b32.xlu0 %v4489, 73
    %v4577 = vpop.permute.xlu0 %4576
    %4578 = vrot.lane.b32.xlu0 %v4491, 73
    %v4579 = vpop.permute.xlu0 %4578
    %4580 = vrot.lane.b32.xlu0 %v4497, 73
    %v4581 = vpop.permute.xlu0 %4580
    %4582 = vrot.lane.b32.xlu0 %v4499, 73
    %v4583 = vpop.permute.xlu0 %4582
    %4584 = vrot.lane.b32.xlu0 %v4501, 73
    %v4585 = vpop.permute.xlu0 %4584
    %4586 = vrot.lane.b32.xlu0 %v4503, 73
    %v4587 = vpop.permute.xlu0 %4586
    %4588 = vrot.lane.b32.xlu0 %v4509, 73
    %v4589 = vpop.permute.xlu0 %4588
    %4590 = vrot.lane.b32.xlu0 %v4511, 73
    %v4591 = vpop.permute.xlu0 %4590
    %4592 = vrot.lane.b32.xlu0 %v4513, 73
    %v4593 = vpop.permute.xlu0 %4592
    %4594 = vrot.lane.b32.xlu0 %v4515, 73
    %v4595 = vpop.permute.xlu0 %4594
    %4596 = vrot.lane.b32.xlu0 %v4521, 73
    %v4597 = vpop.permute.xlu0 %4596
    %4598 = vrot.lane.b32.xlu0 %v4523, 73
    %v4599 = vpop.permute.xlu0 %4598
    %4600 = vrot.lane.b32.xlu0 %v4525, 73
    %v4601 = vpop.permute.xlu0 %4600
    %4602 = vrot.lane.b32.xlu0 %v4527, 73
    %v4603 = vpop.permute.xlu0 %4602
    %4640 = vmatprep.subr.mxu0 0.0
    %4641 = vmatpush1.msra.mxu0 %v4533
    %4642 = vmatprep.subr.mxu0 0.0
    %4643 = vmatpush1.msra.mxu0 %v4535
    %4644 = vmatprep.subr.mxu0 0.0
    %4645 = vmatpush1.msra.mxu0 %v4537
    %4646 = vmatprep.subr.mxu0 0.0
    %4647 = vmatpush1.msra.mxu0 %v4539
    %4648 = vmatprep.subr.mxu0 0.0
    %4649 = vmatpush1.msra.mxu0 %v4541
    %4650 = vmatprep.subr.mxu0 0.0
    %4651 = vmatpush1.msra.mxu0 %v4543
    %4652 = vmatprep.subr.mxu0 0.0
    %4653 = vmatpush1.msra.mxu0 %v4545
    %4654 = vmatprep.subr.mxu0 0.0
    %4655 = vmatpush1.msra.mxu0 %v4547
    %4656 = vmatprep.subr.mxu0 0.0
    %4657 = vmatpush1.msra.mxu0 %v4549
    %4658 = vmatprep.subr.mxu0 0.0
    %4659 = vmatpush1.msra.mxu0 %v4551
    %4660 = vmatprep.subr.mxu0 0.0
    %4661 = vmatpush1.msra.mxu0 %v4553
    %4662 = vmatprep.subr.mxu0 0.0
    %4663 = vmatpush1.msra.mxu0 %v4555
    %4664 = vmatprep.subr.mxu0 0.0
    %4665 = vmatpush1.msra.mxu0 %v4557
    %4666 = vmatprep.subr.mxu0 0.0
    %4667 = vmatpush1.msra.mxu0 %v4559
    %4668 = vmatprep.subr.mxu0 0.0
    %4669 = vmatpush1.msra.mxu0 %v4561
    %4670 = vmatprep.subr.mxu0 0.0
    %4671 = vmatpush1.msra.mxu0 %v4563
    %4672 = vmatprep.subr.mxu0 0.0
    %4673 = vmatpush1.msra.mxu0 %v4565
    %4674 = vmatprep.subr.mxu0 0.0
    %4675 = vmatpush1.msra.mxu0 %v4567
    %4676 = vmatprep.subr.mxu0 0.0
    %4677 = vmatpush1.msra.mxu0 %v4569
    %4678 = vmatprep.subr.mxu0 0.0
    %4679 = vmatpush1.msra.mxu0 %v4571
    %4680 = vmatprep.subr.mxu0 0.0
    %4681 = vmatpush1.msra.mxu0 %v4573
    %4682 = vmatprep.subr.mxu0 0.0
    %4683 = vmatpush1.msra.mxu0 %v4575
    %4684 = vmatprep.subr.mxu0 0.0
    %4685 = vmatpush1.msra.mxu0 %v4577
    %4686 = vmatprep.subr.mxu0 0.0
    %4687 = vmatpush1.msra.mxu0 %v4579
    %4688 = vmatprep.subr.mxu0 0.0
    %4689 = vmatpush1.msra.mxu0 %v4581
    %4690 = vmatprep.subr.mxu0 0.0
    %4691 = vmatpush1.msra.mxu0 %v4583
    %4692 = vmatprep.subr.mxu0 0.0
    %4693 = vmatpush1.msra.mxu0 %v4585
    %4694 = vmatprep.subr.mxu0 0.0
    %4695 = vmatpush1.msra.mxu0 %v4587
    %4696 = vmatprep.subr.mxu0 0.0
    %4697 = vmatpush1.msra.mxu0 %v4589
    %4698 = vmatprep.subr.mxu0 0.0
    %4699 = vmatpush1.msra.mxu0 %v4591
    %4700 = vmatprep.subr.mxu0 0.0
    %4701 = vmatpush1.msra.mxu0 %v4593
    %4702 = vmatprep.subr.mxu0 0.0
    %4703 = vmatpush1.msra.mxu0 %v4595
    %4704 = vmatprep.mubr.f32.mxu0 %v216
    %4705 = vmatmul.mubr.f32.gmra.mrb[0].mxu0 %v215
    %v4706 = vpop.f32.mrb[0].mxu0
    %v4707 = vadd.f32 %v665, %v4706
    %v4708 = vpop.f32.mrb[0].mxu0
    %4709 = vmatprep.mubr.f32.mxu0 %v219
    %4710 = vmatmul.mubr.f32.gmra.mrb[0].mxu0 %v218
    %v4711 = vpop.f32.mrb[0].mxu0
    %v4712 = vadd.f32 %v670, %v4711
    %v4713 = vpop.f32.mrb[0].mxu0
    %4714 = vmatprep.mubr.f32.mxu0 %v222
    %4715 = vmatmul.mubr.f32.gmra.mrb[0].mxu0 %v221
    %v4716 = vpop.f32.mrb[0].mxu0
    %v4717 = vadd.f32 %v675, %v4716
    %v4718 = vpop.f32.mrb[0].mxu0
    %4719 = vmatprep.mubr.f32.mxu0 %v225
    %4720 = vmatmul.mubr.f32.gmra.mrb[0].mxu0 %v224
    %v4721 = vpop.f32.mrb[0].mxu0
    %v4722 = vadd.f32 %v680, %v4721
    %v4723 = vpop.f32.mrb[0].mxu0
    %4724 = vdwg.mxu0
    %4725 = vmatprep.subr.mxu0 0.0
    %4726 = vmatpush1.msra.mxu0 %v4597
    %4727 = vmatprep.subr.mxu0 0.0
    %4728 = vmatpush1.msra.mxu0 %v4599
    %4729 = vmatprep.subr.mxu0 0.0
    %4730 = vmatpush1.msra.mxu0 %v4601
    %4731 = vmatprep.subr.mxu0 0.0
    %4732 = vmatpush1.msra.mxu0 %v4603
    %4733 = vmatprep.subr.mxu0 0.0
    %4734 = vmatpush1.msra.mxu0 0.0
    %4735 = vmatprep.subr.mxu0 0.0
    %4736 = vmatpush1.msra.mxu0 0.0
    %4737 = vmatprep.subr.mxu0 0.0
    %4738 = vmatpush1.msra.mxu0 0.0
    %4739 = vmatprep.subr.mxu0 0.0
    %4740 = vmatpush1.msra.mxu0 0.0
    %4741 = vmatprep.subr.mxu0 0.0
    %4742 = vmatpush1.msra.mxu0 0.0
    %4743 = vmatprep.subr.mxu0 0.0
    %4744 = vmatpush1.msra.mxu0 0.0
    %4745 = vmatprep.subr.mxu0 0.0
    %4746 = vmatpush1.msra.mxu0 0.0
    %4747 = vmatprep.subr.mxu0 0.0
    %4748 = vmatpush1.msra.mxu0 0.0
    %4749 = vmatprep.subr.mxu0 0.0
    %4750 = vmatpush1.msra.mxu0 0.0
    %4751 = vmatprep.subr.mxu0 0.0
    %4752 = vmatpush1.msra.mxu0 0.0
    %4753 = vmatprep.subr.mxu0 0.0
    %4754 = vmatpush1.msra.mxu0 0.0
    %4755 = vmatprep.subr.mxu0 0.0
    %4756 = vmatpush1.msra.mxu0 0.0
    %4757 = vmatprep.subr.mxu0 0.0
    %4758 = vmatpush1.msra.mxu0 0.0
    %4759 = vmatprep.subr.mxu0 0.0
    %4760 = vmatpush1.msra.mxu0 0.0
    %4761 = vmatprep.subr.mxu0 0.0
    %4762 = vmatpush1.msra.mxu0 0.0
    %4763 = vmatprep.subr.mxu0 0.0
    %4764 = vmatpush1.msra.mxu0 0.0
    %4765 = vmatprep.subr.mxu0 0.0
    %4766 = vmatpush1.msra.mxu0 0.0
    %4767 = vmatprep.subr.mxu0 0.0
    %4768 = vmatpush1.msra.mxu0 0.0
    %4769 = vmatprep.subr.mxu0 0.0
    %4770 = vmatpush1.msra.mxu0 0.0
    %4771 = vmatprep.subr.mxu0 0.0
    %4772 = vmatpush1.msra.mxu0 0.0
    %4773 = vmatprep.subr.mxu0 0.0
    %4774 = vmatpush1.msra.mxu0 0.0
    %4775 = vmatprep.subr.mxu0 0.0
    %4776 = vmatpush1.msra.mxu0 0.0
    %4777 = vmatprep.subr.mxu0 0.0
    %4778 = vmatpush1.msra.mxu0 0.0
    %4779 = vmatprep.subr.mxu0 0.0
    %4780 = vmatpush1.msra.mxu0 0.0
    %4781 = vmatprep.subr.mxu0 0.0
    %4782 = vmatpush1.msra.mxu0 0.0
    %4783 = vmatprep.subr.mxu0 0.0
    %4784 = vmatpush1.msra.mxu0 0.0
    %4785 = vmatprep.subr.mxu0 0.0
    %4786 = vmatpush1.msra.mxu0 0.0
    %4787 = vmatprep.subr.mxu0 0.0
    %4788 = vmatpush1.msra.mxu0 0.0
    %4789 = vmatprep.mubr.f32.mxu0 0.0
    %4790 = vmatmul.mubr.f32.gmra.mrb[0].mxu0 %v796
    %v4791 = vpop.f32.mrb[0].mxu0
    %v4792 = vadd.f32 %v4707, %v4791
    %v4793 = vpop.f32.mrb[0].mxu0
    %4794 = vmatprep.mubr.f32.mxu0 0.0
    %4795 = vmatmul.mubr.f32.gmra.mrb[0].mxu0 %v799
    %v4796 = vpop.f32.mrb[0].mxu0
    %v4797 = vadd.f32 %v4712, %v4796
    %v4798 = vpop.f32.mrb[0].mxu0
    %4799 = vmatprep.mubr.f32.mxu0 0.0
    %4800 = vmatmul.mubr.f32.gmra.mrb[0].mxu0 %v802
    %v4801 = vpop.f32.mrb[0].mxu0
    %v4802 = vadd.f32 %v4717, %v4801
    %v4803 = vpop.f32.mrb[0].mxu0
    %4804 = vmatprep.mubr.f32.mxu0 0.0
    %4805 = vmatmul.mubr.f32.gmra.mrb[0].mxu0 %v805
    %v4806 = vpop.f32.mrb[0].mxu0
    %v4807 = vadd.f32 %v4722, %v4806
    %v4808 = vpop.f32.mrb[0].mxu0
    %4809 = vdwg.mxu0
    %v4810 = vsub.f32 1.0, %v2987
    %v4811 = vsub.f32 1.0, %v2988
    %v4812 = vsub.f32 1.0, %v2989
    %v4813 = vsub.f32 1.0, %v2990
    %v4814 = vmul.f32 %v4810, 0.2
    %v4815 = vmul.f32 %v4811, 0.2
    %v4816 = vmul.f32 %v4812, 0.2
    %v4817 = vmul.f32 %v4813, 0.2
    %v4818 = vmul.f32 %v2975, %v4814
    %v4819 = vmul.f32 %v2976, %v4815
    %v4820 = vmul.f32 %v2977, %v4816
    %v4821 = vmul.f32 %v2978, %v4817
    %v4822 = vadd.f32 %v4818, %v4792
    %v4823 = vadd.f32 %v4819, %v4797
    %v4824 = vadd.f32 %v4820, %v4802
    %v4825 = vadd.f32 %v4821, %v4807
    %vm4826 = vcmp.gt.f32.partialorder %v4822, 0.5
    %vm4827 = vcmp.gt.f32.partialorder %v4823, 0.5
    %vm4828 = vcmp.gt.f32.partialorder %v4824, 0.5
    %vm4829 = vcmp.gt.f32.partialorder %v4825, 0.5
    %v4830 = vsel %vm4826, 1, 0
    %v4831 = vsel %vm4827, 1, 0
    %v4832 = vsel %vm4828, 1, 0
    %v4833 = vsel %vm4829, 1, 0
    %v4834 = vcvt.s32.f32 %v4830
    %v4835 = vcvt.s32.f32 %v4831
    %v4836 = vcvt.s32.f32 %v4832
    %v4837 = vcvt.s32.f32 %v4833
    %v4839 = vsel %vm1008, %v4834, 0
    %4841 = vmatprep.subr.mxu0 0.0
    %4842 = vmatpush1.msra.mxu0 %v1000
    %4843 = vmatprep.subr.mxu0 0.0
    %4844 = vmatpush1.msra.mxu0 %v1001
    %4845 = vmatprep.subr.mxu0 0.0
    %4846 = vmatpush1.msra.mxu0 %v1002
    %4847 = vmatprep.subr.mxu0 0.0
    %4848 = vmatpush1.msra.mxu0 %v1003
    %4849 = vmatprep.subr.mxu0 0.0
    %4850 = vmatpush1.msra.mxu0 %v1004
    %4851 = vmatprep.subr.mxu0 0.0
    %4852 = vmatpush1.msra.mxu0 %v1005
    %4853 = vmatprep.subr.mxu0 0.0
    %4854 = vmatpush1.msra.mxu0 %v1006
    %4855 = vmatprep.subr.mxu0 0.0
    %4856 = vmatpush1.msra.mxu0 %v1007
    %4857 = vmatprep.subr.mxu0 0.0
    %4858 = vmatpush1.msra.mxu0 0.0
    %4859 = vmatprep.subr.mxu0 0.0
    %4860 = vmatpush1.msra.mxu0 0.0
    %4861 = vmatprep.subr.mxu0 0.0
    %4862 = vmatpush1.msra.mxu0 0.0
    %4863 = vmatprep.subr.mxu0 0.0
    %4864 = vmatpush1.msra.mxu0 0.0
    %4865 = vmatprep.subr.mxu0 0.0
    %4866 = vmatpush1.msra.mxu0 0.0
    %4867 = vmatprep.subr.mxu0 0.0
    %4868 = vmatpush1.msra.mxu0 0.0
    %4869 = vmatprep.subr.mxu0 0.0
    %4870 = vmatpush1.msra.mxu0 0.0
    %4871 = vmatprep.subr.mxu0 0.0
    %4872 = vmatpush1.msra.mxu0 0.0
    %4873 = vmatprep.subr.mxu0 0.0
    %4874 = vmatpush1.msra.mxu0 0.0
    %4875 = vmatprep.subr.mxu0 0.0
    %4876 = vmatpush1.msra.mxu0 0.0
    %4877 = vmatprep.subr.mxu0 0.0
    %4878 = vmatpush1.msra.mxu0 0.0
    %4879 = vmatprep.subr.mxu0 0.0
    %4880 = vmatpush1.msra.mxu0 0.0
    %4881 = vmatprep.subr.mxu0 0.0
    %4882 = vmatpush1.msra.mxu0 0.0
    %4883 = vmatprep.subr.mxu0 0.0
    %4884 = vmatpush1.msra.mxu0 0.0
    %4885 = vmatprep.subr.mxu0 0.0
    %4886 = vmatpush1.msra.mxu0 0.0
    %4887 = vmatprep.subr.mxu0 0.0
    %4888 = vmatpush1.msra.mxu0 0.0
    %4889 = vmatprep.subr.mxu0 0.0
    %4890 = vmatpush1.msra.mxu0 0.0
    %4891 = vmatprep.subr.mxu0 0.0
    %4892 = vmatpush1.msra.mxu0 0.0
    %4893 = vmatprep.subr.mxu0 0.0
    %4894 = vmatpush1.msra.mxu0 0.0
    %4895 = vmatprep.subr.mxu0 0.0
    %4896 = vmatpush1.msra.mxu0 0.0
    %4897 = vmatprep.subr.mxu0 0.0
    %4898 = vmatpush1.msra.mxu0 0.0
    %4899 = vmatprep.subr.mxu0 0.0
    %4900 = vmatpush1.msra.mxu0 0.0
    %4901 = vmatprep.subr.mxu0 0.0
    %4902 = vmatpush1.msra.mxu0 0.0
    %4903 = vmatprep.subr.mxu0 0.0
    %4904 = vmatpush1.msra.mxu0 0.0
    %4905 = vmatprep.mubr.f32.mxu0 0.0
    %4906 = vmatmul.mubr.f32.gmra.mrb[0].mxu0 %v4839
    %v4907 = vpop.f32.mrb[0].mxu0
    %v4908 = vadd.f32 0.0, %v4907
    %v4909 = vpop.f32.mrb[0].mxu0
    %4910 = vdwg.mxu0
    %v4911 = vadd.f32 %v999, %v4908
    %v4912 = vrot.slane %v4834, 2
    %v4913 = vsel %vm1008, %v4912, 0
    %4915 = vmatprep.subr.mxu0 0.0
    %4916 = vmatpush1.msra.mxu0 %v1084
    %4917 = vmatprep.subr.mxu0 0.0
    %4918 = vmatpush1.msra.mxu0 %v1085
    %4919 = vmatprep.subr.mxu0 0.0
    %4920 = vmatpush1.msra.mxu0 %v1086
    %4921 = vmatprep.subr.mxu0 0.0
    %4922 = vmatpush1.msra.mxu0 %v1087
    %4923 = vmatprep.subr.mxu0 0.0
    %4924 = vmatpush1.msra.mxu0 %v1088
    %4925 = vmatprep.subr.mxu0 0.0
    %4926 = vmatpush1.msra.mxu0 %v1089
    %4927 = vmatprep.subr.mxu0 0.0
    %4928 = vmatpush1.msra.mxu0 %v1090
    %4929 = vmatprep.subr.mxu0 0.0
    %4930 = vmatpush1.msra.mxu0 %v1091
    %4931 = vmatprep.subr.mxu0 0.0
    %4932 = vmatpush1.msra.mxu0 0.0
    %4933 = vmatprep.subr.mxu0 0.0
    %4934 = vmatpush1.msra.mxu0 0.0
    %4935 = vmatprep.subr.mxu0 0.0
    %4936 = vmatpush1.msra.mxu0 0.0
    %4937 = vmatprep.subr.mxu0 0.0
    %4938 = vmatpush1.msra.mxu0 0.0
    %4939 = vmatprep.subr.mxu0 0.0
    %4940 = vmatpush1.msra.mxu0 0.0
    %4941 = vmatprep.subr.mxu0 0.0
    %4942 = vmatpush1.msra.mxu0 0.0
    %4943 = vmatprep.subr.mxu0 0.0
    %4944 = vmatpush1.msra.mxu0 0.0
    %4945 = vmatprep.subr.mxu0 0.0
    %4946 = vmatpush1.msra.mxu0 0.0
    %4947 = vmatprep.subr.mxu0 0.0
    %4948 = vmatpush1.msra.mxu0 0.0
    %4949 = vmatprep.subr.mxu0 0.0
    %4950 = vmatpush1.msra.mxu0 0.0
    %4951 = vmatprep.subr.mxu0 0.0
    %4952 = vmatpush1.msra.mxu0 0.0
    %4953 = vmatprep.subr.mxu0 0.0
    %4954 = vmatpush1.msra.mxu0 0.0
    %4955 = vmatprep.subr.mxu0 0.0
    %4956 = vmatpush1.msra.mxu0 0.0
    %4957 = vmatprep.subr.mxu0 0.0
    %4958 = vmatpush1.msra.mxu0 0.0
    %4959 = vmatprep.subr.mxu0 0.0
    %4960 = vmatpush1.msra.mxu0 0.0
    %4961 = vmatprep.subr.mxu0 0.0
    %4962 = vmatpush1.msra.mxu0 0.0
    %4963 = vmatprep.subr.mxu0 0.0
    %4964 = vmatpush1.msra.mxu0 0.0
    %4965 = vmatprep.subr.mxu0 0.0
    %4966 = vmatpush1.msra.mxu0 0.0
    %4967 = vmatprep.subr.mxu0 0.0
    %4968 = vmatpush1.msra.mxu0 0.0
    %4969 = vmatprep.subr.mxu0 0.0
    %4970 = vmatpush1.msra.mxu0 0.0
    %4971 = vmatprep.subr.mxu0 0.0
    %4972 = vmatpush1.msra.mxu0 0.0
    %4973 = vmatprep.subr.mxu0 0.0
    %4974 = vmatpush1.msra.mxu0 0.0
    %4975 = vmatprep.subr.mxu0 0.0
    %4976 = vmatpush1.msra.mxu0 0.0
    %4977 = vmatprep.subr.mxu0 0.0
    %4978 = vmatpush1.msra.mxu0 0.0
    %4979 = vmatprep.mubr.f32.mxu0 0.0
    %4980 = vmatmul.mubr.f32.gmra.mrb[0].mxu0 %v4913
    %v4981 = vpop.f32.mrb[0].mxu0
    %v4982 = vadd.f32 0.0, %v4981
    %v4983 = vpop.f32.mrb[0].mxu0
    %4984 = vdwg.mxu0
    %v4985 = vadd.f32 %v4911, %v4982
    %v4986 = vrot.slane %v4834, 4
    %v4987 = vsel %vm1008, %v4986, 0
    %4989 = vmatprep.subr.mxu0 0.0
    %4990 = vmatpush1.msra.mxu0 %v1167
    %4991 = vmatprep.subr.mxu0 0.0
    %4992 = vmatpush1.msra.mxu0 %v1168
    %4993 = vmatprep.subr.mxu0 0.0
    %4994 = vmatpush1.msra.mxu0 %v1169
    %4995 = vmatprep.subr.mxu0 0.0
    %4996 = vmatpush1.msra.mxu0 %v1170
    %4997 = vmatprep.subr.mxu0 0.0
    %4998 = vmatpush1.msra.mxu0 %v1171
    %4999 = vmatprep.subr.mxu0 0.0
    %5000 = vmatpush1.msra.mxu0 %v1172
    %5001 = vmatprep.subr.mxu0 0.0
    %5002 = vmatpush1.msra.mxu0 %v1173
    %5003 = vmatprep.subr.mxu0 0.0
    %5004 = vmatpush1.msra.mxu0 %v1174
    %5005 = vmatprep.subr.mxu0 0.0
    %5006 = vmatpush1.msra.mxu0 0.0
    %5007 = vmatprep.subr.mxu0 0.0
    %5008 = vmatpush1.msra.mxu0 0.0
    %5009 = vmatprep.subr.mxu0 0.0
    %5010 = vmatpush1.msra.mxu0 0.0
    %5011 = vmatprep.subr.mxu0 0.0
    %5012 = vmatpush1.msra.mxu0 0.0
    %5013 = vmatprep.subr.mxu0 0.0
    %5014 = vmatpush1.msra.mxu0 0.0
    %5015 = vmatprep.subr.mxu0 0.0
    %5016 = vmatpush1.msra.mxu0 0.0
    %5017 = vmatprep.subr.mxu0 0.0
    %5018 = vmatpush1.msra.mxu0 0.0
    %5019 = vmatprep.subr.mxu0 0.0
    %5020 = vmatpush1.msra.mxu0 0.0
    %5021 = vmatprep.subr.mxu0 0.0
    %5022 = vmatpush1.msra.mxu0 0.0
    %5023 = vmatprep.subr.mxu0 0.0
    %5024 = vmatpush1.msra.mxu0 0.0
    %5025 = vmatprep.subr.mxu0 0.0
    %5026 = vmatpush1.msra.mxu0 0.0
    %5027 = vmatprep.subr.mxu0 0.0
    %5028 = vmatpush1.msra.mxu0 0.0
    %5029 = vmatprep.subr.mxu0 0.0
    %5030 = vmatpush1.msra.mxu0 0.0
    %5031 = vmatprep.subr.mxu0 0.0
    %5032 = vmatpush1.msra.mxu0 0.0
    %5033 = vmatprep.subr.mxu0 0.0
    %5034 = vmatpush1.msra.mxu0 0.0
    %5035 = vmatprep.subr.mxu0 0.0
    %5036 = vmatpush1.msra.mxu0 0.0
    %5037 = vmatprep.subr.mxu0 0.0
    %5038 = vmatpush1.msra.mxu0 0.0
    %5039 = vmatprep.subr.mxu0 0.0
    %5040 = vmatpush1.msra.mxu0 0.0
    %5041 = vmatprep.subr.mxu0 0.0
    %5042 = vmatpush1.msra.mxu0 0.0
    %5043 = vmatprep.subr.mxu0 0.0
    %5044 = vmatpush1.msra.mxu0 0.0
    %5045 = vmatprep.subr.mxu0 0.0
    %5046 = vmatpush1.msra.mxu0 0.0
    %5047 = vmatprep.subr.mxu0 0.0
    %5048 = vmatpush1.msra.mxu0 0.0
    %5049 = vmatprep.subr.mxu0 0.0
    %5050 = vmatpush1.msra.mxu0 0.0
    %5051 = vmatprep.subr.mxu0 0.0
    %5052 = vmatpush1.msra.mxu0 0.0
    %5053 = vmatprep.mubr.f32.mxu0 0.0
    %5054 = vmatmul.mubr.f32.gmra.mrb[0].mxu0 %v4987
    %v5055 = vpop.f32.mrb[0].mxu0
    %v5056 = vadd.f32 0.0, %v5055
    %v5057 = vpop.f32.mrb[0].mxu0
    %5058 = vdwg.mxu0
    %v5059 = vadd.f32 %v4985, %v5056
    %v5060 = vrot.slane %v4834, 6
    %v5061 = vsel %vm1008, %v5060, 0
    %5063 = vmatprep.subr.mxu0 0.0
    %5064 = vmatpush1.msra.mxu0 %v1250
    %5065 = vmatprep.subr.mxu0 0.0
    %5066 = vmatpush1.msra.mxu0 %v1251
    %5067 = vmatprep.subr.mxu0 0.0
    %5068 = vmatpush1.msra.mxu0 %v1252
    %5069 = vmatprep.subr.mxu0 0.0
    %5070 = vmatpush1.msra.mxu0 %v1253
    %5071 = vmatprep.subr.mxu0 0.0
    %5072 = vmatpush1.msra.mxu0 %v1254
    %5073 = vmatprep.subr.mxu0 0.0
    %5074 = vmatpush1.msra.mxu0 %v1255
    %5075 = vmatprep.subr.mxu0 0.0
    %5076 = vmatpush1.msra.mxu0 %v1256
    %5077 = vmatprep.subr.mxu0 0.0
    %5078 = vmatpush1.msra.mxu0 %v1257
    %5079 = vmatprep.subr.mxu0 0.0
    %5080 = vmatpush1.msra.mxu0 0.0
    %5081 = vmatprep.subr.mxu0 0.0
    %5082 = vmatpush1.msra.mxu0 0.0
    %5083 = vmatprep.subr.mxu0 0.0
    %5084 = vmatpush1.msra.mxu0 0.0
    %5085 = vmatprep.subr.mxu0 0.0
    %5086 = vmatpush1.msra.mxu0 0.0
    %5087 = vmatprep.subr.mxu0 0.0
    %5088 = vmatpush1.msra.mxu0 0.0
    %5089 = vmatprep.subr.mxu0 0.0
    %5090 = vmatpush1.msra.mxu0 0.0
    %5091 = vmatprep.subr.mxu0 0.0
    %5092 = vmatpush1.msra.mxu0 0.0
    %5093 = vmatprep.subr.mxu0 0.0
    %5094 = vmatpush1.msra.mxu0 0.0
    %5095 = vmatprep.subr.mxu0 0.0
    %5096 = vmatpush1.msra.mxu0 0.0
    %5097 = vmatprep.subr.mxu0 0.0
    %5098 = vmatpush1.msra.mxu0 0.0
    %5099 = vmatprep.subr.mxu0 0.0
    %5100 = vmatpush1.msra.mxu0 0.0
    %5101 = vmatprep.subr.mxu0 0.0
    %5102 = vmatpush1.msra.mxu0 0.0
    %5103 = vmatprep.subr.mxu0 0.0
    %5104 = vmatpush1.msra.mxu0 0.0
    %5105 = vmatprep.subr.mxu0 0.0
    %5106 = vmatpush1.msra.mxu0 0.0
    %5107 = vmatprep.subr.mxu0 0.0
    %5108 = vmatpush1.msra.mxu0 0.0
    %5109 = vmatprep.subr.mxu0 0.0
    %5110 = vmatpush1.msra.mxu0 0.0
    %5111 = vmatprep.subr.mxu0 0.0
    %5112 = vmatpush1.msra.mxu0 0.0
    %5113 = vmatprep.subr.mxu0 0.0
    %5114 = vmatpush1.msra.mxu0 0.0
    %5115 = vmatprep.subr.mxu0 0.0
    %5116 = vmatpush1.msra.mxu0 0.0
    %5117 = vmatprep.subr.mxu0 0.0
    %5118 = vmatpush1.msra.mxu0 0.0
    %5119 = vmatprep.subr.mxu0 0.0
    %5120 = vmatpush1.msra.mxu0 0.0
    %5121 = vmatprep.subr.mxu0 0.0
    %5122 = vmatpush1.msra.mxu0 0.0
    %5123 = vmatprep.subr.mxu0 0.0
    %5124 = vmatpush1.msra.mxu0 0.0
    %5125 = vmatprep.subr.mxu0 0.0
    %5126 = vmatpush1.msra.mxu0 0.0
    %5127 = vmatprep.mubr.f32.mxu0 0.0
    %5128 = vmatmul.mubr.f32.gmra.mrb[0].mxu0 %v5061
    %v5129 = vpop.f32.mrb[0].mxu0
    %v5130 = vadd.f32 0.0, %v5129
    %v5131 = vpop.f32.mrb[0].mxu0
    %5132 = vdwg.mxu0
    %v5133 = vadd.f32 %v5059, %v5130
    %v5135 = vsel %vm1008, %v4835, 0
    %5137 = vmatprep.subr.mxu0 0.0
    %5138 = vmatpush1.msra.mxu0 %v1333
    %5139 = vmatprep.subr.mxu0 0.0
    %5140 = vmatpush1.msra.mxu0 %v1334
    %5141 = vmatprep.subr.mxu0 0.0
    %5142 = vmatpush1.msra.mxu0 %v1335
    %5143 = vmatprep.subr.mxu0 0.0
    %5144 = vmatpush1.msra.mxu0 %v1336
    %5145 = vmatprep.subr.mxu0 0.0
    %5146 = vmatpush1.msra.mxu0 %v1337
    %5147 = vmatprep.subr.mxu0 0.0
    %5148 = vmatpush1.msra.mxu0 %v1338
    %5149 = vmatprep.subr.mxu0 0.0
    %5150 = vmatpush1.msra.mxu0 %v1339
    %5151 = vmatprep.subr.mxu0 0.0
    %5152 = vmatpush1.msra.mxu0 %v1340
    %5153 = vmatprep.subr.mxu0 0.0
    %5154 = vmatpush1.msra.mxu0 0.0
    %5155 = vmatprep.subr.mxu0 0.0
    %5156 = vmatpush1.msra.mxu0 0.0
    %5157 = vmatprep.subr.mxu0 0.0
    %5158 = vmatpush1.msra.mxu0 0.0
    %5159 = vmatprep.subr.mxu0 0.0
    %5160 = vmatpush1.msra.mxu0 0.0
    %5161 = vmatprep.subr.mxu0 0.0
    %5162 = vmatpush1.msra.mxu0 0.0
    %5163 = vmatprep.subr.mxu0 0.0
    %5164 = vmatpush1.msra.mxu0 0.0
    %5165 = vmatprep.subr.mxu0 0.0
    %5166 = vmatpush1.msra.mxu0 0.0
    %5167 = vmatprep.subr.mxu0 0.0
    %5168 = vmatpush1.msra.mxu0 0.0
    %5169 = vmatprep.subr.mxu0 0.0
    %5170 = vmatpush1.msra.mxu0 0.0
    %5171 = vmatprep.subr.mxu0 0.0
    %5172 = vmatpush1.msra.mxu0 0.0
    %5173 = vmatprep.subr.mxu0 0.0
    %5174 = vmatpush1.msra.mxu0 0.0
    %5175 = vmatprep.subr.mxu0 0.0
    %5176 = vmatpush1.msra.mxu0 0.0
    %5177 = vmatprep.subr.mxu0 0.0
    %5178 = vmatpush1.msra.mxu0 0.0
    %5179 = vmatprep.subr.mxu0 0.0
    %5180 = vmatpush1.msra.mxu0 0.0
    %5181 = vmatprep.subr.mxu0 0.0
    %5182 = vmatpush1.msra.mxu0 0.0
    %5183 = vmatprep.subr.mxu0 0.0
    %5184 = vmatpush1.msra.mxu0 0.0
    %5185 = vmatprep.subr.mxu0 0.0
    %5186 = vmatpush1.msra.mxu0 0.0
    %5187 = vmatprep.subr.mxu0 0.0
    %5188 = vmatpush1.msra.mxu0 0.0
    %5189 = vmatprep.subr.mxu0 0.0
    %5190 = vmatpush1.msra.mxu0 0.0
    %5191 = vmatprep.subr.mxu0 0.0
    %5192 = vmatpush1.msra.mxu0 0.0
    %5193 = vmatprep.subr.mxu0 0.0
    %5194 = vmatpush1.msra.mxu0 0.0
    %5195 = vmatprep.subr.mxu0 0.0
    %5196 = vmatpush1.msra.mxu0 0.0
    %5197 = vmatprep.subr.mxu0 0.0
    %5198 = vmatpush1.msra.mxu0 0.0
    %5199 = vmatprep.subr.mxu0 0.0
    %5200 = vmatpush1.msra.mxu0 0.0
    %5201 = vmatprep.mubr.f32.mxu0 0.0
    %5202 = vmatmul.mubr.f32.gmra.mrb[0].mxu0 %v5135
    %v5203 = vpop.f32.mrb[0].mxu0
    %v5204 = vadd.f32 0.0, %v5203
    %v5205 = vpop.f32.mrb[0].mxu0
    %5206 = vdwg.mxu0
    %v5207 = vadd.f32 %v5133, %v5204
    %v5208 = vrot.slane %v4835, 2
    %v5209 = vsel %vm1008, %v5208, 0
    %5211 = vmatprep.subr.mxu0 0.0
    %5212 = vmatpush1.msra.mxu0 %v1416
    %5213 = vmatprep.subr.mxu0 0.0
    %5214 = vmatpush1.msra.mxu0 %v1417
    %5215 = vmatprep.subr.mxu0 0.0
    %5216 = vmatpush1.msra.mxu0 %v1418
    %5217 = vmatprep.subr.mxu0 0.0
    %5218 = vmatpush1.msra.mxu0 %v1419
    %5219 = vmatprep.subr.mxu0 0.0
    %5220 = vmatpush1.msra.mxu0 %v1420
    %5221 = vmatprep.subr.mxu0 0.0
    %5222 = vmatpush1.msra.mxu0 %v1421
    %5223 = vmatprep.subr.mxu0 0.0
    %5224 = vmatpush1.msra.mxu0 %v1422
    %5225 = vmatprep.subr.mxu0 0.0
    %5226 = vmatpush1.msra.mxu0 %v1423
    %5227 = vmatprep.subr.mxu0 0.0
    %5228 = vmatpush1.msra.mxu0 0.0
    %5229 = vmatprep.subr.mxu0 0.0
    %5230 = vmatpush1.msra.mxu0 0.0
    %5231 = vmatprep.subr.mxu0 0.0
    %5232 = vmatpush1.msra.mxu0 0.0
    %5233 = vmatprep.subr.mxu0 0.0
    %5234 = vmatpush1.msra.mxu0 0.0
    %5235 = vmatprep.subr.mxu0 0.0
    %5236 = vmatpush1.msra.mxu0 0.0
    %5237 = vmatprep.subr.mxu0 0.0
    %5238 = vmatpush1.msra.mxu0 0.0
    %5239 = vmatprep.subr.mxu0 0.0
    %5240 = vmatpush1.msra.mxu0 0.0
    %5241 = vmatprep.subr.mxu0 0.0
    %5242 = vmatpush1.msra.mxu0 0.0
    %5243 = vmatprep.subr.mxu0 0.0
    %5244 = vmatpush1.msra.mxu0 0.0
    %5245 = vmatprep.subr.mxu0 0.0
    %5246 = vmatpush1.msra.mxu0 0.0
    %5247 = vmatprep.subr.mxu0 0.0
    %5248 = vmatpush1.msra.mxu0 0.0
    %5249 = vmatprep.subr.mxu0 0.0
    %5250 = vmatpush1.msra.mxu0 0.0
    %5251 = vmatprep.subr.mxu0 0.0
    %5252 = vmatpush1.msra.mxu0 0.0
    %5253 = vmatprep.subr.mxu0 0.0
    %5254 = vmatpush1.msra.mxu0 0.0
    %5255 = vmatprep.subr.mxu0 0.0
    %5256 = vmatpush1.msra.mxu0 0.0
    %5257 = vmatprep.subr.mxu0 0.0
    %5258 = vmatpush1.msra.mxu0 0.0
    %5259 = vmatprep.subr.mxu0 0.0
    %5260 = vmatpush1.msra.mxu0 0.0
    %5261 = vmatprep.subr.mxu0 0.0
    %5262 = vmatpush1.msra.mxu0 0.0
    %5263 = vmatprep.subr.mxu0 0.0
    %5264 = vmatpush1.msra.mxu0 0.0
    %5265 = vmatprep.subr.mxu0 0.0
    %5266 = vmatpush1.msra.mxu0 0.0
    %5267 = vmatprep.subr.mxu0 0.0
    %5268 = vmatpush1.msra.mxu0 0.0
    %5269 = vmatprep.subr.mxu0 0.0
    %5270 = vmatpush1.msra.mxu0 0.0
    %5271 = vmatprep.subr.mxu0 0.0
    %5272 = vmatpush1.msra.mxu0 0.0
    %5273 = vmatprep.subr.mxu0 0.0
    %5274 = vmatpush1.msra.mxu0 0.0
    %5275 = vmatprep.mubr.f32.mxu0 0.0
    %5276 = vmatmul.mubr.f32.gmra.mrb[0].mxu0 %v5209
    %v5277 = vpop.f32.mrb[0].mxu0
    %v5278 = vadd.f32 0.0, %v5277
    %v5279 = vpop.f32.mrb[0].mxu0
    %5280 = vdwg.mxu0
    %v5281 = vadd.f32 %v5207, %v5278
    %v5282 = vrot.slane %v4835, 4
    %v5283 = vsel %vm1008, %v5282, 0
    %5285 = vmatprep.subr.mxu0 0.0
    %5286 = vmatpush1.msra.mxu0 %v1499
    %5287 = vmatprep.subr.mxu0 0.0
    %5288 = vmatpush1.msra.mxu0 %v1500
    %5289 = vmatprep.subr.mxu0 0.0
    %5290 = vmatpush1.msra.mxu0 %v1501
    %5291 = vmatprep.subr.mxu0 0.0
    %5292 = vmatpush1.msra.mxu0 %v1502
    %5293 = vmatprep.subr.mxu0 0.0
    %5294 = vmatpush1.msra.mxu0 %v1503
    %5295 = vmatprep.subr.mxu0 0.0
    %5296 = vmatpush1.msra.mxu0 %v1504
    %5297 = vmatprep.subr.mxu0 0.0
    %5298 = vmatpush1.msra.mxu0 %v1505
    %5299 = vmatprep.subr.mxu0 0.0
    %5300 = vmatpush1.msra.mxu0 %v1506
    %5301 = vmatprep.subr.mxu0 0.0
    %5302 = vmatpush1.msra.mxu0 0.0
    %5303 = vmatprep.subr.mxu0 0.0
    %5304 = vmatpush1.msra.mxu0 0.0
    %5305 = vmatprep.subr.mxu0 0.0
    %5306 = vmatpush1.msra.mxu0 0.0
    %5307 = vmatprep.subr.mxu0 0.0
    %5308 = vmatpush1.msra.mxu0 0.0
    %5309 = vmatprep.subr.mxu0 0.0
    %5310 = vmatpush1.msra.mxu0 0.0
    %5311 = vmatprep.subr.mxu0 0.0
    %5312 = vmatpush1.msra.mxu0 0.0
    %5313 = vmatprep.subr.mxu0 0.0
    %5314 = vmatpush1.msra.mxu0 0.0
    %5315 = vmatprep.subr.mxu0 0.0
    %5316 = vmatpush1.msra.mxu0 0.0
    %5317 = vmatprep.subr.mxu0 0.0
    %5318 = vmatpush1.msra.mxu0 0.0
    %5319 = vmatprep.subr.mxu0 0.0
    %5320 = vmatpush1.msra.mxu0 0.0
    %5321 = vmatprep.subr.mxu0 0.0
    %5322 = vmatpush1.msra.mxu0 0.0
    %5323 = vmatprep.subr.mxu0 0.0
    %5324 = vmatpush1.msra.mxu0 0.0
    %5325 = vmatprep.subr.mxu0 0.0
    %5326 = vmatpush1.msra.mxu0 0.0
    %5327 = vmatprep.subr.mxu0 0.0
    %5328 = vmatpush1.msra.mxu0 0.0
    %5329 = vmatprep.subr.mxu0 0.0
    %5330 = vmatpush1.msra.mxu0 0.0
    %5331 = vmatprep.subr.mxu0 0.0
    %5332 = vmatpush1.msra.mxu0 0.0
    %5333 = vmatprep.subr.mxu0 0.0
    %5334 = vmatpush1.msra.mxu0 0.0
    %5335 = vmatprep.subr.mxu0 0.0
    %5336 = vmatpush1.msra.mxu0 0.0
    %5337 = vmatprep.subr.mxu0 0.0
    %5338 = vmatpush1.msra.mxu0 0.0
    %5339 = vmatprep.subr.mxu0 0.0
    %5340 = vmatpush1.msra.mxu0 0.0
    %5341 = vmatprep.subr.mxu0 0.0
    %5342 = vmatpush1.msra.mxu0 0.0
    %5343 = vmatprep.subr.mxu0 0.0
    %5344 = vmatpush1.msra.mxu0 0.0
    %5345 = vmatprep.subr.mxu0 0.0
    %5346 = vmatpush1.msra.mxu0 0.0
    %5347 = vmatprep.subr.mxu0 0.0
    %5348 = vmatpush1.msra.mxu0 0.0
    %5349 = vmatprep.mubr.f32.mxu0 0.0
    %5350 = vmatmul.mubr.f32.gmra.mrb[0].mxu0 %v5283
    %v5351 = vpop.f32.mrb[0].mxu0
    %v5352 = vadd.f32 0.0, %v5351
    %v5353 = vpop.f32.mrb[0].mxu0
    %5354 = vdwg.mxu0
    %v5355 = vadd.f32 %v5281, %v5352
    %v5356 = vrot.slane %v4835, 6
    %v5357 = vsel %vm1008, %v5356, 0
    %5359 = vmatprep.subr.mxu0 0.0
    %5360 = vmatpush1.msra.mxu0 %v1582
    %5361 = vmatprep.subr.mxu0 0.0
    %5362 = vmatpush1.msra.mxu0 %v1583
    %5363 = vmatprep.subr.mxu0 0.0
    %5364 = vmatpush1.msra.mxu0 %v1584
    %5365 = vmatprep.subr.mxu0 0.0
    %5366 = vmatpush1.msra.mxu0 %v1585
    %5367 = vmatprep.subr.mxu0 0.0
    %5368 = vmatpush1.msra.mxu0 %v1586
    %5369 = vmatprep.subr.mxu0 0.0
    %5370 = vmatpush1.msra.mxu0 %v1587
    %5371 = vmatprep.subr.mxu0 0.0
    %5372 = vmatpush1.msra.mxu0 %v1588
    %5373 = vmatprep.subr.mxu0 0.0
    %5374 = vmatpush1.msra.mxu0 %v1589
    %5375 = vmatprep.subr.mxu0 0.0
    %5376 = vmatpush1.msra.mxu0 0.0
    %5377 = vmatprep.subr.mxu0 0.0
    %5378 = vmatpush1.msra.mxu0 0.0
    %5379 = vmatprep.subr.mxu0 0.0
    %5380 = vmatpush1.msra.mxu0 0.0
    %5381 = vmatprep.subr.mxu0 0.0
    %5382 = vmatpush1.msra.mxu0 0.0
    %5383 = vmatprep.subr.mxu0 0.0
    %5384 = vmatpush1.msra.mxu0 0.0
    %5385 = vmatprep.subr.mxu0 0.0
    %5386 = vmatpush1.msra.mxu0 0.0
    %5387 = vmatprep.subr.mxu0 0.0
    %5388 = vmatpush1.msra.mxu0 0.0
    %5389 = vmatprep.subr.mxu0 0.0
    %5390 = vmatpush1.msra.mxu0 0.0
    %5391 = vmatprep.subr.mxu0 0.0
    %5392 = vmatpush1.msra.mxu0 0.0
    %5393 = vmatprep.subr.mxu0 0.0
    %5394 = vmatpush1.msra.mxu0 0.0
    %5395 = vmatprep.subr.mxu0 0.0
    %5396 = vmatpush1.msra.mxu0 0.0
    %5397 = vmatprep.subr.mxu0 0.0
    %5398 = vmatpush1.msra.mxu0 0.0
    %5399 = vmatprep.subr.mxu0 0.0
    %5400 = vmatpush1.msra.mxu0 0.0
    %5401 = vmatprep.subr.mxu0 0.0
    %5402 = vmatpush1.msra.mxu0 0.0
    %5403 = vmatprep.subr.mxu0 0.0
    %5404 = vmatpush1.msra.mxu0 0.0
    %5405 = vmatprep.subr.mxu0 0.0
    %5406 = vmatpush1.msra.mxu0 0.0
    %5407 = vmatprep.subr.mxu0 0.0
    %5408 = vmatpush1.msra.mxu0 0.0
    %5409 = vmatprep.subr.mxu0 0.0
    %5410 = vmatpush1.msra.mxu0 0.0
    %5411 = vmatprep.subr.mxu0 0.0
    %5412 = vmatpush1.msra.mxu0 0.0
    %5413 = vmatprep.subr.mxu0 0.0
    %5414 = vmatpush1.msra.mxu0 0.0
    %5415 = vmatprep.subr.mxu0 0.0
    %5416 = vmatpush1.msra.mxu0 0.0
    %5417 = vmatprep.subr.mxu0 0.0
    %5418 = vmatpush1.msra.mxu0 0.0
    %5419 = vmatprep.subr.mxu0 0.0
    %5420 = vmatpush1.msra.mxu0 0.0
    %5421 = vmatprep.subr.mxu0 0.0
    %5422 = vmatpush1.msra.mxu0 0.0
    %5423 = vmatprep.mubr.f32.mxu0 0.0
    %5424 = vmatmul.mubr.f32.gmra.mrb[0].mxu0 %v5357
    %v5425 = vpop.f32.mrb[0].mxu0
    %v5426 = vadd.f32 0.0, %v5425
    %v5427 = vpop.f32.mrb[0].mxu0
    %5428 = vdwg.mxu0
    %v5429 = vadd.f32 %v5355, %v5426
    %v5431 = vsel %vm1008, %v4836, 0
    %5433 = vmatprep.subr.mxu0 0.0
    %5434 = vmatpush1.msra.mxu0 %v1665
    %5435 = vmatprep.subr.mxu0 0.0
    %5436 = vmatpush1.msra.mxu0 %v1666
    %5437 = vmatprep.subr.mxu0 0.0
    %5438 = vmatpush1.msra.mxu0 %v1667
    %5439 = vmatprep.subr.mxu0 0.0
    %5440 = vmatpush1.msra.mxu0 %v1668
    %5441 = vmatprep.subr.mxu0 0.0
    %5442 = vmatpush1.msra.mxu0 %v1669
    %5443 = vmatprep.subr.mxu0 0.0
    %5444 = vmatpush1.msra.mxu0 %v1670
    %5445 = vmatprep.subr.mxu0 0.0
    %5446 = vmatpush1.msra.mxu0 %v1671
    %5447 = vmatprep.subr.mxu0 0.0
    %5448 = vmatpush1.msra.mxu0 %v1672
    %5449 = vmatprep.subr.mxu0 0.0
    %5450 = vmatpush1.msra.mxu0 0.0
    %5451 = vmatprep.subr.mxu0 0.0
    %5452 = vmatpush1.msra.mxu0 0.0
    %5453 = vmatprep.subr.mxu0 0.0
    %5454 = vmatpush1.msra.mxu0 0.0
    %5455 = vmatprep.subr.mxu0 0.0
    %5456 = vmatpush1.msra.mxu0 0.0
    %5457 = vmatprep.subr.mxu0 0.0
    %5458 = vmatpush1.msra.mxu0 0.0
    %5459 = vmatprep.subr.mxu0 0.0
    %5460 = vmatpush1.msra.mxu0 0.0
    %5461 = vmatprep.subr.mxu0 0.0
    %5462 = vmatpush1.msra.mxu0 0.0
    %5463 = vmatprep.subr.mxu0 0.0
    %5464 = vmatpush1.msra.mxu0 0.0
    %5465 = vmatprep.subr.mxu0 0.0
    %5466 = vmatpush1.msra.mxu0 0.0
    %5467 = vmatprep.subr.mxu0 0.0
    %5468 = vmatpush1.msra.mxu0 0.0
    %5469 = vmatprep.subr.mxu0 0.0
    %5470 = vmatpush1.msra.mxu0 0.0
    %5471 = vmatprep.subr.mxu0 0.0
    %5472 = vmatpush1.msra.mxu0 0.0
    %5473 = vmatprep.subr.mxu0 0.0
    %5474 = vmatpush1.msra.mxu0 0.0
    %5475 = vmatprep.subr.mxu0 0.0
    %5476 = vmatpush1.msra.mxu0 0.0
    %5477 = vmatprep.subr.mxu0 0.0
    %5478 = vmatpush1.msra.mxu0 0.0
    %5479 = vmatprep.subr.mxu0 0.0
    %5480 = vmatpush1.msra.mxu0 0.0
    %5481 = vmatprep.subr.mxu0 0.0
    %5482 = vmatpush1.msra.mxu0 0.0
    %5483 = vmatprep.subr.mxu0 0.0
    %5484 = vmatpush1.msra.mxu0 0.0
    %5485 = vmatprep.subr.mxu0 0.0
    %5486 = vmatpush1.msra.mxu0 0.0
    %5487 = vmatprep.subr.mxu0 0.0
    %5488 = vmatpush1.msra.mxu0 0.0
    %5489 = vmatprep.subr.mxu0 0.0
    %5490 = vmatpush1.msra.mxu0 0.0
    %5491 = vmatprep.subr.mxu0 0.0
    %5492 = vmatpush1.msra.mxu0 0.0
    %5493 = vmatprep.subr.mxu0 0.0
    %5494 = vmatpush1.msra.mxu0 0.0
    %5495 = vmatprep.subr.mxu0 0.0
    %5496 = vmatpush1.msra.mxu0 0.0
    %5497 = vmatprep.mubr.f32.mxu0 0.0
    %5498 = vmatmul.mubr.f32.gmra.mrb[0].mxu0 %v5431
    %v5499 = vpop.f32.mrb[0].mxu0
    %v5500 = vadd.f32 0.0, %v5499
    %v5501 = vpop.f32.mrb[0].mxu0
    %5502 = vdwg.mxu0
    %v5503 = vadd.f32 %v5429, %v5500
    %v5504 = vrot.slane %v4836, 2
    %v5505 = vsel %vm1008, %v5504, 0
    %5507 = vmatprep.subr.mxu0 0.0
    %5508 = vmatpush1.msra.mxu0 %v1748
    %5509 = vmatprep.subr.mxu0 0.0
    %5510 = vmatpush1.msra.mxu0 %v1749
    %5511 = vmatprep.subr.mxu0 0.0
    %5512 = vmatpush1.msra.mxu0 %v1750
    %5513 = vmatprep.subr.mxu0 0.0
    %5514 = vmatpush1.msra.mxu0 %v1751
    %5515 = vmatprep.subr.mxu0 0.0
    %5516 = vmatpush1.msra.mxu0 %v1752
    %5517 = vmatprep.subr.mxu0 0.0
    %5518 = vmatpush1.msra.mxu0 %v1753
    %5519 = vmatprep.subr.mxu0 0.0
    %5520 = vmatpush1.msra.mxu0 %v1754
    %5521 = vmatprep.subr.mxu0 0.0
    %5522 = vmatpush1.msra.mxu0 %v1755
    %5523 = vmatprep.subr.mxu0 0.0
    %5524 = vmatpush1.msra.mxu0 0.0
    %5525 = vmatprep.subr.mxu0 0.0
    %5526 = vmatpush1.msra.mxu0 0.0
    %5527 = vmatprep.subr.mxu0 0.0
    %5528 = vmatpush1.msra.mxu0 0.0
    %5529 = vmatprep.subr.mxu0 0.0
    %5530 = vmatpush1.msra.mxu0 0.0
    %5531 = vmatprep.subr.mxu0 0.0
    %5532 = vmatpush1.msra.mxu0 0.0
    %5533 = vmatprep.subr.mxu0 0.0
    %5534 = vmatpush1.msra.mxu0 0.0
    %5535 = vmatprep.subr.mxu0 0.0
    %5536 = vmatpush1.msra.mxu0 0.0
    %5537 = vmatprep.subr.mxu0 0.0
    %5538 = vmatpush1.msra.mxu0 0.0
    %5539 = vmatprep.subr.mxu0 0.0
    %5540 = vmatpush1.msra.mxu0 0.0
    %5541 = vmatprep.subr.mxu0 0.0
    %5542 = vmatpush1.msra.mxu0 0.0
    %5543 = vmatprep.subr.mxu0 0.0
    %5544 = vmatpush1.msra.mxu0 0.0
    %5545 = vmatprep.subr.mxu0 0.0
    %5546 = vmatpush1.msra.mxu0 0.0
    %5547 = vmatprep.subr.mxu0 0.0
    %5548 = vmatpush1.msra.mxu0 0.0
    %5549 = vmatprep.subr.mxu0 0.0
    %5550 = vmatpush1.msra.mxu0 0.0
    %5551 = vmatprep.subr.mxu0 0.0
    %5552 = vmatpush1.msra.mxu0 0.0
    %5553 = vmatprep.subr.mxu0 0.0
    %5554 = vmatpush1.msra.mxu0 0.0
    %5555 = vmatprep.subr.mxu0 0.0
    %5556 = vmatpush1.msra.mxu0 0.0
    %5557 = vmatprep.subr.mxu0 0.0
    %5558 = vmatpush1.msra.mxu0 0.0
    %5559 = vmatprep.subr.mxu0 0.0
    %5560 = vmatpush1.msra.mxu0 0.0
    %5561 = vmatprep.subr.mxu0 0.0
    %5562 = vmatpush1.msra.mxu0 0.0
    %5563 = vmatprep.subr.mxu0 0.0
    %5564 = vmatpush1.msra.mxu0 0.0
    %5565 = vmatprep.subr.mxu0 0.0
    %5566 = vmatpush1.msra.mxu0 0.0
    %5567 = vmatprep.subr.mxu0 0.0
    %5568 = vmatpush1.msra.mxu0 0.0
    %5569 = vmatprep.subr.mxu0 0.0
    %5570 = vmatpush1.msra.mxu0 0.0
    %5571 = vmatprep.mubr.f32.mxu0 0.0
    %5572 = vmatmul.mubr.f32.gmra.mrb[0].mxu0 %v5505
    %v5573 = vpop.f32.mrb[0].mxu0
    %v5574 = vadd.f32 0.0, %v5573
    %v5575 = vpop.f32.mrb[0].mxu0
    %5576 = vdwg.mxu0
    %v5577 = vadd.f32 %v5503, %v5574
    %v5578 = vrot.slane %v4836, 4
    %v5579 = vsel %vm1008, %v5578, 0
    %5581 = vmatprep.subr.mxu0 0.0
    %5582 = vmatpush1.msra.mxu0 %v1831
    %5583 = vmatprep.subr.mxu0 0.0
    %5584 = vmatpush1.msra.mxu0 %v1832
    %5585 = vmatprep.subr.mxu0 0.0
    %5586 = vmatpush1.msra.mxu0 %v1833
    %5587 = vmatprep.subr.mxu0 0.0
    %5588 = vmatpush1.msra.mxu0 %v1834
    %5589 = vmatprep.subr.mxu0 0.0
    %5590 = vmatpush1.msra.mxu0 %v1835
    %5591 = vmatprep.subr.mxu0 0.0
    %5592 = vmatpush1.msra.mxu0 %v1836
    %5593 = vmatprep.subr.mxu0 0.0
    %5594 = vmatpush1.msra.mxu0 %v1837
    %5595 = vmatprep.subr.mxu0 0.0
    %5596 = vmatpush1.msra.mxu0 %v1838
    %5597 = vmatprep.subr.mxu0 0.0
    %5598 = vmatpush1.msra.mxu0 0.0
    %5599 = vmatprep.subr.mxu0 0.0
    %5600 = vmatpush1.msra.mxu0 0.0
    %5601 = vmatprep.subr.mxu0 0.0
    %5602 = vmatpush1.msra.mxu0 0.0
    %5603 = vmatprep.subr.mxu0 0.0
    %5604 = vmatpush1.msra.mxu0 0.0
    %5605 = vmatprep.subr.mxu0 0.0
    %5606 = vmatpush1.msra.mxu0 0.0
    %5607 = vmatprep.subr.mxu0 0.0
    %5608 = vmatpush1.msra.mxu0 0.0
    %5609 = vmatprep.subr.mxu0 0.0
    %5610 = vmatpush1.msra.mxu0 0.0
    %5611 = vmatprep.subr.mxu0 0.0
    %5612 = vmatpush1.msra.mxu0 0.0
    %5613 = vmatprep.subr.mxu0 0.0
    %5614 = vmatpush1.msra.mxu0 0.0
    %5615 = vmatprep.subr.mxu0 0.0
    %5616 = vmatpush1.msra.mxu0 0.0
    %5617 = vmatprep.subr.mxu0 0.0
    %5618 = vmatpush1.msra.mxu0 0.0
    %5619 = vmatprep.subr.mxu0 0.0
    %5620 = vmatpush1.msra.mxu0 0.0
    %5621 = vmatprep.subr.mxu0 0.0
    %5622 = vmatpush1.msra.mxu0 0.0
    %5623 = vmatprep.subr.mxu0 0.0
    %5624 = vmatpush1.msra.mxu0 0.0
    %5625 = vmatprep.subr.mxu0 0.0
    %5626 = vmatpush1.msra.mxu0 0.0
    %5627 = vmatprep.subr.mxu0 0.0
    %5628 = vmatpush1.msra.mxu0 0.0
    %5629 = vmatprep.subr.mxu0 0.0
    %5630 = vmatpush1.msra.mxu0 0.0
    %5631 = vmatprep.subr.mxu0 0.0
    %5632 = vmatpush1.msra.mxu0 0.0
    %5633 = vmatprep.subr.mxu0 0.0
    %5634 = vmatpush1.msra.mxu0 0.0
    %5635 = vmatprep.subr.mxu0 0.0
    %5636 = vmatpush1.msra.mxu0 0.0
    %5637 = vmatprep.subr.mxu0 0.0
    %5638 = vmatpush1.msra.mxu0 0.0
    %5639 = vmatprep.subr.mxu0 0.0
    %5640 = vmatpush1.msra.mxu0 0.0
    %5641 = vmatprep.subr.mxu0 0.0
    %5642 = vmatpush1.msra.mxu0 0.0
    %5643 = vmatprep.subr.mxu0 0.0
    %5644 = vmatpush1.msra.mxu0 0.0
    %5645 = vmatprep.mubr.f32.mxu0 0.0
    %5646 = vmatmul.mubr.f32.gmra.mrb[0].mxu0 %v5579
    %v5647 = vpop.f32.mrb[0].mxu0
    %v5648 = vadd.f32 0.0, %v5647
    %v5649 = vpop.f32.mrb[0].mxu0
    %5650 = vdwg.mxu0
    %v5651 = vadd.f32 %v5577, %v5648
    %v5652 = vrot.slane %v4836, 6
    %v5653 = vsel %vm1008, %v5652, 0
    %5655 = vmatprep.subr.mxu0 0.0
    %5656 = vmatpush1.msra.mxu0 %v1914
    %5657 = vmatprep.subr.mxu0 0.0
    %5658 = vmatpush1.msra.mxu0 %v1915
    %5659 = vmatprep.subr.mxu0 0.0
    %5660 = vmatpush1.msra.mxu0 %v1916
    %5661 = vmatprep.subr.mxu0 0.0
    %5662 = vmatpush1.msra.mxu0 %v1917
    %5663 = vmatprep.subr.mxu0 0.0
    %5664 = vmatpush1.msra.mxu0 %v1918
    %5665 = vmatprep.subr.mxu0 0.0
    %5666 = vmatpush1.msra.mxu0 %v1919
    %5667 = vmatprep.subr.mxu0 0.0
    %5668 = vmatpush1.msra.mxu0 %v1920
    %5669 = vmatprep.subr.mxu0 0.0
    %5670 = vmatpush1.msra.mxu0 %v1921
    %5671 = vmatprep.subr.mxu0 0.0
    %5672 = vmatpush1.msra.mxu0 0.0
    %5673 = vmatprep.subr.mxu0 0.0
    %5674 = vmatpush1.msra.mxu0 0.0
    %5675 = vmatprep.subr.mxu0 0.0
    %5676 = vmatpush1.msra.mxu0 0.0
    %5677 = vmatprep.subr.mxu0 0.0
    %5678 = vmatpush1.msra.mxu0 0.0
    %5679 = vmatprep.subr.mxu0 0.0
    %5680 = vmatpush1.msra.mxu0 0.0
    %5681 = vmatprep.subr.mxu0 0.0
    %5682 = vmatpush1.msra.mxu0 0.0
    %5683 = vmatprep.subr.mxu0 0.0
    %5684 = vmatpush1.msra.mxu0 0.0
    %5685 = vmatprep.subr.mxu0 0.0
    %5686 = vmatpush1.msra.mxu0 0.0
    %5687 = vmatprep.subr.mxu0 0.0
    %5688 = vmatpush1.msra.mxu0 0.0
    %5689 = vmatprep.subr.mxu0 0.0
    %5690 = vmatpush1.msra.mxu0 0.0
    %5691 = vmatprep.subr.mxu0 0.0
    %5692 = vmatpush1.msra.mxu0 0.0
    %5693 = vmatprep.subr.mxu0 0.0
    %5694 = vmatpush1.msra.mxu0 0.0
    %5695 = vmatprep.subr.mxu0 0.0
    %5696 = vmatpush1.msra.mxu0 0.0
    %5697 = vmatprep.subr.mxu0 0.0
    %5698 = vmatpush1.msra.mxu0 0.0
    %5699 = vmatprep.subr.mxu0 0.0
    %5700 = vmatpush1.msra.mxu0 0.0
    %5701 = vmatprep.subr.mxu0 0.0
    %5702 = vmatpush1.msra.mxu0 0.0
    %5703 = vmatprep.subr.mxu0 0.0
    %5704 = vmatpush1.msra.mxu0 0.0
    %5705 = vmatprep.subr.mxu0 0.0
    %5706 = vmatpush1.msra.mxu0 0.0
    %5707 = vmatprep.subr.mxu0 0.0
    %5708 = vmatpush1.msra.mxu0 0.0
    %5709 = vmatprep.subr.mxu0 0.0
    %5710 = vmatpush1.msra.mxu0 0.0
    %5711 = vmatprep.subr.mxu0 0.0
    %5712 = vmatpush1.msra.mxu0 0.0
    %5713 = vmatprep.subr.mxu0 0.0
    %5714 = vmatpush1.msra.mxu0 0.0
    %5715 = vmatprep.subr.mxu0 0.0
    %5716 = vmatpush1.msra.mxu0 0.0
    %5717 = vmatprep.subr.mxu0 0.0
    %5718 = vmatpush1.msra.mxu0 0.0
    %5719 = vmatprep.mubr.f32.mxu0 0.0
    %5720 = vmatmul.mubr.f32.gmra.mrb[0].mxu0 %v5653
    %v5721 = vpop.f32.mrb[0].mxu0
    %v5722 = vadd.f32 0.0, %v5721
    %v5723 = vpop.f32.mrb[0].mxu0
    %5724 = vdwg.mxu0
    %v5725 = vadd.f32 %v5651, %v5722
    %v5727 = vsel %vm1008, %v4837, 0
    %5729 = vmatprep.subr.mxu0 0.0
    %5730 = vmatpush1.msra.mxu0 %v1997
    %5731 = vmatprep.subr.mxu0 0.0
    %5732 = vmatpush1.msra.mxu0 %v1998
    %5733 = vmatprep.subr.mxu0 0.0
    %5734 = vmatpush1.msra.mxu0 %v1999
    %5735 = vmatprep.subr.mxu0 0.0
    %5736 = vmatpush1.msra.mxu0 %v2000
    %5737 = vmatprep.subr.mxu0 0.0
    %5738 = vmatpush1.msra.mxu0 %v2001
    %5739 = vmatprep.subr.mxu0 0.0
    %5740 = vmatpush1.msra.mxu0 %v2002
    %5741 = vmatprep.subr.mxu0 0.0
    %5742 = vmatpush1.msra.mxu0 %v2003
    %5743 = vmatprep.subr.mxu0 0.0
    %5744 = vmatpush1.msra.mxu0 %v2004
    %5745 = vmatprep.subr.mxu0 0.0
    %5746 = vmatpush1.msra.mxu0 0.0
    %5747 = vmatprep.subr.mxu0 0.0
    %5748 = vmatpush1.msra.mxu0 0.0
    %5749 = vmatprep.subr.mxu0 0.0
    %5750 = vmatpush1.msra.mxu0 0.0
    %5751 = vmatprep.subr.mxu0 0.0
    %5752 = vmatpush1.msra.mxu0 0.0
    %5753 = vmatprep.subr.mxu0 0.0
    %5754 = vmatpush1.msra.mxu0 0.0
    %5755 = vmatprep.subr.mxu0 0.0
    %5756 = vmatpush1.msra.mxu0 0.0
    %5757 = vmatprep.subr.mxu0 0.0
    %5758 = vmatpush1.msra.mxu0 0.0
    %5759 = vmatprep.subr.mxu0 0.0
    %5760 = vmatpush1.msra.mxu0 0.0
    %5761 = vmatprep.subr.mxu0 0.0
    %5762 = vmatpush1.msra.mxu0 0.0
    %5763 = vmatprep.subr.mxu0 0.0
    %5764 = vmatpush1.msra.mxu0 0.0
    %5765 = vmatprep.subr.mxu0 0.0
    %5766 = vmatpush1.msra.mxu0 0.0
    %5767 = vmatprep.subr.mxu0 0.0
    %5768 = vmatpush1.msra.mxu0 0.0
    %5769 = vmatprep.subr.mxu0 0.0
    %5770 = vmatpush1.msra.mxu0 0.0
    %5771 = vmatprep.subr.mxu0 0.0
    %5772 = vmatpush1.msra.mxu0 0.0
    %5773 = vmatprep.subr.mxu0 0.0
    %5774 = vmatpush1.msra.mxu0 0.0
    %5775 = vmatprep.subr.mxu0 0.0
    %5776 = vmatpush1.msra.mxu0 0.0
    %5777 = vmatprep.subr.mxu0 0.0
    %5778 = vmatpush1.msra.mxu0 0.0
    %5779 = vmatprep.subr.mxu0 0.0
    %5780 = vmatpush1.msra.mxu0 0.0
    %5781 = vmatprep.subr.mxu0 0.0
    %5782 = vmatpush1.msra.mxu0 0.0
    %5783 = vmatprep.subr.mxu0 0.0
    %5784 = vmatpush1.msra.mxu0 0.0
    %5785 = vmatprep.subr.mxu0 0.0
    %5786 = vmatpush1.msra.mxu0 0.0
    %5787 = vmatprep.subr.mxu0 0.0
    %5788 = vmatpush1.msra.mxu0 0.0
    %5789 = vmatprep.subr.mxu0 0.0
    %5790 = vmatpush1.msra.mxu0 0.0
    %5791 = vmatprep.subr.mxu0 0.0
    %5792 = vmatpush1.msra.mxu0 0.0
    %5793 = vmatprep.mubr.f32.mxu0 0.0
    %5794 = vmatmul.mubr.f32.gmra.mrb[0].mxu0 %v5727
    %v5795 = vpop.f32.mrb[0].mxu0
    %v5796 = vadd.f32 0.0, %v5795
    %v5797 = vpop.f32.mrb[0].mxu0
    %5798 = vdwg.mxu0
    %v5799 = vadd.f32 %v5725, %v5796
    %v5800 = vrot.slane %v4837, 2
    %v5801 = vsel %vm1008, %v5800, 0
    %5803 = vmatprep.subr.mxu0 0.0
    %5804 = vmatpush1.msra.mxu0 %v2080
    %5805 = vmatprep.subr.mxu0 0.0
    %5806 = vmatpush1.msra.mxu0 %v2081
    %5807 = vmatprep.subr.mxu0 0.0
    %5808 = vmatpush1.msra.mxu0 %v2082
    %5809 = vmatprep.subr.mxu0 0.0
    %5810 = vmatpush1.msra.mxu0 %v2083
    %5811 = vmatprep.subr.mxu0 0.0
    %5812 = vmatpush1.msra.mxu0 %v2084
    %5813 = vmatprep.subr.mxu0 0.0
    %5814 = vmatpush1.msra.mxu0 %v2085
    %5815 = vmatprep.subr.mxu0 0.0
    %5816 = vmatpush1.msra.mxu0 %v2086
    %5817 = vmatprep.subr.mxu0 0.0
    %5818 = vmatpush1.msra.mxu0 %v2087
    %5819 = vmatprep.subr.mxu0 0.0
    %5820 = vmatpush1.msra.mxu0 0.0
    %5821 = vmatprep.subr.mxu0 0.0
    %5822 = vmatpush1.msra.mxu0 0.0
    %5823 = vmatprep.subr.mxu0 0.0
    %5824 = vmatpush1.msra.mxu0 0.0
    %5825 = vmatprep.subr.mxu0 0.0
    %5826 = vmatpush1.msra.mxu0 0.0
    %5827 = vmatprep.subr.mxu0 0.0
    %5828 = vmatpush1.msra.mxu0 0.0
    %5829 = vmatprep.subr.mxu0 0.0
    %5830 = vmatpush1.msra.mxu0 0.0
    %5831 = vmatprep.subr.mxu0 0.0
    %5832 = vmatpush1.msra.mxu0 0.0
    %5833 = vmatprep.subr.mxu0 0.0
    %5834 = vmatpush1.msra.mxu0 0.0
    %5835 = vmatprep.subr.mxu0 0.0
    %5836 = vmatpush1.msra.mxu0 0.0
    %5837 = vmatprep.subr.mxu0 0.0
    %5838 = vmatpush1.msra.mxu0 0.0
    %5839 = vmatprep.subr.mxu0 0.0
    %5840 = vmatpush1.msra.mxu0 0.0
    %5841 = vmatprep.subr.mxu0 0.0
    %5842 = vmatpush1.msra.mxu0 0.0
    %5843 = vmatprep.subr.mxu0 0.0
    %5844 = vmatpush1.msra.mxu0 0.0
    %5845 = vmatprep.subr.mxu0 0.0
    %5846 = vmatpush1.msra.mxu0 0.0
    %5847 = vmatprep.subr.mxu0 0.0
    %5848 = vmatpush1.msra.mxu0 0.0
    %5849 = vmatprep.subr.mxu0 0.0
    %5850 = vmatpush1.msra.mxu0 0.0
    %5851 = vmatprep.subr.mxu0 0.0
    %5852 = vmatpush1.msra.mxu0 0.0
    %5853 = vmatprep.subr.mxu0 0.0
    %5854 = vmatpush1.msra.mxu0 0.0
    %5855 = vmatprep.subr.mxu0 0.0
    %5856 = vmatpush1.msra.mxu0 0.0
    %5857 = vmatprep.subr.mxu0 0.0
    %5858 = vmatpush1.msra.mxu0 0.0
    %5859 = vmatprep.subr.mxu0 0.0
    %5860 = vmatpush1.msra.mxu0 0.0
    %5861 = vmatprep.subr.mxu0 0.0
    %5862 = vmatpush1.msra.mxu0 0.0
    %5863 = vmatprep.subr.mxu0 0.0
    %5864 = vmatpush1.msra.mxu0 0.0
    %5865 = vmatprep.subr.mxu0 0.0
    %5866 = vmatpush1.msra.mxu0 0.0
    %5867 = vmatprep.mubr.f32.mxu0 0.0
    %5868 = vmatmul.mubr.f32.gmra.mrb[0].mxu0 %v5801
    %v5869 = vpop.f32.mrb[0].mxu0
    %v5870 = vadd.f32 0.0, %v5869
    %v5871 = vpop.f32.mrb[0].mxu0
    %5872 = vdwg.mxu0
    %v5873 = vadd.f32 %v5799, %v5870
    %v5874 = vrot.slane %v4837, 4
    %v5875 = vsel %vm1008, %v5874, 0
    %5877 = vmatprep.subr.mxu0 0.0
    %5878 = vmatpush1.msra.mxu0 %v2163
    %5879 = vmatprep.subr.mxu0 0.0
    %5880 = vmatpush1.msra.mxu0 %v2164
    %5881 = vmatprep.subr.mxu0 0.0
    %5882 = vmatpush1.msra.mxu0 %v2165
    %5883 = vmatprep.subr.mxu0 0.0
    %5884 = vmatpush1.msra.mxu0 %v2166
    %5885 = vmatprep.subr.mxu0 0.0
    %5886 = vmatpush1.msra.mxu0 %v2167
    %5887 = vmatprep.subr.mxu0 0.0
    %5888 = vmatpush1.msra.mxu0 %v2168
    %5889 = vmatprep.subr.mxu0 0.0
    %5890 = vmatpush1.msra.mxu0 %v2169
    %5891 = vmatprep.subr.mxu0 0.0
    %5892 = vmatpush1.msra.mxu0 %v2170
    %5893 = vmatprep.subr.mxu0 0.0
    %5894 = vmatpush1.msra.mxu0 0.0
    %5895 = vmatprep.subr.mxu0 0.0
    %5896 = vmatpush1.msra.mxu0 0.0
    %5897 = vmatprep.subr.mxu0 0.0
    %5898 = vmatpush1.msra.mxu0 0.0
    %5899 = vmatprep.subr.mxu0 0.0
    %5900 = vmatpush1.msra.mxu0 0.0
    %5901 = vmatprep.subr.mxu0 0.0
    %5902 = vmatpush1.msra.mxu0 0.0
    %5903 = vmatprep.subr.mxu0 0.0
    %5904 = vmatpush1.msra.mxu0 0.0
    %5905 = vmatprep.subr.mxu0 0.0
    %5906 = vmatpush1.msra.mxu0 0.0
    %5907 = vmatprep.subr.mxu0 0.0
    %5908 = vmatpush1.msra.mxu0 0.0
    %5909 = vmatprep.subr.mxu0 0.0
    %5910 = vmatpush1.msra.mxu0 0.0
    %5911 = vmatprep.subr.mxu0 0.0
    %5912 = vmatpush1.msra.mxu0 0.0
    %5913 = vmatprep.subr.mxu0 0.0
    %5914 = vmatpush1.msra.mxu0 0.0
    %5915 = vmatprep.subr.mxu0 0.0
    %5916 = vmatpush1.msra.mxu0 0.0
    %5917 = vmatprep.subr.mxu0 0.0
    %5918 = vmatpush1.msra.mxu0 0.0
    %5919 = vmatprep.subr.mxu0 0.0
    %5920 = vmatpush1.msra.mxu0 0.0
    %5921 = vmatprep.subr.mxu0 0.0
    %5922 = vmatpush1.msra.mxu0 0.0
    %5923 = vmatprep.subr.mxu0 0.0
    %5924 = vmatpush1.msra.mxu0 0.0
    %5925 = vmatprep.subr.mxu0 0.0
    %5926 = vmatpush1.msra.mxu0 0.0
    %5927 = vmatprep.subr.mxu0 0.0
    %5928 = vmatpush1.msra.mxu0 0.0
    %5929 = vmatprep.subr.mxu0 0.0
    %5930 = vmatpush1.msra.mxu0 0.0
    %5931 = vmatprep.subr.mxu0 0.0
    %5932 = vmatpush1.msra.mxu0 0.0
    %5933 = vmatprep.subr.mxu0 0.0
    %5934 = vmatpush1.msra.mxu0 0.0
    %5935 = vmatprep.subr.mxu0 0.0
    %5936 = vmatpush1.msra.mxu0 0.0
    %5937 = vmatprep.subr.mxu0 0.0
    %5938 = vmatpush1.msra.mxu0 0.0
    %5939 = vmatprep.subr.mxu0 0.0
    %5940 = vmatpush1.msra.mxu0 0.0
    %5941 = vmatprep.mubr.f32.mxu0 0.0
    %5942 = vmatmul.mubr.f32.gmra.mrb[0].mxu0 %v5875
    %v5943 = vpop.f32.mrb[0].mxu0
    %v5944 = vadd.f32 0.0, %v5943
    %v5945 = vpop.f32.mrb[0].mxu0
    %5946 = vdwg.mxu0
    %v5947 = vadd.f32 %v5873, %v5944
    %v5948 = vrot.slane %v4837, 6
    %v5949 = vsel %vm1008, %v5948, 0
    %5951 = vmatprep.subr.mxu0 0.0
    %5952 = vmatpush1.msra.mxu0 %v2246
    %5953 = vmatprep.subr.mxu0 0.0
    %5954 = vmatpush1.msra.mxu0 %v2247
    %5955 = vmatprep.subr.mxu0 0.0
    %5956 = vmatpush1.msra.mxu0 %v2248
    %5957 = vmatprep.subr.mxu0 0.0
    %5958 = vmatpush1.msra.mxu0 %v2249
    %5959 = vmatprep.subr.mxu0 0.0
    %5960 = vmatpush1.msra.mxu0 %v2250
    %5961 = vmatprep.subr.mxu0 0.0
    %5962 = vmatpush1.msra.mxu0 %v2251
    %5963 = vmatprep.subr.mxu0 0.0
    %5964 = vmatpush1.msra.mxu0 %v2252
    %5965 = vmatprep.subr.mxu0 0.0
    %5966 = vmatpush1.msra.mxu0 %v2253
    %5967 = vmatprep.subr.mxu0 0.0
    %5968 = vmatpush1.msra.mxu0 0.0
    %5969 = vmatprep.subr.mxu0 0.0
    %5970 = vmatpush1.msra.mxu0 0.0
    %5971 = vmatprep.subr.mxu0 0.0
    %5972 = vmatpush1.msra.mxu0 0.0
    %5973 = vmatprep.subr.mxu0 0.0
    %5974 = vmatpush1.msra.mxu0 0.0
    %5975 = vmatprep.subr.mxu0 0.0
    %5976 = vmatpush1.msra.mxu0 0.0
    %5977 = vmatprep.subr.mxu0 0.0
    %5978 = vmatpush1.msra.mxu0 0.0
    %5979 = vmatprep.subr.mxu0 0.0
    %5980 = vmatpush1.msra.mxu0 0.0
    %5981 = vmatprep.subr.mxu0 0.0
    %5982 = vmatpush1.msra.mxu0 0.0
    %5983 = vmatprep.subr.mxu0 0.0
    %5984 = vmatpush1.msra.mxu0 0.0
    %5985 = vmatprep.subr.mxu0 0.0
    %5986 = vmatpush1.msra.mxu0 0.0
    %5987 = vmatprep.subr.mxu0 0.0
    %5988 = vmatpush1.msra.mxu0 0.0
    %5989 = vmatprep.subr.mxu0 0.0
    %5990 = vmatpush1.msra.mxu0 0.0
    %5991 = vmatprep.subr.mxu0 0.0
    %5992 = vmatpush1.msra.mxu0 0.0
    %5993 = vmatprep.subr.mxu0 0.0
    %5994 = vmatpush1.msra.mxu0 0.0
    %5995 = vmatprep.subr.mxu0 0.0
    %5996 = vmatpush1.msra.mxu0 0.0
    %5997 = vmatprep.subr.mxu0 0.0
    %5998 = vmatpush1.msra.mxu0 0.0
    %5999 = vmatprep.subr.mxu0 0.0
    %6000 = vmatpush1.msra.mxu0 0.0
    %6001 = vmatprep.subr.mxu0 0.0
    %6002 = vmatpush1.msra.mxu0 0.0
    %6003 = vmatprep.subr.mxu0 0.0
    %6004 = vmatpush1.msra.mxu0 0.0
    %6005 = vmatprep.subr.mxu0 0.0
    %6006 = vmatpush1.msra.mxu0 0.0
    %6007 = vmatprep.subr.mxu0 0.0
    %6008 = vmatpush1.msra.mxu0 0.0
    %6009 = vmatprep.subr.mxu0 0.0
    %6010 = vmatpush1.msra.mxu0 0.0
    %6011 = vmatprep.subr.mxu0 0.0
    %6012 = vmatpush1.msra.mxu0 0.0
    %6013 = vmatprep.subr.mxu0 0.0
    %6014 = vmatpush1.msra.mxu0 0.0
    %6015 = vmatprep.mubr.f32.mxu0 0.0
    %6016 = vmatmul.mubr.f32.gmra.mrb[0].mxu0 %v5949
    %v6017 = vpop.f32.mrb[0].mxu0
    %v6018 = vadd.f32 0.0, %v6017
    %v6019 = vpop.f32.mrb[0].mxu0
    %6020 = vdwg.mxu0
    %v6021 = vadd.f32 %v5947, %v6018
    %v6022 = vsub.f32 1.0, %v4181
    %v6023 = vmul.f32 %v6022, 0.2
    %v6024 = vmul.f32 %v4178, %v6023
    %v6025 = vadd.f32 %v6024, %v6021
    %vm6026 = vcmp.gt.f32.partialorder %v6025, 0.5
    %v6027 = vsel %vm6026, 1, 0
    %v6028 = vcvt.s32.f32 %v6027
    %v6030 = vsel %vm794, %v6028, 0
    %6032 = vmatprep.subr.mxu0 0.0
    %6033 = vmatpush1.msra.mxu0 %v232
    %6034 = vmatprep.subr.mxu0 0.0
    %6035 = vmatpush1.msra.mxu0 %v233
    %6036 = vmatprep.subr.mxu0 0.0
    %6037 = vmatpush1.msra.mxu0 %v234
    %6038 = vmatprep.subr.mxu0 0.0
    %6039 = vmatpush1.msra.mxu0 %v235
    %6040 = vmatprep.subr.mxu0 0.0
    %6041 = vmatpush1.msra.mxu0 0.0
    %6042 = vmatprep.subr.mxu0 0.0
    %6043 = vmatpush1.msra.mxu0 0.0
    %6044 = vmatprep.subr.mxu0 0.0
    %6045 = vmatpush1.msra.mxu0 0.0
    %6046 = vmatprep.subr.mxu0 0.0
    %6047 = vmatpush1.msra.mxu0 0.0
    %6048 = vmatprep.subr.mxu0 0.0
    %6049 = vmatpush1.msra.mxu0 0.0
    %6050 = vmatprep.subr.mxu0 0.0
    %6051 = vmatpush1.msra.mxu0 0.0
    %6052 = vmatprep.subr.mxu0 0.0
    %6053 = vmatpush1.msra.mxu0 0.0
    %6054 = vmatprep.subr.mxu0 0.0
    %6055 = vmatpush1.msra.mxu0 0.0
    %6056 = vmatprep.subr.mxu0 0.0
    %6057 = vmatpush1.msra.mxu0 0.0
    %6058 = vmatprep.subr.mxu0 0.0
    %6059 = vmatpush1.msra.mxu0 0.0
    %6060 = vmatprep.subr.mxu0 0.0
    %6061 = vmatpush1.msra.mxu0 0.0
    %6062 = vmatprep.subr.mxu0 0.0
    %6063 = vmatpush1.msra.mxu0 0.0
    %6064 = vmatprep.subr.mxu0 0.0
    %6065 = vmatpush1.msra.mxu0 0.0
    %6066 = vmatprep.subr.mxu0 0.0
    %6067 = vmatpush1.msra.mxu0 0.0
    %6068 = vmatprep.subr.mxu0 0.0
    %6069 = vmatpush1.msra.mxu0 0.0
    %6070 = vmatprep.subr.mxu0 0.0
    %6071 = vmatpush1.msra.mxu0 0.0
    %6072 = vmatprep.subr.mxu0 0.0
    %6073 = vmatpush1.msra.mxu0 0.0
    %6074 = vmatprep.subr.mxu0 0.0
    %6075 = vmatpush1.msra.mxu0 0.0
    %6076 = vmatprep.subr.mxu0 0.0
    %6077 = vmatpush1.msra.mxu0 0.0
    %6078 = vmatprep.subr.mxu0 0.0
    %6079 = vmatpush1.msra.mxu0 0.0
    %6080 = vmatprep.subr.mxu0 0.0
    %6081 = vmatpush1.msra.mxu0 0.0
    %6082 = vmatprep.subr.mxu0 0.0
    %6083 = vmatpush1.msra.mxu0 0.0
    %6084 = vmatprep.subr.mxu0 0.0
    %6085 = vmatpush1.msra.mxu0 0.0
    %6086 = vmatprep.subr.mxu0 0.0
    %6087 = vmatpush1.msra.mxu0 0.0
    %6088 = vmatprep.subr.mxu0 0.0
    %6089 = vmatpush1.msra.mxu0 0.0
    %6090 = vmatprep.subr.mxu0 0.0
    %6091 = vmatpush1.msra.mxu0 0.0
    %6092 = vmatprep.subr.mxu0 0.0
    %6093 = vmatpush1.msra.mxu0 0.0
    %6094 = vmatprep.subr.mxu0 0.0
    %6095 = vmatpush1.msra.mxu0 0.0
    %6096 = vmatprep.mubr.f32.mxu0 0.0
    %6097 = vmatmul.mubr.f32.gmra.mrb[0].mxu0 %v6030
    %v6098 = vpop.f32.mrb[0].mxu0
    %v6099 = vadd.f32 %v2336, %v6098
    %v6100 = vpop.f32.mrb[0].mxu0
    %6101 = vdwg.mxu0
    %v6102 = vsub.f32 1.0, %v4261
    %v6103 = vmul.f32 %v6102, 0.2
    %v6104 = vmul.f32 %v4258, %v6103
    %v6105 = vadd.f32 %v6104, %v6099
    %vm6106 = vcmp.gt.f32.partialorder %v6105, 0.5
    %v6107 = vsel %vm6106, 1, 0
    %v6108 = vcvt.s32.f32 %v6107
    %v6109 = vadd.f32 %v4262, %v6108
    %v6110 = vsub.f32 1.0, %v4311
    %v6111 = vsub.f32 1.0, %v4312
    %v6112 = vsub.f32 1.0, %v4313
    %v6113 = vsub.f32 1.0, %v4314
    %v6114 = vsub.f32 1.0, %v4315
    %v6115 = vsub.f32 1.0, %v4316
    %v6116 = vsub.f32 1.0, %v4317
    %v6117 = vsub.f32 1.0, %v4318
    %v6118 = vmul.f32 %v6110, 0.2
    %v6119 = vmul.f32 %v6111, 0.2
    %v6120 = vmul.f32 %v6112, 0.2
    %v6121 = vmul.f32 %v6113, 0.2
    %v6122 = vmul.f32 %v6114, 0.2
    %v6123 = vmul.f32 %v6115, 0.2
    %v6124 = vmul.f32 %v6116, 0.2
    %v6125 = vmul.f32 %v6117, 0.2
    %v6126 = vmul.f32 %v4287, %v6118
    %v6127 = vmul.f32 %v4288, %v6119
    %v6128 = vmul.f32 %v4289, %v6120
    %v6129 = vmul.f32 %v4290, %v6121
    %v6130 = vmul.f32 %v4291, %v6122
    %v6131 = vmul.f32 %v4292, %v6123
    %v6132 = vmul.f32 %v4293, %v6124
    %v6133 = vmul.f32 %v4294, %v6125
    %v6134 = vadd.f32 %v6126, %v161
    %v6135 = vadd.f32 %v6127, %v163
    %v6136 = vadd.f32 %v6128, %v167
    %v6137 = vadd.f32 %v6129, %v169
    %v6138 = vadd.f32 %v6130, %v173
    %v6139 = vadd.f32 %v6131, %v175
    %v6140 = vadd.f32 %v6132, %v179
    %v6141 = vadd.f32 %v6133, %v181
    %vm6142 = vcmp.gt.f32.partialorder %v6134, 0.5
    %vm6143 = vcmp.gt.f32.partialorder %v6135, 0.5
    %vm6144 = vcmp.gt.f32.partialorder %v6136, 0.5
    %vm6145 = vcmp.gt.f32.partialorder %v6137, 0.5
    %vm6146 = vcmp.gt.f32.partialorder %v6138, 0.5
    %vm6147 = vcmp.gt.f32.partialorder %v6139, 0.5
    %vm6148 = vcmp.gt.f32.partialorder %v6140, 0.5
    %vm6149 = vcmp.gt.f32.partialorder %v6141, 0.5
    %v6150 = vsel %vm6142, 1, 0
    %v6151 = vsel %vm6143, 1, 0
    %v6152 = vsel %vm6144, 1, 0
    %v6153 = vsel %vm6145, 1, 0
    %v6154 = vsel %vm6146, 1, 0
    %v6155 = vsel %vm6147, 1, 0
    %v6156 = vsel %vm6148, 1, 0
    %v6157 = vsel %vm6149, 1, 0
    %v6158 = vcvt.s32.f32 %v6150
    %v6159 = vcvt.s32.f32 %v6151
    %v6160 = vcvt.s32.f32 %v6152
    %v6161 = vcvt.s32.f32 %v6153
    %v6162 = vcvt.s32.f32 %v6154
    %v6163 = vcvt.s32.f32 %v6155
    %v6164 = vcvt.s32.f32 %v6156
    %v6165 = vcvt.s32.f32 %v6157
    %v6166 = vpack.c.bf16 %v6160, %v6158
    %v6167 = vpack.c.bf16 %v6161, %v6159
    %v6168 = vpack.c.bf16 %v6164, %v6162
    %v6169 = vpack.c.bf16 %v6165, %v6163
    %6170 = vmatprep.subr.bf16.mxu0 0
    %6171 = vmatpush1.bf16.msra.mxu0 %v337
    %6172 = vmatprep.subr.bf16.mxu0 0
    %6173 = vmatpush1.bf16.msra.mxu0 %v338
    %6174 = vmatprep.subr.bf16.mxu0 0
    %6175 = vmatpush1.bf16.msra.mxu0 %v339
    %6176 = vmatprep.subr.bf16.mxu0 0
    %6177 = vmatpush1.bf16.msra.mxu0 %v340
    %6178 = vmatprep.subr.bf16.mxu0 0
    %6179 = vmatpush1.bf16.msra.mxu0 %v341
    %6180 = vmatprep.subr.bf16.mxu0 0
    %6181 = vmatpush1.bf16.msra.mxu0 %v342
    %6182 = vmatprep.subr.bf16.mxu0 0
    %6183 = vmatpush1.bf16.msra.mxu0 %v343
    %6184 = vmatprep.subr.bf16.mxu0 0
    %6185 = vmatpush1.bf16.msra.mxu0 %v344
    %6186 = vmatprep.subr.bf16.mxu0 0
    %6187 = vmatpush1.bf16.msra.mxu0 %v345
    %6188 = vmatprep.subr.bf16.mxu0 0
    %6189 = vmatpush1.bf16.msra.mxu0 %v346
    %6190 = vmatprep.subr.bf16.mxu0 0
    %6191 = vmatpush1.bf16.msra.mxu0 %v347
    %6192 = vmatprep.subr.bf16.mxu0 0
    %6193 = vmatpush1.bf16.msra.mxu0 %v348
    %6194 = vmatprep.subr.bf16.mxu0 0
    %6195 = vmatpush1.bf16.msra.mxu0 %v349
    %6196 = vmatprep.subr.bf16.mxu0 0
    %6197 = vmatpush1.bf16.msra.mxu0 %v350
    %6198 = vmatprep.subr.bf16.mxu0 0
    %6199 = vmatpush1.bf16.msra.mxu0 %v351
    %6200 = vmatprep.subr.bf16.mxu0 0
    %6201 = vmatpush1.bf16.msra.mxu0 %v352
    %6202 = vmatprep.mubr.bf16.mxu0 %v6167
    %6203 = vmatmul.mubr.bf16.gmra.mrb[0].mxu0 %v6166
    %v6204 = vpop.f32.mrb[0].mxu0
    %v6205 = vadd.f32 0.0, %v6204
    %v6206 = vpop.f32.mrb[0].mxu0
    %v6207 = vpop.f32.mrb[0].mxu0
    %v6208 = vadd.f32 0.0, %v6207
    %v6209 = vpop.f32.mrb[0].mxu0
    %6210 = vmatprep.mubr.bf16.mxu0 %v6169
    %6211 = vmatmul.mubr.bf16.gmra.mrb[0].mxu0 %v6168
    %v6212 = vpop.f32.mrb[0].mxu0
    %v6213 = vadd.f32 0.0, %v6212
    %v6214 = vpop.f32.mrb[0].mxu0
    %v6215 = vpop.f32.mrb[0].mxu0
    %v6216 = vadd.f32 0.0, %v6215
    %v6217 = vpop.f32.mrb[0].mxu0
    %6218 = vdwg.mxu0
    %6219 = vrot.lane.b32.xlu0 %v6205, 64
    %v6220 = vpop.permute.xlu0 %6219
    %v6221 = vsel %vm418, %v6220, %v6205
    %6222 = vrot.lane.b32.xlu0 %v6208, 64
    %v6223 = vpop.permute.xlu0 %6222
    %v6224 = vsel %vm418, %v6223, %v6208
    %6225 = vrot.lane.b32.xlu0 %v6213, 64
    %v6226 = vpop.permute.xlu0 %6225
    %v6227 = vsel %vm418, %v6226, %v6213
    %6228 = vrot.lane.b32.xlu0 %v6216, 64
    %v6229 = vpop.permute.xlu0 %6228
    %v6230 = vsel %vm418, %v6229, %v6216
    %6231 = vrot.lane.b32.xlu0 %v6221, 64
    %v6232 = vpop.permute.xlu0 %6231
    %6233 = vrot.lane.b32.xlu0 %v6224, 64
    %v6234 = vpop.permute.xlu0 %6233
    %6235 = vrot.lane.b32.xlu0 %v6227, 64
    %v6236 = vpop.permute.xlu0 %6235
    %6237 = vrot.lane.b32.xlu0 %v6230, 64
    %v6238 = vpop.permute.xlu0 %6237
    %v6239 = vsel %vm418, %v6232, %v6205
    %v6240 = vsel %vm418, %v6234, %v6208
    %v6241 = vsel %vm418, %v6236, %v6213
    %v6242 = vsel %vm418, %v6238, %v6216
    %v6243 = vmul.f32 %v6239, %v450
    %v6244 = vmul.f32 %v6240, %v450
    %v6245 = vmul.f32 %v6241, %v450
    %v6246 = vmul.f32 %v6242, %v450
    %v6247 = vmul.f32 %v6239, %v464
    %v6248 = vmul.f32 %v6240, %v464
    %v6249 = vmul.f32 %v6241, %v464
    %v6250 = vmul.f32 %v6242, %v464
    %v6251 = vmul.f32 %v6239, %v478
    %v6252 = vmul.f32 %v6240, %v478
    %v6253 = vmul.f32 %v6241, %v478
    %v6254 = vmul.f32 %v6242, %v478
    %v6255 = vmul.f32 %v6239, %v492
    %v6256 = vmul.f32 %v6240, %v492
    %v6257 = vmul.f32 %v6241, %v492
    %v6258 = vmul.f32 %v6242, %v492
    %v6259 = vmul.f32 %v6205, %v504
    %v6260 = vmul.f32 %v6208, %v504
    %v6261 = vmul.f32 %v6213, %v504
    %v6262 = vmul.f32 %v6216, %v504
    %v6263 = vmul.f32 %v6239, %v518
    %v6264 = vmul.f32 %v6240, %v518
    %v6265 = vmul.f32 %v6241, %v518
    %v6266 = vmul.f32 %v6242, %v518
    %v6267 = vmul.f32 %v6239, %v532
    %v6268 = vmul.f32 %v6240, %v532
    %v6269 = vmul.f32 %v6241, %v532
    %v6270 = vmul.f32 %v6242, %v532
    %v6271 = vmul.f32 %v6239, %v546
    %v6272 = vmul.f32 %v6240, %v546
    %v6273 = vmul.f32 %v6241, %v546
    %v6274 = vmul.f32 %v6242, %v546
    %v6275 = vmul.f32 %v6239, %v560
    %v6276 = vmul.f32 %v6240, %v560
    %v6277 = vmul.f32 %v6241, %v560
    %v6278 = vmul.f32 %v6242, %v560
    %6283 = vrot.lane.b32.xlu0 %v6247, 127
    %v6284 = vpop.permute.xlu0 %6283
    %6285 = vrot.lane.b32.xlu0 %v6248, 127
    %v6286 = vpop.permute.xlu0 %6285
    %6287 = vrot.lane.b32.xlu0 %v6249, 127
    %v6288 = vpop.permute.xlu0 %6287
    %6289 = vrot.lane.b32.xlu0 %v6250, 127
    %v6290 = vpop.permute.xlu0 %6289
    %6295 = vrot.lane.b32.xlu0 %v6251, 126
    %v6296 = vpop.permute.xlu0 %6295
    %6297 = vrot.lane.b32.xlu0 %v6252, 126
    %v6298 = vpop.permute.xlu0 %6297
    %6299 = vrot.lane.b32.xlu0 %v6253, 126
    %v6300 = vpop.permute.xlu0 %6299
    %6301 = vrot.lane.b32.xlu0 %v6254, 126
    %v6302 = vpop.permute.xlu0 %6301
    %6307 = vrot.lane.b32.xlu0 %v6255, 120
    %v6308 = vpop.permute.xlu0 %6307
    %6309 = vrot.lane.b32.xlu0 %v6256, 120
    %v6310 = vpop.permute.xlu0 %6309
    %6311 = vrot.lane.b32.xlu0 %v6257, 120
    %v6312 = vpop.permute.xlu0 %6311
    %6313 = vrot.lane.b32.xlu0 %v6258, 120
    %v6314 = vpop.permute.xlu0 %6313
    %6319 = vrot.lane.b32.xlu0 %v6259, 55
    %v6320 = vpop.permute.xlu0 %6319
    %6321 = vrot.lane.b32.xlu0 %v6260, 55
    %v6322 = vpop.permute.xlu0 %6321
    %6323 = vrot.lane.b32.xlu0 %v6261, 55
    %v6324 = vpop.permute.xlu0 %6323
    %6325 = vrot.lane.b32.xlu0 %v6262, 55
    %v6326 = vpop.permute.xlu0 %6325
    %6331 = vrot.lane.b32.xlu0 %v6263, 54
    %v6332 = vpop.permute.xlu0 %6331
    %6333 = vrot.lane.b32.xlu0 %v6264, 54
    %v6334 = vpop.permute.xlu0 %6333
    %6335 = vrot.lane.b32.xlu0 %v6265, 54
    %v6336 = vpop.permute.xlu0 %6335
    %6337 = vrot.lane.b32.xlu0 %v6266, 54
    %v6338 = vpop.permute.xlu0 %6337
    %6343 = vrot.lane.b32.xlu0 %v6267, 48
    %v6344 = vpop.permute.xlu0 %6343
    %6345 = vrot.lane.b32.xlu0 %v6268, 48
    %v6346 = vpop.permute.xlu0 %6345
    %6347 = vrot.lane.b32.xlu0 %v6269, 48
    %v6348 = vpop.permute.xlu0 %6347
    %6349 = vrot.lane.b32.xlu0 %v6270, 48
    %v6350 = vpop.permute.xlu0 %6349
    %6355 = vrot.lane.b32.xlu0 %v6271, 47
    %v6356 = vpop.permute.xlu0 %6355
    %6357 = vrot.lane.b32.xlu0 %v6272, 47
    %v6358 = vpop.permute.xlu0 %6357
    %6359 = vrot.lane.b32.xlu0 %v6273, 47
    %v6360 = vpop.permute.xlu0 %6359
    %6361 = vrot.lane.b32.xlu0 %v6274, 47
    %v6362 = vpop.permute.xlu0 %6361
    %6367 = vrot.lane.b32.xlu0 %v6275, 46
    %v6368 = vpop.permute.xlu0 %6367
    %6369 = vrot.lane.b32.xlu0 %v6276, 46
    %v6370 = vpop.permute.xlu0 %6369
    %6371 = vrot.lane.b32.xlu0 %v6277, 46
    %v6372 = vpop.permute.xlu0 %6371
    %6373 = vrot.lane.b32.xlu0 %v6278, 46
    %v6374 = vpop.permute.xlu0 %6373
    %6379 = vrot.lane.b32.xlu0 %v6243, 73
    %v6380 = vpop.permute.xlu0 %6379
    %6381 = vrot.lane.b32.xlu0 %v6244, 73
    %v6382 = vpop.permute.xlu0 %6381
    %6383 = vrot.lane.b32.xlu0 %v6245, 73
    %v6384 = vpop.permute.xlu0 %6383
    %6385 = vrot.lane.b32.xlu0 %v6246, 73
    %v6386 = vpop.permute.xlu0 %6385
    %6387 = vrot.lane.b32.xlu0 %v6284, 73
    %v6388 = vpop.permute.xlu0 %6387
    %6389 = vrot.lane.b32.xlu0 %v6286, 73
    %v6390 = vpop.permute.xlu0 %6389
    %6391 = vrot.lane.b32.xlu0 %v6288, 73
    %v6392 = vpop.permute.xlu0 %6391
    %6393 = vrot.lane.b32.xlu0 %v6290, 73
    %v6394 = vpop.permute.xlu0 %6393
    %6395 = vrot.lane.b32.xlu0 %v6296, 73
    %v6396 = vpop.permute.xlu0 %6395
    %6397 = vrot.lane.b32.xlu0 %v6298, 73
    %v6398 = vpop.permute.xlu0 %6397
    %6399 = vrot.lane.b32.xlu0 %v6300, 73
    %v6400 = vpop.permute.xlu0 %6399
    %6401 = vrot.lane.b32.xlu0 %v6302, 73
    %v6402 = vpop.permute.xlu0 %6401
    %6403 = vrot.lane.b32.xlu0 %v6308, 73
    %v6404 = vpop.permute.xlu0 %6403
    %6405 = vrot.lane.b32.xlu0 %v6310, 73
    %v6406 = vpop.permute.xlu0 %6405
    %6407 = vrot.lane.b32.xlu0 %v6312, 73
    %v6408 = vpop.permute.xlu0 %6407
    %6409 = vrot.lane.b32.xlu0 %v6314, 73
    %v6410 = vpop.permute.xlu0 %6409
    %6411 = vrot.lane.b32.xlu0 %v6320, 73
    %v6412 = vpop.permute.xlu0 %6411
    %6413 = vrot.lane.b32.xlu0 %v6322, 73
    %v6414 = vpop.permute.xlu0 %6413
    %6415 = vrot.lane.b32.xlu0 %v6324, 73
    %v6416 = vpop.permute.xlu0 %6415
    %6417 = vrot.lane.b32.xlu0 %v6326, 73
    %v6418 = vpop.permute.xlu0 %6417
    %6419 = vrot.lane.b32.xlu0 %v6332, 73
    %v6420 = vpop.permute.xlu0 %6419
    %6421 = vrot.lane.b32.xlu0 %v6334, 73
    %v6422 = vpop.permute.xlu0 %6421
    %6423 = vrot.lane.b32.xlu0 %v6336, 73
    %v6424 = vpop.permute.xlu0 %6423
    %6425 = vrot.lane.b32.xlu0 %v6338, 73
    %v6426 = vpop.permute.xlu0 %6425
    %6427 = vrot.lane.b32.xlu0 %v6344, 73
    %v6428 = vpop.permute.xlu0 %6427
    %6429 = vrot.lane.b32.xlu0 %v6346, 73
    %v6430 = vpop.permute.xlu0 %6429
    %6431 = vrot.lane.b32.xlu0 %v6348, 73
    %v6432 = vpop.permute.xlu0 %6431
    %6433 = vrot.lane.b32.xlu0 %v6350, 73
    %v6434 = vpop.permute.xlu0 %6433
    %6435 = vrot.lane.b32.xlu0 %v6356, 73
    %v6436 = vpop.permute.xlu0 %6435
    %6437 = vrot.lane.b32.xlu0 %v6358, 73
    %v6438 = vpop.permute.xlu0 %6437
    %6439 = vrot.lane.b32.xlu0 %v6360, 73
    %v6440 = vpop.permute.xlu0 %6439
    %6441 = vrot.lane.b32.xlu0 %v6362, 73
    %v6442 = vpop.permute.xlu0 %6441
    %6443 = vrot.lane.b32.xlu0 %v6368, 73
    %v6444 = vpop.permute.xlu0 %6443
    %6445 = vrot.lane.b32.xlu0 %v6370, 73
    %v6446 = vpop.permute.xlu0 %6445
    %6447 = vrot.lane.b32.xlu0 %v6372, 73
    %v6448 = vpop.permute.xlu0 %6447
    %6449 = vrot.lane.b32.xlu0 %v6374, 73
    %v6450 = vpop.permute.xlu0 %6449
    %6487 = vmatprep.subr.mxu0 0.0
    %6488 = vmatpush1.msra.mxu0 %v6380
    %6489 = vmatprep.subr.mxu0 0.0
    %6490 = vmatpush1.msra.mxu0 %v6382
    %6491 = vmatprep.subr.mxu0 0.0
    %6492 = vmatpush1.msra.mxu0 %v6384
    %6493 = vmatprep.subr.mxu0 0.0
    %6494 = vmatpush1.msra.mxu0 %v6386
    %6495 = vmatprep.subr.mxu0 0.0
    %6496 = vmatpush1.msra.mxu0 %v6388
    %6497 = vmatprep.subr.mxu0 0.0
    %6498 = vmatpush1.msra.mxu0 %v6390
    %6499 = vmatprep.subr.mxu0 0.0
    %6500 = vmatpush1.msra.mxu0 %v6392
    %6501 = vmatprep.subr.mxu0 0.0
    %6502 = vmatpush1.msra.mxu0 %v6394
    %6503 = vmatprep.subr.mxu0 0.0
    %6504 = vmatpush1.msra.mxu0 %v6396
    %6505 = vmatprep.subr.mxu0 0.0
    %6506 = vmatpush1.msra.mxu0 %v6398
    %6507 = vmatprep.subr.mxu0 0.0
    %6508 = vmatpush1.msra.mxu0 %v6400
    %6509 = vmatprep.subr.mxu0 0.0
    %6510 = vmatpush1.msra.mxu0 %v6402
    %6511 = vmatprep.subr.mxu0 0.0
    %6512 = vmatpush1.msra.mxu0 %v6404
    %6513 = vmatprep.subr.mxu0 0.0
    %6514 = vmatpush1.msra.mxu0 %v6406
    %6515 = vmatprep.subr.mxu0 0.0
    %6516 = vmatpush1.msra.mxu0 %v6408
    %6517 = vmatprep.subr.mxu0 0.0
    %6518 = vmatpush1.msra.mxu0 %v6410
    %6519 = vmatprep.subr.mxu0 0.0
    %6520 = vmatpush1.msra.mxu0 %v6412
    %6521 = vmatprep.subr.mxu0 0.0
    %6522 = vmatpush1.msra.mxu0 %v6414
    %6523 = vmatprep.subr.mxu0 0.0
    %6524 = vmatpush1.msra.mxu0 %v6416
    %6525 = vmatprep.subr.mxu0 0.0
    %6526 = vmatpush1.msra.mxu0 %v6418
    %6527 = vmatprep.subr.mxu0 0.0
    %6528 = vmatpush1.msra.mxu0 %v6420
    %6529 = vmatprep.subr.mxu0 0.0
    %6530 = vmatpush1.msra.mxu0 %v6422
    %6531 = vmatprep.subr.mxu0 0.0
    %6532 = vmatpush1.msra.mxu0 %v6424
    %6533 = vmatprep.subr.mxu0 0.0
    %6534 = vmatpush1.msra.mxu0 %v6426
    %6535 = vmatprep.subr.mxu0 0.0
    %6536 = vmatpush1.msra.mxu0 %v6428
    %6537 = vmatprep.subr.mxu0 0.0
    %6538 = vmatpush1.msra.mxu0 %v6430
    %6539 = vmatprep.subr.mxu0 0.0
    %6540 = vmatpush1.msra.mxu0 %v6432
    %6541 = vmatprep.subr.mxu0 0.0
    %6542 = vmatpush1.msra.mxu0 %v6434
    %6543 = vmatprep.subr.mxu0 0.0
    %6544 = vmatpush1.msra.mxu0 %v6436
    %6545 = vmatprep.subr.mxu0 0.0
    %6546 = vmatpush1.msra.mxu0 %v6438
    %6547 = vmatprep.subr.mxu0 0.0
    %6548 = vmatpush1.msra.mxu0 %v6440
    %6549 = vmatprep.subr.mxu0 0.0
    %6550 = vmatpush1.msra.mxu0 %v6442
    %6551 = vmatprep.mubr.f32.mxu0 %v216
    %6552 = vmatmul.mubr.f32.gmra.mrb[0].mxu0 %v215
    %v6553 = vpop.f32.mrb[0].mxu0
    %v6554 = vadd.f32 %v665, %v6553
    %v6555 = vpop.f32.mrb[0].mxu0
    %6556 = vmatprep.mubr.f32.mxu0 %v219
    %6557 = vmatmul.mubr.f32.gmra.mrb[0].mxu0 %v218
    %v6558 = vpop.f32.mrb[0].mxu0
    %v6559 = vadd.f32 %v670, %v6558
    %v6560 = vpop.f32.mrb[0].mxu0
    %6561 = vmatprep.mubr.f32.mxu0 %v222
    %6562 = vmatmul.mubr.f32.gmra.mrb[0].mxu0 %v221
    %v6563 = vpop.f32.mrb[0].mxu0
    %v6564 = vadd.f32 %v675, %v6563
    %v6565 = vpop.f32.mrb[0].mxu0
    %6566 = vmatprep.mubr.f32.mxu0 %v225
    %6567 = vmatmul.mubr.f32.gmra.mrb[0].mxu0 %v224
    %v6568 = vpop.f32.mrb[0].mxu0
    %v6569 = vadd.f32 %v680, %v6568
    %v6570 = vpop.f32.mrb[0].mxu0
    %6571 = vdwg.mxu0
    %6572 = vmatprep.subr.mxu0 0.0
    %6573 = vmatpush1.msra.mxu0 %v6444
    %6574 = vmatprep.subr.mxu0 0.0
    %6575 = vmatpush1.msra.mxu0 %v6446
    %6576 = vmatprep.subr.mxu0 0.0
    %6577 = vmatpush1.msra.mxu0 %v6448
    %6578 = vmatprep.subr.mxu0 0.0
    %6579 = vmatpush1.msra.mxu0 %v6450
    %6580 = vmatprep.subr.mxu0 0.0
    %6581 = vmatpush1.msra.mxu0 0.0
    %6582 = vmatprep.subr.mxu0 0.0
    %6583 = vmatpush1.msra.mxu0 0.0
    %6584 = vmatprep.subr.mxu0 0.0
    %6585 = vmatpush1.msra.mxu0 0.0
    %6586 = vmatprep.subr.mxu0 0.0
    %6587 = vmatpush1.msra.mxu0 0.0
    %6588 = vmatprep.subr.mxu0 0.0
    %6589 = vmatpush1.msra.mxu0 0.0
    %6590 = vmatprep.subr.mxu0 0.0
    %6591 = vmatpush1.msra.mxu0 0.0
    %6592 = vmatprep.subr.mxu0 0.0
    %6593 = vmatpush1.msra.mxu0 0.0
    %6594 = vmatprep.subr.mxu0 0.0
    %6595 = vmatpush1.msra.mxu0 0.0
    %6596 = vmatprep.subr.mxu0 0.0
    %6597 = vmatpush1.msra.mxu0 0.0
    %6598 = vmatprep.subr.mxu0 0.0
    %6599 = vmatpush1.msra.mxu0 0.0
    %6600 = vmatprep.subr.mxu0 0.0
    %6601 = vmatpush1.msra.mxu0 0.0
    %6602 = vmatprep.subr.mxu0 0.0
    %6603 = vmatpush1.msra.mxu0 0.0
    %6604 = vmatprep.subr.mxu0 0.0
    %6605 = vmatpush1.msra.mxu0 0.0
    %6606 = vmatprep.subr.mxu0 0.0
    %6607 = vmatpush1.msra.mxu0 0.0
    %6608 = vmatprep.subr.mxu0 0.0
    %6609 = vmatpush1.msra.mxu0 0.0
    %6610 = vmatprep.subr.mxu0 0.0
    %6611 = vmatpush1.msra.mxu0 0.0
    %6612 = vmatprep.subr.mxu0 0.0
    %6613 = vmatpush1.msra.mxu0 0.0
    %6614 = vmatprep.subr.mxu0 0.0
    %6615 = vmatpush1.msra.mxu0 0.0
    %6616 = vmatprep.subr.mxu0 0.0
    %6617 = vmatpush1.msra.mxu0 0.0
    %6618 = vmatprep.subr.mxu0 0.0
    %6619 = vmatpush1.msra.mxu0 0.0
    %6620 = vmatprep.subr.mxu0 0.0
    %6621 = vmatpush1.msra.mxu0 0.0
    %6622 = vmatprep.subr.mxu0 0.0
    %6623 = vmatpush1.msra.mxu0 0.0
    %6624 = vmatprep.subr.mxu0 0.0
    %6625 = vmatpush1.msra.mxu0 0.0
    %6626 = vmatprep.subr.mxu0 0.0
    %6627 = vmatpush1.msra.mxu0 0.0
    %6628 = vmatprep.subr.mxu0 0.0
    %6629 = vmatpush1.msra.mxu0 0.0
    %6630 = vmatprep.subr.mxu0 0.0
    %6631 = vmatpush1.msra.mxu0 0.0
    %6632 = vmatprep.subr.mxu0 0.0
    %6633 = vmatpush1.msra.mxu0 0.0
    %6634 = vmatprep.subr.mxu0 0.0
    %6635 = vmatpush1.msra.mxu0 0.0
    %6636 = vmatprep.mubr.f32.mxu0 0.0
    %6637 = vmatmul.mubr.f32.gmra.mrb[0].mxu0 %v796
    %v6638 = vpop.f32.mrb[0].mxu0
    %v6639 = vadd.f32 %v6554, %v6638
    %v6640 = vpop.f32.mrb[0].mxu0
    %6641 = vmatprep.mubr.f32.mxu0 0.0
    %6642 = vmatmul.mubr.f32.gmra.mrb[0].mxu0 %v799
    %v6643 = vpop.f32.mrb[0].mxu0
    %v6644 = vadd.f32 %v6559, %v6643
    %v6645 = vpop.f32.mrb[0].mxu0
    %6646 = vmatprep.mubr.f32.mxu0 0.0
    %6647 = vmatmul.mubr.f32.gmra.mrb[0].mxu0 %v802
    %v6648 = vpop.f32.mrb[0].mxu0
    %v6649 = vadd.f32 %v6564, %v6648
    %v6650 = vpop.f32.mrb[0].mxu0
    %6651 = vmatprep.mubr.f32.mxu0 0.0
    %6652 = vmatmul.mubr.f32.gmra.mrb[0].mxu0 %v805
    %v6653 = vpop.f32.mrb[0].mxu0
    %v6654 = vadd.f32 %v6569, %v6653
    %v6655 = vpop.f32.mrb[0].mxu0
    %6656 = vdwg.mxu0
    %v6657 = vsub.f32 1.0, %v4834
    %v6658 = vsub.f32 1.0, %v4835
    %v6659 = vsub.f32 1.0, %v4836
    %v6660 = vsub.f32 1.0, %v4837
    %v6661 = vmul.f32 %v6657, 0.2
    %v6662 = vmul.f32 %v6658, 0.2
    %v6663 = vmul.f32 %v6659, 0.2
    %v6664 = vmul.f32 %v6660, 0.2
    %v6665 = vmul.f32 %v4822, %v6661
    %v6666 = vmul.f32 %v4823, %v6662
    %v6667 = vmul.f32 %v4824, %v6663
    %v6668 = vmul.f32 %v4825, %v6664
    %v6669 = vadd.f32 %v6665, %v6639
    %v6670 = vadd.f32 %v6666, %v6644
    %v6671 = vadd.f32 %v6667, %v6649
    %v6672 = vadd.f32 %v6668, %v6654
    %vm6673 = vcmp.gt.f32.partialorder %v6669, 0.5
    %vm6674 = vcmp.gt.f32.partialorder %v6670, 0.5
    %vm6675 = vcmp.gt.f32.partialorder %v6671, 0.5
    %vm6676 = vcmp.gt.f32.partialorder %v6672, 0.5
    %v6677 = vsel %vm6673, 1, 0
    %v6678 = vsel %vm6674, 1, 0
    %v6679 = vsel %vm6675, 1, 0
    %v6680 = vsel %vm6676, 1, 0
    %v6681 = vcvt.s32.f32 %v6677
    %v6682 = vcvt.s32.f32 %v6678
    %v6683 = vcvt.s32.f32 %v6679
    %v6684 = vcvt.s32.f32 %v6680
    %v6686 = vsel %vm1008, %v6681, 0
    %6688 = vmatprep.subr.mxu0 0.0
    %6689 = vmatpush1.msra.mxu0 %v1000
    %6690 = vmatprep.subr.mxu0 0.0
    %6691 = vmatpush1.msra.mxu0 %v1001
    %6692 = vmatprep.subr.mxu0 0.0
    %6693 = vmatpush1.msra.mxu0 %v1002
    %6694 = vmatprep.subr.mxu0 0.0
    %6695 = vmatpush1.msra.mxu0 %v1003
    %6696 = vmatprep.subr.mxu0 0.0
    %6697 = vmatpush1.msra.mxu0 %v1004
    %6698 = vmatprep.subr.mxu0 0.0
    %6699 = vmatpush1.msra.mxu0 %v1005
    %6700 = vmatprep.subr.mxu0 0.0
    %6701 = vmatpush1.msra.mxu0 %v1006
    %6702 = vmatprep.subr.mxu0 0.0
    %6703 = vmatpush1.msra.mxu0 %v1007
    %6704 = vmatprep.subr.mxu0 0.0
    %6705 = vmatpush1.msra.mxu0 0.0
    %6706 = vmatprep.subr.mxu0 0.0
    %6707 = vmatpush1.msra.mxu0 0.0
    %6708 = vmatprep.subr.mxu0 0.0
    %6709 = vmatpush1.msra.mxu0 0.0
    %6710 = vmatprep.subr.mxu0 0.0
    %6711 = vmatpush1.msra.mxu0 0.0
    %6712 = vmatprep.subr.mxu0 0.0
    %6713 = vmatpush1.msra.mxu0 0.0
    %6714 = vmatprep.subr.mxu0 0.0
    %6715 = vmatpush1.msra.mxu0 0.0
    %6716 = vmatprep.subr.mxu0 0.0
    %6717 = vmatpush1.msra.mxu0 0.0
    %6718 = vmatprep.subr.mxu0 0.0
    %6719 = vmatpush1.msra.mxu0 0.0
    %6720 = vmatprep.subr.mxu0 0.0
    %6721 = vmatpush1.msra.mxu0 0.0
    %6722 = vmatprep.subr.mxu0 0.0
    %6723 = vmatpush1.msra.mxu0 0.0
    %6724 = vmatprep.subr.mxu0 0.0
    %6725 = vmatpush1.msra.mxu0 0.0
    %6726 = vmatprep.subr.mxu0 0.0
    %6727 = vmatpush1.msra.mxu0 0.0
    %6728 = vmatprep.subr.mxu0 0.0
    %6729 = vmatpush1.msra.mxu0 0.0
    %6730 = vmatprep.subr.mxu0 0.0
    %6731 = vmatpush1.msra.mxu0 0.0
    %6732 = vmatprep.subr.mxu0 0.0
    %6733 = vmatpush1.msra.mxu0 0.0
    %6734 = vmatprep.subr.mxu0 0.0
    %6735 = vmatpush1.msra.mxu0 0.0
    %6736 = vmatprep.subr.mxu0 0.0
    %6737 = vmatpush1.msra.mxu0 0.0
    %6738 = vmatprep.subr.mxu0 0.0
    %6739 = vmatpush1.msra.mxu0 0.0
    %6740 = vmatprep.subr.mxu0 0.0
    %6741 = vmatpush1.msra.mxu0 0.0
    %6742 = vmatprep.subr.mxu0 0.0
    %6743 = vmatpush1.msra.mxu0 0.0
    %6744 = vmatprep.subr.mxu0 0.0
    %6745 = vmatpush1.msra.mxu0 0.0
    %6746 = vmatprep.subr.mxu0 0.0
    %6747 = vmatpush1.msra.mxu0 0.0
    %6748 = vmatprep.subr.mxu0 0.0
    %6749 = vmatpush1.msra.mxu0 0.0
    %6750 = vmatprep.subr.mxu0 0.0
    %6751 = vmatpush1.msra.mxu0 0.0
    %6752 = vmatprep.mubr.f32.mxu0 0.0
    %6753 = vmatmul.mubr.f32.gmra.mrb[0].mxu0 %v6686
    %v6754 = vpop.f32.mrb[0].mxu0
    %v6755 = vadd.f32 0.0, %v6754
    %v6756 = vpop.f32.mrb[0].mxu0
    %6757 = vdwg.mxu0
    %v6758 = vadd.f32 %v999, %v6755
    %v6759 = vrot.slane %v6681, 2
    %v6760 = vsel %vm1008, %v6759, 0
    %6762 = vmatprep.subr.mxu0 0.0
    %6763 = vmatpush1.msra.mxu0 %v1084
    %6764 = vmatprep.subr.mxu0 0.0
    %6765 = vmatpush1.msra.mxu0 %v1085
    %6766 = vmatprep.subr.mxu0 0.0
    %6767 = vmatpush1.msra.mxu0 %v1086
    %6768 = vmatprep.subr.mxu0 0.0
    %6769 = vmatpush1.msra.mxu0 %v1087
    %6770 = vmatprep.subr.mxu0 0.0
    %6771 = vmatpush1.msra.mxu0 %v1088
    %6772 = vmatprep.subr.mxu0 0.0
    %6773 = vmatpush1.msra.mxu0 %v1089
    %6774 = vmatprep.subr.mxu0 0.0
    %6775 = vmatpush1.msra.mxu0 %v1090
    %6776 = vmatprep.subr.mxu0 0.0
    %6777 = vmatpush1.msra.mxu0 %v1091
    %6778 = vmatprep.subr.mxu0 0.0
    %6779 = vmatpush1.msra.mxu0 0.0
    %6780 = vmatprep.subr.mxu0 0.0
    %6781 = vmatpush1.msra.mxu0 0.0
    %6782 = vmatprep.subr.mxu0 0.0
    %6783 = vmatpush1.msra.mxu0 0.0
    %6784 = vmatprep.subr.mxu0 0.0
    %6785 = vmatpush1.msra.mxu0 0.0
    %6786 = vmatprep.subr.mxu0 0.0
    %6787 = vmatpush1.msra.mxu0 0.0
    %6788 = vmatprep.subr.mxu0 0.0
    %6789 = vmatpush1.msra.mxu0 0.0
    %6790 = vmatprep.subr.mxu0 0.0
    %6791 = vmatpush1.msra.mxu0 0.0
    %6792 = vmatprep.subr.mxu0 0.0
    %6793 = vmatpush1.msra.mxu0 0.0
    %6794 = vmatprep.subr.mxu0 0.0
    %6795 = vmatpush1.msra.mxu0 0.0
    %6796 = vmatprep.subr.mxu0 0.0
    %6797 = vmatpush1.msra.mxu0 0.0
    %6798 = vmatprep.subr.mxu0 0.0
    %6799 = vmatpush1.msra.mxu0 0.0
    %6800 = vmatprep.subr.mxu0 0.0
    %6801 = vmatpush1.msra.mxu0 0.0
    %6802 = vmatprep.subr.mxu0 0.0
    %6803 = vmatpush1.msra.mxu0 0.0
    %6804 = vmatprep.subr.mxu0 0.0
    %6805 = vmatpush1.msra.mxu0 0.0
    %6806 = vmatprep.subr.mxu0 0.0
    %6807 = vmatpush1.msra.mxu0 0.0
    %6808 = vmatprep.subr.mxu0 0.0
    %6809 = vmatpush1.msra.mxu0 0.0
    %6810 = vmatprep.subr.mxu0 0.0
    %6811 = vmatpush1.msra.mxu0 0.0
    %6812 = vmatprep.subr.mxu0 0.0
    %6813 = vmatpush1.msra.mxu0 0.0
    %6814 = vmatprep.subr.mxu0 0.0
    %6815 = vmatpush1.msra.mxu0 0.0
    %6816 = vmatprep.subr.mxu0 0.0
    %6817 = vmatpush1.msra.mxu0 0.0
    %6818 = vmatprep.subr.mxu0 0.0
    %6819 = vmatpush1.msra.mxu0 0.0
    %6820 = vmatprep.subr.mxu0 0.0
    %6821 = vmatpush1.msra.mxu0 0.0
    %6822 = vmatprep.subr.mxu0 0.0
    %6823 = vmatpush1.msra.mxu0 0.0
    %6824 = vmatprep.subr.mxu0 0.0
    %6825 = vmatpush1.msra.mxu0 0.0
    %6826 = vmatprep.mubr.f32.mxu0 0.0
    %6827 = vmatmul.mubr.f32.gmra.mrb[0].mxu0 %v6760
    %v6828 = vpop.f32.mrb[0].mxu0
    %v6829 = vadd.f32 0.0, %v6828
    %v6830 = vpop.f32.mrb[0].mxu0
    %6831 = vdwg.mxu0
    %v6832 = vadd.f32 %v6758, %v6829
    %v6833 = vrot.slane %v6681, 4
    %v6834 = vsel %vm1008, %v6833, 0
    %6836 = vmatprep.subr.mxu0 0.0
    %6837 = vmatpush1.msra.mxu0 %v1167
    %6838 = vmatprep.subr.mxu0 0.0
    %6839 = vmatpush1.msra.mxu0 %v1168
    %6840 = vmatprep.subr.mxu0 0.0
    %6841 = vmatpush1.msra.mxu0 %v1169
    %6842 = vmatprep.subr.mxu0 0.0
    %6843 = vmatpush1.msra.mxu0 %v1170
    %6844 = vmatprep.subr.mxu0 0.0
    %6845 = vmatpush1.msra.mxu0 %v1171
    %6846 = vmatprep.subr.mxu0 0.0
    %6847 = vmatpush1.msra.mxu0 %v1172
    %6848 = vmatprep.subr.mxu0 0.0
    %6849 = vmatpush1.msra.mxu0 %v1173
    %6850 = vmatprep.subr.mxu0 0.0
    %6851 = vmatpush1.msra.mxu0 %v1174
    %6852 = vmatprep.subr.mxu0 0.0
    %6853 = vmatpush1.msra.mxu0 0.0
    %6854 = vmatprep.subr.mxu0 0.0
    %6855 = vmatpush1.msra.mxu0 0.0
    %6856 = vmatprep.subr.mxu0 0.0
    %6857 = vmatpush1.msra.mxu0 0.0
    %6858 = vmatprep.subr.mxu0 0.0
    %6859 = vmatpush1.msra.mxu0 0.0
    %6860 = vmatprep.subr.mxu0 0.0
    %6861 = vmatpush1.msra.mxu0 0.0
    %6862 = vmatprep.subr.mxu0 0.0
    %6863 = vmatpush1.msra.mxu0 0.0
    %6864 = vmatprep.subr.mxu0 0.0
    %6865 = vmatpush1.msra.mxu0 0.0
    %6866 = vmatprep.subr.mxu0 0.0
    %6867 = vmatpush1.msra.mxu0 0.0
    %6868 = vmatprep.subr.mxu0 0.0
    %6869 = vmatpush1.msra.mxu0 0.0
    %6870 = vmatprep.subr.mxu0 0.0
    %6871 = vmatpush1.msra.mxu0 0.0
    %6872 = vmatprep.subr.mxu0 0.0
    %6873 = vmatpush1.msra.mxu0 0.0
    %6874 = vmatprep.subr.mxu0 0.0
    %6875 = vmatpush1.msra.mxu0 0.0
    %6876 = vmatprep.subr.mxu0 0.0
    %6877 = vmatpush1.msra.mxu0 0.0
    %6878 = vmatprep.subr.mxu0 0.0
    %6879 = vmatpush1.msra.mxu0 0.0
    %6880 = vmatprep.subr.mxu0 0.0
    %6881 = vmatpush1.msra.mxu0 0.0
    %6882 = vmatprep.subr.mxu0 0.0
    %6883 = vmatpush1.msra.mxu0 0.0
    %6884 = vmatprep.subr.mxu0 0.0
    %6885 = vmatpush1.msra.mxu0 0.0
    %6886 = vmatprep.subr.mxu0 0.0
    %6887 = vmatpush1.msra.mxu0 0.0
    %6888 = vmatprep.subr.mxu0 0.0
    %6889 = vmatpush1.msra.mxu0 0.0
    %6890 = vmatprep.subr.mxu0 0.0
    %6891 = vmatpush1.msra.mxu0 0.0
    %6892 = vmatprep.subr.mxu0 0.0
    %6893 = vmatpush1.msra.mxu0 0.0
    %6894 = vmatprep.subr.mxu0 0.0
    %6895 = vmatpush1.msra.mxu0 0.0
    %6896 = vmatprep.subr.mxu0 0.0
    %6897 = vmatpush1.msra.mxu0 0.0
    %6898 = vmatprep.subr.mxu0 0.0
    %6899 = vmatpush1.msra.mxu0 0.0
    %6900 = vmatprep.mubr.f32.mxu0 0.0
    %6901 = vmatmul.mubr.f32.gmra.mrb[0].mxu0 %v6834
    %v6902 = vpop.f32.mrb[0].mxu0
    %v6903 = vadd.f32 0.0, %v6902
    %v6904 = vpop.f32.mrb[0].mxu0
    %6905 = vdwg.mxu0
    %v6906 = vadd.f32 %v6832, %v6903
    %v6907 = vrot.slane %v6681, 6
    %v6908 = vsel %vm1008, %v6907, 0
    %6910 = vmatprep.subr.mxu0 0.0
    %6911 = vmatpush1.msra.mxu0 %v1250
    %6912 = vmatprep.subr.mxu0 0.0
    %6913 = vmatpush1.msra.mxu0 %v1251
    %6914 = vmatprep.subr.mxu0 0.0
    %6915 = vmatpush1.msra.mxu0 %v1252
    %6916 = vmatprep.subr.mxu0 0.0
    %6917 = vmatpush1.msra.mxu0 %v1253
    %6918 = vmatprep.subr.mxu0 0.0
    %6919 = vmatpush1.msra.mxu0 %v1254
    %6920 = vmatprep.subr.mxu0 0.0
    %6921 = vmatpush1.msra.mxu0 %v1255
    %6922 = vmatprep.subr.mxu0 0.0
    %6923 = vmatpush1.msra.mxu0 %v1256
    %6924 = vmatprep.subr.mxu0 0.0
    %6925 = vmatpush1.msra.mxu0 %v1257
    %6926 = vmatprep.subr.mxu0 0.0
    %6927 = vmatpush1.msra.mxu0 0.0
    %6928 = vmatprep.subr.mxu0 0.0
    %6929 = vmatpush1.msra.mxu0 0.0
    %6930 = vmatprep.subr.mxu0 0.0
    %6931 = vmatpush1.msra.mxu0 0.0
    %6932 = vmatprep.subr.mxu0 0.0
    %6933 = vmatpush1.msra.mxu0 0.0
    %6934 = vmatprep.subr.mxu0 0.0
    %6935 = vmatpush1.msra.mxu0 0.0
    %6936 = vmatprep.subr.mxu0 0.0
    %6937 = vmatpush1.msra.mxu0 0.0
    %6938 = vmatprep.subr.mxu0 0.0
    %6939 = vmatpush1.msra.mxu0 0.0
    %6940 = vmatprep.subr.mxu0 0.0
    %6941 = vmatpush1.msra.mxu0 0.0
    %6942 = vmatprep.subr.mxu0 0.0
    %6943 = vmatpush1.msra.mxu0 0.0
    %6944 = vmatprep.subr.mxu0 0.0
    %6945 = vmatpush1.msra.mxu0 0.0
    %6946 = vmatprep.subr.mxu0 0.0
    %6947 = vmatpush1.msra.mxu0 0.0
    %6948 = vmatprep.subr.mxu0 0.0
    %6949 = vmatpush1.msra.mxu0 0.0
    %6950 = vmatprep.subr.mxu0 0.0
    %6951 = vmatpush1.msra.mxu0 0.0
    %6952 = vmatprep.subr.mxu0 0.0
    %6953 = vmatpush1.msra.mxu0 0.0
    %6954 = vmatprep.subr.mxu0 0.0
    %6955 = vmatpush1.msra.mxu0 0.0
    %6956 = vmatprep.subr.mxu0 0.0
    %6957 = vmatpush1.msra.mxu0 0.0
    %6958 = vmatprep.subr.mxu0 0.0
    %6959 = vmatpush1.msra.mxu0 0.0
    %6960 = vmatprep.subr.mxu0 0.0
    %6961 = vmatpush1.msra.mxu0 0.0
    %6962 = vmatprep.subr.mxu0 0.0
    %6963 = vmatpush1.msra.mxu0 0.0
    %6964 = vmatprep.subr.mxu0 0.0
    %6965 = vmatpush1.msra.mxu0 0.0
    %6966 = vmatprep.subr.mxu0 0.0
    %6967 = vmatpush1.msra.mxu0 0.0
    %6968 = vmatprep.subr.mxu0 0.0
    %6969 = vmatpush1.msra.mxu0 0.0
    %6970 = vmatprep.subr.mxu0 0.0
    %6971 = vmatpush1.msra.mxu0 0.0
    %6972 = vmatprep.subr.mxu0 0.0
    %6973 = vmatpush1.msra.mxu0 0.0
    %6974 = vmatprep.mubr.f32.mxu0 0.0
    %6975 = vmatmul.mubr.f32.gmra.mrb[0].mxu0 %v6908
    %v6976 = vpop.f32.mrb[0].mxu0
    %v6977 = vadd.f32 0.0, %v6976
    %v6978 = vpop.f32.mrb[0].mxu0
    %6979 = vdwg.mxu0
    %v6980 = vadd.f32 %v6906, %v6977
    %v6982 = vsel %vm1008, %v6682, 0
    %6984 = vmatprep.subr.mxu0 0.0
    %6985 = vmatpush1.msra.mxu0 %v1333
    %6986 = vmatprep.subr.mxu0 0.0
    %6987 = vmatpush1.msra.mxu0 %v1334
    %6988 = vmatprep.subr.mxu0 0.0
    %6989 = vmatpush1.msra.mxu0 %v1335
    %6990 = vmatprep.subr.mxu0 0.0
    %6991 = vmatpush1.msra.mxu0 %v1336
    %6992 = vmatprep.subr.mxu0 0.0
    %6993 = vmatpush1.msra.mxu0 %v1337
    %6994 = vmatprep.subr.mxu0 0.0
    %6995 = vmatpush1.msra.mxu0 %v1338
    %6996 = vmatprep.subr.mxu0 0.0
    %6997 = vmatpush1.msra.mxu0 %v1339
    %6998 = vmatprep.subr.mxu0 0.0
    %6999 = vmatpush1.msra.mxu0 %v1340
    %7000 = vmatprep.subr.mxu0 0.0
    %7001 = vmatpush1.msra.mxu0 0.0
    %7002 = vmatprep.subr.mxu0 0.0
    %7003 = vmatpush1.msra.mxu0 0.0
    %7004 = vmatprep.subr.mxu0 0.0
    %7005 = vmatpush1.msra.mxu0 0.0
    %7006 = vmatprep.subr.mxu0 0.0
    %7007 = vmatpush1.msra.mxu0 0.0
    %7008 = vmatprep.subr.mxu0 0.0
    %7009 = vmatpush1.msra.mxu0 0.0
    %7010 = vmatprep.subr.mxu0 0.0
    %7011 = vmatpush1.msra.mxu0 0.0
    %7012 = vmatprep.subr.mxu0 0.0
    %7013 = vmatpush1.msra.mxu0 0.0
    %7014 = vmatprep.subr.mxu0 0.0
    %7015 = vmatpush1.msra.mxu0 0.0
    %7016 = vmatprep.subr.mxu0 0.0
    %7017 = vmatpush1.msra.mxu0 0.0
    %7018 = vmatprep.subr.mxu0 0.0
    %7019 = vmatpush1.msra.mxu0 0.0
    %7020 = vmatprep.subr.mxu0 0.0
    %7021 = vmatpush1.msra.mxu0 0.0
    %7022 = vmatprep.subr.mxu0 0.0
    %7023 = vmatpush1.msra.mxu0 0.0
    %7024 = vmatprep.subr.mxu0 0.0
    %7025 = vmatpush1.msra.mxu0 0.0
    %7026 = vmatprep.subr.mxu0 0.0
    %7027 = vmatpush1.msra.mxu0 0.0
    %7028 = vmatprep.subr.mxu0 0.0
    %7029 = vmatpush1.msra.mxu0 0.0
    %7030 = vmatprep.subr.mxu0 0.0
    %7031 = vmatpush1.msra.mxu0 0.0
    %7032 = vmatprep.subr.mxu0 0.0
    %7033 = vmatpush1.msra.mxu0 0.0
    %7034 = vmatprep.subr.mxu0 0.0
    %7035 = vmatpush1.msra.mxu0 0.0
    %7036 = vmatprep.subr.mxu0 0.0
    %7037 = vmatpush1.msra.mxu0 0.0
    %7038 = vmatprep.subr.mxu0 0.0
    %7039 = vmatpush1.msra.mxu0 0.0
    %7040 = vmatprep.subr.mxu0 0.0
    %7041 = vmatpush1.msra.mxu0 0.0
    %7042 = vmatprep.subr.mxu0 0.0
    %7043 = vmatpush1.msra.mxu0 0.0
    %7044 = vmatprep.subr.mxu0 0.0
    %7045 = vmatpush1.msra.mxu0 0.0
    %7046 = vmatprep.subr.mxu0 0.0
    %7047 = vmatpush1.msra.mxu0 0.0
    %7048 = vmatprep.mubr.f32.mxu0 0.0
    %7049 = vmatmul.mubr.f32.gmra.mrb[0].mxu0 %v6982
    %v7050 = vpop.f32.mrb[0].mxu0
    %v7051 = vadd.f32 0.0, %v7050
    %v7052 = vpop.f32.mrb[0].mxu0
    %7053 = vdwg.mxu0
    %v7054 = vadd.f32 %v6980, %v7051
    %v7055 = vrot.slane %v6682, 2
    %v7056 = vsel %vm1008, %v7055, 0
    %7058 = vmatprep.subr.mxu0 0.0
    %7059 = vmatpush1.msra.mxu0 %v1416
    %7060 = vmatprep.subr.mxu0 0.0
    %7061 = vmatpush1.msra.mxu0 %v1417
    %7062 = vmatprep.subr.mxu0 0.0
    %7063 = vmatpush1.msra.mxu0 %v1418
    %7064 = vmatprep.subr.mxu0 0.0
    %7065 = vmatpush1.msra.mxu0 %v1419
    %7066 = vmatprep.subr.mxu0 0.0
    %7067 = vmatpush1.msra.mxu0 %v1420
    %7068 = vmatprep.subr.mxu0 0.0
    %7069 = vmatpush1.msra.mxu0 %v1421
    %7070 = vmatprep.subr.mxu0 0.0
    %7071 = vmatpush1.msra.mxu0 %v1422
    %7072 = vmatprep.subr.mxu0 0.0
    %7073 = vmatpush1.msra.mxu0 %v1423
    %7074 = vmatprep.subr.mxu0 0.0
    %7075 = vmatpush1.msra.mxu0 0.0
    %7076 = vmatprep.subr.mxu0 0.0
    %7077 = vmatpush1.msra.mxu0 0.0
    %7078 = vmatprep.subr.mxu0 0.0
    %7079 = vmatpush1.msra.mxu0 0.0
    %7080 = vmatprep.subr.mxu0 0.0
    %7081 = vmatpush1.msra.mxu0 0.0
    %7082 = vmatprep.subr.mxu0 0.0
    %7083 = vmatpush1.msra.mxu0 0.0
    %7084 = vmatprep.subr.mxu0 0.0
    %7085 = vmatpush1.msra.mxu0 0.0
    %7086 = vmatprep.subr.mxu0 0.0
    %7087 = vmatpush1.msra.mxu0 0.0
    %7088 = vmatprep.subr.mxu0 0.0
    %7089 = vmatpush1.msra.mxu0 0.0
    %7090 = vmatprep.subr.mxu0 0.0
    %7091 = vmatpush1.msra.mxu0 0.0
    %7092 = vmatprep.subr.mxu0 0.0
    %7093 = vmatpush1.msra.mxu0 0.0
    %7094 = vmatprep.subr.mxu0 0.0
    %7095 = vmatpush1.msra.mxu0 0.0
    %7096 = vmatprep.subr.mxu0 0.0
    %7097 = vmatpush1.msra.mxu0 0.0
    %7098 = vmatprep.subr.mxu0 0.0
    %7099 = vmatpush1.msra.mxu0 0.0
    %7100 = vmatprep.subr.mxu0 0.0
    %7101 = vmatpush1.msra.mxu0 0.0
    %7102 = vmatprep.subr.mxu0 0.0
    %7103 = vmatpush1.msra.mxu0 0.0
    %7104 = vmatprep.subr.mxu0 0.0
    %7105 = vmatpush1.msra.mxu0 0.0
    %7106 = vmatprep.subr.mxu0 0.0
    %7107 = vmatpush1.msra.mxu0 0.0
    %7108 = vmatprep.subr.mxu0 0.0
    %7109 = vmatpush1.msra.mxu0 0.0
    %7110 = vmatprep.subr.mxu0 0.0
    %7111 = vmatpush1.msra.mxu0 0.0
    %7112 = vmatprep.subr.mxu0 0.0
    %7113 = vmatpush1.msra.mxu0 0.0
    %7114 = vmatprep.subr.mxu0 0.0
    %7115 = vmatpush1.msra.mxu0 0.0
    %7116 = vmatprep.subr.mxu0 0.0
    %7117 = vmatpush1.msra.mxu0 0.0
    %7118 = vmatprep.subr.mxu0 0.0
    %7119 = vmatpush1.msra.mxu0 0.0
    %7120 = vmatprep.subr.mxu0 0.0
    %7121 = vmatpush1.msra.mxu0 0.0
    %7122 = vmatprep.mubr.f32.mxu0 0.0
    %7123 = vmatmul.mubr.f32.gmra.mrb[0].mxu0 %v7056
    %v7124 = vpop.f32.mrb[0].mxu0
    %v7125 = vadd.f32 0.0, %v7124
    %v7126 = vpop.f32.mrb[0].mxu0
    %7127 = vdwg.mxu0
    %v7128 = vadd.f32 %v7054, %v7125
    %v7129 = vrot.slane %v6682, 4
    %v7130 = vsel %vm1008, %v7129, 0
    %7132 = vmatprep.subr.mxu0 0.0
    %7133 = vmatpush1.msra.mxu0 %v1499
    %7134 = vmatprep.subr.mxu0 0.0
    %7135 = vmatpush1.msra.mxu0 %v1500
    %7136 = vmatprep.subr.mxu0 0.0
    %7137 = vmatpush1.msra.mxu0 %v1501
    %7138 = vmatprep.subr.mxu0 0.0
    %7139 = vmatpush1.msra.mxu0 %v1502
    %7140 = vmatprep.subr.mxu0 0.0
    %7141 = vmatpush1.msra.mxu0 %v1503
    %7142 = vmatprep.subr.mxu0 0.0
    %7143 = vmatpush1.msra.mxu0 %v1504
    %7144 = vmatprep.subr.mxu0 0.0
    %7145 = vmatpush1.msra.mxu0 %v1505
    %7146 = vmatprep.subr.mxu0 0.0
    %7147 = vmatpush1.msra.mxu0 %v1506
    %7148 = vmatprep.subr.mxu0 0.0
    %7149 = vmatpush1.msra.mxu0 0.0
    %7150 = vmatprep.subr.mxu0 0.0
    %7151 = vmatpush1.msra.mxu0 0.0
    %7152 = vmatprep.subr.mxu0 0.0
    %7153 = vmatpush1.msra.mxu0 0.0
    %7154 = vmatprep.subr.mxu0 0.0
    %7155 = vmatpush1.msra.mxu0 0.0
    %7156 = vmatprep.subr.mxu0 0.0
    %7157 = vmatpush1.msra.mxu0 0.0
    %7158 = vmatprep.subr.mxu0 0.0
    %7159 = vmatpush1.msra.mxu0 0.0
    %7160 = vmatprep.subr.mxu0 0.0
    %7161 = vmatpush1.msra.mxu0 0.0
    %7162 = vmatprep.subr.mxu0 0.0
    %7163 = vmatpush1.msra.mxu0 0.0
    %7164 = vmatprep.subr.mxu0 0.0
    %7165 = vmatpush1.msra.mxu0 0.0
    %7166 = vmatprep.subr.mxu0 0.0
    %7167 = vmatpush1.msra.mxu0 0.0
    %7168 = vmatprep.subr.mxu0 0.0
    %7169 = vmatpush1.msra.mxu0 0.0
    %7170 = vmatprep.subr.mxu0 0.0
    %7171 = vmatpush1.msra.mxu0 0.0
    %7172 = vmatprep.subr.mxu0 0.0
    %7173 = vmatpush1.msra.mxu0 0.0
    %7174 = vmatprep.subr.mxu0 0.0
    %7175 = vmatpush1.msra.mxu0 0.0
    %7176 = vmatprep.subr.mxu0 0.0
    %7177 = vmatpush1.msra.mxu0 0.0
    %7178 = vmatprep.subr.mxu0 0.0
    %7179 = vmatpush1.msra.mxu0 0.0
    %7180 = vmatprep.subr.mxu0 0.0
    %7181 = vmatpush1.msra.mxu0 0.0
    %7182 = vmatprep.subr.mxu0 0.0
    %7183 = vmatpush1.msra.mxu0 0.0
    %7184 = vmatprep.subr.mxu0 0.0
    %7185 = vmatpush1.msra.mxu0 0.0
    %7186 = vmatprep.subr.mxu0 0.0
    %7187 = vmatpush1.msra.mxu0 0.0
    %7188 = vmatprep.subr.mxu0 0.0
    %7189 = vmatpush1.msra.mxu0 0.0
    %7190 = vmatprep.subr.mxu0 0.0
    %7191 = vmatpush1.msra.mxu0 0.0
    %7192 = vmatprep.subr.mxu0 0.0
    %7193 = vmatpush1.msra.mxu0 0.0
    %7194 = vmatprep.subr.mxu0 0.0
    %7195 = vmatpush1.msra.mxu0 0.0
    %7196 = vmatprep.mubr.f32.mxu0 0.0
    %7197 = vmatmul.mubr.f32.gmra.mrb[0].mxu0 %v7130
    %v7198 = vpop.f32.mrb[0].mxu0
    %v7199 = vadd.f32 0.0, %v7198
    %v7200 = vpop.f32.mrb[0].mxu0
    %7201 = vdwg.mxu0
    %v7202 = vadd.f32 %v7128, %v7199
    %v7203 = vrot.slane %v6682, 6
    %v7204 = vsel %vm1008, %v7203, 0
    %7206 = vmatprep.subr.mxu0 0.0
    %7207 = vmatpush1.msra.mxu0 %v1582
    %7208 = vmatprep.subr.mxu0 0.0
    %7209 = vmatpush1.msra.mxu0 %v1583
    %7210 = vmatprep.subr.mxu0 0.0
    %7211 = vmatpush1.msra.mxu0 %v1584
    %7212 = vmatprep.subr.mxu0 0.0
    %7213 = vmatpush1.msra.mxu0 %v1585
    %7214 = vmatprep.subr.mxu0 0.0
    %7215 = vmatpush1.msra.mxu0 %v1586
    %7216 = vmatprep.subr.mxu0 0.0
    %7217 = vmatpush1.msra.mxu0 %v1587
    %7218 = vmatprep.subr.mxu0 0.0
    %7219 = vmatpush1.msra.mxu0 %v1588
    %7220 = vmatprep.subr.mxu0 0.0
    %7221 = vmatpush1.msra.mxu0 %v1589
    %7222 = vmatprep.subr.mxu0 0.0
    %7223 = vmatpush1.msra.mxu0 0.0
    %7224 = vmatprep.subr.mxu0 0.0
    %7225 = vmatpush1.msra.mxu0 0.0
    %7226 = vmatprep.subr.mxu0 0.0
    %7227 = vmatpush1.msra.mxu0 0.0
    %7228 = vmatprep.subr.mxu0 0.0
    %7229 = vmatpush1.msra.mxu0 0.0
    %7230 = vmatprep.subr.mxu0 0.0
    %7231 = vmatpush1.msra.mxu0 0.0
    %7232 = vmatprep.subr.mxu0 0.0
    %7233 = vmatpush1.msra.mxu0 0.0
    %7234 = vmatprep.subr.mxu0 0.0
    %7235 = vmatpush1.msra.mxu0 0.0
    %7236 = vmatprep.subr.mxu0 0.0
    %7237 = vmatpush1.msra.mxu0 0.0
    %7238 = vmatprep.subr.mxu0 0.0
    %7239 = vmatpush1.msra.mxu0 0.0
    %7240 = vmatprep.subr.mxu0 0.0
    %7241 = vmatpush1.msra.mxu0 0.0
    %7242 = vmatprep.subr.mxu0 0.0
    %7243 = vmatpush1.msra.mxu0 0.0
    %7244 = vmatprep.subr.mxu0 0.0
    %7245 = vmatpush1.msra.mxu0 0.0
    %7246 = vmatprep.subr.mxu0 0.0
    %7247 = vmatpush1.msra.mxu0 0.0
    %7248 = vmatprep.subr.mxu0 0.0
    %7249 = vmatpush1.msra.mxu0 0.0
    %7250 = vmatprep.subr.mxu0 0.0
    %7251 = vmatpush1.msra.mxu0 0.0
    %7252 = vmatprep.subr.mxu0 0.0
    %7253 = vmatpush1.msra.mxu0 0.0
    %7254 = vmatprep.subr.mxu0 0.0
    %7255 = vmatpush1.msra.mxu0 0.0
    %7256 = vmatprep.subr.mxu0 0.0
    %7257 = vmatpush1.msra.mxu0 0.0
    %7258 = vmatprep.subr.mxu0 0.0
    %7259 = vmatpush1.msra.mxu0 0.0
    %7260 = vmatprep.subr.mxu0 0.0
    %7261 = vmatpush1.msra.mxu0 0.0
    %7262 = vmatprep.subr.mxu0 0.0
    %7263 = vmatpush1.msra.mxu0 0.0
    %7264 = vmatprep.subr.mxu0 0.0
    %7265 = vmatpush1.msra.mxu0 0.0
    %7266 = vmatprep.subr.mxu0 0.0
    %7267 = vmatpush1.msra.mxu0 0.0
    %7268 = vmatprep.subr.mxu0 0.0
    %7269 = vmatpush1.msra.mxu0 0.0
    %7270 = vmatprep.mubr.f32.mxu0 0.0
    %7271 = vmatmul.mubr.f32.gmra.mrb[0].mxu0 %v7204
    %v7272 = vpop.f32.mrb[0].mxu0
    %v7273 = vadd.f32 0.0, %v7272
    %v7274 = vpop.f32.mrb[0].mxu0
    %7275 = vdwg.mxu0
    %v7276 = vadd.f32 %v7202, %v7273
    %v7278 = vsel %vm1008, %v6683, 0
    %7280 = vmatprep.subr.mxu0 0.0
    %7281 = vmatpush1.msra.mxu0 %v1665
    %7282 = vmatprep.subr.mxu0 0.0
    %7283 = vmatpush1.msra.mxu0 %v1666
    %7284 = vmatprep.subr.mxu0 0.0
    %7285 = vmatpush1.msra.mxu0 %v1667
    %7286 = vmatprep.subr.mxu0 0.0
    %7287 = vmatpush1.msra.mxu0 %v1668
    %7288 = vmatprep.subr.mxu0 0.0
    %7289 = vmatpush1.msra.mxu0 %v1669
    %7290 = vmatprep.subr.mxu0 0.0
    %7291 = vmatpush1.msra.mxu0 %v1670
    %7292 = vmatprep.subr.mxu0 0.0
    %7293 = vmatpush1.msra.mxu0 %v1671
    %7294 = vmatprep.subr.mxu0 0.0
    %7295 = vmatpush1.msra.mxu0 %v1672
    %7296 = vmatprep.subr.mxu0 0.0
    %7297 = vmatpush1.msra.mxu0 0.0
    %7298 = vmatprep.subr.mxu0 0.0
    %7299 = vmatpush1.msra.mxu0 0.0
    %7300 = vmatprep.subr.mxu0 0.0
    %7301 = vmatpush1.msra.mxu0 0.0
    %7302 = vmatprep.subr.mxu0 0.0
    %7303 = vmatpush1.msra.mxu0 0.0
    %7304 = vmatprep.subr.mxu0 0.0
    %7305 = vmatpush1.msra.mxu0 0.0
    %7306 = vmatprep.subr.mxu0 0.0
    %7307 = vmatpush1.msra.mxu0 0.0
    %7308 = vmatprep.subr.mxu0 0.0
    %7309 = vmatpush1.msra.mxu0 0.0
    %7310 = vmatprep.subr.mxu0 0.0
    %7311 = vmatpush1.msra.mxu0 0.0
    %7312 = vmatprep.subr.mxu0 0.0
    %7313 = vmatpush1.msra.mxu0 0.0
    %7314 = vmatprep.subr.mxu0 0.0
    %7315 = vmatpush1.msra.mxu0 0.0
    %7316 = vmatprep.subr.mxu0 0.0
    %7317 = vmatpush1.msra.mxu0 0.0
    %7318 = vmatprep.subr.mxu0 0.0
    %7319 = vmatpush1.msra.mxu0 0.0
    %7320 = vmatprep.subr.mxu0 0.0
    %7321 = vmatpush1.msra.mxu0 0.0
    %7322 = vmatprep.subr.mxu0 0.0
    %7323 = vmatpush1.msra.mxu0 0.0
    %7324 = vmatprep.subr.mxu0 0.0
    %7325 = vmatpush1.msra.mxu0 0.0
    %7326 = vmatprep.subr.mxu0 0.0
    %7327 = vmatpush1.msra.mxu0 0.0
    %7328 = vmatprep.subr.mxu0 0.0
    %7329 = vmatpush1.msra.mxu0 0.0
    %7330 = vmatprep.subr.mxu0 0.0
    %7331 = vmatpush1.msra.mxu0 0.0
    %7332 = vmatprep.subr.mxu0 0.0
    %7333 = vmatpush1.msra.mxu0 0.0
    %7334 = vmatprep.subr.mxu0 0.0
    %7335 = vmatpush1.msra.mxu0 0.0
    %7336 = vmatprep.subr.mxu0 0.0
    %7337 = vmatpush1.msra.mxu0 0.0
    %7338 = vmatprep.subr.mxu0 0.0
    %7339 = vmatpush1.msra.mxu0 0.0
    %7340 = vmatprep.subr.mxu0 0.0
    %7341 = vmatpush1.msra.mxu0 0.0
    %7342 = vmatprep.subr.mxu0 0.0
    %7343 = vmatpush1.msra.mxu0 0.0
    %7344 = vmatprep.mubr.f32.mxu0 0.0
    %7345 = vmatmul.mubr.f32.gmra.mrb[0].mxu0 %v7278
    %v7346 = vpop.f32.mrb[0].mxu0
    %v7347 = vadd.f32 0.0, %v7346
    %v7348 = vpop.f32.mrb[0].mxu0
    %7349 = vdwg.mxu0
    %v7350 = vadd.f32 %v7276, %v7347
    %v7351 = vrot.slane %v6683, 2
    %v7352 = vsel %vm1008, %v7351, 0
    %7354 = vmatprep.subr.mxu0 0.0
    %7355 = vmatpush1.msra.mxu0 %v1748
    %7356 = vmatprep.subr.mxu0 0.0
    %7357 = vmatpush1.msra.mxu0 %v1749
    %7358 = vmatprep.subr.mxu0 0.0
    %7359 = vmatpush1.msra.mxu0 %v1750
    %7360 = vmatprep.subr.mxu0 0.0
    %7361 = vmatpush1.msra.mxu0 %v1751
    %7362 = vmatprep.subr.mxu0 0.0
    %7363 = vmatpush1.msra.mxu0 %v1752
    %7364 = vmatprep.subr.mxu0 0.0
    %7365 = vmatpush1.msra.mxu0 %v1753
    %7366 = vmatprep.subr.mxu0 0.0
    %7367 = vmatpush1.msra.mxu0 %v1754
    %7368 = vmatprep.subr.mxu0 0.0
    %7369 = vmatpush1.msra.mxu0 %v1755
    %7370 = vmatprep.subr.mxu0 0.0
    %7371 = vmatpush1.msra.mxu0 0.0
    %7372 = vmatprep.subr.mxu0 0.0
    %7373 = vmatpush1.msra.mxu0 0.0
    %7374 = vmatprep.subr.mxu0 0.0
    %7375 = vmatpush1.msra.mxu0 0.0
    %7376 = vmatprep.subr.mxu0 0.0
    %7377 = vmatpush1.msra.mxu0 0.0
    %7378 = vmatprep.subr.mxu0 0.0
    %7379 = vmatpush1.msra.mxu0 0.0
    %7380 = vmatprep.subr.mxu0 0.0
    %7381 = vmatpush1.msra.mxu0 0.0
    %7382 = vmatprep.subr.mxu0 0.0
    %7383 = vmatpush1.msra.mxu0 0.0
    %7384 = vmatprep.subr.mxu0 0.0
    %7385 = vmatpush1.msra.mxu0 0.0
    %7386 = vmatprep.subr.mxu0 0.0
    %7387 = vmatpush1.msra.mxu0 0.0
    %7388 = vmatprep.subr.mxu0 0.0
    %7389 = vmatpush1.msra.mxu0 0.0
    %7390 = vmatprep.subr.mxu0 0.0
    %7391 = vmatpush1.msra.mxu0 0.0
    %7392 = vmatprep.subr.mxu0 0.0
    %7393 = vmatpush1.msra.mxu0 0.0
    %7394 = vmatprep.subr.mxu0 0.0
    %7395 = vmatpush1.msra.mxu0 0.0
    %7396 = vmatprep.subr.mxu0 0.0
    %7397 = vmatpush1.msra.mxu0 0.0
    %7398 = vmatprep.subr.mxu0 0.0
    %7399 = vmatpush1.msra.mxu0 0.0
    %7400 = vmatprep.subr.mxu0 0.0
    %7401 = vmatpush1.msra.mxu0 0.0
    %7402 = vmatprep.subr.mxu0 0.0
    %7403 = vmatpush1.msra.mxu0 0.0
    %7404 = vmatprep.subr.mxu0 0.0
    %7405 = vmatpush1.msra.mxu0 0.0
    %7406 = vmatprep.subr.mxu0 0.0
    %7407 = vmatpush1.msra.mxu0 0.0
    %7408 = vmatprep.subr.mxu0 0.0
    %7409 = vmatpush1.msra.mxu0 0.0
    %7410 = vmatprep.subr.mxu0 0.0
    %7411 = vmatpush1.msra.mxu0 0.0
    %7412 = vmatprep.subr.mxu0 0.0
    %7413 = vmatpush1.msra.mxu0 0.0
    %7414 = vmatprep.subr.mxu0 0.0
    %7415 = vmatpush1.msra.mxu0 0.0
    %7416 = vmatprep.subr.mxu0 0.0
    %7417 = vmatpush1.msra.mxu0 0.0
    %7418 = vmatprep.mubr.f32.mxu0 0.0
    %7419 = vmatmul.mubr.f32.gmra.mrb[0].mxu0 %v7352
    %v7420 = vpop.f32.mrb[0].mxu0
    %v7421 = vadd.f32 0.0, %v7420
    %v7422 = vpop.f32.mrb[0].mxu0
    %7423 = vdwg.mxu0
    %v7424 = vadd.f32 %v7350, %v7421
    %v7425 = vrot.slane %v6683, 4
    %v7426 = vsel %vm1008, %v7425, 0
    %7428 = vmatprep.subr.mxu0 0.0
    %7429 = vmatpush1.msra.mxu0 %v1831
    %7430 = vmatprep.subr.mxu0 0.0
    %7431 = vmatpush1.msra.mxu0 %v1832
    %7432 = vmatprep.subr.mxu0 0.0
    %7433 = vmatpush1.msra.mxu0 %v1833
    %7434 = vmatprep.subr.mxu0 0.0
    %7435 = vmatpush1.msra.mxu0 %v1834
    %7436 = vmatprep.subr.mxu0 0.0
    %7437 = vmatpush1.msra.mxu0 %v1835
    %7438 = vmatprep.subr.mxu0 0.0
    %7439 = vmatpush1.msra.mxu0 %v1836
    %7440 = vmatprep.subr.mxu0 0.0
    %7441 = vmatpush1.msra.mxu0 %v1837
    %7442 = vmatprep.subr.mxu0 0.0
    %7443 = vmatpush1.msra.mxu0 %v1838
    %7444 = vmatprep.subr.mxu0 0.0
    %7445 = vmatpush1.msra.mxu0 0.0
    %7446 = vmatprep.subr.mxu0 0.0
    %7447 = vmatpush1.msra.mxu0 0.0
    %7448 = vmatprep.subr.mxu0 0.0
    %7449 = vmatpush1.msra.mxu0 0.0
    %7450 = vmatprep.subr.mxu0 0.0
    %7451 = vmatpush1.msra.mxu0 0.0
    %7452 = vmatprep.subr.mxu0 0.0
    %7453 = vmatpush1.msra.mxu0 0.0
    %7454 = vmatprep.subr.mxu0 0.0
    %7455 = vmatpush1.msra.mxu0 0.0
    %7456 = vmatprep.subr.mxu0 0.0
    %7457 = vmatpush1.msra.mxu0 0.0
    %7458 = vmatprep.subr.mxu0 0.0
    %7459 = vmatpush1.msra.mxu0 0.0
    %7460 = vmatprep.subr.mxu0 0.0
    %7461 = vmatpush1.msra.mxu0 0.0
    %7462 = vmatprep.subr.mxu0 0.0
    %7463 = vmatpush1.msra.mxu0 0.0
    %7464 = vmatprep.subr.mxu0 0.0
    %7465 = vmatpush1.msra.mxu0 0.0
    %7466 = vmatprep.subr.mxu0 0.0
    %7467 = vmatpush1.msra.mxu0 0.0
    %7468 = vmatprep.subr.mxu0 0.0
    %7469 = vmatpush1.msra.mxu0 0.0
    %7470 = vmatprep.subr.mxu0 0.0
    %7471 = vmatpush1.msra.mxu0 0.0
    %7472 = vmatprep.subr.mxu0 0.0
    %7473 = vmatpush1.msra.mxu0 0.0
    %7474 = vmatprep.subr.mxu0 0.0
    %7475 = vmatpush1.msra.mxu0 0.0
    %7476 = vmatprep.subr.mxu0 0.0
    %7477 = vmatpush1.msra.mxu0 0.0
    %7478 = vmatprep.subr.mxu0 0.0
    %7479 = vmatpush1.msra.mxu0 0.0
    %7480 = vmatprep.subr.mxu0 0.0
    %7481 = vmatpush1.msra.mxu0 0.0
    %7482 = vmatprep.subr.mxu0 0.0
    %7483 = vmatpush1.msra.mxu0 0.0
    %7484 = vmatprep.subr.mxu0 0.0
    %7485 = vmatpush1.msra.mxu0 0.0
    %7486 = vmatprep.subr.mxu0 0.0
    %7487 = vmatpush1.msra.mxu0 0.0
    %7488 = vmatprep.subr.mxu0 0.0
    %7489 = vmatpush1.msra.mxu0 0.0
    %7490 = vmatprep.subr.mxu0 0.0
    %7491 = vmatpush1.msra.mxu0 0.0
    %7492 = vmatprep.mubr.f32.mxu0 0.0
    %7493 = vmatmul.mubr.f32.gmra.mrb[0].mxu0 %v7426
    %v7494 = vpop.f32.mrb[0].mxu0
    %v7495 = vadd.f32 0.0, %v7494
    %v7496 = vpop.f32.mrb[0].mxu0
    %7497 = vdwg.mxu0
    %v7498 = vadd.f32 %v7424, %v7495
    %v7499 = vrot.slane %v6683, 6
    %v7500 = vsel %vm1008, %v7499, 0
    %7502 = vmatprep.subr.mxu0 0.0
    %7503 = vmatpush1.msra.mxu0 %v1914
    %7504 = vmatprep.subr.mxu0 0.0
    %7505 = vmatpush1.msra.mxu0 %v1915
    %7506 = vmatprep.subr.mxu0 0.0
    %7507 = vmatpush1.msra.mxu0 %v1916
    %7508 = vmatprep.subr.mxu0 0.0
    %7509 = vmatpush1.msra.mxu0 %v1917
    %7510 = vmatprep.subr.mxu0 0.0
    %7511 = vmatpush1.msra.mxu0 %v1918
    %7512 = vmatprep.subr.mxu0 0.0
    %7513 = vmatpush1.msra.mxu0 %v1919
    %7514 = vmatprep.subr.mxu0 0.0
    %7515 = vmatpush1.msra.mxu0 %v1920
    %7516 = vmatprep.subr.mxu0 0.0
    %7517 = vmatpush1.msra.mxu0 %v1921
    %7518 = vmatprep.subr.mxu0 0.0
    %7519 = vmatpush1.msra.mxu0 0.0
    %7520 = vmatprep.subr.mxu0 0.0
    %7521 = vmatpush1.msra.mxu0 0.0
    %7522 = vmatprep.subr.mxu0 0.0
    %7523 = vmatpush1.msra.mxu0 0.0
    %7524 = vmatprep.subr.mxu0 0.0
    %7525 = vmatpush1.msra.mxu0 0.0
    %7526 = vmatprep.subr.mxu0 0.0
    %7527 = vmatpush1.msra.mxu0 0.0
    %7528 = vmatprep.subr.mxu0 0.0
    %7529 = vmatpush1.msra.mxu0 0.0
    %7530 = vmatprep.subr.mxu0 0.0
    %7531 = vmatpush1.msra.mxu0 0.0
    %7532 = vmatprep.subr.mxu0 0.0
    %7533 = vmatpush1.msra.mxu0 0.0
    %7534 = vmatprep.subr.mxu0 0.0
    %7535 = vmatpush1.msra.mxu0 0.0
    %7536 = vmatprep.subr.mxu0 0.0
    %7537 = vmatpush1.msra.mxu0 0.0
    %7538 = vmatprep.subr.mxu0 0.0
    %7539 = vmatpush1.msra.mxu0 0.0
    %7540 = vmatprep.subr.mxu0 0.0
    %7541 = vmatpush1.msra.mxu0 0.0
    %7542 = vmatprep.subr.mxu0 0.0
    %7543 = vmatpush1.msra.mxu0 0.0
    %7544 = vmatprep.subr.mxu0 0.0
    %7545 = vmatpush1.msra.mxu0 0.0
    %7546 = vmatprep.subr.mxu0 0.0
    %7547 = vmatpush1.msra.mxu0 0.0
    %7548 = vmatprep.subr.mxu0 0.0
    %7549 = vmatpush1.msra.mxu0 0.0
    %7550 = vmatprep.subr.mxu0 0.0
    %7551 = vmatpush1.msra.mxu0 0.0
    %7552 = vmatprep.subr.mxu0 0.0
    %7553 = vmatpush1.msra.mxu0 0.0
    %7554 = vmatprep.subr.mxu0 0.0
    %7555 = vmatpush1.msra.mxu0 0.0
    %7556 = vmatprep.subr.mxu0 0.0
    %7557 = vmatpush1.msra.mxu0 0.0
    %7558 = vmatprep.subr.mxu0 0.0
    %7559 = vmatpush1.msra.mxu0 0.0
    %7560 = vmatprep.subr.mxu0 0.0
    %7561 = vmatpush1.msra.mxu0 0.0
    %7562 = vmatprep.subr.mxu0 0.0
    %7563 = vmatpush1.msra.mxu0 0.0
    %7564 = vmatprep.subr.mxu0 0.0
    %7565 = vmatpush1.msra.mxu0 0.0
    %7566 = vmatprep.mubr.f32.mxu0 0.0
    %7567 = vmatmul.mubr.f32.gmra.mrb[0].mxu0 %v7500
    %v7568 = vpop.f32.mrb[0].mxu0
    %v7569 = vadd.f32 0.0, %v7568
    %v7570 = vpop.f32.mrb[0].mxu0
    %7571 = vdwg.mxu0
    %v7572 = vadd.f32 %v7498, %v7569
    %v7574 = vsel %vm1008, %v6684, 0
    %7576 = vmatprep.subr.mxu0 0.0
    %7577 = vmatpush1.msra.mxu0 %v1997
    %7578 = vmatprep.subr.mxu0 0.0
    %7579 = vmatpush1.msra.mxu0 %v1998
    %7580 = vmatprep.subr.mxu0 0.0
    %7581 = vmatpush1.msra.mxu0 %v1999
    %7582 = vmatprep.subr.mxu0 0.0
    %7583 = vmatpush1.msra.mxu0 %v2000
    %7584 = vmatprep.subr.mxu0 0.0
    %7585 = vmatpush1.msra.mxu0 %v2001
    %7586 = vmatprep.subr.mxu0 0.0
    %7587 = vmatpush1.msra.mxu0 %v2002
    %7588 = vmatprep.subr.mxu0 0.0
    %7589 = vmatpush1.msra.mxu0 %v2003
    %7590 = vmatprep.subr.mxu0 0.0
    %7591 = vmatpush1.msra.mxu0 %v2004
    %7592 = vmatprep.subr.mxu0 0.0
    %7593 = vmatpush1.msra.mxu0 0.0
    %7594 = vmatprep.subr.mxu0 0.0
    %7595 = vmatpush1.msra.mxu0 0.0
    %7596 = vmatprep.subr.mxu0 0.0
    %7597 = vmatpush1.msra.mxu0 0.0
    %7598 = vmatprep.subr.mxu0 0.0
    %7599 = vmatpush1.msra.mxu0 0.0
    %7600 = vmatprep.subr.mxu0 0.0
    %7601 = vmatpush1.msra.mxu0 0.0
    %7602 = vmatprep.subr.mxu0 0.0
    %7603 = vmatpush1.msra.mxu0 0.0
    %7604 = vmatprep.subr.mxu0 0.0
    %7605 = vmatpush1.msra.mxu0 0.0
    %7606 = vmatprep.subr.mxu0 0.0
    %7607 = vmatpush1.msra.mxu0 0.0
    %7608 = vmatprep.subr.mxu0 0.0
    %7609 = vmatpush1.msra.mxu0 0.0
    %7610 = vmatprep.subr.mxu0 0.0
    %7611 = vmatpush1.msra.mxu0 0.0
    %7612 = vmatprep.subr.mxu0 0.0
    %7613 = vmatpush1.msra.mxu0 0.0
    %7614 = vmatprep.subr.mxu0 0.0
    %7615 = vmatpush1.msra.mxu0 0.0
    %7616 = vmatprep.subr.mxu0 0.0
    %7617 = vmatpush1.msra.mxu0 0.0
    %7618 = vmatprep.subr.mxu0 0.0
    %7619 = vmatpush1.msra.mxu0 0.0
    %7620 = vmatprep.subr.mxu0 0.0
    %7621 = vmatpush1.msra.mxu0 0.0
    %7622 = vmatprep.subr.mxu0 0.0
    %7623 = vmatpush1.msra.mxu0 0.0
    %7624 = vmatprep.subr.mxu0 0.0
    %7625 = vmatpush1.msra.mxu0 0.0
    %7626 = vmatprep.subr.mxu0 0.0
    %7627 = vmatpush1.msra.mxu0 0.0
    %7628 = vmatprep.subr.mxu0 0.0
    %7629 = vmatpush1.msra.mxu0 0.0
    %7630 = vmatprep.subr.mxu0 0.0
    %7631 = vmatpush1.msra.mxu0 0.0
    %7632 = vmatprep.subr.mxu0 0.0
    %7633 = vmatpush1.msra.mxu0 0.0
    %7634 = vmatprep.subr.mxu0 0.0
    %7635 = vmatpush1.msra.mxu0 0.0
    %7636 = vmatprep.subr.mxu0 0.0
    %7637 = vmatpush1.msra.mxu0 0.0
    %7638 = vmatprep.subr.mxu0 0.0
    %7639 = vmatpush1.msra.mxu0 0.0
    %7640 = vmatprep.mubr.f32.mxu0 0.0
    %7641 = vmatmul.mubr.f32.gmra.mrb[0].mxu0 %v7574
    %v7642 = vpop.f32.mrb[0].mxu0
    %v7643 = vadd.f32 0.0, %v7642
    %v7644 = vpop.f32.mrb[0].mxu0
    %7645 = vdwg.mxu0
    %v7646 = vadd.f32 %v7572, %v7643
    %v7647 = vrot.slane %v6684, 2
    %v7648 = vsel %vm1008, %v7647, 0
    %7650 = vmatprep.subr.mxu0 0.0
    %7651 = vmatpush1.msra.mxu0 %v2080
    %7652 = vmatprep.subr.mxu0 0.0
    %7653 = vmatpush1.msra.mxu0 %v2081
    %7654 = vmatprep.subr.mxu0 0.0
    %7655 = vmatpush1.msra.mxu0 %v2082
    %7656 = vmatprep.subr.mxu0 0.0
    %7657 = vmatpush1.msra.mxu0 %v2083
    %7658 = vmatprep.subr.mxu0 0.0
    %7659 = vmatpush1.msra.mxu0 %v2084
    %7660 = vmatprep.subr.mxu0 0.0
    %7661 = vmatpush1.msra.mxu0 %v2085
    %7662 = vmatprep.subr.mxu0 0.0
    %7663 = vmatpush1.msra.mxu0 %v2086
    %7664 = vmatprep.subr.mxu0 0.0
    %7665 = vmatpush1.msra.mxu0 %v2087
    %7666 = vmatprep.subr.mxu0 0.0
    %7667 = vmatpush1.msra.mxu0 0.0
    %7668 = vmatprep.subr.mxu0 0.0
    %7669 = vmatpush1.msra.mxu0 0.0
    %7670 = vmatprep.subr.mxu0 0.0
    %7671 = vmatpush1.msra.mxu0 0.0
    %7672 = vmatprep.subr.mxu0 0.0
    %7673 = vmatpush1.msra.mxu0 0.0
    %7674 = vmatprep.subr.mxu0 0.0
    %7675 = vmatpush1.msra.mxu0 0.0
    %7676 = vmatprep.subr.mxu0 0.0
    %7677 = vmatpush1.msra.mxu0 0.0
    %7678 = vmatprep.subr.mxu0 0.0
    %7679 = vmatpush1.msra.mxu0 0.0
    %7680 = vmatprep.subr.mxu0 0.0
    %7681 = vmatpush1.msra.mxu0 0.0
    %7682 = vmatprep.subr.mxu0 0.0
    %7683 = vmatpush1.msra.mxu0 0.0
    %7684 = vmatprep.subr.mxu0 0.0
    %7685 = vmatpush1.msra.mxu0 0.0
    %7686 = vmatprep.subr.mxu0 0.0
    %7687 = vmatpush1.msra.mxu0 0.0
    %7688 = vmatprep.subr.mxu0 0.0
    %7689 = vmatpush1.msra.mxu0 0.0
    %7690 = vmatprep.subr.mxu0 0.0
    %7691 = vmatpush1.msra.mxu0 0.0
    %7692 = vmatprep.subr.mxu0 0.0
    %7693 = vmatpush1.msra.mxu0 0.0
    %7694 = vmatprep.subr.mxu0 0.0
    %7695 = vmatpush1.msra.mxu0 0.0
    %7696 = vmatprep.subr.mxu0 0.0
    %7697 = vmatpush1.msra.mxu0 0.0
    %7698 = vmatprep.subr.mxu0 0.0
    %7699 = vmatpush1.msra.mxu0 0.0
    %7700 = vmatprep.subr.mxu0 0.0
    %7701 = vmatpush1.msra.mxu0 0.0
    %7702 = vmatprep.subr.mxu0 0.0
    %7703 = vmatpush1.msra.mxu0 0.0
    %7704 = vmatprep.subr.mxu0 0.0
    %7705 = vmatpush1.msra.mxu0 0.0
    %7706 = vmatprep.subr.mxu0 0.0
    %7707 = vmatpush1.msra.mxu0 0.0
    %7708 = vmatprep.subr.mxu0 0.0
    %7709 = vmatpush1.msra.mxu0 0.0
    %7710 = vmatprep.subr.mxu0 0.0
    %7711 = vmatpush1.msra.mxu0 0.0
    %7712 = vmatprep.subr.mxu0 0.0
    %7713 = vmatpush1.msra.mxu0 0.0
    %7714 = vmatprep.mubr.f32.mxu0 0.0
    %7715 = vmatmul.mubr.f32.gmra.mrb[0].mxu0 %v7648
    %v7716 = vpop.f32.mrb[0].mxu0
    %v7717 = vadd.f32 0.0, %v7716
    %v7718 = vpop.f32.mrb[0].mxu0
    %7719 = vdwg.mxu0
    %v7720 = vadd.f32 %v7646, %v7717
    %v7721 = vrot.slane %v6684, 4
    %v7722 = vsel %vm1008, %v7721, 0
    %7724 = vmatprep.subr.mxu0 0.0
    %7725 = vmatpush1.msra.mxu0 %v2163
    %7726 = vmatprep.subr.mxu0 0.0
    %7727 = vmatpush1.msra.mxu0 %v2164
    %7728 = vmatprep.subr.mxu0 0.0
    %7729 = vmatpush1.msra.mxu0 %v2165
    %7730 = vmatprep.subr.mxu0 0.0
    %7731 = vmatpush1.msra.mxu0 %v2166
    %7732 = vmatprep.subr.mxu0 0.0
    %7733 = vmatpush1.msra.mxu0 %v2167
    %7734 = vmatprep.subr.mxu0 0.0
    %7735 = vmatpush1.msra.mxu0 %v2168
    %7736 = vmatprep.subr.mxu0 0.0
    %7737 = vmatpush1.msra.mxu0 %v2169
    %7738 = vmatprep.subr.mxu0 0.0
    %7739 = vmatpush1.msra.mxu0 %v2170
    %7740 = vmatprep.subr.mxu0 0.0
    %7741 = vmatpush1.msra.mxu0 0.0
    %7742 = vmatprep.subr.mxu0 0.0
    %7743 = vmatpush1.msra.mxu0 0.0
    %7744 = vmatprep.subr.mxu0 0.0
    %7745 = vmatpush1.msra.mxu0 0.0
    %7746 = vmatprep.subr.mxu0 0.0
    %7747 = vmatpush1.msra.mxu0 0.0
    %7748 = vmatprep.subr.mxu0 0.0
    %7749 = vmatpush1.msra.mxu0 0.0
    %7750 = vmatprep.subr.mxu0 0.0
    %7751 = vmatpush1.msra.mxu0 0.0
    %7752 = vmatprep.subr.mxu0 0.0
    %7753 = vmatpush1.msra.mxu0 0.0
    %7754 = vmatprep.subr.mxu0 0.0
    %7755 = vmatpush1.msra.mxu0 0.0
    %7756 = vmatprep.subr.mxu0 0.0
    %7757 = vmatpush1.msra.mxu0 0.0
    %7758 = vmatprep.subr.mxu0 0.0
    %7759 = vmatpush1.msra.mxu0 0.0
    %7760 = vmatprep.subr.mxu0 0.0
    %7761 = vmatpush1.msra.mxu0 0.0
    %7762 = vmatprep.subr.mxu0 0.0
    %7763 = vmatpush1.msra.mxu0 0.0
    %7764 = vmatprep.subr.mxu0 0.0
    %7765 = vmatpush1.msra.mxu0 0.0
    %7766 = vmatprep.subr.mxu0 0.0
    %7767 = vmatpush1.msra.mxu0 0.0
    %7768 = vmatprep.subr.mxu0 0.0
    %7769 = vmatpush1.msra.mxu0 0.0
    %7770 = vmatprep.subr.mxu0 0.0
    %7771 = vmatpush1.msra.mxu0 0.0
    %7772 = vmatprep.subr.mxu0 0.0
    %7773 = vmatpush1.msra.mxu0 0.0
    %7774 = vmatprep.subr.mxu0 0.0
    %7775 = vmatpush1.msra.mxu0 0.0
    %7776 = vmatprep.subr.mxu0 0.0
    %7777 = vmatpush1.msra.mxu0 0.0
    %7778 = vmatprep.subr.mxu0 0.0
    %7779 = vmatpush1.msra.mxu0 0.0
    %7780 = vmatprep.subr.mxu0 0.0
    %7781 = vmatpush1.msra.mxu0 0.0
    %7782 = vmatprep.subr.mxu0 0.0
    %7783 = vmatpush1.msra.mxu0 0.0
    %7784 = vmatprep.subr.mxu0 0.0
    %7785 = vmatpush1.msra.mxu0 0.0
    %7786 = vmatprep.subr.mxu0 0.0
    %7787 = vmatpush1.msra.mxu0 0.0
    %7788 = vmatprep.mubr.f32.mxu0 0.0
    %7789 = vmatmul.mubr.f32.gmra.mrb[0].mxu0 %v7722
    %v7790 = vpop.f32.mrb[0].mxu0
    %v7791 = vadd.f32 0.0, %v7790
    %v7792 = vpop.f32.mrb[0].mxu0
    %7793 = vdwg.mxu0
    %v7794 = vadd.f32 %v7720, %v7791
    %v7795 = vrot.slane %v6684, 6
    %v7796 = vsel %vm1008, %v7795, 0
    %7798 = vmatprep.subr.mxu0 0.0
    %7799 = vmatpush1.msra.mxu0 %v2246
    %7800 = vmatprep.subr.mxu0 0.0
    %7801 = vmatpush1.msra.mxu0 %v2247
    %7802 = vmatprep.subr.mxu0 0.0
    %7803 = vmatpush1.msra.mxu0 %v2248
    %7804 = vmatprep.subr.mxu0 0.0
    %7805 = vmatpush1.msra.mxu0 %v2249
    %7806 = vmatprep.subr.mxu0 0.0
    %7807 = vmatpush1.msra.mxu0 %v2250
    %7808 = vmatprep.subr.mxu0 0.0
    %7809 = vmatpush1.msra.mxu0 %v2251
    %7810 = vmatprep.subr.mxu0 0.0
    %7811 = vmatpush1.msra.mxu0 %v2252
    %7812 = vmatprep.subr.mxu0 0.0
    %7813 = vmatpush1.msra.mxu0 %v2253
    %7814 = vmatprep.subr.mxu0 0.0
    %7815 = vmatpush1.msra.mxu0 0.0
    %7816 = vmatprep.subr.mxu0 0.0
    %7817 = vmatpush1.msra.mxu0 0.0
    %7818 = vmatprep.subr.mxu0 0.0
    %7819 = vmatpush1.msra.mxu0 0.0
    %7820 = vmatprep.subr.mxu0 0.0
    %7821 = vmatpush1.msra.mxu0 0.0
    %7822 = vmatprep.subr.mxu0 0.0
    %7823 = vmatpush1.msra.mxu0 0.0
    %7824 = vmatprep.subr.mxu0 0.0
    %7825 = vmatpush1.msra.mxu0 0.0
    %7826 = vmatprep.subr.mxu0 0.0
    %7827 = vmatpush1.msra.mxu0 0.0
    %7828 = vmatprep.subr.mxu0 0.0
    %7829 = vmatpush1.msra.mxu0 0.0
    %7830 = vmatprep.subr.mxu0 0.0
    %7831 = vmatpush1.msra.mxu0 0.0
    %7832 = vmatprep.subr.mxu0 0.0
    %7833 = vmatpush1.msra.mxu0 0.0
    %7834 = vmatprep.subr.mxu0 0.0
    %7835 = vmatpush1.msra.mxu0 0.0
    %7836 = vmatprep.subr.mxu0 0.0
    %7837 = vmatpush1.msra.mxu0 0.0
    %7838 = vmatprep.subr.mxu0 0.0
    %7839 = vmatpush1.msra.mxu0 0.0
    %7840 = vmatprep.subr.mxu0 0.0
    %7841 = vmatpush1.msra.mxu0 0.0
    %7842 = vmatprep.subr.mxu0 0.0
    %7843 = vmatpush1.msra.mxu0 0.0
    %7844 = vmatprep.subr.mxu0 0.0
    %7845 = vmatpush1.msra.mxu0 0.0
    %7846 = vmatprep.subr.mxu0 0.0
    %7847 = vmatpush1.msra.mxu0 0.0
    %7848 = vmatprep.subr.mxu0 0.0
    %7849 = vmatpush1.msra.mxu0 0.0
    %7850 = vmatprep.subr.mxu0 0.0
    %7851 = vmatpush1.msra.mxu0 0.0
    %7852 = vmatprep.subr.mxu0 0.0
    %7853 = vmatpush1.msra.mxu0 0.0
    %7854 = vmatprep.subr.mxu0 0.0
    %7855 = vmatpush1.msra.mxu0 0.0
    %7856 = vmatprep.subr.mxu0 0.0
    %7857 = vmatpush1.msra.mxu0 0.0
    %7858 = vmatprep.subr.mxu0 0.0
    %7859 = vmatpush1.msra.mxu0 0.0
    %7860 = vmatprep.subr.mxu0 0.0
    %7861 = vmatpush1.msra.mxu0 0.0
    %7862 = vmatprep.mubr.f32.mxu0 0.0
    %7863 = vmatmul.mubr.f32.gmra.mrb[0].mxu0 %v7796
    %v7864 = vpop.f32.mrb[0].mxu0
    %v7865 = vadd.f32 0.0, %v7864
    %v7866 = vpop.f32.mrb[0].mxu0
    %7867 = vdwg.mxu0
    %v7868 = vadd.f32 %v7794, %v7865
    %v7869 = vsub.f32 1.0, %v6028
    %v7870 = vmul.f32 %v7869, 0.2
    %v7871 = vmul.f32 %v6025, %v7870
    %v7872 = vadd.f32 %v7871, %v7868
    %vm7873 = vcmp.gt.f32.partialorder %v7872, 0.5
    %v7874 = vsel %vm7873, 1, 0
    %v7875 = vcvt.s32.f32 %v7874
    %v7877 = vsel %vm794, %v7875, 0
    %7879 = vmatprep.subr.mxu0 0.0
    %7880 = vmatpush1.msra.mxu0 %v232
    %7881 = vmatprep.subr.mxu0 0.0
    %7882 = vmatpush1.msra.mxu0 %v233
    %7883 = vmatprep.subr.mxu0 0.0
    %7884 = vmatpush1.msra.mxu0 %v234
    %7885 = vmatprep.subr.mxu0 0.0
    %7886 = vmatpush1.msra.mxu0 %v235
    %7887 = vmatprep.subr.mxu0 0.0
    %7888 = vmatpush1.msra.mxu0 0.0
    %7889 = vmatprep.subr.mxu0 0.0
    %7890 = vmatpush1.msra.mxu0 0.0
    %7891 = vmatprep.subr.mxu0 0.0
    %7892 = vmatpush1.msra.mxu0 0.0
    %7893 = vmatprep.subr.mxu0 0.0
    %7894 = vmatpush1.msra.mxu0 0.0
    %7895 = vmatprep.subr.mxu0 0.0
    %7896 = vmatpush1.msra.mxu0 0.0
    %7897 = vmatprep.subr.mxu0 0.0
    %7898 = vmatpush1.msra.mxu0 0.0
    %7899 = vmatprep.subr.mxu0 0.0
    %7900 = vmatpush1.msra.mxu0 0.0
    %7901 = vmatprep.subr.mxu0 0.0
    %7902 = vmatpush1.msra.mxu0 0.0
    %7903 = vmatprep.subr.mxu0 0.0
    %7904 = vmatpush1.msra.mxu0 0.0
    %7905 = vmatprep.subr.mxu0 0.0
    %7906 = vmatpush1.msra.mxu0 0.0
    %7907 = vmatprep.subr.mxu0 0.0
    %7908 = vmatpush1.msra.mxu0 0.0
    %7909 = vmatprep.subr.mxu0 0.0
    %7910 = vmatpush1.msra.mxu0 0.0
    %7911 = vmatprep.subr.mxu0 0.0
    %7912 = vmatpush1.msra.mxu0 0.0
    %7913 = vmatprep.subr.mxu0 0.0
    %7914 = vmatpush1.msra.mxu0 0.0
    %7915 = vmatprep.subr.mxu0 0.0
    %7916 = vmatpush1.msra.mxu0 0.0
    %7917 = vmatprep.subr.mxu0 0.0
    %7918 = vmatpush1.msra.mxu0 0.0
    %7919 = vmatprep.subr.mxu0 0.0
    %7920 = vmatpush1.msra.mxu0 0.0
    %7921 = vmatprep.subr.mxu0 0.0
    %7922 = vmatpush1.msra.mxu0 0.0
    %7923 = vmatprep.subr.mxu0 0.0
    %7924 = vmatpush1.msra.mxu0 0.0
    %7925 = vmatprep.subr.mxu0 0.0
    %7926 = vmatpush1.msra.mxu0 0.0
    %7927 = vmatprep.subr.mxu0 0.0
    %7928 = vmatpush1.msra.mxu0 0.0
    %7929 = vmatprep.subr.mxu0 0.0
    %7930 = vmatpush1.msra.mxu0 0.0
    %7931 = vmatprep.subr.mxu0 0.0
    %7932 = vmatpush1.msra.mxu0 0.0
    %7933 = vmatprep.subr.mxu0 0.0
    %7934 = vmatpush1.msra.mxu0 0.0
    %7935 = vmatprep.subr.mxu0 0.0
    %7936 = vmatpush1.msra.mxu0 0.0
    %7937 = vmatprep.subr.mxu0 0.0
    %7938 = vmatpush1.msra.mxu0 0.0
    %7939 = vmatprep.subr.mxu0 0.0
    %7940 = vmatpush1.msra.mxu0 0.0
    %7941 = vmatprep.subr.mxu0 0.0
    %7942 = vmatpush1.msra.mxu0 0.0
    %7943 = vmatprep.mubr.f32.mxu0 0.0
    %7944 = vmatmul.mubr.f32.gmra.mrb[0].mxu0 %v7877
    %v7945 = vpop.f32.mrb[0].mxu0
    %v7946 = vadd.f32 %v2336, %v7945
    %v7947 = vpop.f32.mrb[0].mxu0
    %7948 = vdwg.mxu0
    %v7949 = vsub.f32 1.0, %v6108
    %v7950 = vmul.f32 %v7949, 0.2
    %v7951 = vmul.f32 %v6105, %v7950
    %v7952 = vadd.f32 %v7951, %v7946
    %vm7953 = vcmp.gt.f32.partialorder %v7952, 0.5
    %v7954 = vsel %vm7953, 1, 0
    %v7955 = vcvt.s32.f32 %v7954
    %v7956 = vadd.f32 %v6109, %v7955
    %v7957 = vmul.f32 %v7956, 0.25
    %vm7958 = vcmask 66560
    %7959 = vst.msk [vmem:[#allocation2] sm:$0x3] %vm7958, %v7957
    // Predicated region
    $region46: #{scnn_forward.1} parent=1 // pred_check
      _
    $region47: #{scnn_forward.1} parent=1 // pred_check_branch
      %7961 = sbr.rel (0) target = $region49
    $region48: #{scnn_forward.1} parent=1 // pred_region
      %s7963 = ssub.s32 32, 32
      %7964 = vsyncadd [#allocation3], %s7963
      %s7966 = sshll.u32 [#allocation2], 4
      %s7967 = int_to_ptr.vmem [resolvable:$true] %s7966
      %7969 = dma.vmem_to_hbm [thread:$0]  %s7967, 32, %s11, [#allocation3]
    $region49: #{scnn_forward.1} parent=1 // pred_fallthru
      _
    // Predicated region
    $region50: #{scnn_forward.1} parent=1 // pred_check
      _
    $region51: #{scnn_forward.1} parent=1 // pred_check_branch
      %7971 = sbr.rel (0) target = $region53
    $region52: #{scnn_forward.1} parent=1 // pred_region
      %7972 = dma.done [#allocation3], 32
    $region53: #{scnn_forward.1} parent=1 // pred_fallthru
      _
    %7973 = vsyncpa [#allocation3], 1

</llo_original>
